<compile_context>
chip_gen: v6e
topology: v6e:2x2x1
jax: 0.10.0
libtpu: 0.0.40
codegen_flags: <defaults>
</compile_context>

<pallas_src>
import numpy as np
import jax
import jax.numpy as jnp
from jax.experimental import pallas as pl
from jax.experimental.pallas import tpu as pltpu

EPS = 1e-5


# ----------------------------------------------------------------------------
# In-kernel helpers
# ----------------------------------------------------------------------------
def _dot(a, b):
    return jnp.dot(a, b, preferred_element_type=jnp.float32)


def _sigmoid(x):
    # exp and the approximate reciprocal both run on the EUP, keeping the whole
    # sigmoid off the VALU slots.
    return pl.reciprocal(1.0 + jnp.exp(-x), approx=True)


def _bn_affine(s, ss, count, gamma, beta):
    """Training-mode BatchNorm as a per-channel affine (scale, shift).

    One-pass statistics from sum `s` and sum-of-squares `ss` over `count`
    elements per channel (biased variance, eps=1e-5).  The conv bias preceding
    BN is dropped by the caller -- it cancels exactly in the mean subtraction.
    """
    inv = 1.0 / float(count)
    mean = s * inv
    var = jnp.maximum(ss * inv - mean * mean, 0.0)
    scale = gamma * jax.lax.rsqrt(var + EPS)
    return scale, beta - mean * scale


def _colorization_kernel(
        x0_ref,                               # (P1, 256)   flattened NHWC input
        g1_ref, w1_ref, gm1_ref, bt1_ref,     # (9,P1,P1) (2304,128) (1,128) (1,128)
        w2_ref, gm2_ref, bt2_ref, s2_ref,     # (128,256) (1,64) (1,64) (4,P3,P1)
        g3_ref, w3_ref, gm3_ref, bt3_ref,     # (9,P3,P3) (64,576) (1,64) (1,64)
        w4_ref, gm4_ref, bt4_ref,             # (64,128)  (32,1) (32,1)
        s4t_ref, w5t_ref, b5_ref,             # (4,P3,P5) (8,32) (8,1)
        o_ref):                               # (8, P5)   rows = (ky, kx, cout)
    x0 = x0_ref[...]

    # ---- layer 1: ConvTranspose2d(256,128,3,1,1) + BN + sigmoid --------------
    # im2col via constant 0/1 gather matmuls, then ONE long-K (9*256) matmul.
    n_taps3 = g1_ref.shape[0]
    p1 = jnp.concatenate([_dot(g1_ref[k], x0) for k in range(n_taps3)], axis=-1)
    z1 = _dot(p1, w1_ref[...])                                    # (P1, 128)
    s = jnp.sum(z1, axis=0, keepdims=True)
    ss = jnp.sum(z1 * z1, axis=0, keepdims=True)
    a, b = _bn_affine(s, ss, z1.shape[0], gm1_ref[...], bt1_ref[...])
    x1 = _sigmoid(z1 * a + b)

    # ---- layer 2: ConvTranspose2d(128,64,2,2) + BN + sigmoid -----------------
    # ONE wide-N matmul over the 4 taps; BN stats folded across the tap groups.
    c2 = gm2_ref.shape[-1]
    z2 = _dot(x1, w2_ref[...])                                    # (P1, 4*64)
    s = jnp.sum(z2, axis=0, keepdims=True)
    ss = jnp.sum(z2 * z2, axis=0, keepdims=True)
    s = s[:, 0:c2] + s[:, c2:2 * c2] + s[:, 2 * c2:3 * c2] + s[:, 3 * c2:4 * c2]
    ss = ss[:, 0:c2] + ss[:, c2:2 * c2] + ss[:, 2 * c2:3 * c2] + ss[:, 3 * c2:4 * c2]
    a, b = _bn_affine(s, ss, 4 * z2.shape[0], gm2_ref[...], bt2_ref[...])
    # Interleave the 4 taps onto the 2x-finer grid with constant scatter matmuls.
    y2 = _dot(s2_ref[0], _sigmoid(z2[:, 0:c2] * a + b))
    for k in range(1, 4):
        y2 = y2 + _dot(s2_ref[k], _sigmoid(z2[:, k * c2:(k + 1) * c2] * a + b))

    # ---- layer 3: ConvTranspose2d(64,64,3,1,1) + BN + sigmoid ----------------
    # ONE wide-N matmul over all 9 taps' weights (64-channel pieces are not lane
    # aligned, so gather-after-matmul instead of a lane concat of patches).
    c3 = gm3_ref.shape[-1]
    zw = _dot(y2, w3_ref[...])                                    # (P3, 9*64)
    z3 = _dot(g3_ref[0], zw[:, 0:c3])
    for j in range(1, n_taps3):
        z3 = z3 + _dot(g3_ref[j], zw[:, j * c3:(j + 1) * c3])     # (P3, 64)
    s = jnp.sum(z3, axis=0, keepdims=True)
    ss = jnp.sum(z3 * z3, axis=0, keepdims=True)
    a, b = _bn_affine(s, ss, z3.shape[0], gm3_ref[...], bt3_ref[...])
    x3 = _sigmoid(z3 * a + b)

    # ---- layer 4: ConvTranspose2d(64,32,2,2) + BN + sigmoid ------------------
    # Work in the transposed domain from here on so layer 5's output block is
    # lane-dense.  z4t rows = (tap, channel), cols = coarse pixels.
    c4 = gm4_ref.shape[0]
    z4t = _dot(x3, w4_ref[...]).T                                 # (4*32, P3)
    s = jnp.sum(z4t, axis=1, keepdims=True)                       # (4*32, 1)
    ss = jnp.sum(z4t * z4t, axis=1, keepdims=True)
    s = s[0:c4] + s[c4:2 * c4] + s[2 * c4:3 * c4] + s[3 * c4:4 * c4]
    ss = ss[0:c4] + ss[c4:2 * c4] + ss[2 * c4:3 * c4] + ss[3 * c4:4 * c4]
    a, b = _bn_affine(s, ss, 4 * z4t.shape[1], gm4_ref[...], bt4_ref[...])

    # ---- layer 5: ConvTranspose2d(32,2,2,2) + bias (no BN / sigmoid) ---------
    # y4t = layer-4 activations as (channels, fine pixels); out = W5^T @ y4t + b.
    y4t = _dot(_sigmoid(z4t[0:c4, :] * a + b), s4t_ref[0])
    for k in range(1, 4):
        y4t = y4t + _dot(_sigmoid(z4t[k * c4:(k + 1) * c4, :] * a + b), s4t_ref[k])
    o_ref[...] = (_dot(w5t_ref[...], y4t) + b5_ref[...]).astype(o_ref.dtype)


# ----------------------------------------------------------------------------
# Constant gather / scatter operators (numpy, built once at trace time)
# ----------------------------------------------------------------------------
def _gather3x3_const(N, H, W):
    """G[k, p_out, p_in] in {0,1}: 3x3 'same' (pad 1) neighbourhood gather."""
    P = N * H * W
    g = np.zeros((9, P, P), np.float32)
    for n in range(N):
        for y in range(H):
            for x in range(W):
                po = (n * H + y) * W + x
                for ky in range(3):
                    for kx in range(3):
                        yy, xx = y + ky - 1, x + kx - 1
                        if 0 <= yy < H and 0 <= xx < W:
                            g[3 * ky + kx, po, (n * H + yy) * W + xx] = 1.0
    return g


def _scatter2x2_const(N, H, W):
    """S[k, r_fine, p_coarse] in {0,1}: tap k=(2ky+kx) of coarse pixel (y,x) goes
    to fine pixel (2y+ky, 2x+kx) of the 2x-upsampled grid."""
    s = np.zeros((4, N * 4 * H * W, N * H * W), np.float32)
    for n in range(N):
        for y in range(H):
            for x in range(W):
                p = (n * H + y) * W + x
                for ky in range(2):
                    for kx in range(2):
                        r = (n * 2 * H + 2 * y + ky) * 2 * W + 2 * x + kx
                        s[2 * ky + kx, r, p] = 1.0
    return s


# ----------------------------------------------------------------------------
# Weight packing (torch ConvTranspose2d layout (Ci, Co, kh, kw) -> kernel forms)
# ----------------------------------------------------------------------------
def _corr_stack(w):   # 3x3: correlation weights, long-K form (9*Ci, Co)
    ci, co = w.shape[0], w.shape[1]
    return jnp.transpose(w[:, :, ::-1, ::-1], (2, 3, 0, 1)).reshape(9 * ci, co)


def _corr_wide(w):    # 3x3: correlation weights, wide-N form (Ci, 9*Co)
    ci, co = w.shape[0], w.shape[1]
    return jnp.transpose(w[:, :, ::-1, ::-1], (0, 2, 3, 1)).reshape(ci, 9 * co)


def _up_wide(w):      # 2x2/stride-2: tap-concatenated (Ci, 4*Co)
    ci, co = w.shape[0], w.shape[1]
    return jnp.transpose(w, (0, 2, 3, 1)).reshape(ci, 4 * co)


# ----------------------------------------------------------------------------
# Full fused forward
# ----------------------------------------------------------------------------
def colorization_forward(x_nchw, p):
    N, cin, H, W = x_nchw.shape
    x0 = jnp.transpose(x_nchw, (0, 2, 3, 1)).reshape(N * H * W, cin)
    row = lambda v: v.reshape(1, -1)
    col = lambda v: v.reshape(-1, 1)

    inputs = (
        x0,
        jnp.asarray(_gather3x3_const(N, H, W)),                         # G1
        _corr_stack(p['w1']), row(p['g1']), row(p['bt1']),
        _up_wide(p['w2']), row(p['g2']), row(p['bt2']),
        jnp.asarray(_scatter2x2_const(N, H, W)),                        # S2
        jnp.asarray(_gather3x3_const(N, 2 * H, 2 * W)),                 # G3
        _corr_wide(p['w3']), row(p['g3']), row(p['bt3']),
        _up_wide(p['w4']), col(p['g4']), col(p['bt4']),
        jnp.asarray(_scatter2x2_const(N, 2 * H, 2 * W).transpose(0, 2, 1)),  # S4^T
        jnp.transpose(p['w5'], (2, 3, 1, 0)).reshape(4 * p['w5'].shape[1],
                                                     p['w5'].shape[0]),      # W5^T
        jnp.tile(p['b5'], 4).reshape(-1, 1),                            # (8, 1)
    )

    P5 = N * (4 * H) * (4 * W)
    vmem = pl.BlockSpec(memory_space=pltpu.MemorySpace.VMEM)
    out_t = pl.pallas_call(
        _colorization_kernel,
        out_shape=jax.ShapeDtypeStruct((8, P5), jnp.float32),
        in_specs=[vmem] * len(inputs),
        out_specs=vmem,
    )(*inputs)

    # (8, P5): rows = (ky, kx, cout), cols = (n, y, x) on the 4Hx4W grid.
    # One tiny (16 KiB) rearrangement back to NCHW outside the kernel.
    out = out_t.reshape(2, 2, 2, N, 4 * H, 4 * W).transpose(3, 2, 4, 0, 5, 1)
    return out.reshape(N, 2, 8 * H, 8 * W)


# ----------------------------------------------------------------------------
# Deterministic PyTorch-shaped parameters
# ----------------------------------------------------------------------------
def init_params(key):
    def convT(k, cin, cout, ksz):
        bound = 1.0 / float(np.sqrt(cout * ksz * ksz))
        kw, kb = jax.random.split(k)
        w = jax.random.uniform(kw, (cin, cout, ksz, ksz), jnp.float32, -bound, bound)
        b = jax.random.uniform(kb, (cout,), jnp.float32, -bound, bound)
        return w, b

    keys = jax.random.split(key, 9)
    p = {}
    p['w1'], p['b1'] = convT(keys[0], 256, 128, 3)
    p['w2'], p['b2'] = convT(keys[1], 128, 64, 2)
    p['w3'], p['b3'] = convT(keys[2], 64, 64, 3)
    p['w4'], p['b4'] = convT(keys[3], 64, 32, 2)
    p['w5'], p['b5'] = convT(keys[4], 32, 2, 2)
    for i, c in zip(range(1, 5), (128, 64, 64, 32)):
        kg, kb = jax.random.split(keys[4 + i])
        p[f'g{i}'] = 1.0 + 0.1 * jax.random.normal(kg, (c,), jnp.float32)
        p[f'bt{i}'] = 0.1 * jax.random.normal(kb, (c,), jnp.float32)
    return p


# ----------------------------------------------------------------------------
# Plain-JAX reference (exact sigmoid, two-pass BN, bias before BN)
# ----------------------------------------------------------------------------
def _sigmoid_ref(x):
    return 1.0 / (1.0 + jnp.exp(-x))


def _bn_sig_ref(y, g, b):
    mean = y.mean(axis=(0, 1, 2), keepdims=True)
    var = ((y - mean) ** 2).mean(axis=(0, 1, 2), keepdims=True)
    return _sigmoid_ref((y - mean) * jax.lax.rsqrt(var + EPS) * g + b)


def _conv3x3_ref(x, w_torch, b):
    w_corr = jnp.transpose(w_torch[:, :, ::-1, ::-1], (2, 3, 0, 1))
    y = jax.lax.conv_general_dilated(
        x, w_corr, (1, 1), 'SAME', dimension_numbers=('NHWC', 'HWIO', 'NHWC'))
    return y + b


def _up2x2_ref(x, w_torch, b):
    N, H, W, _ = x.shape
    w_taps = jnp.transpose(w_torch, (2, 3, 0, 1))
    cout = w_taps.shape[-1]
    y = jnp.einsum('nhwi,abio->nhawbo', x, w_taps) + b
    return y.reshape(N, 2 * H, 2 * W, cout)


def colorization_ref(x_nchw, p):
    h = jnp.transpose(x_nchw, (0, 2, 3, 1))
    h = _bn_sig_ref(_conv3x3_ref(h, p['w1'], p['b1']), p['g1'], p['bt1'])
    h = _bn_sig_ref(_up2x2_ref(h, p['w2'], p['b2']), p['g2'], p['bt2'])
    h = _bn_sig_ref(_conv3x3_ref(h, p['w3'], p['b3']), p['g3'], p['bt3'])
    h = _bn_sig_ref(_up2x2_ref(h, p['w4'], p['b4']), p['g4'], p['bt4'])
    h = _up2x2_ref(h, p['w5'], p['b5'])
    return jnp.transpose(h, (0, 3, 1, 2))


# TODO(synk): BatchNorm running-statistics (momentum buffer) updates are a
# training-only side effect and do not affect the returned tensor, so they are
# not modeled.

if __name__ == "__main__":
    key = jax.random.PRNGKey(0)
    kp, kx = jax.random.split(key)
    params = init_params(kp)

    # NCHW input as the PyTorch module expects: (N=2, C=256, H=4, W=4).
    x = jax.random.normal(kx, (2, 256, 4, 4), jnp.float32)

    fwd = jax.jit(colorization_forward)
    out = jax.block_until_ready(fwd(x, params))
    ref = jax.block_until_ready(colorization_ref(x, params))

    assert out.shape == (2, 2, 32, 32), out.shape
    assert bool(jnp.all(jnp.isfinite(out)))
    max_err = float(jnp.max(jnp.abs(out - ref)))
    # Tolerance accommodates the EUP approximate-reciprocal sigmoid; any
    # structural / layout error would show up as an O(0.1 .. 1) discrepancy.
    assert max_err < 2e-2, f"mismatch vs reference: {max_err}"
    print("KERNEL_OK")
</pallas_src>

<mosaic_0001>
module attributes {stable_mosaic.version = 11 : i64} {
  func.func @_colorization_kernel(%arg0: memref<32x256xf32, #tpu.memory_space<vmem>>, %arg1: memref<9x32x32xf32, #tpu.memory_space<vmem>>, %arg2: memref<2304x128xf32, #tpu.memory_space<vmem>>, %arg3: memref<1x128xf32, #tpu.memory_space<vmem>>, %arg4: memref<1x128xf32, #tpu.memory_space<vmem>>, %arg5: memref<128x256xf32, #tpu.memory_space<vmem>>, %arg6: memref<1x64xf32, #tpu.memory_space<vmem>>, %arg7: memref<1x64xf32, #tpu.memory_space<vmem>>, %arg8: memref<4x128x32xf32, #tpu.memory_space<vmem>>, %arg9: memref<9x128x128xf32, #tpu.memory_space<vmem>>, %arg10: memref<64x576xf32, #tpu.memory_space<vmem>>, %arg11: memref<1x64xf32, #tpu.memory_space<vmem>>, %arg12: memref<1x64xf32, #tpu.memory_space<vmem>>, %arg13: memref<64x128xf32, #tpu.memory_space<vmem>>, %arg14: memref<32x1xf32, #tpu.memory_space<vmem>>, %arg15: memref<32x1xf32, #tpu.memory_space<vmem>>, %arg16: memref<4x128x512xf32, #tpu.memory_space<vmem>>, %arg17: memref<8x32xf32, #tpu.memory_space<vmem>>, %arg18: memref<8x1xf32, #tpu.memory_space<vmem>>, %arg19: memref<8x512xf32, #tpu.memory_space<vmem>>) attributes {dimension_semantics = [], scalar_prefetch = 0 : i64, scratch_operands = 0 : i64, tpu.core_type = #tpu.core_type<tc>} {
    %c0 = arith.constant 0 : index
    %c0_0 = arith.constant 0 : index
    %0 = vector.load %arg0[%c0, %c0_0] : memref<32x256xf32, #tpu.memory_space<vmem>>, vector<32x256xf32>
    %c0_1 = arith.constant 0 : index
    %c0_2 = arith.constant 0 : index
    %c0_3 = arith.constant 0 : index
    %1 = vector.load %arg1[%c0_1, %c0_2, %c0_3] : memref<9x32x32xf32, #tpu.memory_space<vmem>>, vector<1x32x32xf32>
    %2 = vector.shape_cast %1 : vector<1x32x32xf32> to vector<32x32xf32>
    %cst = arith.constant dense<0.000000e+00> : vector<32x256xf32>
    %3 = tpu.matmul %2, %0, %cst {dimension_numbers = #tpu.dot_dimension_numbers<[1], [0], [0], [1], [0, 0, 1, 1], [], []>} : vector<32x32xf32>, vector<32x256xf32>, vector<32x256xf32> -> vector<32x256xf32>
    %c1 = arith.constant 1 : index
    %c0_4 = arith.constant 0 : index
    %c0_5 = arith.constant 0 : index
    %4 = vector.load %arg1[%c1, %c0_4, %c0_5] : memref<9x32x32xf32, #tpu.memory_space<vmem>>, vector<1x32x32xf32>
    %5 = vector.shape_cast %4 : vector<1x32x32xf32> to vector<32x32xf32>
    %cst_6 = arith.constant dense<0.000000e+00> : vector<32x256xf32>
    %6 = tpu.matmul %5, %0, %cst_6 {dimension_numbers = #tpu.dot_dimension_numbers<[1], [0], [0], [1], [0, 0, 1, 1], [], []>} : vector<32x32xf32>, vector<32x256xf32>, vector<32x256xf32> -> vector<32x256xf32>
    %c2 = arith.constant 2 : index
    %c0_7 = arith.constant 0 : index
    %c0_8 = arith.constant 0 : index
    %7 = vector.load %arg1[%c2, %c0_7, %c0_8] : memref<9x32x32xf32, #tpu.memory_space<vmem>>, vector<1x32x32xf32>
    %8 = vector.shape_cast %7 : vector<1x32x32xf32> to vector<32x32xf32>
    %cst_9 = arith.constant dense<0.000000e+00> : vector<32x256xf32>
    %9 = tpu.matmul %8, %0, %cst_9 {dimension_numbers = #tpu.dot_dimension_numbers<[1], [0], [0], [1], [0, 0, 1, 1], [], []>} : vector<32x32xf32>, vector<32x256xf32>, vector<32x256xf32> -> vector<32x256xf32>
    %c3 = arith.constant 3 : index
    %c0_10 = arith.constant 0 : index
    %c0_11 = arith.constant 0 : index
    %10 = vector.load %arg1[%c3, %c0_10, %c0_11] : memref<9x32x32xf32, #tpu.memory_space<vmem>>, vector<1x32x32xf32>
    %11 = vector.shape_cast %10 : vector<1x32x32xf32> to vector<32x32xf32>
    %cst_12 = arith.constant dense<0.000000e+00> : vector<32x256xf32>
    %12 = tpu.matmul %11, %0, %cst_12 {dimension_numbers = #tpu.dot_dimension_numbers<[1], [0], [0], [1], [0, 0, 1, 1], [], []>} : vector<32x32xf32>, vector<32x256xf32>, vector<32x256xf32> -> vector<32x256xf32>
    %c4 = arith.constant 4 : index
    %c0_13 = arith.constant 0 : index
    %c0_14 = arith.constant 0 : index
    %13 = vector.load %arg1[%c4, %c0_13, %c0_14] : memref<9x32x32xf32, #tpu.memory_space<vmem>>, vector<1x32x32xf32>
    %14 = vector.shape_cast %13 : vector<1x32x32xf32> to vector<32x32xf32>
    %cst_15 = arith.constant dense<0.000000e+00> : vector<32x256xf32>
    %15 = tpu.matmul %14, %0, %cst_15 {dimension_numbers = #tpu.dot_dimension_numbers<[1], [0], [0], [1], [0, 0, 1, 1], [], []>} : vector<32x32xf32>, vector<32x256xf32>, vector<32x256xf32> -> vector<32x256xf32>
    %c5 = arith.constant 5 : index
    %c0_16 = arith.constant 0 : index
    %c0_17 = arith.constant 0 : index
    %16 = vector.load %arg1[%c5, %c0_16, %c0_17] : memref<9x32x32xf32, #tpu.memory_space<vmem>>, vector<1x32x32xf32>
    %17 = vector.shape_cast %16 : vector<1x32x32xf32> to vector<32x32xf32>
    %cst_18 = arith.constant dense<0.000000e+00> : vector<32x256xf32>
    %18 = tpu.matmul %17, %0, %cst_18 {dimension_numbers = #tpu.dot_dimension_numbers<[1], [0], [0], [1], [0, 0, 1, 1], [], []>} : vector<32x32xf32>, vector<32x256xf32>, vector<32x256xf32> -> vector<32x256xf32>
    %c6 = arith.constant 6 : index
    %c0_19 = arith.constant 0 : index
    %c0_20 = arith.constant 0 : index
    %19 = vector.load %arg1[%c6, %c0_19, %c0_20] : memref<9x32x32xf32, #tpu.memory_space<vmem>>, vector<1x32x32xf32>
    %20 = vector.shape_cast %19 : vector<1x32x32xf32> to vector<32x32xf32>
    %cst_21 = arith.constant dense<0.000000e+00> : vector<32x256xf32>
    %21 = tpu.matmul %20, %0, %cst_21 {dimension_numbers = #tpu.dot_dimension_numbers<[1], [0], [0], [1], [0, 0, 1, 1], [], []>} : vector<32x32xf32>, vector<32x256xf32>, vector<32x256xf32> -> vector<32x256xf32>
    %c7 = arith.constant 7 : index
    %c0_22 = arith.constant 0 : index
    %c0_23 = arith.constant 0 : index
    %22 = vector.load %arg1[%c7, %c0_22, %c0_23] : memref<9x32x32xf32, #tpu.memory_space<vmem>>, vector<1x32x32xf32>
    %23 = vector.shape_cast %22 : vector<1x32x32xf32> to vector<32x32xf32>
    %cst_24 = arith.constant dense<0.000000e+00> : vector<32x256xf32>
    %24 = tpu.matmul %23, %0, %cst_24 {dimension_numbers = #tpu.dot_dimension_numbers<[1], [0], [0], [1], [0, 0, 1, 1], [], []>} : vector<32x32xf32>, vector<32x256xf32>, vector<32x256xf32> -> vector<32x256xf32>
    %c8 = arith.constant 8 : index
    %c0_25 = arith.constant 0 : index
    %c0_26 = arith.constant 0 : index
    %25 = vector.load %arg1[%c8, %c0_25, %c0_26] : memref<9x32x32xf32, #tpu.memory_space<vmem>>, vector<1x32x32xf32>
    %26 = vector.shape_cast %25 : vector<1x32x32xf32> to vector<32x32xf32>
    %cst_27 = arith.constant dense<0.000000e+00> : vector<32x256xf32>
    %27 = tpu.matmul %26, %0, %cst_27 {dimension_numbers = #tpu.dot_dimension_numbers<[1], [0], [0], [1], [0, 0, 1, 1], [], []>} : vector<32x32xf32>, vector<32x256xf32>, vector<32x256xf32> -> vector<32x256xf32>
    %28 = tpu.concatenate %3, %6, %9, %12, %15, %18, %21, %24, %27 in 1 : vector<32x256xf32>, vector<32x256xf32>, vector<32x256xf32>, vector<32x256xf32>, vector<32x256xf32>, vector<32x256xf32>, vector<32x256xf32>, vector<32x256xf32>, vector<32x256xf32> -> vector<32x2304xf32>
    %c0_28 = arith.constant 0 : index
    %c0_29 = arith.constant 0 : index
    %29 = vector.load %arg2[%c0_28, %c0_29] : memref<2304x128xf32, #tpu.memory_space<vmem>>, vector<2304x128xf32>
    %cst_30 = arith.constant dense<0.000000e+00> : vector<32x128xf32>
    %30 = tpu.matmul %28, %29, %cst_30 {dimension_numbers = #tpu.dot_dimension_numbers<[1], [0], [0], [1], [0, 0, 1, 1], [], []>} : vector<32x2304xf32>, vector<2304x128xf32>, vector<32x128xf32> -> vector<32x128xf32>
    %cst_31 = arith.constant dense<0.000000e+00> : vector<128xf32>
    %31 = vector.multi_reduction <add>, %30, %cst_31 [0] : vector<32x128xf32> to vector<128xf32>
    %32 = vector.shape_cast %31 : vector<128xf32> to vector<1x128xf32>
    %33 = arith.mulf %30, %30 : vector<32x128xf32>
    %cst_32 = arith.constant dense<0.000000e+00> : vector<128xf32>
    %34 = vector.multi_reduction <add>, %33, %cst_32 [0] : vector<32x128xf32> to vector<128xf32>
    %35 = vector.shape_cast %34 : vector<128xf32> to vector<1x128xf32>
    %c0_33 = arith.constant 0 : index
    %c0_34 = arith.constant 0 : index
    %36 = vector.load %arg3[%c0_33, %c0_34] : memref<1x128xf32, #tpu.memory_space<vmem>>, vector<1x128xf32>
    %c0_35 = arith.constant 0 : index
    %c0_36 = arith.constant 0 : index
    %37 = vector.load %arg4[%c0_35, %c0_36] : memref<1x128xf32, #tpu.memory_space<vmem>>, vector<1x128xf32>
    %cst_37 = arith.constant 3.125000e-02 : f32
    %38 = vector.broadcast %cst_37 : f32 to vector<1x128xf32>
    %39 = arith.mulf %32, %38 : vector<1x128xf32>
    %cst_38 = arith.constant 3.125000e-02 : f32
    %40 = vector.broadcast %cst_38 : f32 to vector<1x128xf32>
    %41 = arith.mulf %35, %40 : vector<1x128xf32>
    %42 = arith.mulf %39, %39 : vector<1x128xf32>
    %43 = arith.subf %41, %42 : vector<1x128xf32>
    %cst_39 = arith.constant 0.000000e+00 : f32
    %44 = vector.broadcast %cst_39 : f32 to vector<1x128xf32>
    %45 = arith.maximumf %43, %44 : vector<1x128xf32>
    %cst_40 = arith.constant 9.99999974E-6 : f32
    %46 = vector.broadcast %cst_40 : f32 to vector<1x128xf32>
    %47 = arith.addf %45, %46 : vector<1x128xf32>
    %48 = math.rsqrt %47 : vector<1x128xf32>
    %49 = arith.mulf %36, %48 : vector<1x128xf32>
    %50 = arith.mulf %39, %49 : vector<1x128xf32>
    %51 = arith.subf %37, %50 : vector<1x128xf32>
    %52 = vector.broadcast %49 : vector<1x128xf32> to vector<32x128xf32>
    %53 = arith.mulf %30, %52 : vector<32x128xf32>
    %54 = vector.broadcast %51 : vector<1x128xf32> to vector<32x128xf32>
    %55 = arith.addf %53, %54 : vector<32x128xf32>
    %cst_41 = arith.constant 0.000000e+00 : f32
    %56 = vector.broadcast %cst_41 : f32 to vector<32x128xf32>
    %57 = arith.subf %56, %55 : vector<32x128xf32>
    %58 = math.exp %57 : vector<32x128xf32>
    %cst_42 = arith.constant 1.000000e+00 : f32
    %59 = vector.broadcast %cst_42 : f32 to vector<32x128xf32>
    %60 = arith.addf %59, %58 : vector<32x128xf32>
    %61 = tpu.reciprocal %60 {approx = true} : vector<32x128xf32> -> vector<32x128xf32>
    %c0_43 = arith.constant 0 : index
    %c0_44 = arith.constant 0 : index
    %62 = vector.load %arg5[%c0_43, %c0_44] : memref<128x256xf32, #tpu.memory_space<vmem>>, vector<128x256xf32>
    %cst_45 = arith.constant dense<0.000000e+00> : vector<32x256xf32>
    %63 = tpu.matmul %61, %62, %cst_45 {dimension_numbers = #tpu.dot_dimension_numbers<[1], [0], [0], [1], [0, 0, 1, 1], [], []>} : vector<32x128xf32>, vector<128x256xf32>, vector<32x256xf32> -> vector<32x256xf32>
    %cst_46 = arith.constant dense<0.000000e+00> : vector<256xf32>
    %64 = vector.multi_reduction <add>, %63, %cst_46 [0] : vector<32x256xf32> to vector<256xf32>
    %65 = vector.shape_cast %64 : vector<256xf32> to vector<1x256xf32>
    %66 = arith.mulf %63, %63 : vector<32x256xf32>
    %cst_47 = arith.constant dense<0.000000e+00> : vector<256xf32>
    %67 = vector.multi_reduction <add>, %66, %cst_47 [0] : vector<32x256xf32> to vector<256xf32>
    %68 = vector.shape_cast %67 : vector<256xf32> to vector<1x256xf32>
    %69 = vector.extract_strided_slice %65 {offsets = [0, 0], sizes = [1, 64], strides = [1, 1]} : vector<1x256xf32> to vector<1x64xf32>
    %70 = vector.extract_strided_slice %65 {offsets = [0, 64], sizes = [1, 64], strides = [1, 1]} : vector<1x256xf32> to vector<1x64xf32>
    %71 = arith.addf %69, %70 : vector<1x64xf32>
    %72 = vector.extract_strided_slice %65 {offsets = [0, 128], sizes = [1, 64], strides = [1, 1]} : vector<1x256xf32> to vector<1x64xf32>
    %73 = arith.addf %71, %72 : vector<1x64xf32>
    %74 = vector.extract_strided_slice %65 {offsets = [0, 192], sizes = [1, 64], strides = [1, 1]} : vector<1x256xf32> to vector<1x64xf32>
    %75 = arith.addf %73, %74 : vector<1x64xf32>
    %76 = vector.extract_strided_slice %68 {offsets = [0, 0], sizes = [1, 64], strides = [1, 1]} : vector<1x256xf32> to vector<1x64xf32>
    %77 = vector.extract_strided_slice %68 {offsets = [0, 64], sizes = [1, 64], strides = [1, 1]} : vector<1x256xf32> to vector<1x64xf32>
    %78 = arith.addf %76, %77 : vector<1x64xf32>
    %79 = vector.extract_strided_slice %68 {offsets = [0, 128], sizes = [1, 64], strides = [1, 1]} : vector<1x256xf32> to vector<1x64xf32>
    %80 = arith.addf %78, %79 : vector<1x64xf32>
    %81 = vector.extract_strided_slice %68 {offsets = [0, 192], sizes = [1, 64], strides = [1, 1]} : vector<1x256xf32> to vector<1x64xf32>
    %82 = arith.addf %80, %81 : vector<1x64xf32>
    %c0_48 = arith.constant 0 : index
    %c0_49 = arith.constant 0 : index
    %83 = vector.load %arg6[%c0_48, %c0_49] : memref<1x64xf32, #tpu.memory_space<vmem>>, vector<1x64xf32>
    %c0_50 = arith.constant 0 : index
    %c0_51 = arith.constant 0 : index
    %84 = vector.load %arg7[%c0_50, %c0_51] : memref<1x64xf32, #tpu.memory_space<vmem>>, vector<1x64xf32>
    %cst_52 = arith.constant 7.812500e-03 : f32
    %85 = vector.broadcast %cst_52 : f32 to vector<1x64xf32>
    %86 = arith.mulf %75, %85 : vector<1x64xf32>
    %cst_53 = arith.constant 7.812500e-03 : f32
    %87 = vector.broadcast %cst_53 : f32 to vector<1x64xf32>
    %88 = arith.mulf %82, %87 : vector<1x64xf32>
    %89 = arith.mulf %86, %86 : vector<1x64xf32>
    %90 = arith.subf %88, %89 : vector<1x64xf32>
    %cst_54 = arith.constant 0.000000e+00 : f32
    %91 = vector.broadcast %cst_54 : f32 to vector<1x64xf32>
    %92 = arith.maximumf %90, %91 : vector<1x64xf32>
    %cst_55 = arith.constant 9.99999974E-6 : f32
    %93 = vector.broadcast %cst_55 : f32 to vector<1x64xf32>
    %94 = arith.addf %92, %93 : vector<1x64xf32>
    %95 = math.rsqrt %94 : vector<1x64xf32>
    %96 = arith.mulf %83, %95 : vector<1x64xf32>
    %97 = arith.mulf %86, %96 : vector<1x64xf32>
    %98 = arith.subf %84, %97 : vector<1x64xf32>
    %c0_56 = arith.constant 0 : index
    %c0_57 = arith.constant 0 : index
    %c0_58 = arith.constant 0 : index
    %99 = vector.load %arg8[%c0_56, %c0_57, %c0_58] : memref<4x128x32xf32, #tpu.memory_space<vmem>>, vector<1x128x32xf32>
    %100 = vector.shape_cast %99 : vector<1x128x32xf32> to vector<128x32xf32>
    %101 = vector.extract_strided_slice %63 {offsets = [0, 0], sizes = [32, 64], strides = [1, 1]} : vector<32x256xf32> to vector<32x64xf32>
    %102 = vector.broadcast %96 : vector<1x64xf32> to vector<32x64xf32>
    %103 = arith.mulf %101, %102 : vector<32x64xf32>
    %104 = vector.broadcast %98 : vector<1x64xf32> to vector<32x64xf32>
    %105 = arith.addf %103, %104 : vector<32x64xf32>
    %cst_59 = arith.constant 0.000000e+00 : f32
    %106 = vector.broadcast %cst_59 : f32 to vector<32x64xf32>
    %107 = arith.subf %106, %105 : vector<32x64xf32>
    %108 = math.exp %107 : vector<32x64xf32>
    %cst_60 = arith.constant 1.000000e+00 : f32
    %109 = vector.broadcast %cst_60 : f32 to vector<32x64xf32>
    %110 = arith.addf %109, %108 : vector<32x64xf32>
    %111 = tpu.reciprocal %110 {approx = true} : vector<32x64xf32> -> vector<32x64xf32>
    %cst_61 = arith.constant dense<0.000000e+00> : vector<128x64xf32>
    %112 = tpu.matmul %100, %111, %cst_61 {dimension_numbers = #tpu.dot_dimension_numbers<[1], [0], [0], [1], [0, 0, 1, 1], [], []>} : vector<128x32xf32>, vector<32x64xf32>, vector<128x64xf32> -> vector<128x64xf32>
    %c1_62 = arith.constant 1 : index
    %c0_63 = arith.constant 0 : index
    %c0_64 = arith.constant 0 : index
    %113 = vector.load %arg8[%c1_62, %c0_63, %c0_64] : memref<4x128x32xf32, #tpu.memory_space<vmem>>, vector<1x128x32xf32>
    %114 = vector.shape_cast %113 : vector<1x128x32xf32> to vector<128x32xf32>
    %115 = vector.extract_strided_slice %63 {offsets = [0, 64], sizes = [32, 64], strides = [1, 1]} : vector<32x256xf32> to vector<32x64xf32>
    %116 = vector.broadcast %96 : vector<1x64xf32> to vector<32x64xf32>
    %117 = arith.mulf %115, %116 : vector<32x64xf32>
    %118 = vector.broadcast %98 : vector<1x64xf32> to vector<32x64xf32>
    %119 = arith.addf %117, %118 : vector<32x64xf32>
    %cst_65 = arith.constant 0.000000e+00 : f32
    %120 = vector.broadcast %cst_65 : f32 to vector<32x64xf32>
    %121 = arith.subf %120, %119 : vector<32x64xf32>
    %122 = math.exp %121 : vector<32x64xf32>
    %cst_66 = arith.constant 1.000000e+00 : f32
    %123 = vector.broadcast %cst_66 : f32 to vector<32x64xf32>
    %124 = arith.addf %123, %122 : vector<32x64xf32>
    %125 = tpu.reciprocal %124 {approx = true} : vector<32x64xf32> -> vector<32x64xf32>
    %cst_67 = arith.constant dense<0.000000e+00> : vector<128x64xf32>
    %126 = tpu.matmul %114, %125, %cst_67 {dimension_numbers = #tpu.dot_dimension_numbers<[1], [0], [0], [1], [0, 0, 1, 1], [], []>} : vector<128x32xf32>, vector<32x64xf32>, vector<128x64xf32> -> vector<128x64xf32>
    %127 = arith.addf %112, %126 : vector<128x64xf32>
    %c2_68 = arith.constant 2 : index
    %c0_69 = arith.constant 0 : index
    %c0_70 = arith.constant 0 : index
    %128 = vector.load %arg8[%c2_68, %c0_69, %c0_70] : memref<4x128x32xf32, #tpu.memory_space<vmem>>, vector<1x128x32xf32>
    %129 = vector.shape_cast %128 : vector<1x128x32xf32> to vector<128x32xf32>
    %130 = vector.extract_strided_slice %63 {offsets = [0, 128], sizes = [32, 64], strides = [1, 1]} : vector<32x256xf32> to vector<32x64xf32>
    %131 = vector.broadcast %96 : vector<1x64xf32> to vector<32x64xf32>
    %132 = arith.mulf %130, %131 : vector<32x64xf32>
    %133 = vector.broadcast %98 : vector<1x64xf32> to vector<32x64xf32>
    %134 = arith.addf %132, %133 : vector<32x64xf32>
    %cst_71 = arith.constant 0.000000e+00 : f32
    %135 = vector.broadcast %cst_71 : f32 to vector<32x64xf32>
    %136 = arith.subf %135, %134 : vector<32x64xf32>
    %137 = math.exp %136 : vector<32x64xf32>
    %cst_72 = arith.constant 1.000000e+00 : f32
    %138 = vector.broadcast %cst_72 : f32 to vector<32x64xf32>
    %139 = arith.addf %138, %137 : vector<32x64xf32>
    %140 = tpu.reciprocal %139 {approx = true} : vector<32x64xf32> -> vector<32x64xf32>
    %cst_73 = arith.constant dense<0.000000e+00> : vector<128x64xf32>
    %141 = tpu.matmul %129, %140, %cst_73 {dimension_numbers = #tpu.dot_dimension_numbers<[1], [0], [0], [1], [0, 0, 1, 1], [], []>} : vector<128x32xf32>, vector<32x64xf32>, vector<128x64xf32> -> vector<128x64xf32>
    %142 = arith.addf %127, %141 : vector<128x64xf32>
    %c3_74 = arith.constant 3 : index
    %c0_75 = arith.constant 0 : index
    %c0_76 = arith.constant 0 : index
    %143 = vector.load %arg8[%c3_74, %c0_75, %c0_76] : memref<4x128x32xf32, #tpu.memory_space<vmem>>, vector<1x128x32xf32>
    %144 = vector.shape_cast %143 : vector<1x128x32xf32> to vector<128x32xf32>
    %145 = vector.extract_strided_slice %63 {offsets = [0, 192], sizes = [32, 64], strides = [1, 1]} : vector<32x256xf32> to vector<32x64xf32>
    %146 = vector.broadcast %96 : vector<1x64xf32> to vector<32x64xf32>
    %147 = arith.mulf %145, %146 : vector<32x64xf32>
    %148 = vector.broadcast %98 : vector<1x64xf32> to vector<32x64xf32>
    %149 = arith.addf %147, %148 : vector<32x64xf32>
    %cst_77 = arith.constant 0.000000e+00 : f32
    %150 = vector.broadcast %cst_77 : f32 to vector<32x64xf32>
    %151 = arith.subf %150, %149 : vector<32x64xf32>
    %152 = math.exp %151 : vector<32x64xf32>
    %cst_78 = arith.constant 1.000000e+00 : f32
    %153 = vector.broadcast %cst_78 : f32 to vector<32x64xf32>
    %154 = arith.addf %153, %152 : vector<32x64xf32>
    %155 = tpu.reciprocal %154 {approx = true} : vector<32x64xf32> -> vector<32x64xf32>
    %cst_79 = arith.constant dense<0.000000e+00> : vector<128x64xf32>
    %156 = tpu.matmul %144, %155, %cst_79 {dimension_numbers = #tpu.dot_dimension_numbers<[1], [0], [0], [1], [0, 0, 1, 1], [], []>} : vector<128x32xf32>, vector<32x64xf32>, vector<128x64xf32> -> vector<128x64xf32>
    %157 = arith.addf %142, %156 : vector<128x64xf32>
    %c0_80 = arith.constant 0 : index
    %c0_81 = arith.constant 0 : index
    %158 = vector.load %arg10[%c0_80, %c0_81] : memref<64x576xf32, #tpu.memory_space<vmem>>, vector<64x576xf32>
    %cst_82 = arith.constant dense<0.000000e+00> : vector<128x576xf32>
    %159 = tpu.matmul %157, %158, %cst_82 {dimension_numbers = #tpu.dot_dimension_numbers<[1], [0], [0], [1], [0, 0, 1, 1], [], []>} : vector<128x64xf32>, vector<64x576xf32>, vector<128x576xf32> -> vector<128x576xf32>
    %c0_83 = arith.constant 0 : index
    %c0_84 = arith.constant 0 : index
    %c0_85 = arith.constant 0 : index
    %160 = vector.load %arg9[%c0_83, %c0_84, %c0_85] : memref<9x128x128xf32, #tpu.memory_space<vmem>>, vector<1x128x128xf32>
    %161 = vector.shape_cast %160 : vector<1x128x128xf32> to vector<128x128xf32>
    %162 = vector.extract_strided_slice %159 {offsets = [0, 0], sizes = [128, 64], strides = [1, 1]} : vector<128x576xf32> to vector<128x64xf32>
    %cst_86 = arith.constant dense<0.000000e+00> : vector<128x64xf32>
    %163 = tpu.matmul %161, %162, %cst_86 {dimension_numbers = #tpu.dot_dimension_numbers<[1], [0], [0], [1], [0, 0, 1, 1], [], []>} : vector<128x128xf32>, vector<128x64xf32>, vector<128x64xf32> -> vector<128x64xf32>
    %c1_87 = arith.constant 1 : index
    %c0_88 = arith.constant 0 : index
    %c0_89 = arith.constant 0 : index
    %164 = vector.load %arg9[%c1_87, %c0_88, %c0_89] : memref<9x128x128xf32, #tpu.memory_space<vmem>>, vector<1x128x128xf32>
    %165 = vector.shape_cast %164 : vector<1x128x128xf32> to vector<128x128xf32>
    %166 = vector.extract_strided_slice %159 {offsets = [0, 64], sizes = [128, 64], strides = [1, 1]} : vector<128x576xf32> to vector<128x64xf32>
    %cst_90 = arith.constant dense<0.000000e+00> : vector<128x64xf32>
    %167 = tpu.matmul %165, %166, %cst_90 {dimension_numbers = #tpu.dot_dimension_numbers<[1], [0], [0], [1], [0, 0, 1, 1], [], []>} : vector<128x128xf32>, vector<128x64xf32>, vector<128x64xf32> -> vector<128x64xf32>
    %168 = arith.addf %163, %167 : vector<128x64xf32>
    %c2_91 = arith.constant 2 : index
    %c0_92 = arith.constant 0 : index
    %c0_93 = arith.constant 0 : index
    %169 = vector.load %arg9[%c2_91, %c0_92, %c0_93] : memref<9x128x128xf32, #tpu.memory_space<vmem>>, vector<1x128x128xf32>
    %170 = vector.shape_cast %169 : vector<1x128x128xf32> to vector<128x128xf32>
    %171 = vector.extract_strided_slice %159 {offsets = [0, 128], sizes = [128, 64], strides = [1, 1]} : vector<128x576xf32> to vector<128x64xf32>
    %cst_94 = arith.constant dense<0.000000e+00> : vector<128x64xf32>
    %172 = tpu.matmul %170, %171, %cst_94 {dimension_numbers = #tpu.dot_dimension_numbers<[1], [0], [0], [1], [0, 0, 1, 1], [], []>} : vector<128x128xf32>, vector<128x64xf32>, vector<128x64xf32> -> vector<128x64xf32>
    %173 = arith.addf %168, %172 : vector<128x64xf32>
    %c3_95 = arith.constant 3 : index
    %c0_96 = arith.constant 0 : index
    %c0_97 = arith.constant 0 : index
    %174 = vector.load %arg9[%c3_95, %c0_96, %c0_97] : memref<9x128x128xf32, #tpu.memory_space<vmem>>, vector<1x128x128xf32>
    %175 = vector.shape_cast %174 : vector<1x128x128xf32> to vector<128x128xf32>
    %176 = vector.extract_strided_slice %159 {offsets = [0, 192], sizes = [128, 64], strides = [1, 1]} : vector<128x576xf32> to vector<128x64xf32>
    %cst_98 = arith.constant dense<0.000000e+00> : vector<128x64xf32>
    %177 = tpu.matmul %175, %176, %cst_98 {dimension_numbers = #tpu.dot_dimension_numbers<[1], [0], [0], [1], [0, 0, 1, 1], [], []>} : vector<128x128xf32>, vector<128x64xf32>, vector<128x64xf32> -> vector<128x64xf32>
    %178 = arith.addf %173, %177 : vector<128x64xf32>
    %c4_99 = arith.constant 4 : index
    %c0_100 = arith.constant 0 : index
    %c0_101 = arith.constant 0 : index
    %179 = vector.load %arg9[%c4_99, %c0_100, %c0_101] : memref<9x128x128xf32, #tpu.memory_space<vmem>>, vector<1x128x128xf32>
    %180 = vector.shape_cast %179 : vector<1x128x128xf32> to vector<128x128xf32>
    %181 = vector.extract_strided_slice %159 {offsets = [0, 256], sizes = [128, 64], strides = [1, 1]} : vector<128x576xf32> to vector<128x64xf32>
    %cst_102 = arith.constant dense<0.000000e+00> : vector<128x64xf32>
    %182 = tpu.matmul %180, %181, %cst_102 {dimension_numbers = #tpu.dot_dimension_numbers<[1], [0], [0], [1], [0, 0, 1, 1], [], []>} : vector<128x128xf32>, vector<128x64xf32>, vector<128x64xf32> -> vector<128x64xf32>
    %183 = arith.addf %178, %182 : vector<128x64xf32>
    %c5_103 = arith.constant 5 : index
    %c0_104 = arith.constant 0 : index
    %c0_105 = arith.constant 0 : index
    %184 = vector.load %arg9[%c5_103, %c0_104, %c0_105] : memref<9x128x128xf32, #tpu.memory_space<vmem>>, vector<1x128x128xf32>
    %185 = vector.shape_cast %184 : vector<1x128x128xf32> to vector<128x128xf32>
    %186 = vector.extract_strided_slice %159 {offsets = [0, 320], sizes = [128, 64], strides = [1, 1]} : vector<128x576xf32> to vector<128x64xf32>
    %cst_106 = arith.constant dense<0.000000e+00> : vector<128x64xf32>
    %187 = tpu.matmul %185, %186, %cst_106 {dimension_numbers = #tpu.dot_dimension_numbers<[1], [0], [0], [1], [0, 0, 1, 1], [], []>} : vector<128x128xf32>, vector<128x64xf32>, vector<128x64xf32> -> vector<128x64xf32>
    %188 = arith.addf %183, %187 : vector<128x64xf32>
    %c6_107 = arith.constant 6 : index
    %c0_108 = arith.constant 0 : index
    %c0_109 = arith.constant 0 : index
    %189 = vector.load %arg9[%c6_107, %c0_108, %c0_109] : memref<9x128x128xf32, #tpu.memory_space<vmem>>, vector<1x128x128xf32>
    %190 = vector.shape_cast %189 : vector<1x128x128xf32> to vector<128x128xf32>
    %191 = vector.extract_strided_slice %159 {offsets = [0, 384], sizes = [128, 64], strides = [1, 1]} : vector<128x576xf32> to vector<128x64xf32>
    %cst_110 = arith.constant dense<0.000000e+00> : vector<128x64xf32>
    %192 = tpu.matmul %190, %191, %cst_110 {dimension_numbers = #tpu.dot_dimension_numbers<[1], [0], [0], [1], [0, 0, 1, 1], [], []>} : vector<128x128xf32>, vector<128x64xf32>, vector<128x64xf32> -> vector<128x64xf32>
    %193 = arith.addf %188, %192 : vector<128x64xf32>
    %c7_111 = arith.constant 7 : index
    %c0_112 = arith.constant 0 : index
    %c0_113 = arith.constant 0 : index
    %194 = vector.load %arg9[%c7_111, %c0_112, %c0_113] : memref<9x128x128xf32, #tpu.memory_space<vmem>>, vector<1x128x128xf32>
    %195 = vector.shape_cast %194 : vector<1x128x128xf32> to vector<128x128xf32>
    %196 = vector.extract_strided_slice %159 {offsets = [0, 448], sizes = [128, 64], strides = [1, 1]} : vector<128x576xf32> to vector<128x64xf32>
    %cst_114 = arith.constant dense<0.000000e+00> : vector<128x64xf32>
    %197 = tpu.matmul %195, %196, %cst_114 {dimension_numbers = #tpu.dot_dimension_numbers<[1], [0], [0], [1], [0, 0, 1, 1], [], []>} : vector<128x128xf32>, vector<128x64xf32>, vector<128x64xf32> -> vector<128x64xf32>
    %198 = arith.addf %193, %197 : vector<128x64xf32>
    %c8_115 = arith.constant 8 : index
    %c0_116 = arith.constant 0 : index
    %c0_117 = arith.constant 0 : index
    %199 = vector.load %arg9[%c8_115, %c0_116, %c0_117] : memref<9x128x128xf32, #tpu.memory_space<vmem>>, vector<1x128x128xf32>
    %200 = vector.shape_cast %199 : vector<1x128x128xf32> to vector<128x128xf32>
    %201 = vector.extract_strided_slice %159 {offsets = [0, 512], sizes = [128, 64], strides = [1, 1]} : vector<128x576xf32> to vector<128x64xf32>
    %cst_118 = arith.constant dense<0.000000e+00> : vector<128x64xf32>
    %202 = tpu.matmul %200, %201, %cst_118 {dimension_numbers = #tpu.dot_dimension_numbers<[1], [0], [0], [1], [0, 0, 1, 1], [], []>} : vector<128x128xf32>, vector<128x64xf32>, vector<128x64xf32> -> vector<128x64xf32>
    %203 = arith.addf %198, %202 : vector<128x64xf32>
    %cst_119 = arith.constant dense<0.000000e+00> : vector<64xf32>
    %204 = vector.multi_reduction <add>, %203, %cst_119 [0] : vector<128x64xf32> to vector<64xf32>
    %205 = vector.shape_cast %204 : vector<64xf32> to vector<1x64xf32>
    %206 = arith.mulf %203, %203 : vector<128x64xf32>
    %cst_120 = arith.constant dense<0.000000e+00> : vector<64xf32>
    %207 = vector.multi_reduction <add>, %206, %cst_120 [0] : vector<128x64xf32> to vector<64xf32>
    %208 = vector.shape_cast %207 : vector<64xf32> to vector<1x64xf32>
    %c0_121 = arith.constant 0 : index
    %c0_122 = arith.constant 0 : index
    %209 = vector.load %arg11[%c0_121, %c0_122] : memref<1x64xf32, #tpu.memory_space<vmem>>, vector<1x64xf32>
    %c0_123 = arith.constant 0 : index
    %c0_124 = arith.constant 0 : index
    %210 = vector.load %arg12[%c0_123, %c0_124] : memref<1x64xf32, #tpu.memory_space<vmem>>, vector<1x64xf32>
    %cst_125 = arith.constant 7.812500e-03 : f32
    %211 = vector.broadcast %cst_125 : f32 to vector<1x64xf32>
    %212 = arith.mulf %205, %211 : vector<1x64xf32>
    %cst_126 = arith.constant 7.812500e-03 : f32
    %213 = vector.broadcast %cst_126 : f32 to vector<1x64xf32>
    %214 = arith.mulf %208, %213 : vector<1x64xf32>
    %215 = arith.mulf %212, %212 : vector<1x64xf32>
    %216 = arith.subf %214, %215 : vector<1x64xf32>
    %cst_127 = arith.constant 0.000000e+00 : f32
    %217 = vector.broadcast %cst_127 : f32 to vector<1x64xf32>
    %218 = arith.maximumf %216, %217 : vector<1x64xf32>
    %cst_128 = arith.constant 9.99999974E-6 : f32
    %219 = vector.broadcast %cst_128 : f32 to vector<1x64xf32>
    %220 = arith.addf %218, %219 : vector<1x64xf32>
    %221 = math.rsqrt %220 : vector<1x64xf32>
    %222 = arith.mulf %209, %221 : vector<1x64xf32>
    %223 = arith.mulf %212, %222 : vector<1x64xf32>
    %224 = arith.subf %210, %223 : vector<1x64xf32>
    %225 = vector.broadcast %222 : vector<1x64xf32> to vector<128x64xf32>
    %226 = arith.mulf %203, %225 : vector<128x64xf32>
    %227 = vector.broadcast %224 : vector<1x64xf32> to vector<128x64xf32>
    %228 = arith.addf %226, %227 : vector<128x64xf32>
    %cst_129 = arith.constant 0.000000e+00 : f32
    %229 = vector.broadcast %cst_129 : f32 to vector<128x64xf32>
    %230 = arith.subf %229, %228 : vector<128x64xf32>
    %231 = math.exp %230 : vector<128x64xf32>
    %cst_130 = arith.constant 1.000000e+00 : f32
    %232 = vector.broadcast %cst_130 : f32 to vector<128x64xf32>
    %233 = arith.addf %232, %231 : vector<128x64xf32>
    %234 = tpu.reciprocal %233 {approx = true} : vector<128x64xf32> -> vector<128x64xf32>
    %c0_131 = arith.constant 0 : index
    %c0_132 = arith.constant 0 : index
    %235 = vector.load %arg13[%c0_131, %c0_132] : memref<64x128xf32, #tpu.memory_space<vmem>>, vector<64x128xf32>
    %cst_133 = arith.constant dense<0.000000e+00> : vector<128x128xf32>
    %236 = tpu.matmul %234, %235, %cst_133 {dimension_numbers = #tpu.dot_dimension_numbers<[1], [0], [0], [1], [0, 0, 1, 1], [], []>} : vector<128x64xf32>, vector<64x128xf32>, vector<128x128xf32> -> vector<128x128xf32>
    %237 = tpu.transpose %236, [1, 0] : vector<128x128xf32> -> vector<128x128xf32>
    %cst_134 = arith.constant dense<0.000000e+00> : vector<128xf32>
    %238 = vector.multi_reduction <add>, %237, %cst_134 [1] : vector<128x128xf32> to vector<128xf32>
    %239 = vector.shape_cast %238 : vector<128xf32> to vector<128x1xf32>
    %240 = arith.mulf %237, %237 : vector<128x128xf32>
    %cst_135 = arith.constant dense<0.000000e+00> : vector<128xf32>
    %241 = vector.multi_reduction <add>, %240, %cst_135 [1] : vector<128x128xf32> to vector<128xf32>
    %242 = vector.shape_cast %241 : vector<128xf32> to vector<128x1xf32>
    %243 = vector.extract_strided_slice %239 {offsets = [0, 0], sizes = [32, 1], strides = [1, 1]} : vector<128x1xf32> to vector<32x1xf32>
    %244 = vector.extract_strided_slice %239 {offsets = [32, 0], sizes = [32, 1], strides = [1, 1]} : vector<128x1xf32> to vector<32x1xf32>
    %245 = arith.addf %243, %244 : vector<32x1xf32>
    %246 = vector.extract_strided_slice %239 {offsets = [64, 0], sizes = [32, 1], strides = [1, 1]} : vector<128x1xf32> to vector<32x1xf32>
    %247 = arith.addf %245, %246 : vector<32x1xf32>
    %248 = vector.extract_strided_slice %239 {offsets = [96, 0], sizes = [32, 1], strides = [1, 1]} : vector<128x1xf32> to vector<32x1xf32>
    %249 = arith.addf %247, %248 : vector<32x1xf32>
    %250 = vector.extract_strided_slice %242 {offsets = [0, 0], sizes = [32, 1], strides = [1, 1]} : vector<128x1xf32> to vector<32x1xf32>
    %251 = vector.extract_strided_slice %242 {offsets = [32, 0], sizes = [32, 1], strides = [1, 1]} : vector<128x1xf32> to vector<32x1xf32>
    %252 = arith.addf %250, %251 : vector<32x1xf32>
    %253 = vector.extract_strided_slice %242 {offsets = [64, 0], sizes = [32, 1], strides = [1, 1]} : vector<128x1xf32> to vector<32x1xf32>
    %254 = arith.addf %252, %253 : vector<32x1xf32>
    %255 = vector.extract_strided_slice %242 {offsets = [96, 0], sizes = [32, 1], strides = [1, 1]} : vector<128x1xf32> to vector<32x1xf32>
    %256 = arith.addf %254, %255 : vector<32x1xf32>
    %c0_136 = arith.constant 0 : index
    %c0_137 = arith.constant 0 : index
    %257 = vector.load %arg14[%c0_136, %c0_137] : memref<32x1xf32, #tpu.memory_space<vmem>>, vector<32x1xf32>
    %c0_138 = arith.constant 0 : index
    %c0_139 = arith.constant 0 : index
    %258 = vector.load %arg15[%c0_138, %c0_139] : memref<32x1xf32, #tpu.memory_space<vmem>>, vector<32x1xf32>
    %cst_140 = arith.constant 0.001953125 : f32
    %259 = vector.broadcast %cst_140 : f32 to vector<32x1xf32>
    %260 = arith.mulf %249, %259 : vector<32x1xf32>
    %cst_141 = arith.constant 0.001953125 : f32
    %261 = vector.broadcast %cst_141 : f32 to vector<32x1xf32>
    %262 = arith.mulf %256, %261 : vector<32x1xf32>
    %263 = arith.mulf %260, %260 : vector<32x1xf32>
    %264 = arith.subf %262, %263 : vector<32x1xf32>
    %cst_142 = arith.constant 0.000000e+00 : f32
    %265 = vector.broadcast %cst_142 : f32 to vector<32x1xf32>
    %266 = arith.maximumf %264, %265 : vector<32x1xf32>
    %cst_143 = arith.constant 9.99999974E-6 : f32
    %267 = vector.broadcast %cst_143 : f32 to vector<32x1xf32>
    %268 = arith.addf %266, %267 : vector<32x1xf32>
    %269 = math.rsqrt %268 : vector<32x1xf32>
    %270 = arith.mulf %257, %269 : vector<32x1xf32>
    %271 = arith.mulf %260, %270 : vector<32x1xf32>
    %272 = arith.subf %258, %271 : vector<32x1xf32>
    %273 = vector.extract_strided_slice %237 {offsets = [0, 0], sizes = [32, 128], strides = [1, 1]} : vector<128x128xf32> to vector<32x128xf32>
    %274 = vector.broadcast %270 : vector<32x1xf32> to vector<32x128xf32>
    %275 = arith.mulf %273, %274 : vector<32x128xf32>
    %276 = vector.broadcast %272 : vector<32x1xf32> to vector<32x128xf32>
    %277 = arith.addf %275, %276 : vector<32x128xf32>
    %cst_144 = arith.constant 0.000000e+00 : f32
    %278 = vector.broadcast %cst_144 : f32 to vector<32x128xf32>
    %279 = arith.subf %278, %277 : vector<32x128xf32>
    %280 = math.exp %279 : vector<32x128xf32>
    %cst_145 = arith.constant 1.000000e+00 : f32
    %281 = vector.broadcast %cst_145 : f32 to vector<32x128xf32>
    %282 = arith.addf %281, %280 : vector<32x128xf32>
    %283 = tpu.reciprocal %282 {approx = true} : vector<32x128xf32> -> vector<32x128xf32>
    %c0_146 = arith.constant 0 : index
    %c0_147 = arith.constant 0 : index
    %c0_148 = arith.constant 0 : index
    %284 = vector.load %arg16[%c0_146, %c0_147, %c0_148] : memref<4x128x512xf32, #tpu.memory_space<vmem>>, vector<1x128x512xf32>
    %285 = vector.shape_cast %284 : vector<1x128x512xf32> to vector<128x512xf32>
    %cst_149 = arith.constant dense<0.000000e+00> : vector<32x512xf32>
    %286 = tpu.matmul %283, %285, %cst_149 {dimension_numbers = #tpu.dot_dimension_numbers<[1], [0], [0], [1], [0, 0, 1, 1], [], []>} : vector<32x128xf32>, vector<128x512xf32>, vector<32x512xf32> -> vector<32x512xf32>
    %287 = vector.extract_strided_slice %237 {offsets = [32, 0], sizes = [32, 128], strides = [1, 1]} : vector<128x128xf32> to vector<32x128xf32>
    %288 = vector.broadcast %270 : vector<32x1xf32> to vector<32x128xf32>
    %289 = arith.mulf %287, %288 : vector<32x128xf32>
    %290 = vector.broadcast %272 : vector<32x1xf32> to vector<32x128xf32>
    %291 = arith.addf %289, %290 : vector<32x128xf32>
    %cst_150 = arith.constant 0.000000e+00 : f32
    %292 = vector.broadcast %cst_150 : f32 to vector<32x128xf32>
    %293 = arith.subf %292, %291 : vector<32x128xf32>
    %294 = math.exp %293 : vector<32x128xf32>
    %cst_151 = arith.constant 1.000000e+00 : f32
    %295 = vector.broadcast %cst_151 : f32 to vector<32x128xf32>
    %296 = arith.addf %295, %294 : vector<32x128xf32>
    %297 = tpu.reciprocal %296 {approx = true} : vector<32x128xf32> -> vector<32x128xf32>
    %c1_152 = arith.constant 1 : index
    %c0_153 = arith.constant 0 : index
    %c0_154 = arith.constant 0 : index
    %298 = vector.load %arg16[%c1_152, %c0_153, %c0_154] : memref<4x128x512xf32, #tpu.memory_space<vmem>>, vector<1x128x512xf32>
    %299 = vector.shape_cast %298 : vector<1x128x512xf32> to vector<128x512xf32>
    %cst_155 = arith.constant dense<0.000000e+00> : vector<32x512xf32>
    %300 = tpu.matmul %297, %299, %cst_155 {dimension_numbers = #tpu.dot_dimension_numbers<[1], [0], [0], [1], [0, 0, 1, 1], [], []>} : vector<32x128xf32>, vector<128x512xf32>, vector<32x512xf32> -> vector<32x512xf32>
    %301 = arith.addf %286, %300 : vector<32x512xf32>
    %302 = vector.extract_strided_slice %237 {offsets = [64, 0], sizes = [32, 128], strides = [1, 1]} : vector<128x128xf32> to vector<32x128xf32>
    %303 = vector.broadcast %270 : vector<32x1xf32> to vector<32x128xf32>
    %304 = arith.mulf %302, %303 : vector<32x128xf32>
    %305 = vector.broadcast %272 : vector<32x1xf32> to vector<32x128xf32>
    %306 = arith.addf %304, %305 : vector<32x128xf32>
    %cst_156 = arith.constant 0.000000e+00 : f32
    %307 = vector.broadcast %cst_156 : f32 to vector<32x128xf32>
    %308 = arith.subf %307, %306 : vector<32x128xf32>
    %309 = math.exp %308 : vector<32x128xf32>
    %cst_157 = arith.constant 1.000000e+00 : f32
    %310 = vector.broadcast %cst_157 : f32 to vector<32x128xf32>
    %311 = arith.addf %310, %309 : vector<32x128xf32>
    %312 = tpu.reciprocal %311 {approx = true} : vector<32x128xf32> -> vector<32x128xf32>
    %c2_158 = arith.constant 2 : index
    %c0_159 = arith.constant 0 : index
    %c0_160 = arith.constant 0 : index
    %313 = vector.load %arg16[%c2_158, %c0_159, %c0_160] : memref<4x128x512xf32, #tpu.memory_space<vmem>>, vector<1x128x512xf32>
    %314 = vector.shape_cast %313 : vector<1x128x512xf32> to vector<128x512xf32>
    %cst_161 = arith.constant dense<0.000000e+00> : vector<32x512xf32>
    %315 = tpu.matmul %312, %314, %cst_161 {dimension_numbers = #tpu.dot_dimension_numbers<[1], [0], [0], [1], [0, 0, 1, 1], [], []>} : vector<32x128xf32>, vector<128x512xf32>, vector<32x512xf32> -> vector<32x512xf32>
    %316 = arith.addf %301, %315 : vector<32x512xf32>
    %317 = vector.extract_strided_slice %237 {offsets = [96, 0], sizes = [32, 128], strides = [1, 1]} : vector<128x128xf32> to vector<32x128xf32>
    %318 = vector.broadcast %270 : vector<32x1xf32> to vector<32x128xf32>
    %319 = arith.mulf %317, %318 : vector<32x128xf32>
    %320 = vector.broadcast %272 : vector<32x1xf32> to vector<32x128xf32>
    %321 = arith.addf %319, %320 : vector<32x128xf32>
    %cst_162 = arith.constant 0.000000e+00 : f32
    %322 = vector.broadcast %cst_162 : f32 to vector<32x128xf32>
    %323 = arith.subf %322, %321 : vector<32x128xf32>
    %324 = math.exp %323 : vector<32x128xf32>
    %cst_163 = arith.constant 1.000000e+00 : f32
    %325 = vector.broadcast %cst_163 : f32 to vector<32x128xf32>
    %326 = arith.addf %325, %324 : vector<32x128xf32>
    %327 = tpu.reciprocal %326 {approx = true} : vector<32x128xf32> -> vector<32x128xf32>
    %c3_164 = arith.constant 3 : index
    %c0_165 = arith.constant 0 : index
    %c0_166 = arith.constant 0 : index
    %328 = vector.load %arg16[%c3_164, %c0_165, %c0_166] : memref<4x128x512xf32, #tpu.memory_space<vmem>>, vector<1x128x512xf32>
    %329 = vector.shape_cast %328 : vector<1x128x512xf32> to vector<128x512xf32>
    %cst_167 = arith.constant dense<0.000000e+00> : vector<32x512xf32>
    %330 = tpu.matmul %327, %329, %cst_167 {dimension_numbers = #tpu.dot_dimension_numbers<[1], [0], [0], [1], [0, 0, 1, 1], [], []>} : vector<32x128xf32>, vector<128x512xf32>, vector<32x512xf32> -> vector<32x512xf32>
    %331 = arith.addf %316, %330 : vector<32x512xf32>
    %c0_168 = arith.constant 0 : index
    %c0_169 = arith.constant 0 : index
    %332 = vector.load %arg17[%c0_168, %c0_169] : memref<8x32xf32, #tpu.memory_space<vmem>>, vector<8x32xf32>
    %cst_170 = arith.constant dense<0.000000e+00> : vector<8x512xf32>
    %333 = tpu.matmul %332, %331, %cst_170 {dimension_numbers = #tpu.dot_dimension_numbers<[1], [0], [0], [1], [0, 0, 1, 1], [], []>} : vector<8x32xf32>, vector<32x512xf32>, vector<8x512xf32> -> vector<8x512xf32>
    %c0_171 = arith.constant 0 : index
    %c0_172 = arith.constant 0 : index
    %334 = vector.load %arg18[%c0_171, %c0_172] : memref<8x1xf32, #tpu.memory_space<vmem>>, vector<8x1xf32>
    %335 = vector.broadcast %334 : vector<8x1xf32> to vector<8x512xf32>
    %336 = arith.addf %333, %335 : vector<8x512xf32>
    %c0_173 = arith.constant 0 : index
    %c0_174 = arith.constant 0 : index
    %337 = vector.load %arg19[%c0_173, %c0_174] : memref<8x512xf32, #tpu.memory_space<vmem>>, vector<8x512xf32>
    tpu.vector_store %arg19[%c0_173, %c0_174], %336 {strides = array<i32>} : memref<8x512xf32, #tpu.memory_space<vmem>>, vector<8x512xf32>,
    return
  }
}

</mosaic_0001>

<llo_original>
// kernel: tile.0
$region0: #{tile.0}
  %s0 = inlined_call_operand.vmem [shape: f32[4,2], index: 0, kind: input, shape index: {}]
  %s1 = inlined_call_operand.vmem [shape: f32[8,1], index: 1, kind: output, shape index: {}]
  $region1: #{tile.0} parent=0
    #allocation0 [shape = 'u8[4096]{0}', space=vmem, size = 0x1000, scoped, tag = 'scoped mem for input reshape']
    %s3 = sshll.u32 1, 4
    %s4 = ssub.s32 %s3, 1
    %v5 = vld [vmem:[%s0] sm:%s4]
    %6 = vst [vmem:[#allocation0] sm:%s4] %v5
    %v7 = vld [vmem:[#allocation0] sm:$0xf]
    %vm8 = vcmask 7168
    %9 = vst.msk [vmem:[%s1] ss:$2 sm:$0xf] %vm8, %v7
    %v10 = vld [vmem:[#allocation0] sm:$0xf]
    %11 = vrot.lane.b32.xlu0 %v10, 127
    %v12 = vpop.permute.xlu0 %11
    %vm13 = vcmask 7168
    %s14 = scalar_lea.vmem %s1, 1
    %15 = vst.msk [vmem:[%s14] ss:$2 sm:$0xf] %vm13, %v12

// kernel: tile.8
$region0: #{tile.8}
  #allocation2 [shape = 's32[1]{0}', space=sflag, size = 0x4, scoped, tag = 'scoped memory for tile.8']
  %s0 = inlined_call_operand.hbm [shape: f32[2], index: 0, kind: input, shape index: {}]
  %s1 = inlined_call_operand.vmem [shape: f32[4,2], index: 1, kind: output, shape index: {}]
  $region1: #{tile.8} parent=0
    #allocation0 [shape = 'u8[512]{0}', space=vmem, size = 0x400, scoped, tag = 'operand span for operand 0']
    #allocation1 [shape = 's32[1]{0}', space=sflag, size = 0x4, scoped, tag = 'scoped memory for tile.8']
    %2 = vsyncpa [#allocation1], 0
    // Predicated region
    $region2: #{tile.8} parent=1 // pred_check
      _
    $region3: #{tile.8} parent=1 // pred_check_branch
      %4 = sbr.rel (0) target = $region5
    $region4: #{tile.8} parent=1 // pred_region
      %s6 = ssub.s32 16, 16
      %7 = vsyncadd [#allocation1], %s6
      %s9 = sshll.u32 [#allocation0], 4
      %s10 = int_to_ptr.vmem [resolvable:$true] %s9
      %12 = dma.hbm_to_vmem [thread:$0]  %s0, 16, %s10, [#allocation1]
    $region5: #{tile.8} parent=1 // pred_fallthru
      _
    // Predicated region
    $region6: #{tile.8} parent=1 // pred_check
      _
    $region7: #{tile.8} parent=1 // pred_check_branch
      %14 = sbr.rel (0) target = $region9
    $region8: #{tile.8} parent=1 // pred_region
      %15 = dma.done [#allocation1], 16
    $region9: #{tile.8} parent=1 // pred_fallthru
      _
    %v16 = vld [vmem:[#allocation0] ss:$0 sm:$0xff]
    %17 = vst [vmem:[%s1] sm:$0xf] %v16
    %18 = vsyncpa [#allocation1], 1

// kernel: colorization_forward.1
$region0: #{colorization_forward.1}
  #allocation0 [shape = 'u32[]', space=smem, size = 0x4, offset = 0x4, fixed_abs, tag = 'smem constant byte address 0x4 - core index']
  #allocation1 [shape = 'u32[144,128]{1,0:T(1,128)}', space=vmem, size = 0x12000, scoped, tag = 'internal scratch']
  %s0 = inlined_call_operand.vmem [shape: f32[32,256], index: 0, kind: input, shape index: {}]
  %s1 = inlined_call_operand.vmem [shape: f32[9,32,32], index: 1, kind: input, shape index: {}]
  %s2 = inlined_call_operand.vmem [shape: f32[2304,128], index: 2, kind: input, shape index: {}]
  %s3 = inlined_call_operand.vmem [shape: f32[1,128], index: 3, kind: input, shape index: {}]
  %s4 = inlined_call_operand.vmem [shape: f32[1,128], index: 4, kind: input, shape index: {}]
  %s5 = inlined_call_operand.vmem [shape: f32[128,256], index: 5, kind: input, shape index: {}]
  %s6 = inlined_call_operand.vmem [shape: f32[1,64], index: 6, kind: input, shape index: {}]
  %s7 = inlined_call_operand.vmem [shape: f32[1,64], index: 7, kind: input, shape index: {}]
  %s8 = inlined_call_operand.vmem [shape: f32[4,128,32], index: 8, kind: input, shape index: {}]
  %s9 = inlined_call_operand.vmem [shape: f32[9,128,128], index: 9, kind: input, shape index: {}]
  %s10 = inlined_call_operand.vmem [shape: f32[64,576], index: 10, kind: input, shape index: {}]
  %s11 = inlined_call_operand.vmem [shape: f32[1,64], index: 11, kind: input, shape index: {}]
  %s12 = inlined_call_operand.vmem [shape: f32[1,64], index: 12, kind: input, shape index: {}]
  %s13 = inlined_call_operand.vmem [shape: f32[64,128], index: 13, kind: input, shape index: {}]
  %s14 = inlined_call_operand.vmem [shape: f32[32,1], index: 14, kind: input, shape index: {}]
  %s15 = inlined_call_operand.vmem [shape: f32[32,1], index: 15, kind: input, shape index: {}]
  %s16 = inlined_call_operand.vmem [shape: f32[4,128,512], index: 16, kind: input, shape index: {}]
  %s17 = inlined_call_operand.vmem [shape: f32[8,32], index: 17, kind: input, shape index: {}]
  %s18 = inlined_call_operand.vmem [shape: f32[8,1], index: 18, kind: input, shape index: {}]
  %s19 = inlined_call_operand.vmem [shape: f32[8,512], index: 19, kind: output, shape index: {}]
  %s20 = sld [smem:[#allocation0]]
  $region86: #{colorization_forward.1} parent=0
    _
  %s22 = ssub.s32 1, %s20
  %s23 = scalar_select 0, %s22, %s20
  // Predicated region
  $region2: #{colorization_forward.1} parent=0 // pred_check
    _
  $region3: #{colorization_forward.1} parent=0 // pred_check_branch
    %25 = sbr.rel (0) target = $region5
  $region4: #{colorization_forward.1} parent=0 // pred_region
    _
  $region5: #{colorization_forward.1} parent=0 // pred_fallthru
    _
  // Predicated region
  $region6: #{colorization_forward.1} parent=0 // pred_check
    _
  $region7: #{colorization_forward.1} parent=0 // pred_check_branch
    %27 = sbr.rel (0) target = $region9
  $region8: #{colorization_forward.1} parent=0 // pred_region
    _
  $region9: #{colorization_forward.1} parent=0 // pred_fallthru
    _
  // Predicated region
  $region10: #{colorization_forward.1} parent=0 // pred_check
    _
  $region11: #{colorization_forward.1} parent=0 // pred_check_branch
    %29 = sbr.rel (0) target = $region13
  $region12: #{colorization_forward.1} parent=0 // pred_region
    _
  $region13: #{colorization_forward.1} parent=0 // pred_fallthru
    _
  // Predicated region
  $region14: #{colorization_forward.1} parent=0 // pred_check
    _
  $region15: #{colorization_forward.1} parent=0 // pred_check_branch
    %31 = sbr.rel (0) target = $region17
  $region16: #{colorization_forward.1} parent=0 // pred_region
    _
  $region17: #{colorization_forward.1} parent=0 // pred_fallthru
    _
  // Predicated region
  $region18: #{colorization_forward.1} parent=0 // pred_check
    _
  $region19: #{colorization_forward.1} parent=0 // pred_check_branch
    %33 = sbr.rel (0) target = $region21
  $region20: #{colorization_forward.1} parent=0 // pred_region
    _
  $region21: #{colorization_forward.1} parent=0 // pred_fallthru
    _
  // Predicated region
  $region22: #{colorization_forward.1} parent=0 // pred_check
    _
  $region23: #{colorization_forward.1} parent=0 // pred_check_branch
    %35 = sbr.rel (0) target = $region25
  $region24: #{colorization_forward.1} parent=0 // pred_region
    _
  $region25: #{colorization_forward.1} parent=0 // pred_fallthru
    _
  // Predicated region
  $region26: #{colorization_forward.1} parent=0 // pred_check
    _
  $region27: #{colorization_forward.1} parent=0 // pred_check_branch
    %37 = sbr.rel (0) target = $region29
  $region28: #{colorization_forward.1} parent=0 // pred_region
    _
  $region29: #{colorization_forward.1} parent=0 // pred_fallthru
    _
  // Predicated region
  $region30: #{colorization_forward.1} parent=0 // pred_check
    _
  $region31: #{colorization_forward.1} parent=0 // pred_check_branch
    %39 = sbr.rel (0) target = $region33
  $region32: #{colorization_forward.1} parent=0 // pred_region
    _
  $region33: #{colorization_forward.1} parent=0 // pred_fallthru
    _
  // Predicated region
  $region34: #{colorization_forward.1} parent=0 // pred_check
    _
  $region35: #{colorization_forward.1} parent=0 // pred_check_branch
    %41 = sbr.rel (0) target = $region37
  $region36: #{colorization_forward.1} parent=0 // pred_region
    _
  $region37: #{colorization_forward.1} parent=0 // pred_fallthru
    _
  // Predicated region
  $region38: #{colorization_forward.1} parent=0 // pred_check
    _
  $region39: #{colorization_forward.1} parent=0 // pred_check_branch
    %43 = sbr.rel (0) target = $region41
  $region40: #{colorization_forward.1} parent=0 // pred_region
    _
  $region41: #{colorization_forward.1} parent=0 // pred_fallthru
    _
  // Predicated region
  $region42: #{colorization_forward.1} parent=0 // pred_check
    _
  $region43: #{colorization_forward.1} parent=0 // pred_check_branch
    %45 = sbr.rel (0) target = $region45
  $region44: #{colorization_forward.1} parent=0 // pred_region
    _
  $region45: #{colorization_forward.1} parent=0 // pred_fallthru
    _
  // Predicated region
  $region46: #{colorization_forward.1} parent=0 // pred_check
    _
  $region47: #{colorization_forward.1} parent=0 // pred_check_branch
    %47 = sbr.rel (0) target = $region49
  $region48: #{colorization_forward.1} parent=0 // pred_region
    _
  $region49: #{colorization_forward.1} parent=0 // pred_fallthru
    _
  // Predicated region
  $region50: #{colorization_forward.1} parent=0 // pred_check
    _
  $region51: #{colorization_forward.1} parent=0 // pred_check_branch
    %49 = sbr.rel (0) target = $region53
  $region52: #{colorization_forward.1} parent=0 // pred_region
    _
  $region53: #{colorization_forward.1} parent=0 // pred_fallthru
    _
  // Predicated region
  $region54: #{colorization_forward.1} parent=0 // pred_check
    _
  $region55: #{colorization_forward.1} parent=0 // pred_check_branch
    %51 = sbr.rel (0) target = $region57
  $region56: #{colorization_forward.1} parent=0 // pred_region
    _
  $region57: #{colorization_forward.1} parent=0 // pred_fallthru
    _
  // Predicated region
  $region58: #{colorization_forward.1} parent=0 // pred_check
    _
  $region59: #{colorization_forward.1} parent=0 // pred_check_branch
    %53 = sbr.rel (0) target = $region61
  $region60: #{colorization_forward.1} parent=0 // pred_region
    _
  $region61: #{colorization_forward.1} parent=0 // pred_fallthru
    _
  // Predicated region
  $region62: #{colorization_forward.1} parent=0 // pred_check
    _
  $region63: #{colorization_forward.1} parent=0 // pred_check_branch
    %55 = sbr.rel (0) target = $region65
  $region64: #{colorization_forward.1} parent=0 // pred_region
    _
  $region65: #{colorization_forward.1} parent=0 // pred_fallthru
    _
  // Predicated region
  $region66: #{colorization_forward.1} parent=0 // pred_check
    _
  $region67: #{colorization_forward.1} parent=0 // pred_check_branch
    %57 = sbr.rel (0) target = $region69
  $region68: #{colorization_forward.1} parent=0 // pred_region
    _
  $region69: #{colorization_forward.1} parent=0 // pred_fallthru
    _
  // Predicated region
  $region70: #{colorization_forward.1} parent=0 // pred_check
    _
  $region71: #{colorization_forward.1} parent=0 // pred_check_branch
    %59 = sbr.rel (0) target = $region73
  $region72: #{colorization_forward.1} parent=0 // pred_region
    _
  $region73: #{colorization_forward.1} parent=0 // pred_fallthru
    _
  // Predicated region
  $region74: #{colorization_forward.1} parent=0 // pred_check
    _
  $region75: #{colorization_forward.1} parent=0 // pred_check_branch
    %61 = sbr.rel (0) target = $region77
  $region76: #{colorization_forward.1} parent=0 // pred_region
    _
  $region77: #{colorization_forward.1} parent=0 // pred_fallthru
    _
  %v62 = vld [vmem:[%s0] sm:$0xff]
  %v63 = vld [vmem:[%s0 + $0x8] sm:$0xff]
  %v64 = vld [vmem:[%s0 + $0x10] sm:$0xff]
  %v65 = vld [vmem:[%s0 + $0x18] sm:$0xff]
  %v66 = vld [vmem:[%s0 + $0x20] sm:$0xff]
  %v67 = vld [vmem:[%s0 + $0x28] sm:$0xff]
  %v68 = vld [vmem:[%s0 + $0x30] sm:$0xff]
  %v69 = vld [vmem:[%s0 + $0x38] sm:$0xff]
  %v70 = vld [vmem:[%s1] sm:$0xff]
  %v71 = vld [vmem:[%s1 + $0x8] sm:$0xff]
  %v72 = vld [vmem:[%s1 + $0x10] sm:$0xff]
  %v73 = vld [vmem:[%s1 + $0x18] sm:$0xff]
  %vm74 = vcmask 261120
  %v76 = vsel %vm74, %v70, 0
  %v79 = vsel %vm74, %v71, 0
  %v82 = vsel %vm74, %v72, 0
  %v85 = vsel %vm74, %v73, 0
  %87 = vmatprep.subr.mxu0 0.0
  %88 = vmatpush1.msra.mxu0 0.0
  %89 = vmatprep.subr.mxu0 0.0
  %90 = vmatpush1.msra.mxu0 0.0
  %91 = vmatprep.subr.mxu0 0.0
  %92 = vmatpush1.msra.mxu0 0.0
  %93 = vmatprep.subr.mxu0 0.0
  %94 = vmatpush1.msra.mxu0 0.0
  %95 = vmatprep.subr.mxu0 0.0
  %96 = vmatpush1.msra.mxu0 0.0
  %97 = vmatprep.subr.mxu0 0.0
  %98 = vmatpush1.msra.mxu0 0.0
  %99 = vmatprep.subr.mxu0 0.0
  %100 = vmatpush1.msra.mxu0 0.0
  %101 = vmatprep.subr.mxu0 0.0
  %102 = vmatpush1.msra.mxu0 0.0
  %103 = vmatprep.subr.mxu0 0.0
  %104 = vmatpush1.msra.mxu0 0.0
  %105 = vmatprep.subr.mxu0 0.0
  %106 = vmatpush1.msra.mxu0 0.0
  %107 = vmatprep.subr.mxu0 0.0
  %108 = vmatpush1.msra.mxu0 0.0
  %109 = vmatprep.subr.mxu0 0.0
  %110 = vmatpush1.msra.mxu0 0.0
  %111 = vmatprep.subr.mxu0 %v69
  %112 = vmatpush1.msra.mxu0 %v68
  %113 = vmatprep.subr.mxu0 %v67
  %114 = vmatpush1.msra.mxu0 %v66
  %115 = vmatprep.subr.mxu0 %v65
  %116 = vmatpush1.msra.mxu0 %v64
  %117 = vmatprep.subr.mxu0 %v63
  %118 = vmatpush1.msra.mxu0 %v62
  %119 = vmatprep.subr.mxu0 0.0
  %120 = vmatpush2.msra.mxu0 0.0
  %121 = vmatprep.subr.mxu0 0.0
  %122 = vmatpush2.msra.mxu0 0.0
  %123 = vmatprep.subr.mxu0 0.0
  %124 = vmatpush2.msra.mxu0 0.0
  %125 = vmatprep.subr.mxu0 0.0
  %126 = vmatpush2.msra.mxu0 0.0
  %127 = vmatprep.subr.mxu0 0.0
  %128 = vmatpush2.msra.mxu0 0.0
  %129 = vmatprep.subr.mxu0 0.0
  %130 = vmatpush2.msra.mxu0 0.0
  %131 = vmatprep.subr.mxu0 0.0
  %132 = vmatpush2.msra.mxu0 0.0
  %133 = vmatprep.subr.mxu0 0.0
  %134 = vmatpush2.msra.mxu0 0.0
  %135 = vmatprep.subr.mxu0 0.0
  %136 = vmatpush2.msra.mxu0 0.0
  %137 = vmatprep.subr.mxu0 0.0
  %138 = vmatpush2.msra.mxu0 0.0
  %139 = vmatprep.subr.mxu0 0.0
  %140 = vmatpush2.msra.mxu0 0.0
  %141 = vmatprep.subr.mxu0 0.0
  %142 = vmatpush2.msra.mxu0 0.0
  %143 = vmatprep.subr.mxu0 0.0
  %144 = vmatpush2.msra.mxu0 0.0
  %145 = vmatprep.subr.mxu0 0.0
  %146 = vmatpush2.msra.mxu0 0.0
  %147 = vmatprep.subr.mxu0 0.0
  %148 = vmatpush2.msra.mxu0 0.0
  %149 = vmatprep.subr.mxu0 0.0
  %150 = vmatpush2.msra.mxu0 0.0
  %151 = vmatprep.mubr.f32.mxu0 0.0
  %152 = vmatmul.mubr.f32.gmra.mxu0 %v76
  %v153 = vpop.f32.mrf.mxu0
  %v154 = vadd.f32 0.0, %v153
  %v155 = vpop.f32.mrf.mxu0
  %v156 = vadd.f32 0.0, %v155
  %157 = vmatprep.mubr.f32.mxu0 0.0
  %158 = vmatmul.mubr.f32.gmra.mxu0 %v79
  %v159 = vpop.f32.mrf.mxu0
  %v160 = vadd.f32 0.0, %v159
  %v161 = vpop.f32.mrf.mxu0
  %v162 = vadd.f32 0.0, %v161
  %163 = vmatprep.mubr.f32.mxu0 0.0
  %164 = vmatmul.mubr.f32.gmra.mxu0 %v82
  %v165 = vpop.f32.mrf.mxu0
  %v166 = vadd.f32 0.0, %v165
  %v167 = vpop.f32.mrf.mxu0
  %v168 = vadd.f32 0.0, %v167
  %169 = vmatprep.mubr.f32.mxu0 0.0
  %170 = vmatmul.mubr.f32.gmra.mxu0 %v85
  %v171 = vpop.f32.mrf.mxu0
  %v172 = vadd.f32 0.0, %v171
  %v173 = vpop.f32.mrf.mxu0
  %v174 = vadd.f32 0.0, %v173
  %175 = vdwg.mxu0
  %s176 = scalar_lea.vmem %s1, 32
  %v177 = vld [vmem:[%s176] sm:$0xff]
  %v178 = vld [vmem:[%s176 + $0x8] sm:$0xff]
  %v179 = vld [vmem:[%s176 + $0x10] sm:$0xff]
  %v180 = vld [vmem:[%s176 + $0x18] sm:$0xff]
  %v182 = vsel %vm74, %v177, 0
  %v185 = vsel %vm74, %v178, 0
  %v188 = vsel %vm74, %v179, 0
  %v191 = vsel %vm74, %v180, 0
  %193 = vmatprep.subr.mxu0 0.0
  %194 = vmatpush1.msra.mxu0 0.0
  %195 = vmatprep.subr.mxu0 0.0
  %196 = vmatpush1.msra.mxu0 0.0
  %197 = vmatprep.subr.mxu0 0.0
  %198 = vmatpush1.msra.mxu0 0.0
  %199 = vmatprep.subr.mxu0 0.0
  %200 = vmatpush1.msra.mxu0 0.0
  %201 = vmatprep.subr.mxu0 0.0
  %202 = vmatpush1.msra.mxu0 0.0
  %203 = vmatprep.subr.mxu0 0.0
  %204 = vmatpush1.msra.mxu0 0.0
  %205 = vmatprep.subr.mxu0 0.0
  %206 = vmatpush1.msra.mxu0 0.0
  %207 = vmatprep.subr.mxu0 0.0
  %208 = vmatpush1.msra.mxu0 0.0
  %209 = vmatprep.subr.mxu0 0.0
  %210 = vmatpush1.msra.mxu0 0.0
  %211 = vmatprep.subr.mxu0 0.0
  %212 = vmatpush1.msra.mxu0 0.0
  %213 = vmatprep.subr.mxu0 0.0
  %214 = vmatpush1.msra.mxu0 0.0
  %215 = vmatprep.subr.mxu0 0.0
  %216 = vmatpush1.msra.mxu0 0.0
  %217 = vmatprep.subr.mxu0 %v69
  %218 = vmatpush1.msra.mxu0 %v68
  %219 = vmatprep.subr.mxu0 %v67
  %220 = vmatpush1.msra.mxu0 %v66
  %221 = vmatprep.subr.mxu0 %v65
  %222 = vmatpush1.msra.mxu0 %v64
  %223 = vmatprep.subr.mxu0 %v63
  %224 = vmatpush1.msra.mxu0 %v62
  %225 = vmatprep.subr.mxu0 0.0
  %226 = vmatpush2.msra.mxu0 0.0
  %227 = vmatprep.subr.mxu0 0.0
  %228 = vmatpush2.msra.mxu0 0.0
  %229 = vmatprep.subr.mxu0 0.0
  %230 = vmatpush2.msra.mxu0 0.0
  %231 = vmatprep.subr.mxu0 0.0
  %232 = vmatpush2.msra.mxu0 0.0
  %233 = vmatprep.subr.mxu0 0.0
  %234 = vmatpush2.msra.mxu0 0.0
  %235 = vmatprep.subr.mxu0 0.0
  %236 = vmatpush2.msra.mxu0 0.0
  %237 = vmatprep.subr.mxu0 0.0
  %238 = vmatpush2.msra.mxu0 0.0
  %239 = vmatprep.subr.mxu0 0.0
  %240 = vmatpush2.msra.mxu0 0.0
  %241 = vmatprep.subr.mxu0 0.0
  %242 = vmatpush2.msra.mxu0 0.0
  %243 = vmatprep.subr.mxu0 0.0
  %244 = vmatpush2.msra.mxu0 0.0
  %245 = vmatprep.subr.mxu0 0.0
  %246 = vmatpush2.msra.mxu0 0.0
  %247 = vmatprep.subr.mxu0 0.0
  %248 = vmatpush2.msra.mxu0 0.0
  %249 = vmatprep.subr.mxu0 0.0
  %250 = vmatpush2.msra.mxu0 0.0
  %251 = vmatprep.subr.mxu0 0.0
  %252 = vmatpush2.msra.mxu0 0.0
  %253 = vmatprep.subr.mxu0 0.0
  %254 = vmatpush2.msra.mxu0 0.0
  %255 = vmatprep.subr.mxu0 0.0
  %256 = vmatpush2.msra.mxu0 0.0
  %257 = vmatprep.mubr.f32.mxu0 0.0
  %258 = vmatmul.mubr.f32.gmra.mxu0 %v182
  %v259 = vpop.f32.mrf.mxu0
  %v260 = vadd.f32 0.0, %v259
  %v261 = vpop.f32.mrf.mxu0
  %v262 = vadd.f32 0.0, %v261
  %263 = vmatprep.mubr.f32.mxu0 0.0
  %264 = vmatmul.mubr.f32.gmra.mxu0 %v185
  %v265 = vpop.f32.mrf.mxu0
  %v266 = vadd.f32 0.0, %v265
  %v267 = vpop.f32.mrf.mxu0
  %v268 = vadd.f32 0.0, %v267
  %269 = vmatprep.mubr.f32.mxu0 0.0
  %270 = vmatmul.mubr.f32.gmra.mxu0 %v188
  %v271 = vpop.f32.mrf.mxu0
  %v272 = vadd.f32 0.0, %v271
  %v273 = vpop.f32.mrf.mxu0
  %v274 = vadd.f32 0.0, %v273
  %275 = vmatprep.mubr.f32.mxu0 0.0
  %276 = vmatmul.mubr.f32.gmra.mxu0 %v191
  %v277 = vpop.f32.mrf.mxu0
  %v278 = vadd.f32 0.0, %v277
  %v279 = vpop.f32.mrf.mxu0
  %v280 = vadd.f32 0.0, %v279
  %281 = vdwg.mxu0
  %s282 = scalar_lea.vmem %s1, 64
  %v283 = vld [vmem:[%s282] sm:$0xff]
  %v284 = vld [vmem:[%s282 + $0x8] sm:$0xff]
  %v285 = vld [vmem:[%s282 + $0x10] sm:$0xff]
  %v286 = vld [vmem:[%s282 + $0x18] sm:$0xff]
  %v288 = vsel %vm74, %v283, 0
  %v291 = vsel %vm74, %v284, 0
  %v294 = vsel %vm74, %v285, 0
  %v297 = vsel %vm74, %v286, 0
  %299 = vmatprep.subr.mxu0 0.0
  %300 = vmatpush1.msra.mxu0 0.0
  %301 = vmatprep.subr.mxu0 0.0
  %302 = vmatpush1.msra.mxu0 0.0
  %303 = vmatprep.subr.mxu0 0.0
  %304 = vmatpush1.msra.mxu0 0.0
  %305 = vmatprep.subr.mxu0 0.0
  %306 = vmatpush1.msra.mxu0 0.0
  %307 = vmatprep.subr.mxu0 0.0
  %308 = vmatpush1.msra.mxu0 0.0
  %309 = vmatprep.subr.mxu0 0.0
  %310 = vmatpush1.msra.mxu0 0.0
  %311 = vmatprep.subr.mxu0 0.0
  %312 = vmatpush1.msra.mxu0 0.0
  %313 = vmatprep.subr.mxu0 0.0
  %314 = vmatpush1.msra.mxu0 0.0
  %315 = vmatprep.subr.mxu0 0.0
  %316 = vmatpush1.msra.mxu0 0.0
  %317 = vmatprep.subr.mxu0 0.0
  %318 = vmatpush1.msra.mxu0 0.0
  %319 = vmatprep.subr.mxu0 0.0
  %320 = vmatpush1.msra.mxu0 0.0
  %321 = vmatprep.subr.mxu0 0.0
  %322 = vmatpush1.msra.mxu0 0.0
  %323 = vmatprep.subr.mxu0 %v69
  %324 = vmatpush1.msra.mxu0 %v68
  %325 = vmatprep.subr.mxu0 %v67
  %326 = vmatpush1.msra.mxu0 %v66
  %327 = vmatprep.subr.mxu0 %v65
  %328 = vmatpush1.msra.mxu0 %v64
  %329 = vmatprep.subr.mxu0 %v63
  %330 = vmatpush1.msra.mxu0 %v62
  %331 = vmatprep.subr.mxu0 0.0
  %332 = vmatpush2.msra.mxu0 0.0
  %333 = vmatprep.subr.mxu0 0.0
  %334 = vmatpush2.msra.mxu0 0.0
  %335 = vmatprep.subr.mxu0 0.0
  %336 = vmatpush2.msra.mxu0 0.0
  %337 = vmatprep.subr.mxu0 0.0
  %338 = vmatpush2.msra.mxu0 0.0
  %339 = vmatprep.subr.mxu0 0.0
  %340 = vmatpush2.msra.mxu0 0.0
  %341 = vmatprep.subr.mxu0 0.0
  %342 = vmatpush2.msra.mxu0 0.0
  %343 = vmatprep.subr.mxu0 0.0
  %344 = vmatpush2.msra.mxu0 0.0
  %345 = vmatprep.subr.mxu0 0.0
  %346 = vmatpush2.msra.mxu0 0.0
  %347 = vmatprep.subr.mxu0 0.0
  %348 = vmatpush2.msra.mxu0 0.0
  %349 = vmatprep.subr.mxu0 0.0
  %350 = vmatpush2.msra.mxu0 0.0
  %351 = vmatprep.subr.mxu0 0.0
  %352 = vmatpush2.msra.mxu0 0.0
  %353 = vmatprep.subr.mxu0 0.0
  %354 = vmatpush2.msra.mxu0 0.0
  %355 = vmatprep.subr.mxu0 0.0
  %356 = vmatpush2.msra.mxu0 0.0
  %357 = vmatprep.subr.mxu0 0.0
  %358 = vmatpush2.msra.mxu0 0.0
  %359 = vmatprep.subr.mxu0 0.0
  %360 = vmatpush2.msra.mxu0 0.0
  %361 = vmatprep.subr.mxu0 0.0
  %362 = vmatpush2.msra.mxu0 0.0
  %363 = vmatprep.mubr.f32.mxu0 0.0
  %364 = vmatmul.mubr.f32.gmra.mxu0 %v288
  %v365 = vpop.f32.mrf.mxu0
  %v366 = vadd.f32 0.0, %v365
  %v367 = vpop.f32.mrf.mxu0
  %v368 = vadd.f32 0.0, %v367
  %369 = vmatprep.mubr.f32.mxu0 0.0
  %370 = vmatmul.mubr.f32.gmra.mxu0 %v291
  %v371 = vpop.f32.mrf.mxu0
  %v372 = vadd.f32 0.0, %v371
  %v373 = vpop.f32.mrf.mxu0
  %v374 = vadd.f32 0.0, %v373
  %375 = vmatprep.mubr.f32.mxu0 0.0
  %376 = vmatmul.mubr.f32.gmra.mxu0 %v294
  %v377 = vpop.f32.mrf.mxu0
  %v378 = vadd.f32 0.0, %v377
  %v379 = vpop.f32.mrf.mxu0
  %v380 = vadd.f32 0.0, %v379
  %381 = vmatprep.mubr.f32.mxu0 0.0
  %382 = vmatmul.mubr.f32.gmra.mxu0 %v297
  %v383 = vpop.f32.mrf.mxu0
  %v384 = vadd.f32 0.0, %v383
  %v385 = vpop.f32.mrf.mxu0
  %v386 = vadd.f32 0.0, %v385
  %387 = vdwg.mxu0
  %s388 = scalar_lea.vmem %s1, 96
  %v389 = vld [vmem:[%s388] sm:$0xff]
  %v390 = vld [vmem:[%s388 + $0x8] sm:$0xff]
  %v391 = vld [vmem:[%s388 + $0x10] sm:$0xff]
  %v392 = vld [vmem:[%s388 + $0x18] sm:$0xff]
  %v394 = vsel %vm74, %v389, 0
  %v397 = vsel %vm74, %v390, 0
  %v400 = vsel %vm74, %v391, 0
  %v403 = vsel %vm74, %v392, 0
  %405 = vmatprep.subr.mxu0 0.0
  %406 = vmatpush1.msra.mxu0 0.0
  %407 = vmatprep.subr.mxu0 0.0
  %408 = vmatpush1.msra.mxu0 0.0
  %409 = vmatprep.subr.mxu0 0.0
  %410 = vmatpush1.msra.mxu0 0.0
  %411 = vmatprep.subr.mxu0 0.0
  %412 = vmatpush1.msra.mxu0 0.0
  %413 = vmatprep.subr.mxu0 0.0
  %414 = vmatpush1.msra.mxu0 0.0
  %415 = vmatprep.subr.mxu0 0.0
  %416 = vmatpush1.msra.mxu0 0.0
  %417 = vmatprep.subr.mxu0 0.0
  %418 = vmatpush1.msra.mxu0 0.0
  %419 = vmatprep.subr.mxu0 0.0
  %420 = vmatpush1.msra.mxu0 0.0
  %421 = vmatprep.subr.mxu0 0.0
  %422 = vmatpush1.msra.mxu0 0.0
  %423 = vmatprep.subr.mxu0 0.0
  %424 = vmatpush1.msra.mxu0 0.0
  %425 = vmatprep.subr.mxu0 0.0
  %426 = vmatpush1.msra.mxu0 0.0
  %427 = vmatprep.subr.mxu0 0.0
  %428 = vmatpush1.msra.mxu0 0.0
  %429 = vmatprep.subr.mxu0 %v69
  %430 = vmatpush1.msra.mxu0 %v68
  %431 = vmatprep.subr.mxu0 %v67
  %432 = vmatpush1.msra.mxu0 %v66
  %433 = vmatprep.subr.mxu0 %v65
  %434 = vmatpush1.msra.mxu0 %v64
  %435 = vmatprep.subr.mxu0 %v63
  %436 = vmatpush1.msra.mxu0 %v62
  %437 = vmatprep.subr.mxu0 0.0
  %438 = vmatpush2.msra.mxu0 0.0
  %439 = vmatprep.subr.mxu0 0.0
  %440 = vmatpush2.msra.mxu0 0.0
  %441 = vmatprep.subr.mxu0 0.0
  %442 = vmatpush2.msra.mxu0 0.0
  %443 = vmatprep.subr.mxu0 0.0
  %444 = vmatpush2.msra.mxu0 0.0
  %445 = vmatprep.subr.mxu0 0.0
  %446 = vmatpush2.msra.mxu0 0.0
  %447 = vmatprep.subr.mxu0 0.0
  %448 = vmatpush2.msra.mxu0 0.0
  %449 = vmatprep.subr.mxu0 0.0
  %450 = vmatpush2.msra.mxu0 0.0
  %451 = vmatprep.subr.mxu0 0.0
  %452 = vmatpush2.msra.mxu0 0.0
  %453 = vmatprep.subr.mxu0 0.0
  %454 = vmatpush2.msra.mxu0 0.0
  %455 = vmatprep.subr.mxu0 0.0
  %456 = vmatpush2.msra.mxu0 0.0
  %457 = vmatprep.subr.mxu0 0.0
  %458 = vmatpush2.msra.mxu0 0.0
  %459 = vmatprep.subr.mxu0 0.0
  %460 = vmatpush2.msra.mxu0 0.0
  %461 = vmatprep.subr.mxu0 0.0
  %462 = vmatpush2.msra.mxu0 0.0
  %463 = vmatprep.subr.mxu0 0.0
  %464 = vmatpush2.msra.mxu0 0.0
  %465 = vmatprep.subr.mxu0 0.0
  %466 = vmatpush2.msra.mxu0 0.0
  %467 = vmatprep.subr.mxu0 0.0
  %468 = vmatpush2.msra.mxu0 0.0
  %469 = vmatprep.mubr.f32.mxu0 0.0
  %470 = vmatmul.mubr.f32.gmra.mxu0 %v394
  %v471 = vpop.f32.mrf.mxu0
  %v472 = vadd.f32 0.0, %v471
  %v473 = vpop.f32.mrf.mxu0
  %v474 = vadd.f32 0.0, %v473
  %475 = vmatprep.mubr.f32.mxu0 0.0
  %476 = vmatmul.mubr.f32.gmra.mxu0 %v397
  %v477 = vpop.f32.mrf.mxu0
  %v478 = vadd.f32 0.0, %v477
  %v479 = vpop.f32.mrf.mxu0
  %v480 = vadd.f32 0.0, %v479
  %481 = vmatprep.mubr.f32.mxu0 0.0
  %482 = vmatmul.mubr.f32.gmra.mxu0 %v400
  %v483 = vpop.f32.mrf.mxu0
  %v484 = vadd.f32 0.0, %v483
  %v485 = vpop.f32.mrf.mxu0
  %v486 = vadd.f32 0.0, %v485
  %487 = vmatprep.mubr.f32.mxu0 0.0
  %488 = vmatmul.mubr.f32.gmra.mxu0 %v403
  %v489 = vpop.f32.mrf.mxu0
  %v490 = vadd.f32 0.0, %v489
  %v491 = vpop.f32.mrf.mxu0
  %v492 = vadd.f32 0.0, %v491
  %493 = vdwg.mxu0
  %s494 = scalar_lea.vmem %s1, 128
  %v495 = vld [vmem:[%s494] sm:$0xff]
  %v496 = vld [vmem:[%s494 + $0x8] sm:$0xff]
  %v497 = vld [vmem:[%s494 + $0x10] sm:$0xff]
  %v498 = vld [vmem:[%s494 + $0x18] sm:$0xff]
  %v500 = vsel %vm74, %v495, 0
  %v503 = vsel %vm74, %v496, 0
  %v506 = vsel %vm74, %v497, 0
  %v509 = vsel %vm74, %v498, 0
  %511 = vmatprep.subr.mxu0 0.0
  %512 = vmatpush1.msra.mxu0 0.0
  %513 = vmatprep.subr.mxu0 0.0
  %514 = vmatpush1.msra.mxu0 0.0
  %515 = vmatprep.subr.mxu0 0.0
  %516 = vmatpush1.msra.mxu0 0.0
  %517 = vmatprep.subr.mxu0 0.0
  %518 = vmatpush1.msra.mxu0 0.0
  %519 = vmatprep.subr.mxu0 0.0
  %520 = vmatpush1.msra.mxu0 0.0
  %521 = vmatprep.subr.mxu0 0.0
  %522 = vmatpush1.msra.mxu0 0.0
  %523 = vmatprep.subr.mxu0 0.0
  %524 = vmatpush1.msra.mxu0 0.0
  %525 = vmatprep.subr.mxu0 0.0
  %526 = vmatpush1.msra.mxu0 0.0
  %527 = vmatprep.subr.mxu0 0.0
  %528 = vmatpush1.msra.mxu0 0.0
  %529 = vmatprep.subr.mxu0 0.0
  %530 = vmatpush1.msra.mxu0 0.0
  %531 = vmatprep.subr.mxu0 0.0
  %532 = vmatpush1.msra.mxu0 0.0
  %533 = vmatprep.subr.mxu0 0.0
  %534 = vmatpush1.msra.mxu0 0.0
  %535 = vmatprep.subr.mxu0 %v69
  %536 = vmatpush1.msra.mxu0 %v68
  %537 = vmatprep.subr.mxu0 %v67
  %538 = vmatpush1.msra.mxu0 %v66
  %539 = vmatprep.subr.mxu0 %v65
  %540 = vmatpush1.msra.mxu0 %v64
  %541 = vmatprep.subr.mxu0 %v63
  %542 = vmatpush1.msra.mxu0 %v62
  %543 = vmatprep.subr.mxu0 0.0
  %544 = vmatpush2.msra.mxu0 0.0
  %545 = vmatprep.subr.mxu0 0.0
  %546 = vmatpush2.msra.mxu0 0.0
  %547 = vmatprep.subr.mxu0 0.0
  %548 = vmatpush2.msra.mxu0 0.0
  %549 = vmatprep.subr.mxu0 0.0
  %550 = vmatpush2.msra.mxu0 0.0
  %551 = vmatprep.subr.mxu0 0.0
  %552 = vmatpush2.msra.mxu0 0.0
  %553 = vmatprep.subr.mxu0 0.0
  %554 = vmatpush2.msra.mxu0 0.0
  %555 = vmatprep.subr.mxu0 0.0
  %556 = vmatpush2.msra.mxu0 0.0
  %557 = vmatprep.subr.mxu0 0.0
  %558 = vmatpush2.msra.mxu0 0.0
  %559 = vmatprep.subr.mxu0 0.0
  %560 = vmatpush2.msra.mxu0 0.0
  %561 = vmatprep.subr.mxu0 0.0
  %562 = vmatpush2.msra.mxu0 0.0
  %563 = vmatprep.subr.mxu0 0.0
  %564 = vmatpush2.msra.mxu0 0.0
  %565 = vmatprep.subr.mxu0 0.0
  %566 = vmatpush2.msra.mxu0 0.0
  %567 = vmatprep.subr.mxu0 0.0
  %568 = vmatpush2.msra.mxu0 0.0
  %569 = vmatprep.subr.mxu0 0.0
  %570 = vmatpush2.msra.mxu0 0.0
  %571 = vmatprep.subr.mxu0 0.0
  %572 = vmatpush2.msra.mxu0 0.0
  %573 = vmatprep.subr.mxu0 0.0
  %574 = vmatpush2.msra.mxu0 0.0
  %575 = vmatprep.mubr.f32.mxu0 0.0
  %576 = vmatmul.mubr.f32.gmra.mxu0 %v500
  %v577 = vpop.f32.mrf.mxu0
  %v578 = vadd.f32 0.0, %v577
  %v579 = vpop.f32.mrf.mxu0
  %v580 = vadd.f32 0.0, %v579
  %581 = vmatprep.mubr.f32.mxu0 0.0
  %582 = vmatmul.mubr.f32.gmra.mxu0 %v503
  %v583 = vpop.f32.mrf.mxu0
  %v584 = vadd.f32 0.0, %v583
  %v585 = vpop.f32.mrf.mxu0
  %v586 = vadd.f32 0.0, %v585
  %587 = vmatprep.mubr.f32.mxu0 0.0
  %588 = vmatmul.mubr.f32.gmra.mxu0 %v506
  %v589 = vpop.f32.mrf.mxu0
  %v590 = vadd.f32 0.0, %v589
  %v591 = vpop.f32.mrf.mxu0
  %v592 = vadd.f32 0.0, %v591
  %593 = vmatprep.mubr.f32.mxu0 0.0
  %594 = vmatmul.mubr.f32.gmra.mxu0 %v509
  %v595 = vpop.f32.mrf.mxu0
  %v596 = vadd.f32 0.0, %v595
  %v597 = vpop.f32.mrf.mxu0
  %v598 = vadd.f32 0.0, %v597
  %599 = vdwg.mxu0
  %s600 = scalar_lea.vmem %s1, 160
  %v601 = vld [vmem:[%s600] sm:$0xff]
  %v602 = vld [vmem:[%s600 + $0x8] sm:$0xff]
  %v603 = vld [vmem:[%s600 + $0x10] sm:$0xff]
  %v604 = vld [vmem:[%s600 + $0x18] sm:$0xff]
  %v606 = vsel %vm74, %v601, 0
  %v609 = vsel %vm74, %v602, 0
  %v612 = vsel %vm74, %v603, 0
  %v615 = vsel %vm74, %v604, 0
  %617 = vmatprep.subr.mxu0 0.0
  %618 = vmatpush1.msra.mxu0 0.0
  %619 = vmatprep.subr.mxu0 0.0
  %620 = vmatpush1.msra.mxu0 0.0
  %621 = vmatprep.subr.mxu0 0.0
  %622 = vmatpush1.msra.mxu0 0.0
  %623 = vmatprep.subr.mxu0 0.0
  %624 = vmatpush1.msra.mxu0 0.0
  %625 = vmatprep.subr.mxu0 0.0
  %626 = vmatpush1.msra.mxu0 0.0
  %627 = vmatprep.subr.mxu0 0.0
  %628 = vmatpush1.msra.mxu0 0.0
  %629 = vmatprep.subr.mxu0 0.0
  %630 = vmatpush1.msra.mxu0 0.0
  %631 = vmatprep.subr.mxu0 0.0
  %632 = vmatpush1.msra.mxu0 0.0
  %633 = vmatprep.subr.mxu0 0.0
  %634 = vmatpush1.msra.mxu0 0.0
  %635 = vmatprep.subr.mxu0 0.0
  %636 = vmatpush1.msra.mxu0 0.0
  %637 = vmatprep.subr.mxu0 0.0
  %638 = vmatpush1.msra.mxu0 0.0
  %639 = vmatprep.subr.mxu0 0.0
  %640 = vmatpush1.msra.mxu0 0.0
  %641 = vmatprep.subr.mxu0 %v69
  %642 = vmatpush1.msra.mxu0 %v68
  %643 = vmatprep.subr.mxu0 %v67
  %644 = vmatpush1.msra.mxu0 %v66
  %645 = vmatprep.subr.mxu0 %v65
  %646 = vmatpush1.msra.mxu0 %v64
  %647 = vmatprep.subr.mxu0 %v63
  %648 = vmatpush1.msra.mxu0 %v62
  %649 = vmatprep.subr.mxu0 0.0
  %650 = vmatpush2.msra.mxu0 0.0
  %651 = vmatprep.subr.mxu0 0.0
  %652 = vmatpush2.msra.mxu0 0.0
  %653 = vmatprep.subr.mxu0 0.0
  %654 = vmatpush2.msra.mxu0 0.0
  %655 = vmatprep.subr.mxu0 0.0
  %656 = vmatpush2.msra.mxu0 0.0
  %657 = vmatprep.subr.mxu0 0.0
  %658 = vmatpush2.msra.mxu0 0.0
  %659 = vmatprep.subr.mxu0 0.0
  %660 = vmatpush2.msra.mxu0 0.0
  %661 = vmatprep.subr.mxu0 0.0
  %662 = vmatpush2.msra.mxu0 0.0
  %663 = vmatprep.subr.mxu0 0.0
  %664 = vmatpush2.msra.mxu0 0.0
  %665 = vmatprep.subr.mxu0 0.0
  %666 = vmatpush2.msra.mxu0 0.0
  %667 = vmatprep.subr.mxu0 0.0
  %668 = vmatpush2.msra.mxu0 0.0
  %669 = vmatprep.subr.mxu0 0.0
  %670 = vmatpush2.msra.mxu0 0.0
  %671 = vmatprep.subr.mxu0 0.0
  %672 = vmatpush2.msra.mxu0 0.0
  %673 = vmatprep.subr.mxu0 0.0
  %674 = vmatpush2.msra.mxu0 0.0
  %675 = vmatprep.subr.mxu0 0.0
  %676 = vmatpush2.msra.mxu0 0.0
  %677 = vmatprep.subr.mxu0 0.0
  %678 = vmatpush2.msra.mxu0 0.0
  %679 = vmatprep.subr.mxu0 0.0
  %680 = vmatpush2.msra.mxu0 0.0
  %681 = vmatprep.mubr.f32.mxu0 0.0
  %682 = vmatmul.mubr.f32.gmra.mxu0 %v606
  %v683 = vpop.f32.mrf.mxu0
  %v684 = vadd.f32 0.0, %v683
  %v685 = vpop.f32.mrf.mxu0
  %v686 = vadd.f32 0.0, %v685
  %687 = vmatprep.mubr.f32.mxu0 0.0
  %688 = vmatmul.mubr.f32.gmra.mxu0 %v609
  %v689 = vpop.f32.mrf.mxu0
  %v690 = vadd.f32 0.0, %v689
  %v691 = vpop.f32.mrf.mxu0
  %v692 = vadd.f32 0.0, %v691
  %693 = vmatprep.mubr.f32.mxu0 0.0
  %694 = vmatmul.mubr.f32.gmra.mxu0 %v612
  %v695 = vpop.f32.mrf.mxu0
  %v696 = vadd.f32 0.0, %v695
  %v697 = vpop.f32.mrf.mxu0
  %v698 = vadd.f32 0.0, %v697
  %699 = vmatprep.mubr.f32.mxu0 0.0
  %700 = vmatmul.mubr.f32.gmra.mxu0 %v615
  %v701 = vpop.f32.mrf.mxu0
  %v702 = vadd.f32 0.0, %v701
  %v703 = vpop.f32.mrf.mxu0
  %v704 = vadd.f32 0.0, %v703
  %705 = vdwg.mxu0
  %s706 = scalar_lea.vmem %s1, 192
  %v707 = vld [vmem:[%s706] sm:$0xff]
  %v708 = vld [vmem:[%s706 + $0x8] sm:$0xff]
  %v709 = vld [vmem:[%s706 + $0x10] sm:$0xff]
  %v710 = vld [vmem:[%s706 + $0x18] sm:$0xff]
  %v712 = vsel %vm74, %v707, 0
  %v715 = vsel %vm74, %v708, 0
  %v718 = vsel %vm74, %v709, 0
  %v721 = vsel %vm74, %v710, 0
  %723 = vmatprep.subr.mxu0 0.0
  %724 = vmatpush1.msra.mxu0 0.0
  %725 = vmatprep.subr.mxu0 0.0
  %726 = vmatpush1.msra.mxu0 0.0
  %727 = vmatprep.subr.mxu0 0.0
  %728 = vmatpush1.msra.mxu0 0.0
  %729 = vmatprep.subr.mxu0 0.0
  %730 = vmatpush1.msra.mxu0 0.0
  %731 = vmatprep.subr.mxu0 0.0
  %732 = vmatpush1.msra.mxu0 0.0
  %733 = vmatprep.subr.mxu0 0.0
  %734 = vmatpush1.msra.mxu0 0.0
  %735 = vmatprep.subr.mxu0 0.0
  %736 = vmatpush1.msra.mxu0 0.0
  %737 = vmatprep.subr.mxu0 0.0
  %738 = vmatpush1.msra.mxu0 0.0
  %739 = vmatprep.subr.mxu0 0.0
  %740 = vmatpush1.msra.mxu0 0.0
  %741 = vmatprep.subr.mxu0 0.0
  %742 = vmatpush1.msra.mxu0 0.0
  %743 = vmatprep.subr.mxu0 0.0
  %744 = vmatpush1.msra.mxu0 0.0
  %745 = vmatprep.subr.mxu0 0.0
  %746 = vmatpush1.msra.mxu0 0.0
  %747 = vmatprep.subr.mxu0 %v69
  %748 = vmatpush1.msra.mxu0 %v68
  %749 = vmatprep.subr.mxu0 %v67
  %750 = vmatpush1.msra.mxu0 %v66
  %751 = vmatprep.subr.mxu0 %v65
  %752 = vmatpush1.msra.mxu0 %v64
  %753 = vmatprep.subr.mxu0 %v63
  %754 = vmatpush1.msra.mxu0 %v62
  %755 = vmatprep.subr.mxu0 0.0
  %756 = vmatpush2.msra.mxu0 0.0
  %757 = vmatprep.subr.mxu0 0.0
  %758 = vmatpush2.msra.mxu0 0.0
  %759 = vmatprep.subr.mxu0 0.0
  %760 = vmatpush2.msra.mxu0 0.0
  %761 = vmatprep.subr.mxu0 0.0
  %762 = vmatpush2.msra.mxu0 0.0
  %763 = vmatprep.subr.mxu0 0.0
  %764 = vmatpush2.msra.mxu0 0.0
  %765 = vmatprep.subr.mxu0 0.0
  %766 = vmatpush2.msra.mxu0 0.0
  %767 = vmatprep.subr.mxu0 0.0
  %768 = vmatpush2.msra.mxu0 0.0
  %769 = vmatprep.subr.mxu0 0.0
  %770 = vmatpush2.msra.mxu0 0.0
  %771 = vmatprep.subr.mxu0 0.0
  %772 = vmatpush2.msra.mxu0 0.0
  %773 = vmatprep.subr.mxu0 0.0
  %774 = vmatpush2.msra.mxu0 0.0
  %775 = vmatprep.subr.mxu0 0.0
  %776 = vmatpush2.msra.mxu0 0.0
  %777 = vmatprep.subr.mxu0 0.0
  %778 = vmatpush2.msra.mxu0 0.0
  %779 = vmatprep.subr.mxu0 0.0
  %780 = vmatpush2.msra.mxu0 0.0
  %781 = vmatprep.subr.mxu0 0.0
  %782 = vmatpush2.msra.mxu0 0.0
  %783 = vmatprep.subr.mxu0 0.0
  %784 = vmatpush2.msra.mxu0 0.0
  %785 = vmatprep.subr.mxu0 0.0
  %786 = vmatpush2.msra.mxu0 0.0
  %787 = vmatprep.mubr.f32.mxu0 0.0
  %788 = vmatmul.mubr.f32.gmra.mxu0 %v712
  %v789 = vpop.f32.mrf.mxu0
  %v790 = vadd.f32 0.0, %v789
  %v791 = vpop.f32.mrf.mxu0
  %v792 = vadd.f32 0.0, %v791
  %793 = vmatprep.mubr.f32.mxu0 0.0
  %794 = vmatmul.mubr.f32.gmra.mxu0 %v715
  %v795 = vpop.f32.mrf.mxu0
  %v796 = vadd.f32 0.0, %v795
  %v797 = vpop.f32.mrf.mxu0
  %v798 = vadd.f32 0.0, %v797
  %799 = vmatprep.mubr.f32.mxu0 0.0
  %800 = vmatmul.mubr.f32.gmra.mxu0 %v718
  %v801 = vpop.f32.mrf.mxu0
  %v802 = vadd.f32 0.0, %v801
  %v803 = vpop.f32.mrf.mxu0
  %v804 = vadd.f32 0.0, %v803
  %805 = vmatprep.mubr.f32.mxu0 0.0
  %806 = vmatmul.mubr.f32.gmra.mxu0 %v721
  %v807 = vpop.f32.mrf.mxu0
  %v808 = vadd.f32 0.0, %v807
  %v809 = vpop.f32.mrf.mxu0
  %v810 = vadd.f32 0.0, %v809
  %811 = vdwg.mxu0
  %s812 = scalar_lea.vmem %s1, 224
  %v813 = vld [vmem:[%s812] sm:$0xff]
  %v814 = vld [vmem:[%s812 + $0x8] sm:$0xff]
  %v815 = vld [vmem:[%s812 + $0x10] sm:$0xff]
  %v816 = vld [vmem:[%s812 + $0x18] sm:$0xff]
  %v818 = vsel %vm74, %v813, 0
  %v821 = vsel %vm74, %v814, 0
  %v824 = vsel %vm74, %v815, 0
  %v827 = vsel %vm74, %v816, 0
  %829 = vmatprep.subr.mxu0 0.0
  %830 = vmatpush1.msra.mxu0 0.0
  %831 = vmatprep.subr.mxu0 0.0
  %832 = vmatpush1.msra.mxu0 0.0
  %833 = vmatprep.subr.mxu0 0.0
  %834 = vmatpush1.msra.mxu0 0.0
  %835 = vmatprep.subr.mxu0 0.0
  %836 = vmatpush1.msra.mxu0 0.0
  %837 = vmatprep.subr.mxu0 0.0
  %838 = vmatpush1.msra.mxu0 0.0
  %839 = vmatprep.subr.mxu0 0.0
  %840 = vmatpush1.msra.mxu0 0.0
  %841 = vmatprep.subr.mxu0 0.0
  %842 = vmatpush1.msra.mxu0 0.0
  %843 = vmatprep.subr.mxu0 0.0
  %844 = vmatpush1.msra.mxu0 0.0
  %845 = vmatprep.subr.mxu0 0.0
  %846 = vmatpush1.msra.mxu0 0.0
  %847 = vmatprep.subr.mxu0 0.0
  %848 = vmatpush1.msra.mxu0 0.0
  %849 = vmatprep.subr.mxu0 0.0
  %850 = vmatpush1.msra.mxu0 0.0
  %851 = vmatprep.subr.mxu0 0.0
  %852 = vmatpush1.msra.mxu0 0.0
  %853 = vmatprep.subr.mxu0 %v69
  %854 = vmatpush1.msra.mxu0 %v68
  %855 = vmatprep.subr.mxu0 %v67
  %856 = vmatpush1.msra.mxu0 %v66
  %857 = vmatprep.subr.mxu0 %v65
  %858 = vmatpush1.msra.mxu0 %v64
  %859 = vmatprep.subr.mxu0 %v63
  %860 = vmatpush1.msra.mxu0 %v62
  %861 = vmatprep.subr.mxu0 0.0
  %862 = vmatpush2.msra.mxu0 0.0
  %863 = vmatprep.subr.mxu0 0.0
  %864 = vmatpush2.msra.mxu0 0.0
  %865 = vmatprep.subr.mxu0 0.0
  %866 = vmatpush2.msra.mxu0 0.0
  %867 = vmatprep.subr.mxu0 0.0
  %868 = vmatpush2.msra.mxu0 0.0
  %869 = vmatprep.subr.mxu0 0.0
  %870 = vmatpush2.msra.mxu0 0.0
  %871 = vmatprep.subr.mxu0 0.0
  %872 = vmatpush2.msra.mxu0 0.0
  %873 = vmatprep.subr.mxu0 0.0
  %874 = vmatpush2.msra.mxu0 0.0
  %875 = vmatprep.subr.mxu0 0.0
  %876 = vmatpush2.msra.mxu0 0.0
  %877 = vmatprep.subr.mxu0 0.0
  %878 = vmatpush2.msra.mxu0 0.0
  %879 = vmatprep.subr.mxu0 0.0
  %880 = vmatpush2.msra.mxu0 0.0
  %881 = vmatprep.subr.mxu0 0.0
  %882 = vmatpush2.msra.mxu0 0.0
  %883 = vmatprep.subr.mxu0 0.0
  %884 = vmatpush2.msra.mxu0 0.0
  %885 = vmatprep.subr.mxu0 0.0
  %886 = vmatpush2.msra.mxu0 0.0
  %887 = vmatprep.subr.mxu0 0.0
  %888 = vmatpush2.msra.mxu0 0.0
  %889 = vmatprep.subr.mxu0 0.0
  %890 = vmatpush2.msra.mxu0 0.0
  %891 = vmatprep.subr.mxu0 0.0
  %892 = vmatpush2.msra.mxu0 0.0
  %893 = vmatprep.mubr.f32.mxu0 0.0
  %894 = vmatmul.mubr.f32.gmra.mxu0 %v818
  %v895 = vpop.f32.mrf.mxu0
  %v896 = vadd.f32 0.0, %v895
  %v897 = vpop.f32.mrf.mxu0
  %v898 = vadd.f32 0.0, %v897
  %899 = vmatprep.mubr.f32.mxu0 0.0
  %900 = vmatmul.mubr.f32.gmra.mxu0 %v821
  %v901 = vpop.f32.mrf.mxu0
  %v902 = vadd.f32 0.0, %v901
  %v903 = vpop.f32.mrf.mxu0
  %v904 = vadd.f32 0.0, %v903
  %905 = vmatprep.mubr.f32.mxu0 0.0
  %906 = vmatmul.mubr.f32.gmra.mxu0 %v824
  %v907 = vpop.f32.mrf.mxu0
  %v908 = vadd.f32 0.0, %v907
  %v909 = vpop.f32.mrf.mxu0
  %v910 = vadd.f32 0.0, %v909
  %911 = vmatprep.mubr.f32.mxu0 0.0
  %912 = vmatmul.mubr.f32.gmra.mxu0 %v827
  %v913 = vpop.f32.mrf.mxu0
  %v914 = vadd.f32 0.0, %v913
  %v915 = vpop.f32.mrf.mxu0
  %v916 = vadd.f32 0.0, %v915
  %917 = vdwg.mxu0
  %s918 = scalar_lea.vmem %s1, 256
  %v919 = vld [vmem:[%s918] sm:$0xff]
  %v920 = vld [vmem:[%s918 + $0x8] sm:$0xff]
  %v921 = vld [vmem:[%s918 + $0x10] sm:$0xff]
  %v922 = vld [vmem:[%s918 + $0x18] sm:$0xff]
  %v924 = vsel %vm74, %v919, 0
  %v927 = vsel %vm74, %v920, 0
  %v930 = vsel %vm74, %v921, 0
  %v933 = vsel %vm74, %v922, 0
  %935 = vmatprep.subr.mxu0 0.0
  %936 = vmatpush1.msra.mxu0 0.0
  %937 = vmatprep.subr.mxu0 0.0
  %938 = vmatpush1.msra.mxu0 0.0
  %939 = vmatprep.subr.mxu0 0.0
  %940 = vmatpush1.msra.mxu0 0.0
  %941 = vmatprep.subr.mxu0 0.0
  %942 = vmatpush1.msra.mxu0 0.0
  %943 = vmatprep.subr.mxu0 0.0
  %944 = vmatpush1.msra.mxu0 0.0
  %945 = vmatprep.subr.mxu0 0.0
  %946 = vmatpush1.msra.mxu0 0.0
  %947 = vmatprep.subr.mxu0 0.0
  %948 = vmatpush1.msra.mxu0 0.0
  %949 = vmatprep.subr.mxu0 0.0
  %950 = vmatpush1.msra.mxu0 0.0
  %951 = vmatprep.subr.mxu0 0.0
  %952 = vmatpush1.msra.mxu0 0.0
  %953 = vmatprep.subr.mxu0 0.0
  %954 = vmatpush1.msra.mxu0 0.0
  %955 = vmatprep.subr.mxu0 0.0
  %956 = vmatpush1.msra.mxu0 0.0
  %957 = vmatprep.subr.mxu0 0.0
  %958 = vmatpush1.msra.mxu0 0.0
  %959 = vmatprep.subr.mxu0 %v69
  %960 = vmatpush1.msra.mxu0 %v68
  %961 = vmatprep.subr.mxu0 %v67
  %962 = vmatpush1.msra.mxu0 %v66
  %963 = vmatprep.subr.mxu0 %v65
  %964 = vmatpush1.msra.mxu0 %v64
  %965 = vmatprep.subr.mxu0 %v63
  %966 = vmatpush1.msra.mxu0 %v62
  %967 = vmatprep.subr.mxu0 0.0
  %968 = vmatpush2.msra.mxu0 0.0
  %969 = vmatprep.subr.mxu0 0.0
  %970 = vmatpush2.msra.mxu0 0.0
  %971 = vmatprep.subr.mxu0 0.0
  %972 = vmatpush2.msra.mxu0 0.0
  %973 = vmatprep.subr.mxu0 0.0
  %974 = vmatpush2.msra.mxu0 0.0
  %975 = vmatprep.subr.mxu0 0.0
  %976 = vmatpush2.msra.mxu0 0.0
  %977 = vmatprep.subr.mxu0 0.0
  %978 = vmatpush2.msra.mxu0 0.0
  %979 = vmatprep.subr.mxu0 0.0
  %980 = vmatpush2.msra.mxu0 0.0
  %981 = vmatprep.subr.mxu0 0.0
  %982 = vmatpush2.msra.mxu0 0.0
  %983 = vmatprep.subr.mxu0 0.0
  %984 = vmatpush2.msra.mxu0 0.0
  %985 = vmatprep.subr.mxu0 0.0
  %986 = vmatpush2.msra.mxu0 0.0
  %987 = vmatprep.subr.mxu0 0.0
  %988 = vmatpush2.msra.mxu0 0.0
  %989 = vmatprep.subr.mxu0 0.0
  %990 = vmatpush2.msra.mxu0 0.0
  %991 = vmatprep.subr.mxu0 0.0
  %992 = vmatpush2.msra.mxu0 0.0
  %993 = vmatprep.subr.mxu0 0.0
  %994 = vmatpush2.msra.mxu0 0.0
  %995 = vmatprep.subr.mxu0 0.0
  %996 = vmatpush2.msra.mxu0 0.0
  %997 = vmatprep.subr.mxu0 0.0
  %998 = vmatpush2.msra.mxu0 0.0
  %999 = vmatprep.mubr.f32.mxu0 0.0
  %1000 = vmatmul.mubr.f32.gmra.mxu0 %v924
  %v1001 = vpop.f32.mrf.mxu0
  %v1002 = vadd.f32 0.0, %v1001
  %v1003 = vpop.f32.mrf.mxu0
  %v1004 = vadd.f32 0.0, %v1003
  %1005 = vmatprep.mubr.f32.mxu0 0.0
  %1006 = vmatmul.mubr.f32.gmra.mxu0 %v927
  %v1007 = vpop.f32.mrf.mxu0
  %v1008 = vadd.f32 0.0, %v1007
  %v1009 = vpop.f32.mrf.mxu0
  %v1010 = vadd.f32 0.0, %v1009
  %1011 = vmatprep.mubr.f32.mxu0 0.0
  %1012 = vmatmul.mubr.f32.gmra.mxu0 %v930
  %v1013 = vpop.f32.mrf.mxu0
  %v1014 = vadd.f32 0.0, %v1013
  %v1015 = vpop.f32.mrf.mxu0
  %v1016 = vadd.f32 0.0, %v1015
  %1017 = vmatprep.mubr.f32.mxu0 0.0
  %1018 = vmatmul.mubr.f32.gmra.mxu0 %v933
  %v1019 = vpop.f32.mrf.mxu0
  %v1020 = vadd.f32 0.0, %v1019
  %v1021 = vpop.f32.mrf.mxu0
  %v1022 = vadd.f32 0.0, %v1021
  %1023 = vdwg.mxu0
  %v1024 = vld [vmem:[%s2] sm:$0xff]
  %v1025 = vld [vmem:[%s2 + $0x8] sm:$0xff]
  %v1026 = vld [vmem:[%s2 + $0x10] sm:$0xff]
  %v1027 = vld [vmem:[%s2 + $0x18] sm:$0xff]
  %v1028 = vld [vmem:[%s2 + $0x20] sm:$0xff]
  %v1029 = vld [vmem:[%s2 + $0x28] sm:$0xff]
  %v1030 = vld [vmem:[%s2 + $0x30] sm:$0xff]
  %v1031 = vld [vmem:[%s2 + $0x38] sm:$0xff]
  %v1032 = vld [vmem:[%s2 + $0x40] sm:$0xff]
  %v1033 = vld [vmem:[%s2 + $0x48] sm:$0xff]
  %v1034 = vld [vmem:[%s2 + $0x50] sm:$0xff]
  %v1035 = vld [vmem:[%s2 + $0x58] sm:$0xff]
  %v1036 = vld [vmem:[%s2 + $0x60] sm:$0xff]
  %v1037 = vld [vmem:[%s2 + $0x68] sm:$0xff]
  %v1038 = vld [vmem:[%s2 + $0x70] sm:$0xff]
  %v1039 = vld [vmem:[%s2 + $0x78] sm:$0xff]
  %v1040 = vld [vmem:[%s2 + $0x80] sm:$0xff]
  %v1041 = vld [vmem:[%s2 + $0x88] sm:$0xff]
  %v1042 = vld [vmem:[%s2 + $0x90] sm:$0xff]
  %v1043 = vld [vmem:[%s2 + $0x98] sm:$0xff]
  %v1044 = vld [vmem:[%s2 + $0xa0] sm:$0xff]
  %v1045 = vld [vmem:[%s2 + $0xa8] sm:$0xff]
  %v1046 = vld [vmem:[%s2 + $0xb0] sm:$0xff]
  %v1047 = vld [vmem:[%s2 + $0xb8] sm:$0xff]
  %v1048 = vld [vmem:[%s2 + $0xc0] sm:$0xff]
  %v1049 = vld [vmem:[%s2 + $0xc8] sm:$0xff]
  %v1050 = vld [vmem:[%s2 + $0xd0] sm:$0xff]
  %v1051 = vld [vmem:[%s2 + $0xd8] sm:$0xff]
  %v1052 = vld [vmem:[%s2 + $0xe0] sm:$0xff]
  %v1053 = vld [vmem:[%s2 + $0xe8] sm:$0xff]
  %v1054 = vld [vmem:[%s2 + $0xf0] sm:$0xff]
  %v1055 = vld [vmem:[%s2 + $0xf8] sm:$0xff]
  %v1056 = vld [vmem:[%s2 + $0x100] sm:$0xff]
  %v1057 = vld [vmem:[%s2 + $0x108] sm:$0xff]
  %v1058 = vld [vmem:[%s2 + $0x110] sm:$0xff]
  %v1059 = vld [vmem:[%s2 + $0x118] sm:$0xff]
  %v1060 = vld [vmem:[%s2 + $0x120] sm:$0xff]
  %v1061 = vld [vmem:[%s2 + $0x128] sm:$0xff]
  %v1062 = vld [vmem:[%s2 + $0x130] sm:$0xff]
  %v1063 = vld [vmem:[%s2 + $0x138] sm:$0xff]
  %v1064 = vld [vmem:[%s2 + $0x140] sm:$0xff]
  %v1065 = vld [vmem:[%s2 + $0x148] sm:$0xff]
  %v1066 = vld [vmem:[%s2 + $0x150] sm:$0xff]
  %v1067 = vld [vmem:[%s2 + $0x158] sm:$0xff]
  %v1068 = vld [vmem:[%s2 + $0x160] sm:$0xff]
  %v1069 = vld [vmem:[%s2 + $0x168] sm:$0xff]
  %v1070 = vld [vmem:[%s2 + $0x170] sm:$0xff]
  %v1071 = vld [vmem:[%s2 + $0x178] sm:$0xff]
  %v1072 = vld [vmem:[%s2 + $0x180] sm:$0xff]
  %v1073 = vld [vmem:[%s2 + $0x188] sm:$0xff]
  %v1074 = vld [vmem:[%s2 + $0x190] sm:$0xff]
  %v1075 = vld [vmem:[%s2 + $0x198] sm:$0xff]
  %v1076 = vld [vmem:[%s2 + $0x1a0] sm:$0xff]
  %v1077 = vld [vmem:[%s2 + $0x1a8] sm:$0xff]
  %v1078 = vld [vmem:[%s2 + $0x1b0] sm:$0xff]
  %v1079 = vld [vmem:[%s2 + $0x1b8] sm:$0xff]
  %v1080 = vld [vmem:[%s2 + $0x1c0] sm:$0xff]
  %v1081 = vld [vmem:[%s2 + $0x1c8] sm:$0xff]
  %v1082 = vld [vmem:[%s2 + $0x1d0] sm:$0xff]
  %v1083 = vld [vmem:[%s2 + $0x1d8] sm:$0xff]
  %v1084 = vld [vmem:[%s2 + $0x1e0] sm:$0xff]
  %v1085 = vld [vmem:[%s2 + $0x1e8] sm:$0xff]
  %v1086 = vld [vmem:[%s2 + $0x1f0] sm:$0xff]
  %v1087 = vld [vmem:[%s2 + $0x1f8] sm:$0xff]
  %v1088 = vld [vmem:[%s2 + $0x200] sm:$0xff]
  %v1089 = vld [vmem:[%s2 + $0x208] sm:$0xff]
  %v1090 = vld [vmem:[%s2 + $0x210] sm:$0xff]
  %v1091 = vld [vmem:[%s2 + $0x218] sm:$0xff]
  %v1092 = vld [vmem:[%s2 + $0x220] sm:$0xff]
  %v1093 = vld [vmem:[%s2 + $0x228] sm:$0xff]
  %v1094 = vld [vmem:[%s2 + $0x230] sm:$0xff]
  %v1095 = vld [vmem:[%s2 + $0x238] sm:$0xff]
  %v1096 = vld [vmem:[%s2 + $0x240] sm:$0xff]
  %v1097 = vld [vmem:[%s2 + $0x248] sm:$0xff]
  %v1098 = vld [vmem:[%s2 + $0x250] sm:$0xff]
  %v1099 = vld [vmem:[%s2 + $0x258] sm:$0xff]
  %v1100 = vld [vmem:[%s2 + $0x260] sm:$0xff]
  %v1101 = vld [vmem:[%s2 + $0x268] sm:$0xff]
  %v1102 = vld [vmem:[%s2 + $0x270] sm:$0xff]
  %v1103 = vld [vmem:[%s2 + $0x278] sm:$0xff]
  %v1104 = vld [vmem:[%s2 + $0x280] sm:$0xff]
  %v1105 = vld [vmem:[%s2 + $0x288] sm:$0xff]
  %v1106 = vld [vmem:[%s2 + $0x290] sm:$0xff]
  %v1107 = vld [vmem:[%s2 + $0x298] sm:$0xff]
  %v1108 = vld [vmem:[%s2 + $0x2a0] sm:$0xff]
  %v1109 = vld [vmem:[%s2 + $0x2a8] sm:$0xff]
  %v1110 = vld [vmem:[%s2 + $0x2b0] sm:$0xff]
  %v1111 = vld [vmem:[%s2 + $0x2b8] sm:$0xff]
  %v1112 = vld [vmem:[%s2 + $0x2c0] sm:$0xff]
  %v1113 = vld [vmem:[%s2 + $0x2c8] sm:$0xff]
  %v1114 = vld [vmem:[%s2 + $0x2d0] sm:$0xff]
  %v1115 = vld [vmem:[%s2 + $0x2d8] sm:$0xff]
  %v1116 = vld [vmem:[%s2 + $0x2e0] sm:$0xff]
  %v1117 = vld [vmem:[%s2 + $0x2e8] sm:$0xff]
  %v1118 = vld [vmem:[%s2 + $0x2f0] sm:$0xff]
  %v1119 = vld [vmem:[%s2 + $0x2f8] sm:$0xff]
  %v1120 = vld [vmem:[%s2 + $0x300] sm:$0xff]
  %v1121 = vld [vmem:[%s2 + $0x308] sm:$0xff]
  %v1122 = vld [vmem:[%s2 + $0x310] sm:$0xff]
  %v1123 = vld [vmem:[%s2 + $0x318] sm:$0xff]
  %v1124 = vld [vmem:[%s2 + $0x320] sm:$0xff]
  %v1125 = vld [vmem:[%s2 + $0x328] sm:$0xff]
  %v1126 = vld [vmem:[%s2 + $0x330] sm:$0xff]
  %v1127 = vld [vmem:[%s2 + $0x338] sm:$0xff]
  %v1128 = vld [vmem:[%s2 + $0x340] sm:$0xff]
  %v1129 = vld [vmem:[%s2 + $0x348] sm:$0xff]
  %v1130 = vld [vmem:[%s2 + $0x350] sm:$0xff]
  %v1131 = vld [vmem:[%s2 + $0x358] sm:$0xff]
  %v1132 = vld [vmem:[%s2 + $0x360] sm:$0xff]
  %v1133 = vld [vmem:[%s2 + $0x368] sm:$0xff]
  %v1134 = vld [vmem:[%s2 + $0x370] sm:$0xff]
  %v1135 = vld [vmem:[%s2 + $0x378] sm:$0xff]
  %v1136 = vld [vmem:[%s2 + $0x380] sm:$0xff]
  %v1137 = vld [vmem:[%s2 + $0x388] sm:$0xff]
  %v1138 = vld [vmem:[%s2 + $0x390] sm:$0xff]
  %v1139 = vld [vmem:[%s2 + $0x398] sm:$0xff]
  %v1140 = vld [vmem:[%s2 + $0x3a0] sm:$0xff]
  %v1141 = vld [vmem:[%s2 + $0x3a8] sm:$0xff]
  %v1142 = vld [vmem:[%s2 + $0x3b0] sm:$0xff]
  %v1143 = vld [vmem:[%s2 + $0x3b8] sm:$0xff]
  %v1144 = vld [vmem:[%s2 + $0x3c0] sm:$0xff]
  %v1145 = vld [vmem:[%s2 + $0x3c8] sm:$0xff]
  %v1146 = vld [vmem:[%s2 + $0x3d0] sm:$0xff]
  %v1147 = vld [vmem:[%s2 + $0x3d8] sm:$0xff]
  %v1148 = vld [vmem:[%s2 + $0x3e0] sm:$0xff]
  %v1149 = vld [vmem:[%s2 + $0x3e8] sm:$0xff]
  %v1150 = vld [vmem:[%s2 + $0x3f0] sm:$0xff]
  %v1151 = vld [vmem:[%s2 + $0x3f8] sm:$0xff]
  %v1152 = vld [vmem:[%s2 + $0x400] sm:$0xff]
  %v1153 = vld [vmem:[%s2 + $0x408] sm:$0xff]
  %v1154 = vld [vmem:[%s2 + $0x410] sm:$0xff]
  %v1155 = vld [vmem:[%s2 + $0x418] sm:$0xff]
  %v1156 = vld [vmem:[%s2 + $0x420] sm:$0xff]
  %v1157 = vld [vmem:[%s2 + $0x428] sm:$0xff]
  %v1158 = vld [vmem:[%s2 + $0x430] sm:$0xff]
  %v1159 = vld [vmem:[%s2 + $0x438] sm:$0xff]
  %v1160 = vld [vmem:[%s2 + $0x440] sm:$0xff]
  %v1161 = vld [vmem:[%s2 + $0x448] sm:$0xff]
  %v1162 = vld [vmem:[%s2 + $0x450] sm:$0xff]
  %v1163 = vld [vmem:[%s2 + $0x458] sm:$0xff]
  %v1164 = vld [vmem:[%s2 + $0x460] sm:$0xff]
  %v1165 = vld [vmem:[%s2 + $0x468] sm:$0xff]
  %v1166 = vld [vmem:[%s2 + $0x470] sm:$0xff]
  %v1167 = vld [vmem:[%s2 + $0x478] sm:$0xff]
  %v1168 = vld [vmem:[%s2 + $0x480] sm:$0xff]
  %v1169 = vld [vmem:[%s2 + $0x488] sm:$0xff]
  %v1170 = vld [vmem:[%s2 + $0x490] sm:$0xff]
  %v1171 = vld [vmem:[%s2 + $0x498] sm:$0xff]
  %v1172 = vld [vmem:[%s2 + $0x4a0] sm:$0xff]
  %v1173 = vld [vmem:[%s2 + $0x4a8] sm:$0xff]
  %v1174 = vld [vmem:[%s2 + $0x4b0] sm:$0xff]
  %v1175 = vld [vmem:[%s2 + $0x4b8] sm:$0xff]
  %v1176 = vld [vmem:[%s2 + $0x4c0] sm:$0xff]
  %v1177 = vld [vmem:[%s2 + $0x4c8] sm:$0xff]
  %v1178 = vld [vmem:[%s2 + $0x4d0] sm:$0xff]
  %v1179 = vld [vmem:[%s2 + $0x4d8] sm:$0xff]
  %v1180 = vld [vmem:[%s2 + $0x4e0] sm:$0xff]
  %v1181 = vld [vmem:[%s2 + $0x4e8] sm:$0xff]
  %v1182 = vld [vmem:[%s2 + $0x4f0] sm:$0xff]
  %v1183 = vld [vmem:[%s2 + $0x4f8] sm:$0xff]
  %v1184 = vld [vmem:[%s2 + $0x500] sm:$0xff]
  %v1185 = vld [vmem:[%s2 + $0x508] sm:$0xff]
  %v1186 = vld [vmem:[%s2 + $0x510] sm:$0xff]
  %v1187 = vld [vmem:[%s2 + $0x518] sm:$0xff]
  %v1188 = vld [vmem:[%s2 + $0x520] sm:$0xff]
  %v1189 = vld [vmem:[%s2 + $0x528] sm:$0xff]
  %v1190 = vld [vmem:[%s2 + $0x530] sm:$0xff]
  %v1191 = vld [vmem:[%s2 + $0x538] sm:$0xff]
  %v1192 = vld [vmem:[%s2 + $0x540] sm:$0xff]
  %v1193 = vld [vmem:[%s2 + $0x548] sm:$0xff]
  %v1194 = vld [vmem:[%s2 + $0x550] sm:$0xff]
  %v1195 = vld [vmem:[%s2 + $0x558] sm:$0xff]
  %v1196 = vld [vmem:[%s2 + $0x560] sm:$0xff]
  %v1197 = vld [vmem:[%s2 + $0x568] sm:$0xff]
  %v1198 = vld [vmem:[%s2 + $0x570] sm:$0xff]
  %v1199 = vld [vmem:[%s2 + $0x578] sm:$0xff]
  %v1200 = vld [vmem:[%s2 + $0x580] sm:$0xff]
  %v1201 = vld [vmem:[%s2 + $0x588] sm:$0xff]
  %v1202 = vld [vmem:[%s2 + $0x590] sm:$0xff]
  %v1203 = vld [vmem:[%s2 + $0x598] sm:$0xff]
  %v1204 = vld [vmem:[%s2 + $0x5a0] sm:$0xff]
  %v1205 = vld [vmem:[%s2 + $0x5a8] sm:$0xff]
  %v1206 = vld [vmem:[%s2 + $0x5b0] sm:$0xff]
  %v1207 = vld [vmem:[%s2 + $0x5b8] sm:$0xff]
  %v1208 = vld [vmem:[%s2 + $0x5c0] sm:$0xff]
  %v1209 = vld [vmem:[%s2 + $0x5c8] sm:$0xff]
  %v1210 = vld [vmem:[%s2 + $0x5d0] sm:$0xff]
  %v1211 = vld [vmem:[%s2 + $0x5d8] sm:$0xff]
  %v1212 = vld [vmem:[%s2 + $0x5e0] sm:$0xff]
  %v1213 = vld [vmem:[%s2 + $0x5e8] sm:$0xff]
  %v1214 = vld [vmem:[%s2 + $0x5f0] sm:$0xff]
  %v1215 = vld [vmem:[%s2 + $0x5f8] sm:$0xff]
  %v1216 = vld [vmem:[%s2 + $0x600] sm:$0xff]
  %v1217 = vld [vmem:[%s2 + $0x608] sm:$0xff]
  %v1218 = vld [vmem:[%s2 + $0x610] sm:$0xff]
  %v1219 = vld [vmem:[%s2 + $0x618] sm:$0xff]
  %v1220 = vld [vmem:[%s2 + $0x620] sm:$0xff]
  %v1221 = vld [vmem:[%s2 + $0x628] sm:$0xff]
  %v1222 = vld [vmem:[%s2 + $0x630] sm:$0xff]
  %v1223 = vld [vmem:[%s2 + $0x638] sm:$0xff]
  %v1224 = vld [vmem:[%s2 + $0x640] sm:$0xff]
  %v1225 = vld [vmem:[%s2 + $0x648] sm:$0xff]
  %v1226 = vld [vmem:[%s2 + $0x650] sm:$0xff]
  %v1227 = vld [vmem:[%s2 + $0x658] sm:$0xff]
  %v1228 = vld [vmem:[%s2 + $0x660] sm:$0xff]
  %v1229 = vld [vmem:[%s2 + $0x668] sm:$0xff]
  %v1230 = vld [vmem:[%s2 + $0x670] sm:$0xff]
  %v1231 = vld [vmem:[%s2 + $0x678] sm:$0xff]
  %v1232 = vld [vmem:[%s2 + $0x680] sm:$0xff]
  %v1233 = vld [vmem:[%s2 + $0x688] sm:$0xff]
  %v1234 = vld [vmem:[%s2 + $0x690] sm:$0xff]
  %v1235 = vld [vmem:[%s2 + $0x698] sm:$0xff]
  %v1236 = vld [vmem:[%s2 + $0x6a0] sm:$0xff]
  %v1237 = vld [vmem:[%s2 + $0x6a8] sm:$0xff]
  %v1238 = vld [vmem:[%s2 + $0x6b0] sm:$0xff]
  %v1239 = vld [vmem:[%s2 + $0x6b8] sm:$0xff]
  %v1240 = vld [vmem:[%s2 + $0x6c0] sm:$0xff]
  %v1241 = vld [vmem:[%s2 + $0x6c8] sm:$0xff]
  %v1242 = vld [vmem:[%s2 + $0x6d0] sm:$0xff]
  %v1243 = vld [vmem:[%s2 + $0x6d8] sm:$0xff]
  %v1244 = vld [vmem:[%s2 + $0x6e0] sm:$0xff]
  %v1245 = vld [vmem:[%s2 + $0x6e8] sm:$0xff]
  %v1246 = vld [vmem:[%s2 + $0x6f0] sm:$0xff]
  %v1247 = vld [vmem:[%s2 + $0x6f8] sm:$0xff]
  %v1248 = vld [vmem:[%s2 + $0x700] sm:$0xff]
  %v1249 = vld [vmem:[%s2 + $0x708] sm:$0xff]
  %v1250 = vld [vmem:[%s2 + $0x710] sm:$0xff]
  %v1251 = vld [vmem:[%s2 + $0x718] sm:$0xff]
  %v1252 = vld [vmem:[%s2 + $0x720] sm:$0xff]
  %v1253 = vld [vmem:[%s2 + $0x728] sm:$0xff]
  %v1254 = vld [vmem:[%s2 + $0x730] sm:$0xff]
  %v1255 = vld [vmem:[%s2 + $0x738] sm:$0xff]
  %v1256 = vld [vmem:[%s2 + $0x740] sm:$0xff]
  %v1257 = vld [vmem:[%s2 + $0x748] sm:$0xff]
  %v1258 = vld [vmem:[%s2 + $0x750] sm:$0xff]
  %v1259 = vld [vmem:[%s2 + $0x758] sm:$0xff]
  %v1260 = vld [vmem:[%s2 + $0x760] sm:$0xff]
  %v1261 = vld [vmem:[%s2 + $0x768] sm:$0xff]
  %v1262 = vld [vmem:[%s2 + $0x770] sm:$0xff]
  %v1263 = vld [vmem:[%s2 + $0x778] sm:$0xff]
  %v1264 = vld [vmem:[%s2 + $0x780] sm:$0xff]
  %v1265 = vld [vmem:[%s2 + $0x788] sm:$0xff]
  %v1266 = vld [vmem:[%s2 + $0x790] sm:$0xff]
  %v1267 = vld [vmem:[%s2 + $0x798] sm:$0xff]
  %v1268 = vld [vmem:[%s2 + $0x7a0] sm:$0xff]
  %v1269 = vld [vmem:[%s2 + $0x7a8] sm:$0xff]
  %v1270 = vld [vmem:[%s2 + $0x7b0] sm:$0xff]
  %v1271 = vld [vmem:[%s2 + $0x7b8] sm:$0xff]
  %v1272 = vld [vmem:[%s2 + $0x7c0] sm:$0xff]
  %v1273 = vld [vmem:[%s2 + $0x7c8] sm:$0xff]
  %v1274 = vld [vmem:[%s2 + $0x7d0] sm:$0xff]
  %v1275 = vld [vmem:[%s2 + $0x7d8] sm:$0xff]
  %v1276 = vld [vmem:[%s2 + $0x7e0] sm:$0xff]
  %v1277 = vld [vmem:[%s2 + $0x7e8] sm:$0xff]
  %v1278 = vld [vmem:[%s2 + $0x7f0] sm:$0xff]
  %v1279 = vld [vmem:[%s2 + $0x7f8] sm:$0xff]
  %v1280 = vld [vmem:[%s2 + $0x800] sm:$0xff]
  %v1281 = vld [vmem:[%s2 + $0x808] sm:$0xff]
  %v1282 = vld [vmem:[%s2 + $0x810] sm:$0xff]
  %v1283 = vld [vmem:[%s2 + $0x818] sm:$0xff]
  %v1284 = vld [vmem:[%s2 + $0x820] sm:$0xff]
  %v1285 = vld [vmem:[%s2 + $0x828] sm:$0xff]
  %v1286 = vld [vmem:[%s2 + $0x830] sm:$0xff]
  %v1287 = vld [vmem:[%s2 + $0x838] sm:$0xff]
  %v1288 = vld [vmem:[%s2 + $0x840] sm:$0xff]
  %v1289 = vld [vmem:[%s2 + $0x848] sm:$0xff]
  %v1290 = vld [vmem:[%s2 + $0x850] sm:$0xff]
  %v1291 = vld [vmem:[%s2 + $0x858] sm:$0xff]
  %v1292 = vld [vmem:[%s2 + $0x860] sm:$0xff]
  %v1293 = vld [vmem:[%s2 + $0x868] sm:$0xff]
  %v1294 = vld [vmem:[%s2 + $0x870] sm:$0xff]
  %v1295 = vld [vmem:[%s2 + $0x878] sm:$0xff]
  %v1296 = vld [vmem:[%s2 + $0x880] sm:$0xff]
  %v1297 = vld [vmem:[%s2 + $0x888] sm:$0xff]
  %v1298 = vld [vmem:[%s2 + $0x890] sm:$0xff]
  %v1299 = vld [vmem:[%s2 + $0x898] sm:$0xff]
  %v1300 = vld [vmem:[%s2 + $0x8a0] sm:$0xff]
  %v1301 = vld [vmem:[%s2 + $0x8a8] sm:$0xff]
  %v1302 = vld [vmem:[%s2 + $0x8b0] sm:$0xff]
  %v1303 = vld [vmem:[%s2 + $0x8b8] sm:$0xff]
  %v1304 = vld [vmem:[%s2 + $0x8c0] sm:$0xff]
  %v1305 = vld [vmem:[%s2 + $0x8c8] sm:$0xff]
  %v1306 = vld [vmem:[%s2 + $0x8d0] sm:$0xff]
  %v1307 = vld [vmem:[%s2 + $0x8d8] sm:$0xff]
  %v1308 = vld [vmem:[%s2 + $0x8e0] sm:$0xff]
  %v1309 = vld [vmem:[%s2 + $0x8e8] sm:$0xff]
  %v1310 = vld [vmem:[%s2 + $0x8f0] sm:$0xff]
  %v1311 = vld [vmem:[%s2 + $0x8f8] sm:$0xff]
  %1312 = vmatprep.subr.mxu0 0.0
  %1313 = vmatpush1.msra.mxu0 %v1039
  %1314 = vmatprep.subr.mxu0 0.0
  %1315 = vmatpush1.msra.mxu0 %v1038
  %1316 = vmatprep.subr.mxu0 0.0
  %1317 = vmatpush1.msra.mxu0 %v1037
  %1318 = vmatprep.subr.mxu0 0.0
  %1319 = vmatpush1.msra.mxu0 %v1036
  %1320 = vmatprep.subr.mxu0 0.0
  %1321 = vmatpush1.msra.mxu0 %v1035
  %1322 = vmatprep.subr.mxu0 0.0
  %1323 = vmatpush1.msra.mxu0 %v1034
  %1324 = vmatprep.subr.mxu0 0.0
  %1325 = vmatpush1.msra.mxu0 %v1033
  %1326 = vmatprep.subr.mxu0 0.0
  %1327 = vmatpush1.msra.mxu0 %v1032
  %1328 = vmatprep.subr.mxu0 0.0
  %1329 = vmatpush1.msra.mxu0 %v1031
  %1330 = vmatprep.subr.mxu0 0.0
  %1331 = vmatpush1.msra.mxu0 %v1030
  %1332 = vmatprep.subr.mxu0 0.0
  %1333 = vmatpush1.msra.mxu0 %v1029
  %1334 = vmatprep.subr.mxu0 0.0
  %1335 = vmatpush1.msra.mxu0 %v1028
  %1336 = vmatprep.subr.mxu0 0.0
  %1337 = vmatpush1.msra.mxu0 %v1027
  %1338 = vmatprep.subr.mxu0 0.0
  %1339 = vmatpush1.msra.mxu0 %v1026
  %1340 = vmatprep.subr.mxu0 0.0
  %1341 = vmatpush1.msra.mxu0 %v1025
  %1342 = vmatprep.subr.mxu0 0.0
  %1343 = vmatpush1.msra.mxu0 %v1024
  %1344 = vmatprep.subr.mxu0 0.0
  %1345 = vmatpush2.msra.mxu0 %v1055
  %1346 = vmatprep.subr.mxu0 0.0
  %1347 = vmatpush2.msra.mxu0 %v1054
  %1348 = vmatprep.subr.mxu0 0.0
  %1349 = vmatpush2.msra.mxu0 %v1053
  %1350 = vmatprep.subr.mxu0 0.0
  %1351 = vmatpush2.msra.mxu0 %v1052
  %1352 = vmatprep.subr.mxu0 0.0
  %1353 = vmatpush2.msra.mxu0 %v1051
  %1354 = vmatprep.subr.mxu0 0.0
  %1355 = vmatpush2.msra.mxu0 %v1050
  %1356 = vmatprep.subr.mxu0 0.0
  %1357 = vmatpush2.msra.mxu0 %v1049
  %1358 = vmatprep.subr.mxu0 0.0
  %1359 = vmatpush2.msra.mxu0 %v1048
  %1360 = vmatprep.subr.mxu0 0.0
  %1361 = vmatpush2.msra.mxu0 %v1047
  %1362 = vmatprep.subr.mxu0 0.0
  %1363 = vmatpush2.msra.mxu0 %v1046
  %1364 = vmatprep.subr.mxu0 0.0
  %1365 = vmatpush2.msra.mxu0 %v1045
  %1366 = vmatprep.subr.mxu0 0.0
  %1367 = vmatpush2.msra.mxu0 %v1044
  %1368 = vmatprep.subr.mxu0 0.0
  %1369 = vmatpush2.msra.mxu0 %v1043
  %1370 = vmatprep.subr.mxu0 0.0
  %1371 = vmatpush2.msra.mxu0 %v1042
  %1372 = vmatprep.subr.mxu0 0.0
  %1373 = vmatpush2.msra.mxu0 %v1041
  %1374 = vmatprep.subr.mxu0 0.0
  %1375 = vmatpush2.msra.mxu0 %v1040
  %1376 = vmatprep.mubr.f32.mxu0 %v156
  %1377 = vmatmul.mubr.f32.gmra.mxu0 %v154
  %v1378 = vpop.f32.mrf.mxu0
  %v1379 = vadd.f32 0.0, %v1378
  %v1380 = vpop.f32.mrf.mxu0
  %1381 = vmatprep.mubr.f32.mxu0 %v162
  %1382 = vmatmul.mubr.f32.gmra.mxu0 %v160
  %v1383 = vpop.f32.mrf.mxu0
  %v1384 = vadd.f32 0.0, %v1383
  %v1385 = vpop.f32.mrf.mxu0
  %1386 = vmatprep.mubr.f32.mxu0 %v168
  %1387 = vmatmul.mubr.f32.gmra.mxu0 %v166
  %v1388 = vpop.f32.mrf.mxu0
  %v1389 = vadd.f32 0.0, %v1388
  %v1390 = vpop.f32.mrf.mxu0
  %1391 = vmatprep.mubr.f32.mxu0 %v174
  %1392 = vmatmul.mubr.f32.gmra.mxu0 %v172
  %v1393 = vpop.f32.mrf.mxu0
  %v1394 = vadd.f32 0.0, %v1393
  %v1395 = vpop.f32.mrf.mxu0
  %1396 = vdwg.mxu0
  %1397 = vmatprep.subr.mxu0 0.0
  %1398 = vmatpush1.msra.mxu0 %v1071
  %1399 = vmatprep.subr.mxu0 0.0
  %1400 = vmatpush1.msra.mxu0 %v1070
  %1401 = vmatprep.subr.mxu0 0.0
  %1402 = vmatpush1.msra.mxu0 %v1069
  %1403 = vmatprep.subr.mxu0 0.0
  %1404 = vmatpush1.msra.mxu0 %v1068
  %1405 = vmatprep.subr.mxu0 0.0
  %1406 = vmatpush1.msra.mxu0 %v1067
  %1407 = vmatprep.subr.mxu0 0.0
  %1408 = vmatpush1.msra.mxu0 %v1066
  %1409 = vmatprep.subr.mxu0 0.0
  %1410 = vmatpush1.msra.mxu0 %v1065
  %1411 = vmatprep.subr.mxu0 0.0
  %1412 = vmatpush1.msra.mxu0 %v1064
  %1413 = vmatprep.subr.mxu0 0.0
  %1414 = vmatpush1.msra.mxu0 %v1063
  %1415 = vmatprep.subr.mxu0 0.0
  %1416 = vmatpush1.msra.mxu0 %v1062
  %1417 = vmatprep.subr.mxu0 0.0
  %1418 = vmatpush1.msra.mxu0 %v1061
  %1419 = vmatprep.subr.mxu0 0.0
  %1420 = vmatpush1.msra.mxu0 %v1060
  %1421 = vmatprep.subr.mxu0 0.0
  %1422 = vmatpush1.msra.mxu0 %v1059
  %1423 = vmatprep.subr.mxu0 0.0
  %1424 = vmatpush1.msra.mxu0 %v1058
  %1425 = vmatprep.subr.mxu0 0.0
  %1426 = vmatpush1.msra.mxu0 %v1057
  %1427 = vmatprep.subr.mxu0 0.0
  %1428 = vmatpush1.msra.mxu0 %v1056
  %1429 = vmatprep.subr.mxu0 0.0
  %1430 = vmatpush2.msra.mxu0 %v1087
  %1431 = vmatprep.subr.mxu0 0.0
  %1432 = vmatpush2.msra.mxu0 %v1086
  %1433 = vmatprep.subr.mxu0 0.0
  %1434 = vmatpush2.msra.mxu0 %v1085
  %1435 = vmatprep.subr.mxu0 0.0
  %1436 = vmatpush2.msra.mxu0 %v1084
  %1437 = vmatprep.subr.mxu0 0.0
  %1438 = vmatpush2.msra.mxu0 %v1083
  %1439 = vmatprep.subr.mxu0 0.0
  %1440 = vmatpush2.msra.mxu0 %v1082
  %1441 = vmatprep.subr.mxu0 0.0
  %1442 = vmatpush2.msra.mxu0 %v1081
  %1443 = vmatprep.subr.mxu0 0.0
  %1444 = vmatpush2.msra.mxu0 %v1080
  %1445 = vmatprep.subr.mxu0 0.0
  %1446 = vmatpush2.msra.mxu0 %v1079
  %1447 = vmatprep.subr.mxu0 0.0
  %1448 = vmatpush2.msra.mxu0 %v1078
  %1449 = vmatprep.subr.mxu0 0.0
  %1450 = vmatpush2.msra.mxu0 %v1077
  %1451 = vmatprep.subr.mxu0 0.0
  %1452 = vmatpush2.msra.mxu0 %v1076
  %1453 = vmatprep.subr.mxu0 0.0
  %1454 = vmatpush2.msra.mxu0 %v1075
  %1455 = vmatprep.subr.mxu0 0.0
  %1456 = vmatpush2.msra.mxu0 %v1074
  %1457 = vmatprep.subr.mxu0 0.0
  %1458 = vmatpush2.msra.mxu0 %v1073
  %1459 = vmatprep.subr.mxu0 0.0
  %1460 = vmatpush2.msra.mxu0 %v1072
  %1461 = vmatprep.mubr.f32.mxu0 %v262
  %1462 = vmatmul.mubr.f32.gmra.mxu0 %v260
  %v1463 = vpop.f32.mrf.mxu0
  %v1464 = vadd.f32 %v1379, %v1463
  %v1465 = vpop.f32.mrf.mxu0
  %1466 = vmatprep.mubr.f32.mxu0 %v268
  %1467 = vmatmul.mubr.f32.gmra.mxu0 %v266
  %v1468 = vpop.f32.mrf.mxu0
  %v1469 = vadd.f32 %v1384, %v1468
  %v1470 = vpop.f32.mrf.mxu0
  %1471 = vmatprep.mubr.f32.mxu0 %v274
  %1472 = vmatmul.mubr.f32.gmra.mxu0 %v272
  %v1473 = vpop.f32.mrf.mxu0
  %v1474 = vadd.f32 %v1389, %v1473
  %v1475 = vpop.f32.mrf.mxu0
  %1476 = vmatprep.mubr.f32.mxu0 %v280
  %1477 = vmatmul.mubr.f32.gmra.mxu0 %v278
  %v1478 = vpop.f32.mrf.mxu0
  %v1479 = vadd.f32 %v1394, %v1478
  %v1480 = vpop.f32.mrf.mxu0
  %1481 = vdwg.mxu0
  %1482 = vmatprep.subr.mxu0 0.0
  %1483 = vmatpush1.msra.mxu0 %v1103
  %1484 = vmatprep.subr.mxu0 0.0
  %1485 = vmatpush1.msra.mxu0 %v1102
  %1486 = vmatprep.subr.mxu0 0.0
  %1487 = vmatpush1.msra.mxu0 %v1101
  %1488 = vmatprep.subr.mxu0 0.0
  %1489 = vmatpush1.msra.mxu0 %v1100
  %1490 = vmatprep.subr.mxu0 0.0
  %1491 = vmatpush1.msra.mxu0 %v1099
  %1492 = vmatprep.subr.mxu0 0.0
  %1493 = vmatpush1.msra.mxu0 %v1098
  %1494 = vmatprep.subr.mxu0 0.0
  %1495 = vmatpush1.msra.mxu0 %v1097
  %1496 = vmatprep.subr.mxu0 0.0
  %1497 = vmatpush1.msra.mxu0 %v1096
  %1498 = vmatprep.subr.mxu0 0.0
  %1499 = vmatpush1.msra.mxu0 %v1095
  %1500 = vmatprep.subr.mxu0 0.0
  %1501 = vmatpush1.msra.mxu0 %v1094
  %1502 = vmatprep.subr.mxu0 0.0
  %1503 = vmatpush1.msra.mxu0 %v1093
  %1504 = vmatprep.subr.mxu0 0.0
  %1505 = vmatpush1.msra.mxu0 %v1092
  %1506 = vmatprep.subr.mxu0 0.0
  %1507 = vmatpush1.msra.mxu0 %v1091
  %1508 = vmatprep.subr.mxu0 0.0
  %1509 = vmatpush1.msra.mxu0 %v1090
  %1510 = vmatprep.subr.mxu0 0.0
  %1511 = vmatpush1.msra.mxu0 %v1089
  %1512 = vmatprep.subr.mxu0 0.0
  %1513 = vmatpush1.msra.mxu0 %v1088
  %1514 = vmatprep.subr.mxu0 0.0
  %1515 = vmatpush2.msra.mxu0 %v1119
  %1516 = vmatprep.subr.mxu0 0.0
  %1517 = vmatpush2.msra.mxu0 %v1118
  %1518 = vmatprep.subr.mxu0 0.0
  %1519 = vmatpush2.msra.mxu0 %v1117
  %1520 = vmatprep.subr.mxu0 0.0
  %1521 = vmatpush2.msra.mxu0 %v1116
  %1522 = vmatprep.subr.mxu0 0.0
  %1523 = vmatpush2.msra.mxu0 %v1115
  %1524 = vmatprep.subr.mxu0 0.0
  %1525 = vmatpush2.msra.mxu0 %v1114
  %1526 = vmatprep.subr.mxu0 0.0
  %1527 = vmatpush2.msra.mxu0 %v1113
  %1528 = vmatprep.subr.mxu0 0.0
  %1529 = vmatpush2.msra.mxu0 %v1112
  %1530 = vmatprep.subr.mxu0 0.0
  %1531 = vmatpush2.msra.mxu0 %v1111
  %1532 = vmatprep.subr.mxu0 0.0
  %1533 = vmatpush2.msra.mxu0 %v1110
  %1534 = vmatprep.subr.mxu0 0.0
  %1535 = vmatpush2.msra.mxu0 %v1109
  %1536 = vmatprep.subr.mxu0 0.0
  %1537 = vmatpush2.msra.mxu0 %v1108
  %1538 = vmatprep.subr.mxu0 0.0
  %1539 = vmatpush2.msra.mxu0 %v1107
  %1540 = vmatprep.subr.mxu0 0.0
  %1541 = vmatpush2.msra.mxu0 %v1106
  %1542 = vmatprep.subr.mxu0 0.0
  %1543 = vmatpush2.msra.mxu0 %v1105
  %1544 = vmatprep.subr.mxu0 0.0
  %1545 = vmatpush2.msra.mxu0 %v1104
  %1546 = vmatprep.mubr.f32.mxu0 %v368
  %1547 = vmatmul.mubr.f32.gmra.mxu0 %v366
  %v1548 = vpop.f32.mrf.mxu0
  %v1549 = vadd.f32 %v1464, %v1548
  %v1550 = vpop.f32.mrf.mxu0
  %1551 = vmatprep.mubr.f32.mxu0 %v374
  %1552 = vmatmul.mubr.f32.gmra.mxu0 %v372
  %v1553 = vpop.f32.mrf.mxu0
  %v1554 = vadd.f32 %v1469, %v1553
  %v1555 = vpop.f32.mrf.mxu0
  %1556 = vmatprep.mubr.f32.mxu0 %v380
  %1557 = vmatmul.mubr.f32.gmra.mxu0 %v378
  %v1558 = vpop.f32.mrf.mxu0
  %v1559 = vadd.f32 %v1474, %v1558
  %v1560 = vpop.f32.mrf.mxu0
  %1561 = vmatprep.mubr.f32.mxu0 %v386
  %1562 = vmatmul.mubr.f32.gmra.mxu0 %v384
  %v1563 = vpop.f32.mrf.mxu0
  %v1564 = vadd.f32 %v1479, %v1563
  %v1565 = vpop.f32.mrf.mxu0
  %1566 = vdwg.mxu0
  %1567 = vmatprep.subr.mxu0 0.0
  %1568 = vmatpush1.msra.mxu0 %v1135
  %1569 = vmatprep.subr.mxu0 0.0
  %1570 = vmatpush1.msra.mxu0 %v1134
  %1571 = vmatprep.subr.mxu0 0.0
  %1572 = vmatpush1.msra.mxu0 %v1133
  %1573 = vmatprep.subr.mxu0 0.0
  %1574 = vmatpush1.msra.mxu0 %v1132
  %1575 = vmatprep.subr.mxu0 0.0
  %1576 = vmatpush1.msra.mxu0 %v1131
  %1577 = vmatprep.subr.mxu0 0.0
  %1578 = vmatpush1.msra.mxu0 %v1130
  %1579 = vmatprep.subr.mxu0 0.0
  %1580 = vmatpush1.msra.mxu0 %v1129
  %1581 = vmatprep.subr.mxu0 0.0
  %1582 = vmatpush1.msra.mxu0 %v1128
  %1583 = vmatprep.subr.mxu0 0.0
  %1584 = vmatpush1.msra.mxu0 %v1127
  %1585 = vmatprep.subr.mxu0 0.0
  %1586 = vmatpush1.msra.mxu0 %v1126
  %1587 = vmatprep.subr.mxu0 0.0
  %1588 = vmatpush1.msra.mxu0 %v1125
  %1589 = vmatprep.subr.mxu0 0.0
  %1590 = vmatpush1.msra.mxu0 %v1124
  %1591 = vmatprep.subr.mxu0 0.0
  %1592 = vmatpush1.msra.mxu0 %v1123
  %1593 = vmatprep.subr.mxu0 0.0
  %1594 = vmatpush1.msra.mxu0 %v1122
  %1595 = vmatprep.subr.mxu0 0.0
  %1596 = vmatpush1.msra.mxu0 %v1121
  %1597 = vmatprep.subr.mxu0 0.0
  %1598 = vmatpush1.msra.mxu0 %v1120
  %1599 = vmatprep.subr.mxu0 0.0
  %1600 = vmatpush2.msra.mxu0 %v1151
  %1601 = vmatprep.subr.mxu0 0.0
  %1602 = vmatpush2.msra.mxu0 %v1150
  %1603 = vmatprep.subr.mxu0 0.0
  %1604 = vmatpush2.msra.mxu0 %v1149
  %1605 = vmatprep.subr.mxu0 0.0
  %1606 = vmatpush2.msra.mxu0 %v1148
  %1607 = vmatprep.subr.mxu0 0.0
  %1608 = vmatpush2.msra.mxu0 %v1147
  %1609 = vmatprep.subr.mxu0 0.0
  %1610 = vmatpush2.msra.mxu0 %v1146
  %1611 = vmatprep.subr.mxu0 0.0
  %1612 = vmatpush2.msra.mxu0 %v1145
  %1613 = vmatprep.subr.mxu0 0.0
  %1614 = vmatpush2.msra.mxu0 %v1144
  %1615 = vmatprep.subr.mxu0 0.0
  %1616 = vmatpush2.msra.mxu0 %v1143
  %1617 = vmatprep.subr.mxu0 0.0
  %1618 = vmatpush2.msra.mxu0 %v1142
  %1619 = vmatprep.subr.mxu0 0.0
  %1620 = vmatpush2.msra.mxu0 %v1141
  %1621 = vmatprep.subr.mxu0 0.0
  %1622 = vmatpush2.msra.mxu0 %v1140
  %1623 = vmatprep.subr.mxu0 0.0
  %1624 = vmatpush2.msra.mxu0 %v1139
  %1625 = vmatprep.subr.mxu0 0.0
  %1626 = vmatpush2.msra.mxu0 %v1138
  %1627 = vmatprep.subr.mxu0 0.0
  %1628 = vmatpush2.msra.mxu0 %v1137
  %1629 = vmatprep.subr.mxu0 0.0
  %1630 = vmatpush2.msra.mxu0 %v1136
  %1631 = vmatprep.mubr.f32.mxu0 %v474
  %1632 = vmatmul.mubr.f32.gmra.mxu0 %v472
  %v1633 = vpop.f32.mrf.mxu0
  %v1634 = vadd.f32 %v1549, %v1633
  %v1635 = vpop.f32.mrf.mxu0
  %1636 = vmatprep.mubr.f32.mxu0 %v480
  %1637 = vmatmul.mubr.f32.gmra.mxu0 %v478
  %v1638 = vpop.f32.mrf.mxu0
  %v1639 = vadd.f32 %v1554, %v1638
  %v1640 = vpop.f32.mrf.mxu0
  %1641 = vmatprep.mubr.f32.mxu0 %v486
  %1642 = vmatmul.mubr.f32.gmra.mxu0 %v484
  %v1643 = vpop.f32.mrf.mxu0
  %v1644 = vadd.f32 %v1559, %v1643
  %v1645 = vpop.f32.mrf.mxu0
  %1646 = vmatprep.mubr.f32.mxu0 %v492
  %1647 = vmatmul.mubr.f32.gmra.mxu0 %v490
  %v1648 = vpop.f32.mrf.mxu0
  %v1649 = vadd.f32 %v1564, %v1648
  %v1650 = vpop.f32.mrf.mxu0
  %1651 = vdwg.mxu0
  %1652 = vmatprep.subr.mxu0 0.0
  %1653 = vmatpush1.msra.mxu0 %v1167
  %1654 = vmatprep.subr.mxu0 0.0
  %1655 = vmatpush1.msra.mxu0 %v1166
  %1656 = vmatprep.subr.mxu0 0.0
  %1657 = vmatpush1.msra.mxu0 %v1165
  %1658 = vmatprep.subr.mxu0 0.0
  %1659 = vmatpush1.msra.mxu0 %v1164
  %1660 = vmatprep.subr.mxu0 0.0
  %1661 = vmatpush1.msra.mxu0 %v1163
  %1662 = vmatprep.subr.mxu0 0.0
  %1663 = vmatpush1.msra.mxu0 %v1162
  %1664 = vmatprep.subr.mxu0 0.0
  %1665 = vmatpush1.msra.mxu0 %v1161
  %1666 = vmatprep.subr.mxu0 0.0
  %1667 = vmatpush1.msra.mxu0 %v1160
  %1668 = vmatprep.subr.mxu0 0.0
  %1669 = vmatpush1.msra.mxu0 %v1159
  %1670 = vmatprep.subr.mxu0 0.0
  %1671 = vmatpush1.msra.mxu0 %v1158
  %1672 = vmatprep.subr.mxu0 0.0
  %1673 = vmatpush1.msra.mxu0 %v1157
  %1674 = vmatprep.subr.mxu0 0.0
  %1675 = vmatpush1.msra.mxu0 %v1156
  %1676 = vmatprep.subr.mxu0 0.0
  %1677 = vmatpush1.msra.mxu0 %v1155
  %1678 = vmatprep.subr.mxu0 0.0
  %1679 = vmatpush1.msra.mxu0 %v1154
  %1680 = vmatprep.subr.mxu0 0.0
  %1681 = vmatpush1.msra.mxu0 %v1153
  %1682 = vmatprep.subr.mxu0 0.0
  %1683 = vmatpush1.msra.mxu0 %v1152
  %1684 = vmatprep.subr.mxu0 0.0
  %1685 = vmatpush2.msra.mxu0 %v1183
  %1686 = vmatprep.subr.mxu0 0.0
  %1687 = vmatpush2.msra.mxu0 %v1182
  %1688 = vmatprep.subr.mxu0 0.0
  %1689 = vmatpush2.msra.mxu0 %v1181
  %1690 = vmatprep.subr.mxu0 0.0
  %1691 = vmatpush2.msra.mxu0 %v1180
  %1692 = vmatprep.subr.mxu0 0.0
  %1693 = vmatpush2.msra.mxu0 %v1179
  %1694 = vmatprep.subr.mxu0 0.0
  %1695 = vmatpush2.msra.mxu0 %v1178
  %1696 = vmatprep.subr.mxu0 0.0
  %1697 = vmatpush2.msra.mxu0 %v1177
  %1698 = vmatprep.subr.mxu0 0.0
  %1699 = vmatpush2.msra.mxu0 %v1176
  %1700 = vmatprep.subr.mxu0 0.0
  %1701 = vmatpush2.msra.mxu0 %v1175
  %1702 = vmatprep.subr.mxu0 0.0
  %1703 = vmatpush2.msra.mxu0 %v1174
  %1704 = vmatprep.subr.mxu0 0.0
  %1705 = vmatpush2.msra.mxu0 %v1173
  %1706 = vmatprep.subr.mxu0 0.0
  %1707 = vmatpush2.msra.mxu0 %v1172
  %1708 = vmatprep.subr.mxu0 0.0
  %1709 = vmatpush2.msra.mxu0 %v1171
  %1710 = vmatprep.subr.mxu0 0.0
  %1711 = vmatpush2.msra.mxu0 %v1170
  %1712 = vmatprep.subr.mxu0 0.0
  %1713 = vmatpush2.msra.mxu0 %v1169
  %1714 = vmatprep.subr.mxu0 0.0
  %1715 = vmatpush2.msra.mxu0 %v1168
  %1716 = vmatprep.mubr.f32.mxu0 %v580
  %1717 = vmatmul.mubr.f32.gmra.mxu0 %v578
  %v1718 = vpop.f32.mrf.mxu0
  %v1719 = vadd.f32 %v1634, %v1718
  %v1720 = vpop.f32.mrf.mxu0
  %1721 = vmatprep.mubr.f32.mxu0 %v586
  %1722 = vmatmul.mubr.f32.gmra.mxu0 %v584
  %v1723 = vpop.f32.mrf.mxu0
  %v1724 = vadd.f32 %v1639, %v1723
  %v1725 = vpop.f32.mrf.mxu0
  %1726 = vmatprep.mubr.f32.mxu0 %v592
  %1727 = vmatmul.mubr.f32.gmra.mxu0 %v590
  %v1728 = vpop.f32.mrf.mxu0
  %v1729 = vadd.f32 %v1644, %v1728
  %v1730 = vpop.f32.mrf.mxu0
  %1731 = vmatprep.mubr.f32.mxu0 %v598
  %1732 = vmatmul.mubr.f32.gmra.mxu0 %v596
  %v1733 = vpop.f32.mrf.mxu0
  %v1734 = vadd.f32 %v1649, %v1733
  %v1735 = vpop.f32.mrf.mxu0
  %1736 = vdwg.mxu0
  %1737 = vmatprep.subr.mxu0 0.0
  %1738 = vmatpush1.msra.mxu0 %v1199
  %1739 = vmatprep.subr.mxu0 0.0
  %1740 = vmatpush1.msra.mxu0 %v1198
  %1741 = vmatprep.subr.mxu0 0.0
  %1742 = vmatpush1.msra.mxu0 %v1197
  %1743 = vmatprep.subr.mxu0 0.0
  %1744 = vmatpush1.msra.mxu0 %v1196
  %1745 = vmatprep.subr.mxu0 0.0
  %1746 = vmatpush1.msra.mxu0 %v1195
  %1747 = vmatprep.subr.mxu0 0.0
  %1748 = vmatpush1.msra.mxu0 %v1194
  %1749 = vmatprep.subr.mxu0 0.0
  %1750 = vmatpush1.msra.mxu0 %v1193
  %1751 = vmatprep.subr.mxu0 0.0
  %1752 = vmatpush1.msra.mxu0 %v1192
  %1753 = vmatprep.subr.mxu0 0.0
  %1754 = vmatpush1.msra.mxu0 %v1191
  %1755 = vmatprep.subr.mxu0 0.0
  %1756 = vmatpush1.msra.mxu0 %v1190
  %1757 = vmatprep.subr.mxu0 0.0
  %1758 = vmatpush1.msra.mxu0 %v1189
  %1759 = vmatprep.subr.mxu0 0.0
  %1760 = vmatpush1.msra.mxu0 %v1188
  %1761 = vmatprep.subr.mxu0 0.0
  %1762 = vmatpush1.msra.mxu0 %v1187
  %1763 = vmatprep.subr.mxu0 0.0
  %1764 = vmatpush1.msra.mxu0 %v1186
  %1765 = vmatprep.subr.mxu0 0.0
  %1766 = vmatpush1.msra.mxu0 %v1185
  %1767 = vmatprep.subr.mxu0 0.0
  %1768 = vmatpush1.msra.mxu0 %v1184
  %1769 = vmatprep.subr.mxu0 0.0
  %1770 = vmatpush2.msra.mxu0 %v1215
  %1771 = vmatprep.subr.mxu0 0.0
  %1772 = vmatpush2.msra.mxu0 %v1214
  %1773 = vmatprep.subr.mxu0 0.0
  %1774 = vmatpush2.msra.mxu0 %v1213
  %1775 = vmatprep.subr.mxu0 0.0
  %1776 = vmatpush2.msra.mxu0 %v1212
  %1777 = vmatprep.subr.mxu0 0.0
  %1778 = vmatpush2.msra.mxu0 %v1211
  %1779 = vmatprep.subr.mxu0 0.0
  %1780 = vmatpush2.msra.mxu0 %v1210
  %1781 = vmatprep.subr.mxu0 0.0
  %1782 = vmatpush2.msra.mxu0 %v1209
  %1783 = vmatprep.subr.mxu0 0.0
  %1784 = vmatpush2.msra.mxu0 %v1208
  %1785 = vmatprep.subr.mxu0 0.0
  %1786 = vmatpush2.msra.mxu0 %v1207
  %1787 = vmatprep.subr.mxu0 0.0
  %1788 = vmatpush2.msra.mxu0 %v1206
  %1789 = vmatprep.subr.mxu0 0.0
  %1790 = vmatpush2.msra.mxu0 %v1205
  %1791 = vmatprep.subr.mxu0 0.0
  %1792 = vmatpush2.msra.mxu0 %v1204
  %1793 = vmatprep.subr.mxu0 0.0
  %1794 = vmatpush2.msra.mxu0 %v1203
  %1795 = vmatprep.subr.mxu0 0.0
  %1796 = vmatpush2.msra.mxu0 %v1202
  %1797 = vmatprep.subr.mxu0 0.0
  %1798 = vmatpush2.msra.mxu0 %v1201
  %1799 = vmatprep.subr.mxu0 0.0
  %1800 = vmatpush2.msra.mxu0 %v1200
  %1801 = vmatprep.mubr.f32.mxu0 %v686
  %1802 = vmatmul.mubr.f32.gmra.mxu0 %v684
  %v1803 = vpop.f32.mrf.mxu0
  %v1804 = vadd.f32 %v1719, %v1803
  %v1805 = vpop.f32.mrf.mxu0
  %1806 = vmatprep.mubr.f32.mxu0 %v692
  %1807 = vmatmul.mubr.f32.gmra.mxu0 %v690
  %v1808 = vpop.f32.mrf.mxu0
  %v1809 = vadd.f32 %v1724, %v1808
  %v1810 = vpop.f32.mrf.mxu0
  %1811 = vmatprep.mubr.f32.mxu0 %v698
  %1812 = vmatmul.mubr.f32.gmra.mxu0 %v696
  %v1813 = vpop.f32.mrf.mxu0
  %v1814 = vadd.f32 %v1729, %v1813
  %v1815 = vpop.f32.mrf.mxu0
  %1816 = vmatprep.mubr.f32.mxu0 %v704
  %1817 = vmatmul.mubr.f32.gmra.mxu0 %v702
  %v1818 = vpop.f32.mrf.mxu0
  %v1819 = vadd.f32 %v1734, %v1818
  %v1820 = vpop.f32.mrf.mxu0
  %1821 = vdwg.mxu0
  %1822 = vmatprep.subr.mxu0 0.0
  %1823 = vmatpush1.msra.mxu0 %v1231
  %1824 = vmatprep.subr.mxu0 0.0
  %1825 = vmatpush1.msra.mxu0 %v1230
  %1826 = vmatprep.subr.mxu0 0.0
  %1827 = vmatpush1.msra.mxu0 %v1229
  %1828 = vmatprep.subr.mxu0 0.0
  %1829 = vmatpush1.msra.mxu0 %v1228
  %1830 = vmatprep.subr.mxu0 0.0
  %1831 = vmatpush1.msra.mxu0 %v1227
  %1832 = vmatprep.subr.mxu0 0.0
  %1833 = vmatpush1.msra.mxu0 %v1226
  %1834 = vmatprep.subr.mxu0 0.0
  %1835 = vmatpush1.msra.mxu0 %v1225
  %1836 = vmatprep.subr.mxu0 0.0
  %1837 = vmatpush1.msra.mxu0 %v1224
  %1838 = vmatprep.subr.mxu0 0.0
  %1839 = vmatpush1.msra.mxu0 %v1223
  %1840 = vmatprep.subr.mxu0 0.0
  %1841 = vmatpush1.msra.mxu0 %v1222
  %1842 = vmatprep.subr.mxu0 0.0
  %1843 = vmatpush1.msra.mxu0 %v1221
  %1844 = vmatprep.subr.mxu0 0.0
  %1845 = vmatpush1.msra.mxu0 %v1220
  %1846 = vmatprep.subr.mxu0 0.0
  %1847 = vmatpush1.msra.mxu0 %v1219
  %1848 = vmatprep.subr.mxu0 0.0
  %1849 = vmatpush1.msra.mxu0 %v1218
  %1850 = vmatprep.subr.mxu0 0.0
  %1851 = vmatpush1.msra.mxu0 %v1217
  %1852 = vmatprep.subr.mxu0 0.0
  %1853 = vmatpush1.msra.mxu0 %v1216
  %1854 = vmatprep.subr.mxu0 0.0
  %1855 = vmatpush2.msra.mxu0 %v1247
  %1856 = vmatprep.subr.mxu0 0.0
  %1857 = vmatpush2.msra.mxu0 %v1246
  %1858 = vmatprep.subr.mxu0 0.0
  %1859 = vmatpush2.msra.mxu0 %v1245
  %1860 = vmatprep.subr.mxu0 0.0
  %1861 = vmatpush2.msra.mxu0 %v1244
  %1862 = vmatprep.subr.mxu0 0.0
  %1863 = vmatpush2.msra.mxu0 %v1243
  %1864 = vmatprep.subr.mxu0 0.0
  %1865 = vmatpush2.msra.mxu0 %v1242
  %1866 = vmatprep.subr.mxu0 0.0
  %1867 = vmatpush2.msra.mxu0 %v1241
  %1868 = vmatprep.subr.mxu0 0.0
  %1869 = vmatpush2.msra.mxu0 %v1240
  %1870 = vmatprep.subr.mxu0 0.0
  %1871 = vmatpush2.msra.mxu0 %v1239
  %1872 = vmatprep.subr.mxu0 0.0
  %1873 = vmatpush2.msra.mxu0 %v1238
  %1874 = vmatprep.subr.mxu0 0.0
  %1875 = vmatpush2.msra.mxu0 %v1237
  %1876 = vmatprep.subr.mxu0 0.0
  %1877 = vmatpush2.msra.mxu0 %v1236
  %1878 = vmatprep.subr.mxu0 0.0
  %1879 = vmatpush2.msra.mxu0 %v1235
  %1880 = vmatprep.subr.mxu0 0.0
  %1881 = vmatpush2.msra.mxu0 %v1234
  %1882 = vmatprep.subr.mxu0 0.0
  %1883 = vmatpush2.msra.mxu0 %v1233
  %1884 = vmatprep.subr.mxu0 0.0
  %1885 = vmatpush2.msra.mxu0 %v1232
  %1886 = vmatprep.mubr.f32.mxu0 %v792
  %1887 = vmatmul.mubr.f32.gmra.mxu0 %v790
  %v1888 = vpop.f32.mrf.mxu0
  %v1889 = vadd.f32 %v1804, %v1888
  %v1890 = vpop.f32.mrf.mxu0
  %1891 = vmatprep.mubr.f32.mxu0 %v798
  %1892 = vmatmul.mubr.f32.gmra.mxu0 %v796
  %v1893 = vpop.f32.mrf.mxu0
  %v1894 = vadd.f32 %v1809, %v1893
  %v1895 = vpop.f32.mrf.mxu0
  %1896 = vmatprep.mubr.f32.mxu0 %v804
  %1897 = vmatmul.mubr.f32.gmra.mxu0 %v802
  %v1898 = vpop.f32.mrf.mxu0
  %v1899 = vadd.f32 %v1814, %v1898
  %v1900 = vpop.f32.mrf.mxu0
  %1901 = vmatprep.mubr.f32.mxu0 %v810
  %1902 = vmatmul.mubr.f32.gmra.mxu0 %v808
  %v1903 = vpop.f32.mrf.mxu0
  %v1904 = vadd.f32 %v1819, %v1903
  %v1905 = vpop.f32.mrf.mxu0
  %1906 = vdwg.mxu0
  %1907 = vmatprep.subr.mxu0 0.0
  %1908 = vmatpush1.msra.mxu0 %v1263
  %1909 = vmatprep.subr.mxu0 0.0
  %1910 = vmatpush1.msra.mxu0 %v1262
  %1911 = vmatprep.subr.mxu0 0.0
  %1912 = vmatpush1.msra.mxu0 %v1261
  %1913 = vmatprep.subr.mxu0 0.0
  %1914 = vmatpush1.msra.mxu0 %v1260
  %1915 = vmatprep.subr.mxu0 0.0
  %1916 = vmatpush1.msra.mxu0 %v1259
  %1917 = vmatprep.subr.mxu0 0.0
  %1918 = vmatpush1.msra.mxu0 %v1258
  %1919 = vmatprep.subr.mxu0 0.0
  %1920 = vmatpush1.msra.mxu0 %v1257
  %1921 = vmatprep.subr.mxu0 0.0
  %1922 = vmatpush1.msra.mxu0 %v1256
  %1923 = vmatprep.subr.mxu0 0.0
  %1924 = vmatpush1.msra.mxu0 %v1255
  %1925 = vmatprep.subr.mxu0 0.0
  %1926 = vmatpush1.msra.mxu0 %v1254
  %1927 = vmatprep.subr.mxu0 0.0
  %1928 = vmatpush1.msra.mxu0 %v1253
  %1929 = vmatprep.subr.mxu0 0.0
  %1930 = vmatpush1.msra.mxu0 %v1252
  %1931 = vmatprep.subr.mxu0 0.0
  %1932 = vmatpush1.msra.mxu0 %v1251
  %1933 = vmatprep.subr.mxu0 0.0
  %1934 = vmatpush1.msra.mxu0 %v1250
  %1935 = vmatprep.subr.mxu0 0.0
  %1936 = vmatpush1.msra.mxu0 %v1249
  %1937 = vmatprep.subr.mxu0 0.0
  %1938 = vmatpush1.msra.mxu0 %v1248
  %1939 = vmatprep.subr.mxu0 0.0
  %1940 = vmatpush2.msra.mxu0 %v1279
  %1941 = vmatprep.subr.mxu0 0.0
  %1942 = vmatpush2.msra.mxu0 %v1278
  %1943 = vmatprep.subr.mxu0 0.0
  %1944 = vmatpush2.msra.mxu0 %v1277
  %1945 = vmatprep.subr.mxu0 0.0
  %1946 = vmatpush2.msra.mxu0 %v1276
  %1947 = vmatprep.subr.mxu0 0.0
  %1948 = vmatpush2.msra.mxu0 %v1275
  %1949 = vmatprep.subr.mxu0 0.0
  %1950 = vmatpush2.msra.mxu0 %v1274
  %1951 = vmatprep.subr.mxu0 0.0
  %1952 = vmatpush2.msra.mxu0 %v1273
  %1953 = vmatprep.subr.mxu0 0.0
  %1954 = vmatpush2.msra.mxu0 %v1272
  %1955 = vmatprep.subr.mxu0 0.0
  %1956 = vmatpush2.msra.mxu0 %v1271
  %1957 = vmatprep.subr.mxu0 0.0
  %1958 = vmatpush2.msra.mxu0 %v1270
  %1959 = vmatprep.subr.mxu0 0.0
  %1960 = vmatpush2.msra.mxu0 %v1269
  %1961 = vmatprep.subr.mxu0 0.0
  %1962 = vmatpush2.msra.mxu0 %v1268
  %1963 = vmatprep.subr.mxu0 0.0
  %1964 = vmatpush2.msra.mxu0 %v1267
  %1965 = vmatprep.subr.mxu0 0.0
  %1966 = vmatpush2.msra.mxu0 %v1266
  %1967 = vmatprep.subr.mxu0 0.0
  %1968 = vmatpush2.msra.mxu0 %v1265
  %1969 = vmatprep.subr.mxu0 0.0
  %1970 = vmatpush2.msra.mxu0 %v1264
  %1971 = vmatprep.mubr.f32.mxu0 %v898
  %1972 = vmatmul.mubr.f32.gmra.mxu0 %v896
  %v1973 = vpop.f32.mrf.mxu0
  %v1974 = vadd.f32 %v1889, %v1973
  %v1975 = vpop.f32.mrf.mxu0
  %1976 = vmatprep.mubr.f32.mxu0 %v904
  %1977 = vmatmul.mubr.f32.gmra.mxu0 %v902
  %v1978 = vpop.f32.mrf.mxu0
  %v1979 = vadd.f32 %v1894, %v1978
  %v1980 = vpop.f32.mrf.mxu0
  %1981 = vmatprep.mubr.f32.mxu0 %v910
  %1982 = vmatmul.mubr.f32.gmra.mxu0 %v908
  %v1983 = vpop.f32.mrf.mxu0
  %v1984 = vadd.f32 %v1899, %v1983
  %v1985 = vpop.f32.mrf.mxu0
  %1986 = vmatprep.mubr.f32.mxu0 %v916
  %1987 = vmatmul.mubr.f32.gmra.mxu0 %v914
  %v1988 = vpop.f32.mrf.mxu0
  %v1989 = vadd.f32 %v1904, %v1988
  %v1990 = vpop.f32.mrf.mxu0
  %1991 = vdwg.mxu0
  %1992 = vmatprep.subr.mxu0 0.0
  %1993 = vmatpush1.msra.mxu0 %v1295
  %1994 = vmatprep.subr.mxu0 0.0
  %1995 = vmatpush1.msra.mxu0 %v1294
  %1996 = vmatprep.subr.mxu0 0.0
  %1997 = vmatpush1.msra.mxu0 %v1293
  %1998 = vmatprep.subr.mxu0 0.0
  %1999 = vmatpush1.msra.mxu0 %v1292
  %2000 = vmatprep.subr.mxu0 0.0
  %2001 = vmatpush1.msra.mxu0 %v1291
  %2002 = vmatprep.subr.mxu0 0.0
  %2003 = vmatpush1.msra.mxu0 %v1290
  %2004 = vmatprep.subr.mxu0 0.0
  %2005 = vmatpush1.msra.mxu0 %v1289
  %2006 = vmatprep.subr.mxu0 0.0
  %2007 = vmatpush1.msra.mxu0 %v1288
  %2008 = vmatprep.subr.mxu0 0.0
  %2009 = vmatpush1.msra.mxu0 %v1287
  %2010 = vmatprep.subr.mxu0 0.0
  %2011 = vmatpush1.msra.mxu0 %v1286
  %2012 = vmatprep.subr.mxu0 0.0
  %2013 = vmatpush1.msra.mxu0 %v1285
  %2014 = vmatprep.subr.mxu0 0.0
  %2015 = vmatpush1.msra.mxu0 %v1284
  %2016 = vmatprep.subr.mxu0 0.0
  %2017 = vmatpush1.msra.mxu0 %v1283
  %2018 = vmatprep.subr.mxu0 0.0
  %2019 = vmatpush1.msra.mxu0 %v1282
  %2020 = vmatprep.subr.mxu0 0.0
  %2021 = vmatpush1.msra.mxu0 %v1281
  %2022 = vmatprep.subr.mxu0 0.0
  %2023 = vmatpush1.msra.mxu0 %v1280
  %2024 = vmatprep.subr.mxu0 0.0
  %2025 = vmatpush2.msra.mxu0 %v1311
  %2026 = vmatprep.subr.mxu0 0.0
  %2027 = vmatpush2.msra.mxu0 %v1310
  %2028 = vmatprep.subr.mxu0 0.0
  %2029 = vmatpush2.msra.mxu0 %v1309
  %2030 = vmatprep.subr.mxu0 0.0
  %2031 = vmatpush2.msra.mxu0 %v1308
  %2032 = vmatprep.subr.mxu0 0.0
  %2033 = vmatpush2.msra.mxu0 %v1307
  %2034 = vmatprep.subr.mxu0 0.0
  %2035 = vmatpush2.msra.mxu0 %v1306
  %2036 = vmatprep.subr.mxu0 0.0
  %2037 = vmatpush2.msra.mxu0 %v1305
  %2038 = vmatprep.subr.mxu0 0.0
  %2039 = vmatpush2.msra.mxu0 %v1304
  %2040 = vmatprep.subr.mxu0 0.0
  %2041 = vmatpush2.msra.mxu0 %v1303
  %2042 = vmatprep.subr.mxu0 0.0
  %2043 = vmatpush2.msra.mxu0 %v1302
  %2044 = vmatprep.subr.mxu0 0.0
  %2045 = vmatpush2.msra.mxu0 %v1301
  %2046 = vmatprep.subr.mxu0 0.0
  %2047 = vmatpush2.msra.mxu0 %v1300
  %2048 = vmatprep.subr.mxu0 0.0
  %2049 = vmatpush2.msra.mxu0 %v1299
  %2050 = vmatprep.subr.mxu0 0.0
  %2051 = vmatpush2.msra.mxu0 %v1298
  %2052 = vmatprep.subr.mxu0 0.0
  %2053 = vmatpush2.msra.mxu0 %v1297
  %2054 = vmatprep.subr.mxu0 0.0
  %2055 = vmatpush2.msra.mxu0 %v1296
  %2056 = vmatprep.mubr.f32.mxu0 %v1004
  %2057 = vmatmul.mubr.f32.gmra.mxu0 %v1002
  %v2058 = vpop.f32.mrf.mxu0
  %v2059 = vadd.f32 %v1974, %v2058
  %v2060 = vpop.f32.mrf.mxu0
  %2061 = vmatprep.mubr.f32.mxu0 %v1010
  %2062 = vmatmul.mubr.f32.gmra.mxu0 %v1008
  %v2063 = vpop.f32.mrf.mxu0
  %v2064 = vadd.f32 %v1979, %v2063
  %v2065 = vpop.f32.mrf.mxu0
  %2066 = vmatprep.mubr.f32.mxu0 %v1016
  %2067 = vmatmul.mubr.f32.gmra.mxu0 %v1014
  %v2068 = vpop.f32.mrf.mxu0
  %v2069 = vadd.f32 %v1984, %v2068
  %v2070 = vpop.f32.mrf.mxu0
  %2071 = vmatprep.mubr.f32.mxu0 %v1022
  %2072 = vmatmul.mubr.f32.gmra.mxu0 %v1020
  %v2073 = vpop.f32.mrf.mxu0
  %v2074 = vadd.f32 %v1989, %v2073
  %v2075 = vpop.f32.mrf.mxu0
  %2076 = vdwg.mxu0
  %v2077 = vadd.f32 %v2059, %v2064
  %v2078 = vadd.f32 %v2077, %v2069
  %v2079 = vadd.f32 %v2078, %v2074
  %v2080 = vrot.slane %v2079, 4
  %v2081 = vadd.f32 %v2079, %v2080
  %v2082 = vrot.slane %v2081, 2
  %v2083 = vadd.f32 %v2081, %v2082
  %v2084 = vrot.slane %v2083, 1
  %v2085 = vadd.f32 %v2083, %v2084
  %v2086 = vmul.f32 %v2059, %v2059
  %v2087 = vmul.f32 %v2064, %v2064
  %v2088 = vmul.f32 %v2069, %v2069
  %v2089 = vmul.f32 %v2074, %v2074
  %v2090 = vadd.f32 %v2086, %v2087
  %v2091 = vadd.f32 %v2090, %v2088
  %v2092 = vadd.f32 %v2091, %v2089
  %v2093 = vrot.slane %v2092, 4
  %v2094 = vadd.f32 %v2092, %v2093
  %v2095 = vrot.slane %v2094, 2
  %v2096 = vadd.f32 %v2094, %v2095
  %v2097 = vrot.slane %v2096, 1
  %v2098 = vadd.f32 %v2096, %v2097
  %v2099 = vld [vmem:[%s3] sm:$0x1]
  %v2100 = vld [vmem:[%s4] sm:$0x1]
  %v2101 = vmul.f32 %v2085, 0.03125
  %v2102 = vmul.f32 %v2098, 0.03125
  %v2103 = vmul.f32 %v2101, %v2101
  %v2104 = vsub.f32 %v2102, %v2103
  %v2105 = vmax.f32 %v2104, 0.0
  %v2106 = vadd.f32 %v2105, 1e-05
  %v2107 = vrsqrt.pop %v2106
  %v2108 = vmul.f32 %v2099, %v2107
  %v2109 = vmul.f32 %v2101, %v2108
  %v2110 = vsub.f32 %v2100, %v2109
  %v2112 = vlaneseq
  %v2113 = vshrl.u32 %v2112, 7
  %v2114 = vsub.s32 0, %v2113
  %v2115 = vrot.slane %v2108, %v2114
  %v2117 = vmul.f32 %v2059, %v2115
  %v2118 = vmul.f32 %v2064, %v2115
  %v2119 = vmul.f32 %v2069, %v2115
  %v2120 = vmul.f32 %v2074, %v2115
  %v2122 = vlaneseq
  %v2123 = vshrl.u32 %v2122, 7
  %v2124 = vsub.s32 0, %v2123
  %v2125 = vrot.slane %v2110, %v2124
  %v2127 = vadd.f32 %v2117, %v2125
  %v2128 = vadd.f32 %v2118, %v2125
  %v2129 = vadd.f32 %v2119, %v2125
  %v2130 = vadd.f32 %v2120, %v2125
  %v2131 = vsub.f32 0.0, %v2127
  %v2132 = vsub.f32 0.0, %v2128
  %v2133 = vsub.f32 0.0, %v2129
  %v2134 = vsub.f32 0.0, %v2130
  %v2135 = vmul.f32 %v2131, 1.442695
  %v2136 = vpow.pop %v2135
  %v2137 = vmul.f32 %v2132, 1.442695
  %v2138 = vpow.pop %v2137
  %v2139 = vmul.f32 %v2133, 1.442695
  %v2140 = vpow.pop %v2139
  %v2141 = vmul.f32 %v2134, 1.442695
  %v2142 = vpow.pop %v2141
  %v2143 = vadd.f32 %v2136, 1.0
  %v2144 = vadd.f32 %v2138, 1.0
  %v2145 = vadd.f32 %v2140, 1.0
  %v2146 = vadd.f32 %v2142, 1.0
  %v2147 = vrcp.pop %v2143
  %v2148 = vrcp.pop %v2144
  %v2149 = vrcp.pop %v2145
  %v2150 = vrcp.pop %v2146
  %v2151 = vld [vmem:[%s5] sm:$0xff]
  %v2152 = vld [vmem:[%s5 + $0x8] sm:$0xff]
  %v2153 = vld [vmem:[%s5 + $0x10] sm:$0xff]
  %v2154 = vld [vmem:[%s5 + $0x18] sm:$0xff]
  %v2155 = vld [vmem:[%s5 + $0x20] sm:$0xff]
  %v2156 = vld [vmem:[%s5 + $0x28] sm:$0xff]
  %v2157 = vld [vmem:[%s5 + $0x30] sm:$0xff]
  %v2158 = vld [vmem:[%s5 + $0x38] sm:$0xff]
  %v2159 = vld [vmem:[%s5 + $0x40] sm:$0xff]
  %v2160 = vld [vmem:[%s5 + $0x48] sm:$0xff]
  %v2161 = vld [vmem:[%s5 + $0x50] sm:$0xff]
  %v2162 = vld [vmem:[%s5 + $0x58] sm:$0xff]
  %v2163 = vld [vmem:[%s5 + $0x60] sm:$0xff]
  %v2164 = vld [vmem:[%s5 + $0x68] sm:$0xff]
  %v2165 = vld [vmem:[%s5 + $0x70] sm:$0xff]
  %v2166 = vld [vmem:[%s5 + $0x78] sm:$0xff]
  %v2167 = vld [vmem:[%s5 + $0x80] sm:$0xff]
  %v2168 = vld [vmem:[%s5 + $0x88] sm:$0xff]
  %v2169 = vld [vmem:[%s5 + $0x90] sm:$0xff]
  %v2170 = vld [vmem:[%s5 + $0x98] sm:$0xff]
  %v2171 = vld [vmem:[%s5 + $0xa0] sm:$0xff]
  %v2172 = vld [vmem:[%s5 + $0xa8] sm:$0xff]
  %v2173 = vld [vmem:[%s5 + $0xb0] sm:$0xff]
  %v2174 = vld [vmem:[%s5 + $0xb8] sm:$0xff]
  %v2175 = vld [vmem:[%s5 + $0xc0] sm:$0xff]
  %v2176 = vld [vmem:[%s5 + $0xc8] sm:$0xff]
  %v2177 = vld [vmem:[%s5 + $0xd0] sm:$0xff]
  %v2178 = vld [vmem:[%s5 + $0xd8] sm:$0xff]
  %v2179 = vld [vmem:[%s5 + $0xe0] sm:$0xff]
  %v2180 = vld [vmem:[%s5 + $0xe8] sm:$0xff]
  %v2181 = vld [vmem:[%s5 + $0xf0] sm:$0xff]
  %v2182 = vld [vmem:[%s5 + $0xf8] sm:$0xff]
  %2183 = vmatprep.subr.mxu0 %v2182
  %2184 = vmatpush1.msra.mxu0 %v2181
  %2185 = vmatprep.subr.mxu0 %v2180
  %2186 = vmatpush1.msra.mxu0 %v2179
  %2187 = vmatprep.subr.mxu0 %v2178
  %2188 = vmatpush1.msra.mxu0 %v2177
  %2189 = vmatprep.subr.mxu0 %v2176
  %2190 = vmatpush1.msra.mxu0 %v2175
  %2191 = vmatprep.subr.mxu0 %v2174
  %2192 = vmatpush1.msra.mxu0 %v2173
  %2193 = vmatprep.subr.mxu0 %v2172
  %2194 = vmatpush1.msra.mxu0 %v2171
  %2195 = vmatprep.subr.mxu0 %v2170
  %2196 = vmatpush1.msra.mxu0 %v2169
  %2197 = vmatprep.subr.mxu0 %v2168
  %2198 = vmatpush1.msra.mxu0 %v2167
  %2199 = vmatprep.subr.mxu0 %v2166
  %2200 = vmatpush1.msra.mxu0 %v2165
  %2201 = vmatprep.subr.mxu0 %v2164
  %2202 = vmatpush1.msra.mxu0 %v2163
  %2203 = vmatprep.subr.mxu0 %v2162
  %2204 = vmatpush1.msra.mxu0 %v2161
  %2205 = vmatprep.subr.mxu0 %v2160
  %2206 = vmatpush1.msra.mxu0 %v2159
  %2207 = vmatprep.subr.mxu0 %v2158
  %2208 = vmatpush1.msra.mxu0 %v2157
  %2209 = vmatprep.subr.mxu0 %v2156
  %2210 = vmatpush1.msra.mxu0 %v2155
  %2211 = vmatprep.subr.mxu0 %v2154
  %2212 = vmatpush1.msra.mxu0 %v2153
  %2213 = vmatprep.subr.mxu0 %v2152
  %2214 = vmatpush1.msra.mxu0 %v2151
  %2215 = vmatprep.subr.mxu0 0.0
  %2216 = vmatpush2.msra.mxu0 0.0
  %2217 = vmatprep.subr.mxu0 0.0
  %2218 = vmatpush2.msra.mxu0 0.0
  %2219 = vmatprep.subr.mxu0 0.0
  %2220 = vmatpush2.msra.mxu0 0.0
  %2221 = vmatprep.subr.mxu0 0.0
  %2222 = vmatpush2.msra.mxu0 0.0
  %2223 = vmatprep.subr.mxu0 0.0
  %2224 = vmatpush2.msra.mxu0 0.0
  %2225 = vmatprep.subr.mxu0 0.0
  %2226 = vmatpush2.msra.mxu0 0.0
  %2227 = vmatprep.subr.mxu0 0.0
  %2228 = vmatpush2.msra.mxu0 0.0
  %2229 = vmatprep.subr.mxu0 0.0
  %2230 = vmatpush2.msra.mxu0 0.0
  %2231 = vmatprep.subr.mxu0 0.0
  %2232 = vmatpush2.msra.mxu0 0.0
  %2233 = vmatprep.subr.mxu0 0.0
  %2234 = vmatpush2.msra.mxu0 0.0
  %2235 = vmatprep.subr.mxu0 0.0
  %2236 = vmatpush2.msra.mxu0 0.0
  %2237 = vmatprep.subr.mxu0 0.0
  %2238 = vmatpush2.msra.mxu0 0.0
  %2239 = vmatprep.subr.mxu0 0.0
  %2240 = vmatpush2.msra.mxu0 0.0
  %2241 = vmatprep.subr.mxu0 0.0
  %2242 = vmatpush2.msra.mxu0 0.0
  %2243 = vmatprep.subr.mxu0 0.0
  %2244 = vmatpush2.msra.mxu0 0.0
  %2245 = vmatprep.subr.mxu0 0.0
  %2246 = vmatpush2.msra.mxu0 0.0
  %2247 = vmatprep.mubr.f32.mxu0 0.0
  %2248 = vmatmul.mubr.f32.gmra.mxu0 %v2147
  %v2249 = vpop.f32.mrf.mxu0
  %v2250 = vadd.f32 0.0, %v2249
  %v2251 = vpop.f32.mrf.mxu0
  %v2252 = vadd.f32 0.0, %v2251
  %2253 = vmatprep.mubr.f32.mxu0 0.0
  %2254 = vmatmul.mubr.f32.gmra.mxu0 %v2148
  %v2255 = vpop.f32.mrf.mxu0
  %v2256 = vadd.f32 0.0, %v2255
  %v2257 = vpop.f32.mrf.mxu0
  %v2258 = vadd.f32 0.0, %v2257
  %2259 = vmatprep.mubr.f32.mxu0 0.0
  %2260 = vmatmul.mubr.f32.gmra.mxu0 %v2149
  %v2261 = vpop.f32.mrf.mxu0
  %v2262 = vadd.f32 0.0, %v2261
  %v2263 = vpop.f32.mrf.mxu0
  %v2264 = vadd.f32 0.0, %v2263
  %2265 = vmatprep.mubr.f32.mxu0 0.0
  %2266 = vmatmul.mubr.f32.gmra.mxu0 %v2150
  %v2267 = vpop.f32.mrf.mxu0
  %v2268 = vadd.f32 0.0, %v2267
  %v2269 = vpop.f32.mrf.mxu0
  %v2270 = vadd.f32 0.0, %v2269
  %2271 = vdwg.mxu0
  %v2272 = vadd.f32 %v2250, %v2256
  %v2273 = vadd.f32 %v2272, %v2262
  %v2274 = vadd.f32 %v2273, %v2268
  %v2275 = vrot.slane %v2274, 4
  %v2276 = vadd.f32 %v2274, %v2275
  %v2277 = vrot.slane %v2276, 2
  %v2278 = vadd.f32 %v2276, %v2277
  %v2279 = vrot.slane %v2278, 1
  %v2280 = vadd.f32 %v2278, %v2279
  %v2281 = vadd.f32 %v2252, %v2258
  %v2282 = vadd.f32 %v2281, %v2264
  %v2283 = vadd.f32 %v2282, %v2270
  %v2284 = vrot.slane %v2283, 4
  %v2285 = vadd.f32 %v2283, %v2284
  %v2286 = vrot.slane %v2285, 2
  %v2287 = vadd.f32 %v2285, %v2286
  %v2288 = vrot.slane %v2287, 1
  %v2289 = vadd.f32 %v2287, %v2288
  %v2290 = vmul.f32 %v2250, %v2250
  %v2291 = vmul.f32 %v2252, %v2252
  %v2292 = vmul.f32 %v2256, %v2256
  %v2293 = vmul.f32 %v2258, %v2258
  %v2294 = vmul.f32 %v2262, %v2262
  %v2295 = vmul.f32 %v2264, %v2264
  %v2296 = vmul.f32 %v2268, %v2268
  %v2297 = vmul.f32 %v2270, %v2270
  %v2298 = vadd.f32 %v2290, %v2292
  %v2299 = vadd.f32 %v2298, %v2294
  %v2300 = vadd.f32 %v2299, %v2296
  %v2301 = vrot.slane %v2300, 4
  %v2302 = vadd.f32 %v2300, %v2301
  %v2303 = vrot.slane %v2302, 2
  %v2304 = vadd.f32 %v2302, %v2303
  %v2305 = vrot.slane %v2304, 1
  %v2306 = vadd.f32 %v2304, %v2305
  %v2307 = vadd.f32 %v2291, %v2293
  %v2308 = vadd.f32 %v2307, %v2295
  %v2309 = vadd.f32 %v2308, %v2297
  %v2310 = vrot.slane %v2309, 4
  %v2311 = vadd.f32 %v2309, %v2310
  %v2312 = vrot.slane %v2311, 2
  %v2313 = vadd.f32 %v2311, %v2312
  %v2314 = vrot.slane %v2313, 1
  %v2315 = vadd.f32 %v2313, %v2314
  %2317 = vrot.lane.b32.xlu0 %v2280, 64
  %v2318 = vpop.permute.xlu0 %2317
  %v2320 = vadd.f32 %v2280, %v2318
  %v2321 = vadd.f32 %v2320, %v2289
  %2323 = vrot.lane.b32.xlu0 %v2289, 64
  %v2324 = vpop.permute.xlu0 %2323
  %v2326 = vadd.f32 %v2321, %v2324
  %2328 = vrot.lane.b32.xlu0 %v2306, 64
  %v2329 = vpop.permute.xlu0 %2328
  %v2331 = vadd.f32 %v2306, %v2329
  %v2332 = vadd.f32 %v2331, %v2315
  %2334 = vrot.lane.b32.xlu0 %v2315, 64
  %v2335 = vpop.permute.xlu0 %2334
  %v2337 = vadd.f32 %v2332, %v2335
  %v2338 = vld [vmem:[%s6] sm:$0x1]
  %v2339 = vld [vmem:[%s7] sm:$0x1]
  %v2340 = vmul.f32 %v2326, 0.0078125
  %v2341 = vmul.f32 %v2337, 0.0078125
  %v2342 = vmul.f32 %v2340, %v2340
  %v2343 = vsub.f32 %v2341, %v2342
  %v2344 = vmax.f32 %v2343, 0.0
  %v2345 = vadd.f32 %v2344, 1e-05
  %v2346 = vrsqrt.pop %v2345
  %v2347 = vmul.f32 %v2338, %v2346
  %v2348 = vmul.f32 %v2340, %v2347
  %v2349 = vsub.f32 %v2339, %v2348
  %v2350 = vld [vmem:[%s8] sm:$0xff]
  %v2351 = vld [vmem:[%s8 + $0x8] sm:$0xff]
  %v2352 = vld [vmem:[%s8 + $0x10] sm:$0xff]
  %v2353 = vld [vmem:[%s8 + $0x18] sm:$0xff]
  %v2354 = vld [vmem:[%s8 + $0x20] sm:$0xff]
  %v2355 = vld [vmem:[%s8 + $0x28] sm:$0xff]
  %v2356 = vld [vmem:[%s8 + $0x30] sm:$0xff]
  %v2357 = vld [vmem:[%s8 + $0x38] sm:$0xff]
  %v2358 = vld [vmem:[%s8 + $0x40] sm:$0xff]
  %v2359 = vld [vmem:[%s8 + $0x48] sm:$0xff]
  %v2360 = vld [vmem:[%s8 + $0x50] sm:$0xff]
  %v2361 = vld [vmem:[%s8 + $0x58] sm:$0xff]
  %v2362 = vld [vmem:[%s8 + $0x60] sm:$0xff]
  %v2363 = vld [vmem:[%s8 + $0x68] sm:$0xff]
  %v2364 = vld [vmem:[%s8 + $0x70] sm:$0xff]
  %v2365 = vld [vmem:[%s8 + $0x78] sm:$0xff]
  %v2367 = vlaneseq
  %v2368 = vshrl.u32 %v2367, 7
  %v2369 = vsub.s32 0, %v2368
  %v2370 = vrot.slane %v2347, %v2369
  %v2372 = vmul.f32 %v2250, %v2370
  %v2373 = vmul.f32 %v2256, %v2370
  %v2374 = vmul.f32 %v2262, %v2370
  %v2375 = vmul.f32 %v2268, %v2370
  %v2377 = vlaneseq
  %v2378 = vshrl.u32 %v2377, 7
  %v2379 = vsub.s32 0, %v2378
  %v2380 = vrot.slane %v2349, %v2379
  %v2382 = vadd.f32 %v2372, %v2380
  %v2383 = vadd.f32 %v2373, %v2380
  %v2384 = vadd.f32 %v2374, %v2380
  %v2385 = vadd.f32 %v2375, %v2380
  %v2386 = vsub.f32 0.0, %v2382
  %v2387 = vsub.f32 0.0, %v2383
  %v2388 = vsub.f32 0.0, %v2384
  %v2389 = vsub.f32 0.0, %v2385
  %v2390 = vmul.f32 %v2386, 1.442695
  %v2391 = vpow.pop %v2390
  %v2392 = vmul.f32 %v2387, 1.442695
  %v2393 = vpow.pop %v2392
  %v2394 = vmul.f32 %v2388, 1.442695
  %v2395 = vpow.pop %v2394
  %v2396 = vmul.f32 %v2389, 1.442695
  %v2397 = vpow.pop %v2396
  %v2398 = vadd.f32 %v2391, 1.0
  %v2399 = vadd.f32 %v2393, 1.0
  %v2400 = vadd.f32 %v2395, 1.0
  %v2401 = vadd.f32 %v2397, 1.0
  %v2402 = vrcp.pop %v2398
  %v2403 = vrcp.pop %v2399
  %v2404 = vrcp.pop %v2400
  %v2405 = vrcp.pop %v2401
  %s2406 = scalar_lea.vmem %s8, 128
  %v2407 = vld [vmem:[%s2406] sm:$0xff]
  %v2408 = vld [vmem:[%s2406 + $0x8] sm:$0xff]
  %v2409 = vld [vmem:[%s2406 + $0x10] sm:$0xff]
  %v2410 = vld [vmem:[%s2406 + $0x18] sm:$0xff]
  %v2411 = vld [vmem:[%s2406 + $0x20] sm:$0xff]
  %v2412 = vld [vmem:[%s2406 + $0x28] sm:$0xff]
  %v2413 = vld [vmem:[%s2406 + $0x30] sm:$0xff]
  %v2414 = vld [vmem:[%s2406 + $0x38] sm:$0xff]
  %v2415 = vld [vmem:[%s2406 + $0x40] sm:$0xff]
  %v2416 = vld [vmem:[%s2406 + $0x48] sm:$0xff]
  %v2417 = vld [vmem:[%s2406 + $0x50] sm:$0xff]
  %v2418 = vld [vmem:[%s2406 + $0x58] sm:$0xff]
  %v2419 = vld [vmem:[%s2406 + $0x60] sm:$0xff]
  %v2420 = vld [vmem:[%s2406 + $0x68] sm:$0xff]
  %v2421 = vld [vmem:[%s2406 + $0x70] sm:$0xff]
  %v2422 = vld [vmem:[%s2406 + $0x78] sm:$0xff]
  %2423 = vrot.lane.b32.xlu0 %v2370, 64
  %v2424 = vpop.permute.xlu0 %2423
  %v2426 = vmul.f32 %v2250, %v2424
  %v2427 = vmul.f32 %v2256, %v2424
  %v2428 = vmul.f32 %v2262, %v2424
  %v2429 = vmul.f32 %v2268, %v2424
  %2430 = vrot.lane.b32.xlu0 %v2380, 64
  %v2431 = vpop.permute.xlu0 %2430
  %v2433 = vadd.f32 %v2426, %v2431
  %v2434 = vadd.f32 %v2427, %v2431
  %v2435 = vadd.f32 %v2428, %v2431
  %v2436 = vadd.f32 %v2429, %v2431
  %v2437 = vsub.f32 0.0, %v2433
  %v2438 = vsub.f32 0.0, %v2434
  %v2439 = vsub.f32 0.0, %v2435
  %v2440 = vsub.f32 0.0, %v2436
  %v2441 = vmul.f32 %v2437, 1.442695
  %v2442 = vpow.pop %v2441
  %v2443 = vmul.f32 %v2438, 1.442695
  %v2444 = vpow.pop %v2443
  %v2445 = vmul.f32 %v2439, 1.442695
  %v2446 = vpow.pop %v2445
  %v2447 = vmul.f32 %v2440, 1.442695
  %v2448 = vpow.pop %v2447
  %v2449 = vadd.f32 %v2442, 1.0
  %v2450 = vadd.f32 %v2444, 1.0
  %v2451 = vadd.f32 %v2446, 1.0
  %v2452 = vadd.f32 %v2448, 1.0
  %v2453 = vrcp.pop %v2449
  %v2454 = vrcp.pop %v2450
  %v2455 = vrcp.pop %v2451
  %v2456 = vrcp.pop %v2452
  %2461 = vrot.lane.b32.xlu0 %v2453, 64
  %v2462 = vpop.permute.xlu0 %2461
  %2463 = vrot.lane.b32.xlu0 %v2454, 64
  %v2464 = vpop.permute.xlu0 %2463
  %2465 = vrot.lane.b32.xlu0 %v2455, 64
  %v2466 = vpop.permute.xlu0 %2465
  %2467 = vrot.lane.b32.xlu0 %v2456, 64
  %v2468 = vpop.permute.xlu0 %2467
  %v2474 = vsel %vm74, %v2407, 0
  %v2477 = vsel %vm74, %v2408, 0
  %v2480 = vsel %vm74, %v2409, 0
  %v2483 = vsel %vm74, %v2410, 0
  %v2486 = vsel %vm74, %v2411, 0
  %v2489 = vsel %vm74, %v2412, 0
  %v2492 = vsel %vm74, %v2413, 0
  %v2495 = vsel %vm74, %v2414, 0
  %v2498 = vsel %vm74, %v2415, 0
  %v2501 = vsel %vm74, %v2416, 0
  %v2504 = vsel %vm74, %v2417, 0
  %v2507 = vsel %vm74, %v2418, 0
  %v2510 = vsel %vm74, %v2419, 0
  %v2513 = vsel %vm74, %v2420, 0
  %v2516 = vsel %vm74, %v2421, 0
  %v2519 = vsel %vm74, %v2422, 0
  %2521 = vmatprep.subr.mxu0 0.0
  %2522 = vmatpush1.msra.mxu0 0.0
  %2523 = vmatprep.subr.mxu0 0.0
  %2524 = vmatpush1.msra.mxu0 0.0
  %2525 = vmatprep.subr.mxu0 0.0
  %2526 = vmatpush1.msra.mxu0 0.0
  %2527 = vmatprep.subr.mxu0 0.0
  %2528 = vmatpush1.msra.mxu0 0.0
  %2529 = vmatprep.subr.mxu0 0.0
  %2530 = vmatpush1.msra.mxu0 0.0
  %2531 = vmatprep.subr.mxu0 0.0
  %2532 = vmatpush1.msra.mxu0 0.0
  %2533 = vmatprep.subr.mxu0 0.0
  %2534 = vmatpush1.msra.mxu0 0.0
  %2535 = vmatprep.subr.mxu0 0.0
  %2536 = vmatpush1.msra.mxu0 0.0
  %2537 = vmatprep.subr.mxu0 0.0
  %2538 = vmatpush1.msra.mxu0 0.0
  %2539 = vmatprep.subr.mxu0 0.0
  %2540 = vmatpush1.msra.mxu0 0.0
  %2541 = vmatprep.subr.mxu0 0.0
  %2542 = vmatpush1.msra.mxu0 0.0
  %2543 = vmatprep.subr.mxu0 0.0
  %2544 = vmatpush1.msra.mxu0 0.0
  %2545 = vmatprep.subr.mxu0 0.0
  %2546 = vmatpush1.msra.mxu0 %v2468
  %2547 = vmatprep.subr.mxu0 0.0
  %2548 = vmatpush1.msra.mxu0 %v2466
  %2549 = vmatprep.subr.mxu0 0.0
  %2550 = vmatpush1.msra.mxu0 %v2464
  %2551 = vmatprep.subr.mxu0 0.0
  %2552 = vmatpush1.msra.mxu0 %v2462
  %2553 = vmatprep.subr.mxu0 0.0
  %2554 = vmatpush2.msra.mxu0 0.0
  %2555 = vmatprep.subr.mxu0 0.0
  %2556 = vmatpush2.msra.mxu0 0.0
  %2557 = vmatprep.subr.mxu0 0.0
  %2558 = vmatpush2.msra.mxu0 0.0
  %2559 = vmatprep.subr.mxu0 0.0
  %2560 = vmatpush2.msra.mxu0 0.0
  %2561 = vmatprep.subr.mxu0 0.0
  %2562 = vmatpush2.msra.mxu0 0.0
  %2563 = vmatprep.subr.mxu0 0.0
  %2564 = vmatpush2.msra.mxu0 0.0
  %2565 = vmatprep.subr.mxu0 0.0
  %2566 = vmatpush2.msra.mxu0 0.0
  %2567 = vmatprep.subr.mxu0 0.0
  %2568 = vmatpush2.msra.mxu0 0.0
  %2569 = vmatprep.subr.mxu0 0.0
  %2570 = vmatpush2.msra.mxu0 0.0
  %2571 = vmatprep.subr.mxu0 0.0
  %2572 = vmatpush2.msra.mxu0 0.0
  %2573 = vmatprep.subr.mxu0 0.0
  %2574 = vmatpush2.msra.mxu0 0.0
  %2575 = vmatprep.subr.mxu0 0.0
  %2576 = vmatpush2.msra.mxu0 0.0
  %2577 = vmatprep.subr.mxu0 0.0
  %2578 = vmatpush2.msra.mxu0 0.0
  %2579 = vmatprep.subr.mxu0 0.0
  %2580 = vmatpush2.msra.mxu0 0.0
  %2581 = vmatprep.subr.mxu0 0.0
  %2582 = vmatpush2.msra.mxu0 0.0
  %2583 = vmatprep.subr.mxu0 0.0
  %2584 = vmatpush2.msra.mxu0 0.0
  %2585 = vmatprep.mubr.f32.mxu0 0.0
  %2586 = vmatmul.mubr.f32.gmra.mxu0 %v2474
  %v2587 = vpop.f32.mrf.mxu0
  %v2588 = vadd.f32 0.0, %v2587
  %v2589 = vpop.f32.mrf.mxu0
  %2590 = vmatprep.mubr.f32.mxu0 0.0
  %2591 = vmatmul.mubr.f32.gmra.mxu0 %v2477
  %v2592 = vpop.f32.mrf.mxu0
  %v2593 = vadd.f32 0.0, %v2592
  %v2594 = vpop.f32.mrf.mxu0
  %2595 = vmatprep.mubr.f32.mxu0 0.0
  %2596 = vmatmul.mubr.f32.gmra.mxu0 %v2480
  %v2597 = vpop.f32.mrf.mxu0
  %v2598 = vadd.f32 0.0, %v2597
  %v2599 = vpop.f32.mrf.mxu0
  %2600 = vmatprep.mubr.f32.mxu0 0.0
  %2601 = vmatmul.mubr.f32.gmra.mxu0 %v2483
  %v2602 = vpop.f32.mrf.mxu0
  %v2603 = vadd.f32 0.0, %v2602
  %v2604 = vpop.f32.mrf.mxu0
  %2605 = vmatprep.mubr.f32.mxu0 0.0
  %2606 = vmatmul.mubr.f32.gmra.mxu0 %v2486
  %v2607 = vpop.f32.mrf.mxu0
  %v2608 = vadd.f32 0.0, %v2607
  %v2609 = vpop.f32.mrf.mxu0
  %2610 = vmatprep.mubr.f32.mxu0 0.0
  %2611 = vmatmul.mubr.f32.gmra.mxu0 %v2489
  %v2612 = vpop.f32.mrf.mxu0
  %v2613 = vadd.f32 0.0, %v2612
  %v2614 = vpop.f32.mrf.mxu0
  %2615 = vmatprep.mubr.f32.mxu0 0.0
  %2616 = vmatmul.mubr.f32.gmra.mxu0 %v2492
  %v2617 = vpop.f32.mrf.mxu0
  %v2618 = vadd.f32 0.0, %v2617
  %v2619 = vpop.f32.mrf.mxu0
  %2620 = vmatprep.mubr.f32.mxu0 0.0
  %2621 = vmatmul.mubr.f32.gmra.mxu0 %v2495
  %v2622 = vpop.f32.mrf.mxu0
  %v2623 = vadd.f32 0.0, %v2622
  %v2624 = vpop.f32.mrf.mxu0
  %2625 = vmatprep.mubr.f32.mxu0 0.0
  %2626 = vmatmul.mubr.f32.gmra.mxu0 %v2498
  %v2627 = vpop.f32.mrf.mxu0
  %v2628 = vadd.f32 0.0, %v2627
  %v2629 = vpop.f32.mrf.mxu0
  %2630 = vmatprep.mubr.f32.mxu0 0.0
  %2631 = vmatmul.mubr.f32.gmra.mxu0 %v2501
  %v2632 = vpop.f32.mrf.mxu0
  %v2633 = vadd.f32 0.0, %v2632
  %v2634 = vpop.f32.mrf.mxu0
  %2635 = vmatprep.mubr.f32.mxu0 0.0
  %2636 = vmatmul.mubr.f32.gmra.mxu0 %v2504
  %v2637 = vpop.f32.mrf.mxu0
  %v2638 = vadd.f32 0.0, %v2637
  %v2639 = vpop.f32.mrf.mxu0
  %2640 = vmatprep.mubr.f32.mxu0 0.0
  %2641 = vmatmul.mubr.f32.gmra.mxu0 %v2507
  %v2642 = vpop.f32.mrf.mxu0
  %v2643 = vadd.f32 0.0, %v2642
  %v2644 = vpop.f32.mrf.mxu0
  %2645 = vmatprep.mubr.f32.mxu0 0.0
  %2646 = vmatmul.mubr.f32.gmra.mxu0 %v2510
  %v2647 = vpop.f32.mrf.mxu0
  %v2648 = vadd.f32 0.0, %v2647
  %v2649 = vpop.f32.mrf.mxu0
  %2650 = vmatprep.mubr.f32.mxu0 0.0
  %2651 = vmatmul.mubr.f32.gmra.mxu0 %v2513
  %v2652 = vpop.f32.mrf.mxu0
  %v2653 = vadd.f32 0.0, %v2652
  %v2654 = vpop.f32.mrf.mxu0
  %2655 = vmatprep.mubr.f32.mxu0 0.0
  %2656 = vmatmul.mubr.f32.gmra.mxu0 %v2516
  %v2657 = vpop.f32.mrf.mxu0
  %v2658 = vadd.f32 0.0, %v2657
  %v2659 = vpop.f32.mrf.mxu0
  %2660 = vmatprep.mubr.f32.mxu0 0.0
  %2661 = vmatmul.mubr.f32.gmra.mxu0 %v2519
  %v2662 = vpop.f32.mrf.mxu0
  %v2663 = vadd.f32 0.0, %v2662
  %v2664 = vpop.f32.mrf.mxu0
  %2665 = vdwg.mxu0
  %v2667 = vsel %vm74, %v2350, 0
  %v2670 = vsel %vm74, %v2351, 0
  %v2673 = vsel %vm74, %v2352, 0
  %v2676 = vsel %vm74, %v2353, 0
  %v2679 = vsel %vm74, %v2354, 0
  %v2682 = vsel %vm74, %v2355, 0
  %v2685 = vsel %vm74, %v2356, 0
  %v2688 = vsel %vm74, %v2357, 0
  %v2691 = vsel %vm74, %v2358, 0
  %v2694 = vsel %vm74, %v2359, 0
  %v2697 = vsel %vm74, %v2360, 0
  %v2700 = vsel %vm74, %v2361, 0
  %v2703 = vsel %vm74, %v2362, 0
  %v2706 = vsel %vm74, %v2363, 0
  %v2709 = vsel %vm74, %v2364, 0
  %v2712 = vsel %vm74, %v2365, 0
  %2714 = vmatprep.subr.mxu0 0.0
  %2715 = vmatpush1.msra.mxu0 0.0
  %2716 = vmatprep.subr.mxu0 0.0
  %2717 = vmatpush1.msra.mxu0 0.0
  %2718 = vmatprep.subr.mxu0 0.0
  %2719 = vmatpush1.msra.mxu0 0.0
  %2720 = vmatprep.subr.mxu0 0.0
  %2721 = vmatpush1.msra.mxu0 0.0
  %2722 = vmatprep.subr.mxu0 0.0
  %2723 = vmatpush1.msra.mxu0 0.0
  %2724 = vmatprep.subr.mxu0 0.0
  %2725 = vmatpush1.msra.mxu0 0.0
  %2726 = vmatprep.subr.mxu0 0.0
  %2727 = vmatpush1.msra.mxu0 0.0
  %2728 = vmatprep.subr.mxu0 0.0
  %2729 = vmatpush1.msra.mxu0 0.0
  %2730 = vmatprep.subr.mxu0 0.0
  %2731 = vmatpush1.msra.mxu0 0.0
  %2732 = vmatprep.subr.mxu0 0.0
  %2733 = vmatpush1.msra.mxu0 0.0
  %2734 = vmatprep.subr.mxu0 0.0
  %2735 = vmatpush1.msra.mxu0 0.0
  %2736 = vmatprep.subr.mxu0 0.0
  %2737 = vmatpush1.msra.mxu0 0.0
  %2738 = vmatprep.subr.mxu0 0.0
  %2739 = vmatpush1.msra.mxu0 %v2405
  %2740 = vmatprep.subr.mxu0 0.0
  %2741 = vmatpush1.msra.mxu0 %v2404
  %2742 = vmatprep.subr.mxu0 0.0
  %2743 = vmatpush1.msra.mxu0 %v2403
  %2744 = vmatprep.subr.mxu0 0.0
  %2745 = vmatpush1.msra.mxu0 %v2402
  %2746 = vmatprep.subr.mxu0 0.0
  %2747 = vmatpush2.msra.mxu0 0.0
  %2748 = vmatprep.subr.mxu0 0.0
  %2749 = vmatpush2.msra.mxu0 0.0
  %2750 = vmatprep.subr.mxu0 0.0
  %2751 = vmatpush2.msra.mxu0 0.0
  %2752 = vmatprep.subr.mxu0 0.0
  %2753 = vmatpush2.msra.mxu0 0.0
  %2754 = vmatprep.subr.mxu0 0.0
  %2755 = vmatpush2.msra.mxu0 0.0
  %2756 = vmatprep.subr.mxu0 0.0
  %2757 = vmatpush2.msra.mxu0 0.0
  %2758 = vmatprep.subr.mxu0 0.0
  %2759 = vmatpush2.msra.mxu0 0.0
  %2760 = vmatprep.subr.mxu0 0.0
  %2761 = vmatpush2.msra.mxu0 0.0
  %2762 = vmatprep.subr.mxu0 0.0
  %2763 = vmatpush2.msra.mxu0 0.0
  %2764 = vmatprep.subr.mxu0 0.0
  %2765 = vmatpush2.msra.mxu0 0.0
  %2766 = vmatprep.subr.mxu0 0.0
  %2767 = vmatpush2.msra.mxu0 0.0
  %2768 = vmatprep.subr.mxu0 0.0
  %2769 = vmatpush2.msra.mxu0 0.0
  %2770 = vmatprep.subr.mxu0 0.0
  %2771 = vmatpush2.msra.mxu0 0.0
  %2772 = vmatprep.subr.mxu0 0.0
  %2773 = vmatpush2.msra.mxu0 0.0
  %2774 = vmatprep.subr.mxu0 0.0
  %2775 = vmatpush2.msra.mxu0 0.0
  %2776 = vmatprep.subr.mxu0 0.0
  %2777 = vmatpush2.msra.mxu0 0.0
  %2778 = vmatprep.mubr.f32.mxu0 0.0
  %2779 = vmatmul.mubr.f32.gmra.mxu0 %v2667
  %v2780 = vpop.f32.mrf.mxu0
  %v2781 = vadd.f32 %v2588, %v2780
  %v2782 = vpop.f32.mrf.mxu0
  %2783 = vmatprep.mubr.f32.mxu0 0.0
  %2784 = vmatmul.mubr.f32.gmra.mxu0 %v2670
  %v2785 = vpop.f32.mrf.mxu0
  %v2786 = vadd.f32 %v2593, %v2785
  %v2787 = vpop.f32.mrf.mxu0
  %2788 = vmatprep.mubr.f32.mxu0 0.0
  %2789 = vmatmul.mubr.f32.gmra.mxu0 %v2673
  %v2790 = vpop.f32.mrf.mxu0
  %v2791 = vadd.f32 %v2598, %v2790
  %v2792 = vpop.f32.mrf.mxu0
  %2793 = vmatprep.mubr.f32.mxu0 0.0
  %2794 = vmatmul.mubr.f32.gmra.mxu0 %v2676
  %v2795 = vpop.f32.mrf.mxu0
  %v2796 = vadd.f32 %v2603, %v2795
  %v2797 = vpop.f32.mrf.mxu0
  %2798 = vmatprep.mubr.f32.mxu0 0.0
  %2799 = vmatmul.mubr.f32.gmra.mxu0 %v2679
  %v2800 = vpop.f32.mrf.mxu0
  %v2801 = vadd.f32 %v2608, %v2800
  %v2802 = vpop.f32.mrf.mxu0
  %2803 = vmatprep.mubr.f32.mxu0 0.0
  %2804 = vmatmul.mubr.f32.gmra.mxu0 %v2682
  %v2805 = vpop.f32.mrf.mxu0
  %v2806 = vadd.f32 %v2613, %v2805
  %v2807 = vpop.f32.mrf.mxu0
  %2808 = vmatprep.mubr.f32.mxu0 0.0
  %2809 = vmatmul.mubr.f32.gmra.mxu0 %v2685
  %v2810 = vpop.f32.mrf.mxu0
  %v2811 = vadd.f32 %v2618, %v2810
  %v2812 = vpop.f32.mrf.mxu0
  %2813 = vmatprep.mubr.f32.mxu0 0.0
  %2814 = vmatmul.mubr.f32.gmra.mxu0 %v2688
  %v2815 = vpop.f32.mrf.mxu0
  %v2816 = vadd.f32 %v2623, %v2815
  %v2817 = vpop.f32.mrf.mxu0
  %2818 = vmatprep.mubr.f32.mxu0 0.0
  %2819 = vmatmul.mubr.f32.gmra.mxu0 %v2691
  %v2820 = vpop.f32.mrf.mxu0
  %v2821 = vadd.f32 %v2628, %v2820
  %v2822 = vpop.f32.mrf.mxu0
  %2823 = vmatprep.mubr.f32.mxu0 0.0
  %2824 = vmatmul.mubr.f32.gmra.mxu0 %v2694
  %v2825 = vpop.f32.mrf.mxu0
  %v2826 = vadd.f32 %v2633, %v2825
  %v2827 = vpop.f32.mrf.mxu0
  %2828 = vmatprep.mubr.f32.mxu0 0.0
  %2829 = vmatmul.mubr.f32.gmra.mxu0 %v2697
  %v2830 = vpop.f32.mrf.mxu0
  %v2831 = vadd.f32 %v2638, %v2830
  %v2832 = vpop.f32.mrf.mxu0
  %2833 = vmatprep.mubr.f32.mxu0 0.0
  %2834 = vmatmul.mubr.f32.gmra.mxu0 %v2700
  %v2835 = vpop.f32.mrf.mxu0
  %v2836 = vadd.f32 %v2643, %v2835
  %v2837 = vpop.f32.mrf.mxu0
  %2838 = vmatprep.mubr.f32.mxu0 0.0
  %2839 = vmatmul.mubr.f32.gmra.mxu0 %v2703
  %v2840 = vpop.f32.mrf.mxu0
  %v2841 = vadd.f32 %v2648, %v2840
  %v2842 = vpop.f32.mrf.mxu0
  %2843 = vmatprep.mubr.f32.mxu0 0.0
  %2844 = vmatmul.mubr.f32.gmra.mxu0 %v2706
  %v2845 = vpop.f32.mrf.mxu0
  %v2846 = vadd.f32 %v2653, %v2845
  %v2847 = vpop.f32.mrf.mxu0
  %2848 = vmatprep.mubr.f32.mxu0 0.0
  %2849 = vmatmul.mubr.f32.gmra.mxu0 %v2709
  %v2850 = vpop.f32.mrf.mxu0
  %v2851 = vadd.f32 %v2658, %v2850
  %v2852 = vpop.f32.mrf.mxu0
  %2853 = vmatprep.mubr.f32.mxu0 0.0
  %2854 = vmatmul.mubr.f32.gmra.mxu0 %v2712
  %v2855 = vpop.f32.mrf.mxu0
  %v2856 = vadd.f32 %v2663, %v2855
  %v2857 = vpop.f32.mrf.mxu0
  %2858 = vdwg.mxu0
  %s2859 = scalar_lea.vmem %s8, 256
  %v2860 = vld [vmem:[%s2859] sm:$0xff]
  %v2861 = vld [vmem:[%s2859 + $0x8] sm:$0xff]
  %v2862 = vld [vmem:[%s2859 + $0x10] sm:$0xff]
  %v2863 = vld [vmem:[%s2859 + $0x18] sm:$0xff]
  %v2864 = vld [vmem:[%s2859 + $0x20] sm:$0xff]
  %v2865 = vld [vmem:[%s2859 + $0x28] sm:$0xff]
  %v2866 = vld [vmem:[%s2859 + $0x30] sm:$0xff]
  %v2867 = vld [vmem:[%s2859 + $0x38] sm:$0xff]
  %v2868 = vld [vmem:[%s2859 + $0x40] sm:$0xff]
  %v2869 = vld [vmem:[%s2859 + $0x48] sm:$0xff]
  %v2870 = vld [vmem:[%s2859 + $0x50] sm:$0xff]
  %v2871 = vld [vmem:[%s2859 + $0x58] sm:$0xff]
  %v2872 = vld [vmem:[%s2859 + $0x60] sm:$0xff]
  %v2873 = vld [vmem:[%s2859 + $0x68] sm:$0xff]
  %v2874 = vld [vmem:[%s2859 + $0x70] sm:$0xff]
  %v2875 = vld [vmem:[%s2859 + $0x78] sm:$0xff]
  %v2876 = vmul.f32 %v2252, %v2370
  %v2877 = vmul.f32 %v2258, %v2370
  %v2878 = vmul.f32 %v2264, %v2370
  %v2879 = vmul.f32 %v2270, %v2370
  %v2880 = vadd.f32 %v2876, %v2380
  %v2881 = vadd.f32 %v2877, %v2380
  %v2882 = vadd.f32 %v2878, %v2380
  %v2883 = vadd.f32 %v2879, %v2380
  %v2884 = vsub.f32 0.0, %v2880
  %v2885 = vsub.f32 0.0, %v2881
  %v2886 = vsub.f32 0.0, %v2882
  %v2887 = vsub.f32 0.0, %v2883
  %v2888 = vmul.f32 %v2884, 1.442695
  %v2889 = vpow.pop %v2888
  %v2890 = vmul.f32 %v2885, 1.442695
  %v2891 = vpow.pop %v2890
  %v2892 = vmul.f32 %v2886, 1.442695
  %v2893 = vpow.pop %v2892
  %v2894 = vmul.f32 %v2887, 1.442695
  %v2895 = vpow.pop %v2894
  %v2896 = vadd.f32 %v2889, 1.0
  %v2897 = vadd.f32 %v2891, 1.0
  %v2898 = vadd.f32 %v2893, 1.0
  %v2899 = vadd.f32 %v2895, 1.0
  %v2900 = vrcp.pop %v2896
  %v2901 = vrcp.pop %v2897
  %v2902 = vrcp.pop %v2898
  %v2903 = vrcp.pop %v2899
  %v2905 = vsel %vm74, %v2860, 0
  %v2908 = vsel %vm74, %v2861, 0
  %v2911 = vsel %vm74, %v2862, 0
  %v2914 = vsel %vm74, %v2863, 0
  %v2917 = vsel %vm74, %v2864, 0
  %v2920 = vsel %vm74, %v2865, 0
  %v2923 = vsel %vm74, %v2866, 0
  %v2926 = vsel %vm74, %v2867, 0
  %v2929 = vsel %vm74, %v2868, 0
  %v2932 = vsel %vm74, %v2869, 0
  %v2935 = vsel %vm74, %v2870, 0
  %v2938 = vsel %vm74, %v2871, 0
  %v2941 = vsel %vm74, %v2872, 0
  %v2944 = vsel %vm74, %v2873, 0
  %v2947 = vsel %vm74, %v2874, 0
  %v2950 = vsel %vm74, %v2875, 0
  %2952 = vmatprep.subr.mxu0 0.0
  %2953 = vmatpush1.msra.mxu0 0.0
  %2954 = vmatprep.subr.mxu0 0.0
  %2955 = vmatpush1.msra.mxu0 0.0
  %2956 = vmatprep.subr.mxu0 0.0
  %2957 = vmatpush1.msra.mxu0 0.0
  %2958 = vmatprep.subr.mxu0 0.0
  %2959 = vmatpush1.msra.mxu0 0.0
  %2960 = vmatprep.subr.mxu0 0.0
  %2961 = vmatpush1.msra.mxu0 0.0
  %2962 = vmatprep.subr.mxu0 0.0
  %2963 = vmatpush1.msra.mxu0 0.0
  %2964 = vmatprep.subr.mxu0 0.0
  %2965 = vmatpush1.msra.mxu0 0.0
  %2966 = vmatprep.subr.mxu0 0.0
  %2967 = vmatpush1.msra.mxu0 0.0
  %2968 = vmatprep.subr.mxu0 0.0
  %2969 = vmatpush1.msra.mxu0 0.0
  %2970 = vmatprep.subr.mxu0 0.0
  %2971 = vmatpush1.msra.mxu0 0.0
  %2972 = vmatprep.subr.mxu0 0.0
  %2973 = vmatpush1.msra.mxu0 0.0
  %2974 = vmatprep.subr.mxu0 0.0
  %2975 = vmatpush1.msra.mxu0 0.0
  %2976 = vmatprep.subr.mxu0 0.0
  %2977 = vmatpush1.msra.mxu0 %v2903
  %2978 = vmatprep.subr.mxu0 0.0
  %2979 = vmatpush1.msra.mxu0 %v2902
  %2980 = vmatprep.subr.mxu0 0.0
  %2981 = vmatpush1.msra.mxu0 %v2901
  %2982 = vmatprep.subr.mxu0 0.0
  %2983 = vmatpush1.msra.mxu0 %v2900
  %2984 = vmatprep.subr.mxu0 0.0
  %2985 = vmatpush2.msra.mxu0 0.0
  %2986 = vmatprep.subr.mxu0 0.0
  %2987 = vmatpush2.msra.mxu0 0.0
  %2988 = vmatprep.subr.mxu0 0.0
  %2989 = vmatpush2.msra.mxu0 0.0
  %2990 = vmatprep.subr.mxu0 0.0
  %2991 = vmatpush2.msra.mxu0 0.0
  %2992 = vmatprep.subr.mxu0 0.0
  %2993 = vmatpush2.msra.mxu0 0.0
  %2994 = vmatprep.subr.mxu0 0.0
  %2995 = vmatpush2.msra.mxu0 0.0
  %2996 = vmatprep.subr.mxu0 0.0
  %2997 = vmatpush2.msra.mxu0 0.0
  %2998 = vmatprep.subr.mxu0 0.0
  %2999 = vmatpush2.msra.mxu0 0.0
  %3000 = vmatprep.subr.mxu0 0.0
  %3001 = vmatpush2.msra.mxu0 0.0
  %3002 = vmatprep.subr.mxu0 0.0
  %3003 = vmatpush2.msra.mxu0 0.0
  %3004 = vmatprep.subr.mxu0 0.0
  %3005 = vmatpush2.msra.mxu0 0.0
  %3006 = vmatprep.subr.mxu0 0.0
  %3007 = vmatpush2.msra.mxu0 0.0
  %3008 = vmatprep.subr.mxu0 0.0
  %3009 = vmatpush2.msra.mxu0 0.0
  %3010 = vmatprep.subr.mxu0 0.0
  %3011 = vmatpush2.msra.mxu0 0.0
  %3012 = vmatprep.subr.mxu0 0.0
  %3013 = vmatpush2.msra.mxu0 0.0
  %3014 = vmatprep.subr.mxu0 0.0
  %3015 = vmatpush2.msra.mxu0 0.0
  %3016 = vmatprep.mubr.f32.mxu0 0.0
  %3017 = vmatmul.mubr.f32.gmra.mxu0 %v2905
  %v3018 = vpop.f32.mrf.mxu0
  %v3019 = vadd.f32 0.0, %v3018
  %v3020 = vpop.f32.mrf.mxu0
  %3021 = vmatprep.mubr.f32.mxu0 0.0
  %3022 = vmatmul.mubr.f32.gmra.mxu0 %v2908
  %v3023 = vpop.f32.mrf.mxu0
  %v3024 = vadd.f32 0.0, %v3023
  %v3025 = vpop.f32.mrf.mxu0
  %3026 = vmatprep.mubr.f32.mxu0 0.0
  %3027 = vmatmul.mubr.f32.gmra.mxu0 %v2911
  %v3028 = vpop.f32.mrf.mxu0
  %v3029 = vadd.f32 0.0, %v3028
  %v3030 = vpop.f32.mrf.mxu0
  %3031 = vmatprep.mubr.f32.mxu0 0.0
  %3032 = vmatmul.mubr.f32.gmra.mxu0 %v2914
  %v3033 = vpop.f32.mrf.mxu0
  %v3034 = vadd.f32 0.0, %v3033
  %v3035 = vpop.f32.mrf.mxu0
  %3036 = vmatprep.mubr.f32.mxu0 0.0
  %3037 = vmatmul.mubr.f32.gmra.mxu0 %v2917
  %v3038 = vpop.f32.mrf.mxu0
  %v3039 = vadd.f32 0.0, %v3038
  %v3040 = vpop.f32.mrf.mxu0
  %3041 = vmatprep.mubr.f32.mxu0 0.0
  %3042 = vmatmul.mubr.f32.gmra.mxu0 %v2920
  %v3043 = vpop.f32.mrf.mxu0
  %v3044 = vadd.f32 0.0, %v3043
  %v3045 = vpop.f32.mrf.mxu0
  %3046 = vmatprep.mubr.f32.mxu0 0.0
  %3047 = vmatmul.mubr.f32.gmra.mxu0 %v2923
  %v3048 = vpop.f32.mrf.mxu0
  %v3049 = vadd.f32 0.0, %v3048
  %v3050 = vpop.f32.mrf.mxu0
  %3051 = vmatprep.mubr.f32.mxu0 0.0
  %3052 = vmatmul.mubr.f32.gmra.mxu0 %v2926
  %v3053 = vpop.f32.mrf.mxu0
  %v3054 = vadd.f32 0.0, %v3053
  %v3055 = vpop.f32.mrf.mxu0
  %3056 = vmatprep.mubr.f32.mxu0 0.0
  %3057 = vmatmul.mubr.f32.gmra.mxu0 %v2929
  %v3058 = vpop.f32.mrf.mxu0
  %v3059 = vadd.f32 0.0, %v3058
  %v3060 = vpop.f32.mrf.mxu0
  %3061 = vmatprep.mubr.f32.mxu0 0.0
  %3062 = vmatmul.mubr.f32.gmra.mxu0 %v2932
  %v3063 = vpop.f32.mrf.mxu0
  %v3064 = vadd.f32 0.0, %v3063
  %v3065 = vpop.f32.mrf.mxu0
  %3066 = vmatprep.mubr.f32.mxu0 0.0
  %3067 = vmatmul.mubr.f32.gmra.mxu0 %v2935
  %v3068 = vpop.f32.mrf.mxu0
  %v3069 = vadd.f32 0.0, %v3068
  %v3070 = vpop.f32.mrf.mxu0
  %3071 = vmatprep.mubr.f32.mxu0 0.0
  %3072 = vmatmul.mubr.f32.gmra.mxu0 %v2938
  %v3073 = vpop.f32.mrf.mxu0
  %v3074 = vadd.f32 0.0, %v3073
  %v3075 = vpop.f32.mrf.mxu0
  %3076 = vmatprep.mubr.f32.mxu0 0.0
  %3077 = vmatmul.mubr.f32.gmra.mxu0 %v2941
  %v3078 = vpop.f32.mrf.mxu0
  %v3079 = vadd.f32 0.0, %v3078
  %v3080 = vpop.f32.mrf.mxu0
  %3081 = vmatprep.mubr.f32.mxu0 0.0
  %3082 = vmatmul.mubr.f32.gmra.mxu0 %v2944
  %v3083 = vpop.f32.mrf.mxu0
  %v3084 = vadd.f32 0.0, %v3083
  %v3085 = vpop.f32.mrf.mxu0
  %3086 = vmatprep.mubr.f32.mxu0 0.0
  %3087 = vmatmul.mubr.f32.gmra.mxu0 %v2947
  %v3088 = vpop.f32.mrf.mxu0
  %v3089 = vadd.f32 0.0, %v3088
  %v3090 = vpop.f32.mrf.mxu0
  %3091 = vmatprep.mubr.f32.mxu0 0.0
  %3092 = vmatmul.mubr.f32.gmra.mxu0 %v2950
  %v3093 = vpop.f32.mrf.mxu0
  %v3094 = vadd.f32 0.0, %v3093
  %v3095 = vpop.f32.mrf.mxu0
  %3096 = vdwg.mxu0
  %v3097 = vadd.f32 %v2781, %v3019
  %v3098 = vadd.f32 %v2786, %v3024
  %v3099 = vadd.f32 %v2791, %v3029
  %v3100 = vadd.f32 %v2796, %v3034
  %v3101 = vadd.f32 %v2801, %v3039
  %v3102 = vadd.f32 %v2806, %v3044
  %v3103 = vadd.f32 %v2811, %v3049
  %v3104 = vadd.f32 %v2816, %v3054
  %v3105 = vadd.f32 %v2821, %v3059
  %v3106 = vadd.f32 %v2826, %v3064
  %v3107 = vadd.f32 %v2831, %v3069
  %v3108 = vadd.f32 %v2836, %v3074
  %v3109 = vadd.f32 %v2841, %v3079
  %v3110 = vadd.f32 %v2846, %v3084
  %v3111 = vadd.f32 %v2851, %v3089
  %v3112 = vadd.f32 %v2856, %v3094
  %s3113 = scalar_lea.vmem %s8, 384
  %v3114 = vld [vmem:[%s3113] sm:$0xff]
  %v3115 = vld [vmem:[%s3113 + $0x8] sm:$0xff]
  %v3116 = vld [vmem:[%s3113 + $0x10] sm:$0xff]
  %v3117 = vld [vmem:[%s3113 + $0x18] sm:$0xff]
  %v3118 = vld [vmem:[%s3113 + $0x20] sm:$0xff]
  %v3119 = vld [vmem:[%s3113 + $0x28] sm:$0xff]
  %v3120 = vld [vmem:[%s3113 + $0x30] sm:$0xff]
  %v3121 = vld [vmem:[%s3113 + $0x38] sm:$0xff]
  %v3122 = vld [vmem:[%s3113 + $0x40] sm:$0xff]
  %v3123 = vld [vmem:[%s3113 + $0x48] sm:$0xff]
  %v3124 = vld [vmem:[%s3113 + $0x50] sm:$0xff]
  %v3125 = vld [vmem:[%s3113 + $0x58] sm:$0xff]
  %v3126 = vld [vmem:[%s3113 + $0x60] sm:$0xff]
  %v3127 = vld [vmem:[%s3113 + $0x68] sm:$0xff]
  %v3128 = vld [vmem:[%s3113 + $0x70] sm:$0xff]
  %v3129 = vld [vmem:[%s3113 + $0x78] sm:$0xff]
  %v3130 = vmul.f32 %v2252, %v2424
  %v3131 = vmul.f32 %v2258, %v2424
  %v3132 = vmul.f32 %v2264, %v2424
  %v3133 = vmul.f32 %v2270, %v2424
  %v3134 = vadd.f32 %v3130, %v2431
  %v3135 = vadd.f32 %v3131, %v2431
  %v3136 = vadd.f32 %v3132, %v2431
  %v3137 = vadd.f32 %v3133, %v2431
  %v3138 = vsub.f32 0.0, %v3134
  %v3139 = vsub.f32 0.0, %v3135
  %v3140 = vsub.f32 0.0, %v3136
  %v3141 = vsub.f32 0.0, %v3137
  %v3142 = vmul.f32 %v3138, 1.442695
  %v3143 = vpow.pop %v3142
  %v3144 = vmul.f32 %v3139, 1.442695
  %v3145 = vpow.pop %v3144
  %v3146 = vmul.f32 %v3140, 1.442695
  %v3147 = vpow.pop %v3146
  %v3148 = vmul.f32 %v3141, 1.442695
  %v3149 = vpow.pop %v3148
  %v3150 = vadd.f32 %v3143, 1.0
  %v3151 = vadd.f32 %v3145, 1.0
  %v3152 = vadd.f32 %v3147, 1.0
  %v3153 = vadd.f32 %v3149, 1.0
  %v3154 = vrcp.pop %v3150
  %v3155 = vrcp.pop %v3151
  %v3156 = vrcp.pop %v3152
  %v3157 = vrcp.pop %v3153
  %3162 = vrot.lane.b32.xlu0 %v3154, 64
  %v3163 = vpop.permute.xlu0 %3162
  %3164 = vrot.lane.b32.xlu0 %v3155, 64
  %v3165 = vpop.permute.xlu0 %3164
  %3166 = vrot.lane.b32.xlu0 %v3156, 64
  %v3167 = vpop.permute.xlu0 %3166
  %3168 = vrot.lane.b32.xlu0 %v3157, 64
  %v3169 = vpop.permute.xlu0 %3168
  %v3175 = vsel %vm74, %v3114, 0
  %v3178 = vsel %vm74, %v3115, 0
  %v3181 = vsel %vm74, %v3116, 0
  %v3184 = vsel %vm74, %v3117, 0
  %v3187 = vsel %vm74, %v3118, 0
  %v3190 = vsel %vm74, %v3119, 0
  %v3193 = vsel %vm74, %v3120, 0
  %v3196 = vsel %vm74, %v3121, 0
  %v3199 = vsel %vm74, %v3122, 0
  %v3202 = vsel %vm74, %v3123, 0
  %v3205 = vsel %vm74, %v3124, 0
  %v3208 = vsel %vm74, %v3125, 0
  %v3211 = vsel %vm74, %v3126, 0
  %v3214 = vsel %vm74, %v3127, 0
  %v3217 = vsel %vm74, %v3128, 0
  %v3220 = vsel %vm74, %v3129, 0
  %3222 = vmatprep.subr.mxu0 0.0
  %3223 = vmatpush1.msra.mxu0 0.0
  %3224 = vmatprep.subr.mxu0 0.0
  %3225 = vmatpush1.msra.mxu0 0.0
  %3226 = vmatprep.subr.mxu0 0.0
  %3227 = vmatpush1.msra.mxu0 0.0
  %3228 = vmatprep.subr.mxu0 0.0
  %3229 = vmatpush1.msra.mxu0 0.0
  %3230 = vmatprep.subr.mxu0 0.0
  %3231 = vmatpush1.msra.mxu0 0.0
  %3232 = vmatprep.subr.mxu0 0.0
  %3233 = vmatpush1.msra.mxu0 0.0
  %3234 = vmatprep.subr.mxu0 0.0
  %3235 = vmatpush1.msra.mxu0 0.0
  %3236 = vmatprep.subr.mxu0 0.0
  %3237 = vmatpush1.msra.mxu0 0.0
  %3238 = vmatprep.subr.mxu0 0.0
  %3239 = vmatpush1.msra.mxu0 0.0
  %3240 = vmatprep.subr.mxu0 0.0
  %3241 = vmatpush1.msra.mxu0 0.0
  %3242 = vmatprep.subr.mxu0 0.0
  %3243 = vmatpush1.msra.mxu0 0.0
  %3244 = vmatprep.subr.mxu0 0.0
  %3245 = vmatpush1.msra.mxu0 0.0
  %3246 = vmatprep.subr.mxu0 0.0
  %3247 = vmatpush1.msra.mxu0 %v3169
  %3248 = vmatprep.subr.mxu0 0.0
  %3249 = vmatpush1.msra.mxu0 %v3167
  %3250 = vmatprep.subr.mxu0 0.0
  %3251 = vmatpush1.msra.mxu0 %v3165
  %3252 = vmatprep.subr.mxu0 0.0
  %3253 = vmatpush1.msra.mxu0 %v3163
  %3254 = vmatprep.subr.mxu0 0.0
  %3255 = vmatpush2.msra.mxu0 0.0
  %3256 = vmatprep.subr.mxu0 0.0
  %3257 = vmatpush2.msra.mxu0 0.0
  %3258 = vmatprep.subr.mxu0 0.0
  %3259 = vmatpush2.msra.mxu0 0.0
  %3260 = vmatprep.subr.mxu0 0.0
  %3261 = vmatpush2.msra.mxu0 0.0
  %3262 = vmatprep.subr.mxu0 0.0
  %3263 = vmatpush2.msra.mxu0 0.0
  %3264 = vmatprep.subr.mxu0 0.0
  %3265 = vmatpush2.msra.mxu0 0.0
  %3266 = vmatprep.subr.mxu0 0.0
  %3267 = vmatpush2.msra.mxu0 0.0
  %3268 = vmatprep.subr.mxu0 0.0
  %3269 = vmatpush2.msra.mxu0 0.0
  %3270 = vmatprep.subr.mxu0 0.0
  %3271 = vmatpush2.msra.mxu0 0.0
  %3272 = vmatprep.subr.mxu0 0.0
  %3273 = vmatpush2.msra.mxu0 0.0
  %3274 = vmatprep.subr.mxu0 0.0
  %3275 = vmatpush2.msra.mxu0 0.0
  %3276 = vmatprep.subr.mxu0 0.0
  %3277 = vmatpush2.msra.mxu0 0.0
  %3278 = vmatprep.subr.mxu0 0.0
  %3279 = vmatpush2.msra.mxu0 0.0
  %3280 = vmatprep.subr.mxu0 0.0
  %3281 = vmatpush2.msra.mxu0 0.0
  %3282 = vmatprep.subr.mxu0 0.0
  %3283 = vmatpush2.msra.mxu0 0.0
  %3284 = vmatprep.subr.mxu0 0.0
  %3285 = vmatpush2.msra.mxu0 0.0
  %3286 = vmatprep.mubr.f32.mxu0 0.0
  %3287 = vmatmul.mubr.f32.gmra.mxu0 %v3175
  %v3288 = vpop.f32.mrf.mxu0
  %v3289 = vadd.f32 0.0, %v3288
  %v3290 = vpop.f32.mrf.mxu0
  %3291 = vmatprep.mubr.f32.mxu0 0.0
  %3292 = vmatmul.mubr.f32.gmra.mxu0 %v3178
  %v3293 = vpop.f32.mrf.mxu0
  %v3294 = vadd.f32 0.0, %v3293
  %v3295 = vpop.f32.mrf.mxu0
  %3296 = vmatprep.mubr.f32.mxu0 0.0
  %3297 = vmatmul.mubr.f32.gmra.mxu0 %v3181
  %v3298 = vpop.f32.mrf.mxu0
  %v3299 = vadd.f32 0.0, %v3298
  %v3300 = vpop.f32.mrf.mxu0
  %3301 = vmatprep.mubr.f32.mxu0 0.0
  %3302 = vmatmul.mubr.f32.gmra.mxu0 %v3184
  %v3303 = vpop.f32.mrf.mxu0
  %v3304 = vadd.f32 0.0, %v3303
  %v3305 = vpop.f32.mrf.mxu0
  %3306 = vmatprep.mubr.f32.mxu0 0.0
  %3307 = vmatmul.mubr.f32.gmra.mxu0 %v3187
  %v3308 = vpop.f32.mrf.mxu0
  %v3309 = vadd.f32 0.0, %v3308
  %v3310 = vpop.f32.mrf.mxu0
  %3311 = vmatprep.mubr.f32.mxu0 0.0
  %3312 = vmatmul.mubr.f32.gmra.mxu0 %v3190
  %v3313 = vpop.f32.mrf.mxu0
  %v3314 = vadd.f32 0.0, %v3313
  %v3315 = vpop.f32.mrf.mxu0
  %3316 = vmatprep.mubr.f32.mxu0 0.0
  %3317 = vmatmul.mubr.f32.gmra.mxu0 %v3193
  %v3318 = vpop.f32.mrf.mxu0
  %v3319 = vadd.f32 0.0, %v3318
  %v3320 = vpop.f32.mrf.mxu0
  %3321 = vmatprep.mubr.f32.mxu0 0.0
  %3322 = vmatmul.mubr.f32.gmra.mxu0 %v3196
  %v3323 = vpop.f32.mrf.mxu0
  %v3324 = vadd.f32 0.0, %v3323
  %v3325 = vpop.f32.mrf.mxu0
  %3326 = vmatprep.mubr.f32.mxu0 0.0
  %3327 = vmatmul.mubr.f32.gmra.mxu0 %v3199
  %v3328 = vpop.f32.mrf.mxu0
  %v3329 = vadd.f32 0.0, %v3328
  %v3330 = vpop.f32.mrf.mxu0
  %3331 = vmatprep.mubr.f32.mxu0 0.0
  %3332 = vmatmul.mubr.f32.gmra.mxu0 %v3202
  %v3333 = vpop.f32.mrf.mxu0
  %v3334 = vadd.f32 0.0, %v3333
  %v3335 = vpop.f32.mrf.mxu0
  %3336 = vmatprep.mubr.f32.mxu0 0.0
  %3337 = vmatmul.mubr.f32.gmra.mxu0 %v3205
  %v3338 = vpop.f32.mrf.mxu0
  %v3339 = vadd.f32 0.0, %v3338
  %v3340 = vpop.f32.mrf.mxu0
  %3341 = vmatprep.mubr.f32.mxu0 0.0
  %3342 = vmatmul.mubr.f32.gmra.mxu0 %v3208
  %v3343 = vpop.f32.mrf.mxu0
  %v3344 = vadd.f32 0.0, %v3343
  %v3345 = vpop.f32.mrf.mxu0
  %3346 = vmatprep.mubr.f32.mxu0 0.0
  %3347 = vmatmul.mubr.f32.gmra.mxu0 %v3211
  %v3348 = vpop.f32.mrf.mxu0
  %v3349 = vadd.f32 0.0, %v3348
  %v3350 = vpop.f32.mrf.mxu0
  %3351 = vmatprep.mubr.f32.mxu0 0.0
  %3352 = vmatmul.mubr.f32.gmra.mxu0 %v3214
  %v3353 = vpop.f32.mrf.mxu0
  %v3354 = vadd.f32 0.0, %v3353
  %v3355 = vpop.f32.mrf.mxu0
  %3356 = vmatprep.mubr.f32.mxu0 0.0
  %3357 = vmatmul.mubr.f32.gmra.mxu0 %v3217
  %v3358 = vpop.f32.mrf.mxu0
  %v3359 = vadd.f32 0.0, %v3358
  %v3360 = vpop.f32.mrf.mxu0
  %3361 = vmatprep.mubr.f32.mxu0 0.0
  %3362 = vmatmul.mubr.f32.gmra.mxu0 %v3220
  %v3363 = vpop.f32.mrf.mxu0
  %v3364 = vadd.f32 0.0, %v3363
  %v3365 = vpop.f32.mrf.mxu0
  %3366 = vdwg.mxu0
  %v3367 = vadd.f32 %v3097, %v3289
  %v3368 = vadd.f32 %v3098, %v3294
  %v3369 = vadd.f32 %v3099, %v3299
  %v3370 = vadd.f32 %v3100, %v3304
  %v3371 = vadd.f32 %v3101, %v3309
  %v3372 = vadd.f32 %v3102, %v3314
  %v3373 = vadd.f32 %v3103, %v3319
  %v3374 = vadd.f32 %v3104, %v3324
  %v3375 = vadd.f32 %v3105, %v3329
  %v3376 = vadd.f32 %v3106, %v3334
  %v3377 = vadd.f32 %v3107, %v3339
  %v3378 = vadd.f32 %v3108, %v3344
  %v3379 = vadd.f32 %v3109, %v3349
  %v3380 = vadd.f32 %v3110, %v3354
  %v3381 = vadd.f32 %v3111, %v3359
  %v3382 = vadd.f32 %v3112, %v3364
  %v3383 = vld [vmem:[%s10] sm:$0xff]
  %v3384 = vld [vmem:[%s10 + $0x8] sm:$0xff]
  %v3385 = vld [vmem:[%s10 + $0x10] sm:$0xff]
  %v3386 = vld [vmem:[%s10 + $0x18] sm:$0xff]
  %v3387 = vld [vmem:[%s10 + $0x20] sm:$0xff]
  %v3388 = vld [vmem:[%s10 + $0x28] sm:$0xff]
  %v3389 = vld [vmem:[%s10 + $0x30] sm:$0xff]
  %v3390 = vld [vmem:[%s10 + $0x38] sm:$0xff]
  %v3391 = vld [vmem:[%s10 + $0x40] sm:$0xff]
  %v3392 = vld [vmem:[%s10 + $0x48] sm:$0xff]
  %v3393 = vld [vmem:[%s10 + $0x50] sm:$0xff]
  %v3394 = vld [vmem:[%s10 + $0x58] sm:$0xff]
  %v3395 = vld [vmem:[%s10 + $0x60] sm:$0xff]
  %v3396 = vld [vmem:[%s10 + $0x68] sm:$0xff]
  %v3397 = vld [vmem:[%s10 + $0x70] sm:$0xff]
  %v3398 = vld [vmem:[%s10 + $0x78] sm:$0xff]
  %v3399 = vld [vmem:[%s10 + $0x80] sm:$0xff]
  %v3400 = vld [vmem:[%s10 + $0x88] sm:$0xff]
  %v3401 = vld [vmem:[%s10 + $0x90] sm:$0xff]
  %v3402 = vld [vmem:[%s10 + $0x98] sm:$0xff]
  %v3403 = vld [vmem:[%s10 + $0xa0] sm:$0xff]
  %v3404 = vld [vmem:[%s10 + $0xa8] sm:$0xff]
  %v3405 = vld [vmem:[%s10 + $0xb0] sm:$0xff]
  %v3406 = vld [vmem:[%s10 + $0xb8] sm:$0xff]
  %v3407 = vld [vmem:[%s10 + $0xc0] sm:$0xff]
  %v3408 = vld [vmem:[%s10 + $0xc8] sm:$0xff]
  %v3409 = vld [vmem:[%s10 + $0xd0] sm:$0xff]
  %v3410 = vld [vmem:[%s10 + $0xd8] sm:$0xff]
  %v3411 = vld [vmem:[%s10 + $0xe0] sm:$0xff]
  %v3412 = vld [vmem:[%s10 + $0xe8] sm:$0xff]
  %v3413 = vld [vmem:[%s10 + $0xf0] sm:$0xff]
  %v3414 = vld [vmem:[%s10 + $0xf8] sm:$0xff]
  %v3415 = vld [vmem:[%s10 + $0x100] sm:$0xff]
  %v3416 = vld [vmem:[%s10 + $0x108] sm:$0xff]
  %v3417 = vld [vmem:[%s10 + $0x110] sm:$0xff]
  %v3418 = vld [vmem:[%s10 + $0x118] sm:$0xff]
  %v3419 = vld [vmem:[%s10 + $0x120] sm:$0xff]
  %v3420 = vld [vmem:[%s10 + $0x128] sm:$0xff]
  %v3421 = vld [vmem:[%s10 + $0x130] sm:$0xff]
  %v3422 = vld [vmem:[%s10 + $0x138] sm:$0xff]
  %vm3423 = vcmask 523264
  %v3425 = vsel %vm3423, %v3367, 0
  %v3428 = vsel %vm3423, %v3368, 0
  %v3431 = vsel %vm3423, %v3369, 0
  %v3434 = vsel %vm3423, %v3370, 0
  %v3437 = vsel %vm3423, %v3371, 0
  %v3440 = vsel %vm3423, %v3372, 0
  %v3443 = vsel %vm3423, %v3373, 0
  %v3446 = vsel %vm3423, %v3374, 0
  %v3449 = vsel %vm3423, %v3375, 0
  %v3452 = vsel %vm3423, %v3376, 0
  %v3455 = vsel %vm3423, %v3377, 0
  %v3458 = vsel %vm3423, %v3378, 0
  %v3461 = vsel %vm3423, %v3379, 0
  %v3464 = vsel %vm3423, %v3380, 0
  %v3467 = vsel %vm3423, %v3381, 0
  %v3470 = vsel %vm3423, %v3382, 0
  %3472 = vmatprep.subr.mxu0 0.0
  %3473 = vmatpush1.msra.mxu0 0.0
  %3474 = vmatprep.subr.mxu0 0.0
  %3475 = vmatpush1.msra.mxu0 0.0
  %3476 = vmatprep.subr.mxu0 0.0
  %3477 = vmatpush1.msra.mxu0 0.0
  %3478 = vmatprep.subr.mxu0 0.0
  %3479 = vmatpush1.msra.mxu0 0.0
  %3480 = vmatprep.subr.mxu0 0.0
  %3481 = vmatpush1.msra.mxu0 0.0
  %3482 = vmatprep.subr.mxu0 0.0
  %3483 = vmatpush1.msra.mxu0 0.0
  %3484 = vmatprep.subr.mxu0 0.0
  %3485 = vmatpush1.msra.mxu0 0.0
  %3486 = vmatprep.subr.mxu0 0.0
  %3487 = vmatpush1.msra.mxu0 0.0
  %3488 = vmatprep.subr.mxu0 %v3419
  %3489 = vmatpush1.msra.mxu0 %v3418
  %3490 = vmatprep.subr.mxu0 %v3414
  %3491 = vmatpush1.msra.mxu0 %v3413
  %3492 = vmatprep.subr.mxu0 %v3409
  %3493 = vmatpush1.msra.mxu0 %v3408
  %3494 = vmatprep.subr.mxu0 %v3404
  %3495 = vmatpush1.msra.mxu0 %v3403
  %3496 = vmatprep.subr.mxu0 %v3399
  %3497 = vmatpush1.msra.mxu0 %v3398
  %3498 = vmatprep.subr.mxu0 %v3394
  %3499 = vmatpush1.msra.mxu0 %v3393
  %3500 = vmatprep.subr.mxu0 %v3389
  %3501 = vmatpush1.msra.mxu0 %v3388
  %3502 = vmatprep.subr.mxu0 %v3384
  %3503 = vmatpush1.msra.mxu0 %v3383
  %3504 = vmatprep.subr.mxu0 0.0
  %3505 = vmatpush2.msra.mxu0 0.0
  %3506 = vmatprep.subr.mxu0 0.0
  %3507 = vmatpush2.msra.mxu0 0.0
  %3508 = vmatprep.subr.mxu0 0.0
  %3509 = vmatpush2.msra.mxu0 0.0
  %3510 = vmatprep.subr.mxu0 0.0
  %3511 = vmatpush2.msra.mxu0 0.0
  %3512 = vmatprep.subr.mxu0 0.0
  %3513 = vmatpush2.msra.mxu0 0.0
  %3514 = vmatprep.subr.mxu0 0.0
  %3515 = vmatpush2.msra.mxu0 0.0
  %3516 = vmatprep.subr.mxu0 0.0
  %3517 = vmatpush2.msra.mxu0 0.0
  %3518 = vmatprep.subr.mxu0 0.0
  %3519 = vmatpush2.msra.mxu0 0.0
  %3520 = vmatprep.subr.mxu0 0.0
  %3521 = vmatpush2.msra.mxu0 0.0
  %3522 = vmatprep.subr.mxu0 0.0
  %3523 = vmatpush2.msra.mxu0 0.0
  %3524 = vmatprep.subr.mxu0 0.0
  %3525 = vmatpush2.msra.mxu0 0.0
  %3526 = vmatprep.subr.mxu0 0.0
  %3527 = vmatpush2.msra.mxu0 0.0
  %3528 = vmatprep.subr.mxu0 0.0
  %3529 = vmatpush2.msra.mxu0 0.0
  %3530 = vmatprep.subr.mxu0 0.0
  %3531 = vmatpush2.msra.mxu0 0.0
  %3532 = vmatprep.subr.mxu0 0.0
  %3533 = vmatpush2.msra.mxu0 0.0
  %3534 = vmatprep.subr.mxu0 0.0
  %3535 = vmatpush2.msra.mxu0 0.0
  %3536 = vmatprep.mubr.f32.mxu0 0.0
  %3537 = vmatmul.mubr.f32.gmra.mxu0 %v3425
  %v3538 = vpop.f32.mrf.mxu0
  %v3539 = vadd.f32 0.0, %v3538
  %v3540 = vpop.f32.mrf.mxu0
  %v3541 = vadd.f32 0.0, %v3540
  %3542 = vmatprep.mubr.f32.mxu0 0.0
  %3543 = vmatmul.mubr.f32.gmra.mxu0 %v3428
  %v3544 = vpop.f32.mrf.mxu0
  %v3545 = vadd.f32 0.0, %v3544
  %v3546 = vpop.f32.mrf.mxu0
  %v3547 = vadd.f32 0.0, %v3546
  %3548 = vmatprep.mubr.f32.mxu0 0.0
  %3549 = vmatmul.mubr.f32.gmra.mxu0 %v3431
  %v3550 = vpop.f32.mrf.mxu0
  %v3551 = vadd.f32 0.0, %v3550
  %v3552 = vpop.f32.mrf.mxu0
  %v3553 = vadd.f32 0.0, %v3552
  %3554 = vmatprep.mubr.f32.mxu0 0.0
  %3555 = vmatmul.mubr.f32.gmra.mxu0 %v3434
  %v3556 = vpop.f32.mrf.mxu0
  %v3557 = vadd.f32 0.0, %v3556
  %v3558 = vpop.f32.mrf.mxu0
  %v3559 = vadd.f32 0.0, %v3558
  %3560 = vmatprep.mubr.f32.mxu0 0.0
  %3561 = vmatmul.mubr.f32.gmra.mxu0 %v3437
  %v3562 = vpop.f32.mrf.mxu0
  %v3563 = vadd.f32 0.0, %v3562
  %v3564 = vpop.f32.mrf.mxu0
  %v3565 = vadd.f32 0.0, %v3564
  %3566 = vmatprep.mubr.f32.mxu0 0.0
  %3567 = vmatmul.mubr.f32.gmra.mxu0 %v3440
  %v3568 = vpop.f32.mrf.mxu0
  %v3569 = vadd.f32 0.0, %v3568
  %v3570 = vpop.f32.mrf.mxu0
  %v3571 = vadd.f32 0.0, %v3570
  %3572 = vmatprep.mubr.f32.mxu0 0.0
  %3573 = vmatmul.mubr.f32.gmra.mxu0 %v3443
  %v3574 = vpop.f32.mrf.mxu0
  %v3575 = vadd.f32 0.0, %v3574
  %v3576 = vpop.f32.mrf.mxu0
  %v3577 = vadd.f32 0.0, %v3576
  %3578 = vmatprep.mubr.f32.mxu0 0.0
  %3579 = vmatmul.mubr.f32.gmra.mxu0 %v3446
  %v3580 = vpop.f32.mrf.mxu0
  %v3581 = vadd.f32 0.0, %v3580
  %v3582 = vpop.f32.mrf.mxu0
  %v3583 = vadd.f32 0.0, %v3582
  %3584 = vmatprep.mubr.f32.mxu0 0.0
  %3585 = vmatmul.mubr.f32.gmra.mxu0 %v3449
  %v3586 = vpop.f32.mrf.mxu0
  %v3587 = vadd.f32 0.0, %v3586
  %v3588 = vpop.f32.mrf.mxu0
  %v3589 = vadd.f32 0.0, %v3588
  %3590 = vmatprep.mubr.f32.mxu0 0.0
  %3591 = vmatmul.mubr.f32.gmra.mxu0 %v3452
  %v3592 = vpop.f32.mrf.mxu0
  %v3593 = vadd.f32 0.0, %v3592
  %v3594 = vpop.f32.mrf.mxu0
  %v3595 = vadd.f32 0.0, %v3594
  %3596 = vmatprep.mubr.f32.mxu0 0.0
  %3597 = vmatmul.mubr.f32.gmra.mxu0 %v3455
  %v3598 = vpop.f32.mrf.mxu0
  %v3599 = vadd.f32 0.0, %v3598
  %v3600 = vpop.f32.mrf.mxu0
  %v3601 = vadd.f32 0.0, %v3600
  %3602 = vmatprep.mubr.f32.mxu0 0.0
  %3603 = vmatmul.mubr.f32.gmra.mxu0 %v3458
  %v3604 = vpop.f32.mrf.mxu0
  %v3605 = vadd.f32 0.0, %v3604
  %v3606 = vpop.f32.mrf.mxu0
  %v3607 = vadd.f32 0.0, %v3606
  %3608 = vmatprep.mubr.f32.mxu0 0.0
  %3609 = vmatmul.mubr.f32.gmra.mxu0 %v3461
  %v3610 = vpop.f32.mrf.mxu0
  %v3611 = vadd.f32 0.0, %v3610
  %v3612 = vpop.f32.mrf.mxu0
  %v3613 = vadd.f32 0.0, %v3612
  %3614 = vmatprep.mubr.f32.mxu0 0.0
  %3615 = vmatmul.mubr.f32.gmra.mxu0 %v3464
  %v3616 = vpop.f32.mrf.mxu0
  %v3617 = vadd.f32 0.0, %v3616
  %v3618 = vpop.f32.mrf.mxu0
  %v3619 = vadd.f32 0.0, %v3618
  %3620 = vmatprep.mubr.f32.mxu0 0.0
  %3621 = vmatmul.mubr.f32.gmra.mxu0 %v3467
  %v3622 = vpop.f32.mrf.mxu0
  %v3623 = vadd.f32 0.0, %v3622
  %v3624 = vpop.f32.mrf.mxu0
  %v3625 = vadd.f32 0.0, %v3624
  %3626 = vmatprep.mubr.f32.mxu0 0.0
  %3627 = vmatmul.mubr.f32.gmra.mxu0 %v3470
  %v3628 = vpop.f32.mrf.mxu0
  %v3629 = vadd.f32 0.0, %v3628
  %v3630 = vpop.f32.mrf.mxu0
  %v3631 = vadd.f32 0.0, %v3630
  %3632 = vdwg.mxu0
  %3633 = vmatprep.subr.mxu0 0.0
  %3634 = vmatpush1.msra.mxu0 0.0
  %3635 = vmatprep.subr.mxu0 0.0
  %3636 = vmatpush1.msra.mxu0 0.0
  %3637 = vmatprep.subr.mxu0 0.0
  %3638 = vmatpush1.msra.mxu0 0.0
  %3639 = vmatprep.subr.mxu0 0.0
  %3640 = vmatpush1.msra.mxu0 0.0
  %3641 = vmatprep.subr.mxu0 0.0
  %3642 = vmatpush1.msra.mxu0 0.0
  %3643 = vmatprep.subr.mxu0 0.0
  %3644 = vmatpush1.msra.mxu0 0.0
  %3645 = vmatprep.subr.mxu0 0.0
  %3646 = vmatpush1.msra.mxu0 0.0
  %3647 = vmatprep.subr.mxu0 0.0
  %3648 = vmatpush1.msra.mxu0 0.0
  %3649 = vmatprep.subr.mxu0 %v3421
  %3650 = vmatpush1.msra.mxu0 %v3420
  %3651 = vmatprep.subr.mxu0 %v3416
  %3652 = vmatpush1.msra.mxu0 %v3415
  %3653 = vmatprep.subr.mxu0 %v3411
  %3654 = vmatpush1.msra.mxu0 %v3410
  %3655 = vmatprep.subr.mxu0 %v3406
  %3656 = vmatpush1.msra.mxu0 %v3405
  %3657 = vmatprep.subr.mxu0 %v3401
  %3658 = vmatpush1.msra.mxu0 %v3400
  %3659 = vmatprep.subr.mxu0 %v3396
  %3660 = vmatpush1.msra.mxu0 %v3395
  %3661 = vmatprep.subr.mxu0 %v3391
  %3662 = vmatpush1.msra.mxu0 %v3390
  %3663 = vmatprep.subr.mxu0 %v3386
  %3664 = vmatpush1.msra.mxu0 %v3385
  %3665 = vmatprep.subr.mxu0 0.0
  %3666 = vmatpush2.msra.mxu0 0.0
  %3667 = vmatprep.subr.mxu0 0.0
  %3668 = vmatpush2.msra.mxu0 0.0
  %3669 = vmatprep.subr.mxu0 0.0
  %3670 = vmatpush2.msra.mxu0 0.0
  %3671 = vmatprep.subr.mxu0 0.0
  %3672 = vmatpush2.msra.mxu0 0.0
  %3673 = vmatprep.subr.mxu0 0.0
  %3674 = vmatpush2.msra.mxu0 0.0
  %3675 = vmatprep.subr.mxu0 0.0
  %3676 = vmatpush2.msra.mxu0 0.0
  %3677 = vmatprep.subr.mxu0 0.0
  %3678 = vmatpush2.msra.mxu0 0.0
  %3679 = vmatprep.subr.mxu0 0.0
  %3680 = vmatpush2.msra.mxu0 0.0
  %3681 = vmatprep.subr.mxu0 0.0
  %3682 = vmatpush2.msra.mxu0 0.0
  %3683 = vmatprep.subr.mxu0 0.0
  %3684 = vmatpush2.msra.mxu0 0.0
  %3685 = vmatprep.subr.mxu0 0.0
  %3686 = vmatpush2.msra.mxu0 0.0
  %3687 = vmatprep.subr.mxu0 0.0
  %3688 = vmatpush2.msra.mxu0 0.0
  %3689 = vmatprep.subr.mxu0 0.0
  %3690 = vmatpush2.msra.mxu0 0.0
  %3691 = vmatprep.subr.mxu0 0.0
  %3692 = vmatpush2.msra.mxu0 0.0
  %3693 = vmatprep.subr.mxu0 0.0
  %3694 = vmatpush2.msra.mxu0 0.0
  %3695 = vmatprep.subr.mxu0 0.0
  %3696 = vmatpush2.msra.mxu0 0.0
  %3697 = vmatprep.mubr.f32.mxu0 0.0
  %3698 = vmatmul.mubr.f32.gmra.mxu0 %v3425
  %v3699 = vpop.f32.mrf.mxu0
  %v3700 = vadd.f32 0.0, %v3699
  %v3701 = vpop.f32.mrf.mxu0
  %v3702 = vadd.f32 0.0, %v3701
  %3703 = vmatprep.mubr.f32.mxu0 0.0
  %3704 = vmatmul.mubr.f32.gmra.mxu0 %v3428
  %v3705 = vpop.f32.mrf.mxu0
  %v3706 = vadd.f32 0.0, %v3705
  %v3707 = vpop.f32.mrf.mxu0
  %v3708 = vadd.f32 0.0, %v3707
  %3709 = vmatprep.mubr.f32.mxu0 0.0
  %3710 = vmatmul.mubr.f32.gmra.mxu0 %v3431
  %v3711 = vpop.f32.mrf.mxu0
  %v3712 = vadd.f32 0.0, %v3711
  %v3713 = vpop.f32.mrf.mxu0
  %v3714 = vadd.f32 0.0, %v3713
  %3715 = vmatprep.mubr.f32.mxu0 0.0
  %3716 = vmatmul.mubr.f32.gmra.mxu0 %v3434
  %v3717 = vpop.f32.mrf.mxu0
  %v3718 = vadd.f32 0.0, %v3717
  %v3719 = vpop.f32.mrf.mxu0
  %v3720 = vadd.f32 0.0, %v3719
  %3721 = vmatprep.mubr.f32.mxu0 0.0
  %3722 = vmatmul.mubr.f32.gmra.mxu0 %v3437
  %v3723 = vpop.f32.mrf.mxu0
  %v3724 = vadd.f32 0.0, %v3723
  %v3725 = vpop.f32.mrf.mxu0
  %v3726 = vadd.f32 0.0, %v3725
  %3727 = vmatprep.mubr.f32.mxu0 0.0
  %3728 = vmatmul.mubr.f32.gmra.mxu0 %v3440
  %v3729 = vpop.f32.mrf.mxu0
  %v3730 = vadd.f32 0.0, %v3729
  %v3731 = vpop.f32.mrf.mxu0
  %v3732 = vadd.f32 0.0, %v3731
  %3733 = vmatprep.mubr.f32.mxu0 0.0
  %3734 = vmatmul.mubr.f32.gmra.mxu0 %v3443
  %v3735 = vpop.f32.mrf.mxu0
  %v3736 = vadd.f32 0.0, %v3735
  %v3737 = vpop.f32.mrf.mxu0
  %v3738 = vadd.f32 0.0, %v3737
  %3739 = vmatprep.mubr.f32.mxu0 0.0
  %3740 = vmatmul.mubr.f32.gmra.mxu0 %v3446
  %v3741 = vpop.f32.mrf.mxu0
  %v3742 = vadd.f32 0.0, %v3741
  %v3743 = vpop.f32.mrf.mxu0
  %v3744 = vadd.f32 0.0, %v3743
  %3745 = vmatprep.mubr.f32.mxu0 0.0
  %3746 = vmatmul.mubr.f32.gmra.mxu0 %v3449
  %v3747 = vpop.f32.mrf.mxu0
  %v3748 = vadd.f32 0.0, %v3747
  %v3749 = vpop.f32.mrf.mxu0
  %v3750 = vadd.f32 0.0, %v3749
  %3751 = vmatprep.mubr.f32.mxu0 0.0
  %3752 = vmatmul.mubr.f32.gmra.mxu0 %v3452
  %v3753 = vpop.f32.mrf.mxu0
  %v3754 = vadd.f32 0.0, %v3753
  %v3755 = vpop.f32.mrf.mxu0
  %v3756 = vadd.f32 0.0, %v3755
  %3757 = vmatprep.mubr.f32.mxu0 0.0
  %3758 = vmatmul.mubr.f32.gmra.mxu0 %v3455
  %v3759 = vpop.f32.mrf.mxu0
  %v3760 = vadd.f32 0.0, %v3759
  %v3761 = vpop.f32.mrf.mxu0
  %v3762 = vadd.f32 0.0, %v3761
  %3763 = vmatprep.mubr.f32.mxu0 0.0
  %3764 = vmatmul.mubr.f32.gmra.mxu0 %v3458
  %v3765 = vpop.f32.mrf.mxu0
  %v3766 = vadd.f32 0.0, %v3765
  %v3767 = vpop.f32.mrf.mxu0
  %v3768 = vadd.f32 0.0, %v3767
  %3769 = vmatprep.mubr.f32.mxu0 0.0
  %3770 = vmatmul.mubr.f32.gmra.mxu0 %v3461
  %v3771 = vpop.f32.mrf.mxu0
  %v3772 = vadd.f32 0.0, %v3771
  %v3773 = vpop.f32.mrf.mxu0
  %v3774 = vadd.f32 0.0, %v3773
  %3775 = vmatprep.mubr.f32.mxu0 0.0
  %3776 = vmatmul.mubr.f32.gmra.mxu0 %v3464
  %v3777 = vpop.f32.mrf.mxu0
  %v3778 = vadd.f32 0.0, %v3777
  %v3779 = vpop.f32.mrf.mxu0
  %v3780 = vadd.f32 0.0, %v3779
  %3781 = vmatprep.mubr.f32.mxu0 0.0
  %3782 = vmatmul.mubr.f32.gmra.mxu0 %v3467
  %v3783 = vpop.f32.mrf.mxu0
  %v3784 = vadd.f32 0.0, %v3783
  %v3785 = vpop.f32.mrf.mxu0
  %v3786 = vadd.f32 0.0, %v3785
  %3787 = vmatprep.mubr.f32.mxu0 0.0
  %3788 = vmatmul.mubr.f32.gmra.mxu0 %v3470
  %v3789 = vpop.f32.mrf.mxu0
  %v3790 = vadd.f32 0.0, %v3789
  %v3791 = vpop.f32.mrf.mxu0
  %v3792 = vadd.f32 0.0, %v3791
  %3793 = vdwg.mxu0
  %3794 = vmatprep.subr.mxu0 0.0
  %3795 = vmatpush1.msra.mxu0 0.0
  %3796 = vmatprep.subr.mxu0 0.0
  %3797 = vmatpush1.msra.mxu0 0.0
  %3798 = vmatprep.subr.mxu0 0.0
  %3799 = vmatpush1.msra.mxu0 0.0
  %3800 = vmatprep.subr.mxu0 0.0
  %3801 = vmatpush1.msra.mxu0 0.0
  %3802 = vmatprep.subr.mxu0 0.0
  %3803 = vmatpush1.msra.mxu0 0.0
  %3804 = vmatprep.subr.mxu0 0.0
  %3805 = vmatpush1.msra.mxu0 0.0
  %3806 = vmatprep.subr.mxu0 0.0
  %3807 = vmatpush1.msra.mxu0 0.0
  %3808 = vmatprep.subr.mxu0 0.0
  %3809 = vmatpush1.msra.mxu0 0.0
  %3810 = vmatprep.subr.mxu0 0.0
  %3811 = vmatpush1.msra.mxu0 %v3422
  %3812 = vmatprep.subr.mxu0 0.0
  %3813 = vmatpush1.msra.mxu0 %v3417
  %3814 = vmatprep.subr.mxu0 0.0
  %3815 = vmatpush1.msra.mxu0 %v3412
  %3816 = vmatprep.subr.mxu0 0.0
  %3817 = vmatpush1.msra.mxu0 %v3407
  %3818 = vmatprep.subr.mxu0 0.0
  %3819 = vmatpush1.msra.mxu0 %v3402
  %3820 = vmatprep.subr.mxu0 0.0
  %3821 = vmatpush1.msra.mxu0 %v3397
  %3822 = vmatprep.subr.mxu0 0.0
  %3823 = vmatpush1.msra.mxu0 %v3392
  %3824 = vmatprep.subr.mxu0 0.0
  %3825 = vmatpush1.msra.mxu0 %v3387
  %3826 = vmatprep.subr.mxu0 0.0
  %3827 = vmatpush2.msra.mxu0 0.0
  %3828 = vmatprep.subr.mxu0 0.0
  %3829 = vmatpush2.msra.mxu0 0.0
  %3830 = vmatprep.subr.mxu0 0.0
  %3831 = vmatpush2.msra.mxu0 0.0
  %3832 = vmatprep.subr.mxu0 0.0
  %3833 = vmatpush2.msra.mxu0 0.0
  %3834 = vmatprep.subr.mxu0 0.0
  %3835 = vmatpush2.msra.mxu0 0.0
  %3836 = vmatprep.subr.mxu0 0.0
  %3837 = vmatpush2.msra.mxu0 0.0
  %3838 = vmatprep.subr.mxu0 0.0
  %3839 = vmatpush2.msra.mxu0 0.0
  %3840 = vmatprep.subr.mxu0 0.0
  %3841 = vmatpush2.msra.mxu0 0.0
  %3842 = vmatprep.subr.mxu0 0.0
  %3843 = vmatpush2.msra.mxu0 0.0
  %3844 = vmatprep.subr.mxu0 0.0
  %3845 = vmatpush2.msra.mxu0 0.0
  %3846 = vmatprep.subr.mxu0 0.0
  %3847 = vmatpush2.msra.mxu0 0.0
  %3848 = vmatprep.subr.mxu0 0.0
  %3849 = vmatpush2.msra.mxu0 0.0
  %3850 = vmatprep.subr.mxu0 0.0
  %3851 = vmatpush2.msra.mxu0 0.0
  %3852 = vmatprep.subr.mxu0 0.0
  %3853 = vmatpush2.msra.mxu0 0.0
  %3854 = vmatprep.subr.mxu0 0.0
  %3855 = vmatpush2.msra.mxu0 0.0
  %3856 = vmatprep.subr.mxu0 0.0
  %3857 = vmatpush2.msra.mxu0 0.0
  %3858 = vmatprep.mubr.f32.mxu0 0.0
  %3859 = vmatmul.mubr.f32.gmra.mxu0 %v3425
  %v3860 = vpop.f32.mrf.mxu0
  %v3861 = vadd.f32 0.0, %v3860
  %v3862 = vpop.f32.mrf.mxu0
  %3863 = vmatprep.mubr.f32.mxu0 0.0
  %3864 = vmatmul.mubr.f32.gmra.mxu0 %v3428
  %v3865 = vpop.f32.mrf.mxu0
  %v3866 = vadd.f32 0.0, %v3865
  %v3867 = vpop.f32.mrf.mxu0
  %3868 = vmatprep.mubr.f32.mxu0 0.0
  %3869 = vmatmul.mubr.f32.gmra.mxu0 %v3431
  %v3870 = vpop.f32.mrf.mxu0
  %v3871 = vadd.f32 0.0, %v3870
  %v3872 = vpop.f32.mrf.mxu0
  %3873 = vmatprep.mubr.f32.mxu0 0.0
  %3874 = vmatmul.mubr.f32.gmra.mxu0 %v3434
  %v3875 = vpop.f32.mrf.mxu0
  %v3876 = vadd.f32 0.0, %v3875
  %v3877 = vpop.f32.mrf.mxu0
  %3878 = vmatprep.mubr.f32.mxu0 0.0
  %3879 = vmatmul.mubr.f32.gmra.mxu0 %v3437
  %v3880 = vpop.f32.mrf.mxu0
  %v3881 = vadd.f32 0.0, %v3880
  %v3882 = vpop.f32.mrf.mxu0
  %3883 = vmatprep.mubr.f32.mxu0 0.0
  %3884 = vmatmul.mubr.f32.gmra.mxu0 %v3440
  %v3885 = vpop.f32.mrf.mxu0
  %v3886 = vadd.f32 0.0, %v3885
  %v3887 = vpop.f32.mrf.mxu0
  %3888 = vmatprep.mubr.f32.mxu0 0.0
  %3889 = vmatmul.mubr.f32.gmra.mxu0 %v3443
  %v3890 = vpop.f32.mrf.mxu0
  %v3891 = vadd.f32 0.0, %v3890
  %v3892 = vpop.f32.mrf.mxu0
  %3893 = vmatprep.mubr.f32.mxu0 0.0
  %3894 = vmatmul.mubr.f32.gmra.mxu0 %v3446
  %v3895 = vpop.f32.mrf.mxu0
  %v3896 = vadd.f32 0.0, %v3895
  %v3897 = vpop.f32.mrf.mxu0
  %3898 = vmatprep.mubr.f32.mxu0 0.0
  %3899 = vmatmul.mubr.f32.gmra.mxu0 %v3449
  %v3900 = vpop.f32.mrf.mxu0
  %v3901 = vadd.f32 0.0, %v3900
  %v3902 = vpop.f32.mrf.mxu0
  %3903 = vmatprep.mubr.f32.mxu0 0.0
  %3904 = vmatmul.mubr.f32.gmra.mxu0 %v3452
  %v3905 = vpop.f32.mrf.mxu0
  %v3906 = vadd.f32 0.0, %v3905
  %v3907 = vpop.f32.mrf.mxu0
  %3908 = vmatprep.mubr.f32.mxu0 0.0
  %3909 = vmatmul.mubr.f32.gmra.mxu0 %v3455
  %v3910 = vpop.f32.mrf.mxu0
  %v3911 = vadd.f32 0.0, %v3910
  %v3912 = vpop.f32.mrf.mxu0
  %3913 = vmatprep.mubr.f32.mxu0 0.0
  %3914 = vmatmul.mubr.f32.gmra.mxu0 %v3458
  %v3915 = vpop.f32.mrf.mxu0
  %v3916 = vadd.f32 0.0, %v3915
  %v3917 = vpop.f32.mrf.mxu0
  %3918 = vmatprep.mubr.f32.mxu0 0.0
  %3919 = vmatmul.mubr.f32.gmra.mxu0 %v3461
  %v3920 = vpop.f32.mrf.mxu0
  %v3921 = vadd.f32 0.0, %v3920
  %v3922 = vpop.f32.mrf.mxu0
  %3923 = vmatprep.mubr.f32.mxu0 0.0
  %3924 = vmatmul.mubr.f32.gmra.mxu0 %v3464
  %v3925 = vpop.f32.mrf.mxu0
  %v3926 = vadd.f32 0.0, %v3925
  %v3927 = vpop.f32.mrf.mxu0
  %3928 = vmatprep.mubr.f32.mxu0 0.0
  %3929 = vmatmul.mubr.f32.gmra.mxu0 %v3467
  %v3930 = vpop.f32.mrf.mxu0
  %v3931 = vadd.f32 0.0, %v3930
  %v3932 = vpop.f32.mrf.mxu0
  %3933 = vmatprep.mubr.f32.mxu0 0.0
  %3934 = vmatmul.mubr.f32.gmra.mxu0 %v3470
  %v3935 = vpop.f32.mrf.mxu0
  %v3936 = vadd.f32 0.0, %v3935
  %v3937 = vpop.f32.mrf.mxu0
  %3938 = vdwg.mxu0
  %v3939 = vld [vmem:[%s9] sm:$0xff]
  %v3940 = vld [vmem:[%s9 + $0x8] sm:$0xff]
  %v3941 = vld [vmem:[%s9 + $0x10] sm:$0xff]
  %v3942 = vld [vmem:[%s9 + $0x18] sm:$0xff]
  %v3943 = vld [vmem:[%s9 + $0x20] sm:$0xff]
  %v3944 = vld [vmem:[%s9 + $0x28] sm:$0xff]
  %v3945 = vld [vmem:[%s9 + $0x30] sm:$0xff]
  %v3946 = vld [vmem:[%s9 + $0x38] sm:$0xff]
  %v3947 = vld [vmem:[%s9 + $0x40] sm:$0xff]
  %v3948 = vld [vmem:[%s9 + $0x48] sm:$0xff]
  %v3949 = vld [vmem:[%s9 + $0x50] sm:$0xff]
  %v3950 = vld [vmem:[%s9 + $0x58] sm:$0xff]
  %v3951 = vld [vmem:[%s9 + $0x60] sm:$0xff]
  %v3952 = vld [vmem:[%s9 + $0x68] sm:$0xff]
  %v3953 = vld [vmem:[%s9 + $0x70] sm:$0xff]
  %v3954 = vld [vmem:[%s9 + $0x78] sm:$0xff]
  %s3955 = scalar_lea.vmem %s9, 128
  %v3956 = vld [vmem:[%s3955] sm:$0xff]
  %v3957 = vld [vmem:[%s3955 + $0x8] sm:$0xff]
  %v3958 = vld [vmem:[%s3955 + $0x10] sm:$0xff]
  %v3959 = vld [vmem:[%s3955 + $0x18] sm:$0xff]
  %v3960 = vld [vmem:[%s3955 + $0x20] sm:$0xff]
  %v3961 = vld [vmem:[%s3955 + $0x28] sm:$0xff]
  %v3962 = vld [vmem:[%s3955 + $0x30] sm:$0xff]
  %v3963 = vld [vmem:[%s3955 + $0x38] sm:$0xff]
  %v3964 = vld [vmem:[%s3955 + $0x40] sm:$0xff]
  %v3965 = vld [vmem:[%s3955 + $0x48] sm:$0xff]
  %v3966 = vld [vmem:[%s3955 + $0x50] sm:$0xff]
  %v3967 = vld [vmem:[%s3955 + $0x58] sm:$0xff]
  %v3968 = vld [vmem:[%s3955 + $0x60] sm:$0xff]
  %v3969 = vld [vmem:[%s3955 + $0x68] sm:$0xff]
  %v3970 = vld [vmem:[%s3955 + $0x70] sm:$0xff]
  %v3971 = vld [vmem:[%s3955 + $0x78] sm:$0xff]
  %3988 = vrot.lane.b32.xlu0 %v3539, 64
  %v3989 = vpop.permute.xlu0 %3988
  %3990 = vrot.lane.b32.xlu0 %v3545, 64
  %v3991 = vpop.permute.xlu0 %3990
  %3992 = vrot.lane.b32.xlu0 %v3551, 64
  %v3993 = vpop.permute.xlu0 %3992
  %3994 = vrot.lane.b32.xlu0 %v3557, 64
  %v3995 = vpop.permute.xlu0 %3994
  %3996 = vrot.lane.b32.xlu0 %v3563, 64
  %v3997 = vpop.permute.xlu0 %3996
  %3998 = vrot.lane.b32.xlu0 %v3569, 64
  %v3999 = vpop.permute.xlu0 %3998
  %4000 = vrot.lane.b32.xlu0 %v3575, 64
  %v4001 = vpop.permute.xlu0 %4000
  %4002 = vrot.lane.b32.xlu0 %v3581, 64
  %v4003 = vpop.permute.xlu0 %4002
  %4004 = vrot.lane.b32.xlu0 %v3587, 64
  %v4005 = vpop.permute.xlu0 %4004
  %4006 = vrot.lane.b32.xlu0 %v3593, 64
  %v4007 = vpop.permute.xlu0 %4006
  %4008 = vrot.lane.b32.xlu0 %v3599, 64
  %v4009 = vpop.permute.xlu0 %4008
  %4010 = vrot.lane.b32.xlu0 %v3605, 64
  %v4011 = vpop.permute.xlu0 %4010
  %4012 = vrot.lane.b32.xlu0 %v3611, 64
  %v4013 = vpop.permute.xlu0 %4012
  %4014 = vrot.lane.b32.xlu0 %v3617, 64
  %v4015 = vpop.permute.xlu0 %4014
  %4016 = vrot.lane.b32.xlu0 %v3623, 64
  %v4017 = vpop.permute.xlu0 %4016
  %4018 = vrot.lane.b32.xlu0 %v3629, 64
  %v4019 = vpop.permute.xlu0 %4018
  %4036 = vmatprep.subr.mxu0 0.0
  %4037 = vmatpush1.msra.mxu0 %v4019
  %4038 = vmatprep.subr.mxu0 0.0
  %4039 = vmatpush1.msra.mxu0 %v4017
  %4040 = vmatprep.subr.mxu0 0.0
  %4041 = vmatpush1.msra.mxu0 %v4015
  %4042 = vmatprep.subr.mxu0 0.0
  %4043 = vmatpush1.msra.mxu0 %v4013
  %4044 = vmatprep.subr.mxu0 0.0
  %4045 = vmatpush1.msra.mxu0 %v4011
  %4046 = vmatprep.subr.mxu0 0.0
  %4047 = vmatpush1.msra.mxu0 %v4009
  %4048 = vmatprep.subr.mxu0 0.0
  %4049 = vmatpush1.msra.mxu0 %v4007
  %4050 = vmatprep.subr.mxu0 0.0
  %4051 = vmatpush1.msra.mxu0 %v4005
  %4052 = vmatprep.subr.mxu0 0.0
  %4053 = vmatpush1.msra.mxu0 %v4003
  %4054 = vmatprep.subr.mxu0 0.0
  %4055 = vmatpush1.msra.mxu0 %v4001
  %4056 = vmatprep.subr.mxu0 0.0
  %4057 = vmatpush1.msra.mxu0 %v3999
  %4058 = vmatprep.subr.mxu0 0.0
  %4059 = vmatpush1.msra.mxu0 %v3997
  %4060 = vmatprep.subr.mxu0 0.0
  %4061 = vmatpush1.msra.mxu0 %v3995
  %4062 = vmatprep.subr.mxu0 0.0
  %4063 = vmatpush1.msra.mxu0 %v3993
  %4064 = vmatprep.subr.mxu0 0.0
  %4065 = vmatpush1.msra.mxu0 %v3991
  %4066 = vmatprep.subr.mxu0 0.0
  %4067 = vmatpush1.msra.mxu0 %v3989
  %4068 = vmatprep.subr.mxu0 0.0
  %4069 = vmatpush2.msra.mxu0 0.0
  %4070 = vmatprep.subr.mxu0 0.0
  %4071 = vmatpush2.msra.mxu0 0.0
  %4072 = vmatprep.subr.mxu0 0.0
  %4073 = vmatpush2.msra.mxu0 0.0
  %4074 = vmatprep.subr.mxu0 0.0
  %4075 = vmatpush2.msra.mxu0 0.0
  %4076 = vmatprep.subr.mxu0 0.0
  %4077 = vmatpush2.msra.mxu0 0.0
  %4078 = vmatprep.subr.mxu0 0.0
  %4079 = vmatpush2.msra.mxu0 0.0
  %4080 = vmatprep.subr.mxu0 0.0
  %4081 = vmatpush2.msra.mxu0 0.0
  %4082 = vmatprep.subr.mxu0 0.0
  %4083 = vmatpush2.msra.mxu0 0.0
  %4084 = vmatprep.subr.mxu0 0.0
  %4085 = vmatpush2.msra.mxu0 0.0
  %4086 = vmatprep.subr.mxu0 0.0
  %4087 = vmatpush2.msra.mxu0 0.0
  %4088 = vmatprep.subr.mxu0 0.0
  %4089 = vmatpush2.msra.mxu0 0.0
  %4090 = vmatprep.subr.mxu0 0.0
  %4091 = vmatpush2.msra.mxu0 0.0
  %4092 = vmatprep.subr.mxu0 0.0
  %4093 = vmatpush2.msra.mxu0 0.0
  %4094 = vmatprep.subr.mxu0 0.0
  %4095 = vmatpush2.msra.mxu0 0.0
  %4096 = vmatprep.subr.mxu0 0.0
  %4097 = vmatpush2.msra.mxu0 0.0
  %4098 = vmatprep.subr.mxu0 0.0
  %4099 = vmatpush2.msra.mxu0 0.0
  %4100 = vmatprep.mubr.f32.mxu0 0.0
  %4101 = vmatmul.mubr.f32.gmra.mxu0 %v3956
  %v4102 = vpop.f32.mrf.mxu0
  %v4103 = vadd.f32 0.0, %v4102
  %v4104 = vpop.f32.mrf.mxu0
  %4105 = vmatprep.mubr.f32.mxu0 0.0
  %4106 = vmatmul.mubr.f32.gmra.mxu0 %v3957
  %v4107 = vpop.f32.mrf.mxu0
  %v4108 = vadd.f32 0.0, %v4107
  %v4109 = vpop.f32.mrf.mxu0
  %4110 = vmatprep.mubr.f32.mxu0 0.0
  %4111 = vmatmul.mubr.f32.gmra.mxu0 %v3958
  %v4112 = vpop.f32.mrf.mxu0
  %v4113 = vadd.f32 0.0, %v4112
  %v4114 = vpop.f32.mrf.mxu0
  %4115 = vmatprep.mubr.f32.mxu0 0.0
  %4116 = vmatmul.mubr.f32.gmra.mxu0 %v3959
  %v4117 = vpop.f32.mrf.mxu0
  %v4118 = vadd.f32 0.0, %v4117
  %v4119 = vpop.f32.mrf.mxu0
  %4120 = vmatprep.mubr.f32.mxu0 0.0
  %4121 = vmatmul.mubr.f32.gmra.mxu0 %v3960
  %v4122 = vpop.f32.mrf.mxu0
  %v4123 = vadd.f32 0.0, %v4122
  %v4124 = vpop.f32.mrf.mxu0
  %4125 = vmatprep.mubr.f32.mxu0 0.0
  %4126 = vmatmul.mubr.f32.gmra.mxu0 %v3961
  %v4127 = vpop.f32.mrf.mxu0
  %v4128 = vadd.f32 0.0, %v4127
  %v4129 = vpop.f32.mrf.mxu0
  %4130 = vmatprep.mubr.f32.mxu0 0.0
  %4131 = vmatmul.mubr.f32.gmra.mxu0 %v3962
  %v4132 = vpop.f32.mrf.mxu0
  %v4133 = vadd.f32 0.0, %v4132
  %v4134 = vpop.f32.mrf.mxu0
  %4135 = vmatprep.mubr.f32.mxu0 0.0
  %4136 = vmatmul.mubr.f32.gmra.mxu0 %v3963
  %v4137 = vpop.f32.mrf.mxu0
  %v4138 = vadd.f32 0.0, %v4137
  %v4139 = vpop.f32.mrf.mxu0
  %4140 = vmatprep.mubr.f32.mxu0 0.0
  %4141 = vmatmul.mubr.f32.gmra.mxu0 %v3964
  %v4142 = vpop.f32.mrf.mxu0
  %v4143 = vadd.f32 0.0, %v4142
  %v4144 = vpop.f32.mrf.mxu0
  %4145 = vmatprep.mubr.f32.mxu0 0.0
  %4146 = vmatmul.mubr.f32.gmra.mxu0 %v3965
  %v4147 = vpop.f32.mrf.mxu0
  %v4148 = vadd.f32 0.0, %v4147
  %v4149 = vpop.f32.mrf.mxu0
  %4150 = vmatprep.mubr.f32.mxu0 0.0
  %4151 = vmatmul.mubr.f32.gmra.mxu0 %v3966
  %v4152 = vpop.f32.mrf.mxu0
  %v4153 = vadd.f32 0.0, %v4152
  %v4154 = vpop.f32.mrf.mxu0
  %4155 = vmatprep.mubr.f32.mxu0 0.0
  %4156 = vmatmul.mubr.f32.gmra.mxu0 %v3967
  %v4157 = vpop.f32.mrf.mxu0
  %v4158 = vadd.f32 0.0, %v4157
  %v4159 = vpop.f32.mrf.mxu0
  %4160 = vmatprep.mubr.f32.mxu0 0.0
  %4161 = vmatmul.mubr.f32.gmra.mxu0 %v3968
  %v4162 = vpop.f32.mrf.mxu0
  %v4163 = vadd.f32 0.0, %v4162
  %v4164 = vpop.f32.mrf.mxu0
  %4165 = vmatprep.mubr.f32.mxu0 0.0
  %4166 = vmatmul.mubr.f32.gmra.mxu0 %v3969
  %v4167 = vpop.f32.mrf.mxu0
  %v4168 = vadd.f32 0.0, %v4167
  %v4169 = vpop.f32.mrf.mxu0
  %4170 = vmatprep.mubr.f32.mxu0 0.0
  %4171 = vmatmul.mubr.f32.gmra.mxu0 %v3970
  %v4172 = vpop.f32.mrf.mxu0
  %v4173 = vadd.f32 0.0, %v4172
  %v4174 = vpop.f32.mrf.mxu0
  %4175 = vmatprep.mubr.f32.mxu0 0.0
  %4176 = vmatmul.mubr.f32.gmra.mxu0 %v3971
  %v4177 = vpop.f32.mrf.mxu0
  %v4178 = vadd.f32 0.0, %v4177
  %v4179 = vpop.f32.mrf.mxu0
  %4180 = vdwg.mxu0
  %4181 = vmatprep.subr.mxu0 0.0
  %4182 = vmatpush1.msra.mxu0 %v3629
  %4183 = vmatprep.subr.mxu0 0.0
  %4184 = vmatpush1.msra.mxu0 %v3623
  %4185 = vmatprep.subr.mxu0 0.0
  %4186 = vmatpush1.msra.mxu0 %v3617
  %4187 = vmatprep.subr.mxu0 0.0
  %4188 = vmatpush1.msra.mxu0 %v3611
  %4189 = vmatprep.subr.mxu0 0.0
  %4190 = vmatpush1.msra.mxu0 %v3605
  %4191 = vmatprep.subr.mxu0 0.0
  %4192 = vmatpush1.msra.mxu0 %v3599
  %4193 = vmatprep.subr.mxu0 0.0
  %4194 = vmatpush1.msra.mxu0 %v3593
  %4195 = vmatprep.subr.mxu0 0.0
  %4196 = vmatpush1.msra.mxu0 %v3587
  %4197 = vmatprep.subr.mxu0 0.0
  %4198 = vmatpush1.msra.mxu0 %v3581
  %4199 = vmatprep.subr.mxu0 0.0
  %4200 = vmatpush1.msra.mxu0 %v3575
  %4201 = vmatprep.subr.mxu0 0.0
  %4202 = vmatpush1.msra.mxu0 %v3569
  %4203 = vmatprep.subr.mxu0 0.0
  %4204 = vmatpush1.msra.mxu0 %v3563
  %4205 = vmatprep.subr.mxu0 0.0
  %4206 = vmatpush1.msra.mxu0 %v3557
  %4207 = vmatprep.subr.mxu0 0.0
  %4208 = vmatpush1.msra.mxu0 %v3551
  %4209 = vmatprep.subr.mxu0 0.0
  %4210 = vmatpush1.msra.mxu0 %v3545
  %4211 = vmatprep.subr.mxu0 0.0
  %4212 = vmatpush1.msra.mxu0 %v3539
  %4213 = vmatprep.subr.mxu0 0.0
  %4214 = vmatpush2.msra.mxu0 0.0
  %4215 = vmatprep.subr.mxu0 0.0
  %4216 = vmatpush2.msra.mxu0 0.0
  %4217 = vmatprep.subr.mxu0 0.0
  %4218 = vmatpush2.msra.mxu0 0.0
  %4219 = vmatprep.subr.mxu0 0.0
  %4220 = vmatpush2.msra.mxu0 0.0
  %4221 = vmatprep.subr.mxu0 0.0
  %4222 = vmatpush2.msra.mxu0 0.0
  %4223 = vmatprep.subr.mxu0 0.0
  %4224 = vmatpush2.msra.mxu0 0.0
  %4225 = vmatprep.subr.mxu0 0.0
  %4226 = vmatpush2.msra.mxu0 0.0
  %4227 = vmatprep.subr.mxu0 0.0
  %4228 = vmatpush2.msra.mxu0 0.0
  %4229 = vmatprep.subr.mxu0 0.0
  %4230 = vmatpush2.msra.mxu0 0.0
  %4231 = vmatprep.subr.mxu0 0.0
  %4232 = vmatpush2.msra.mxu0 0.0
  %4233 = vmatprep.subr.mxu0 0.0
  %4234 = vmatpush2.msra.mxu0 0.0
  %4235 = vmatprep.subr.mxu0 0.0
  %4236 = vmatpush2.msra.mxu0 0.0
  %4237 = vmatprep.subr.mxu0 0.0
  %4238 = vmatpush2.msra.mxu0 0.0
  %4239 = vmatprep.subr.mxu0 0.0
  %4240 = vmatpush2.msra.mxu0 0.0
  %4241 = vmatprep.subr.mxu0 0.0
  %4242 = vmatpush2.msra.mxu0 0.0
  %4243 = vmatprep.subr.mxu0 0.0
  %4244 = vmatpush2.msra.mxu0 0.0
  %4245 = vmatprep.mubr.f32.mxu0 0.0
  %4246 = vmatmul.mubr.f32.gmra.mxu0 %v3939
  %v4247 = vpop.f32.mrf.mxu0
  %v4248 = vadd.f32 %v4103, %v4247
  %v4249 = vpop.f32.mrf.mxu0
  %4250 = vmatprep.mubr.f32.mxu0 0.0
  %4251 = vmatmul.mubr.f32.gmra.mxu0 %v3940
  %v4252 = vpop.f32.mrf.mxu0
  %v4253 = vadd.f32 %v4108, %v4252
  %v4254 = vpop.f32.mrf.mxu0
  %4255 = vmatprep.mubr.f32.mxu0 0.0
  %4256 = vmatmul.mubr.f32.gmra.mxu0 %v3941
  %v4257 = vpop.f32.mrf.mxu0
  %v4258 = vadd.f32 %v4113, %v4257
  %v4259 = vpop.f32.mrf.mxu0
  %4260 = vmatprep.mubr.f32.mxu0 0.0
  %4261 = vmatmul.mubr.f32.gmra.mxu0 %v3942
  %v4262 = vpop.f32.mrf.mxu0
  %v4263 = vadd.f32 %v4118, %v4262
  %v4264 = vpop.f32.mrf.mxu0
  %4265 = vmatprep.mubr.f32.mxu0 0.0
  %4266 = vmatmul.mubr.f32.gmra.mxu0 %v3943
  %v4267 = vpop.f32.mrf.mxu0
  %v4268 = vadd.f32 %v4123, %v4267
  %v4269 = vpop.f32.mrf.mxu0
  %4270 = vmatprep.mubr.f32.mxu0 0.0
  %4271 = vmatmul.mubr.f32.gmra.mxu0 %v3944
  %v4272 = vpop.f32.mrf.mxu0
  %v4273 = vadd.f32 %v4128, %v4272
  %v4274 = vpop.f32.mrf.mxu0
  %4275 = vmatprep.mubr.f32.mxu0 0.0
  %4276 = vmatmul.mubr.f32.gmra.mxu0 %v3945
  %v4277 = vpop.f32.mrf.mxu0
  %v4278 = vadd.f32 %v4133, %v4277
  %v4279 = vpop.f32.mrf.mxu0
  %4280 = vmatprep.mubr.f32.mxu0 0.0
  %4281 = vmatmul.mubr.f32.gmra.mxu0 %v3946
  %v4282 = vpop.f32.mrf.mxu0
  %v4283 = vadd.f32 %v4138, %v4282
  %v4284 = vpop.f32.mrf.mxu0
  %4285 = vmatprep.mubr.f32.mxu0 0.0
  %4286 = vmatmul.mubr.f32.gmra.mxu0 %v3947
  %v4287 = vpop.f32.mrf.mxu0
  %v4288 = vadd.f32 %v4143, %v4287
  %v4289 = vpop.f32.mrf.mxu0
  %4290 = vmatprep.mubr.f32.mxu0 0.0
  %4291 = vmatmul.mubr.f32.gmra.mxu0 %v3948
  %v4292 = vpop.f32.mrf.mxu0
  %v4293 = vadd.f32 %v4148, %v4292
  %v4294 = vpop.f32.mrf.mxu0
  %4295 = vmatprep.mubr.f32.mxu0 0.0
  %4296 = vmatmul.mubr.f32.gmra.mxu0 %v3949
  %v4297 = vpop.f32.mrf.mxu0
  %v4298 = vadd.f32 %v4153, %v4297
  %v4299 = vpop.f32.mrf.mxu0
  %4300 = vmatprep.mubr.f32.mxu0 0.0
  %4301 = vmatmul.mubr.f32.gmra.mxu0 %v3950
  %v4302 = vpop.f32.mrf.mxu0
  %v4303 = vadd.f32 %v4158, %v4302
  %v4304 = vpop.f32.mrf.mxu0
  %4305 = vmatprep.mubr.f32.mxu0 0.0
  %4306 = vmatmul.mubr.f32.gmra.mxu0 %v3951
  %v4307 = vpop.f32.mrf.mxu0
  %v4308 = vadd.f32 %v4163, %v4307
  %v4309 = vpop.f32.mrf.mxu0
  %4310 = vmatprep.mubr.f32.mxu0 0.0
  %4311 = vmatmul.mubr.f32.gmra.mxu0 %v3952
  %v4312 = vpop.f32.mrf.mxu0
  %v4313 = vadd.f32 %v4168, %v4312
  %v4314 = vpop.f32.mrf.mxu0
  %4315 = vmatprep.mubr.f32.mxu0 0.0
  %4316 = vmatmul.mubr.f32.gmra.mxu0 %v3953
  %v4317 = vpop.f32.mrf.mxu0
  %v4318 = vadd.f32 %v4173, %v4317
  %v4319 = vpop.f32.mrf.mxu0
  %4320 = vmatprep.mubr.f32.mxu0 0.0
  %4321 = vmatmul.mubr.f32.gmra.mxu0 %v3954
  %v4322 = vpop.f32.mrf.mxu0
  %v4323 = vadd.f32 %v4178, %v4322
  %v4324 = vpop.f32.mrf.mxu0
  %4325 = vdwg.mxu0
  %s4326 = scalar_lea.vmem %s9, 256
  %v4327 = vld [vmem:[%s4326] sm:$0xff]
  %v4328 = vld [vmem:[%s4326 + $0x8] sm:$0xff]
  %v4329 = vld [vmem:[%s4326 + $0x10] sm:$0xff]
  %v4330 = vld [vmem:[%s4326 + $0x18] sm:$0xff]
  %v4331 = vld [vmem:[%s4326 + $0x20] sm:$0xff]
  %v4332 = vld [vmem:[%s4326 + $0x28] sm:$0xff]
  %v4333 = vld [vmem:[%s4326 + $0x30] sm:$0xff]
  %v4334 = vld [vmem:[%s4326 + $0x38] sm:$0xff]
  %v4335 = vld [vmem:[%s4326 + $0x40] sm:$0xff]
  %v4336 = vld [vmem:[%s4326 + $0x48] sm:$0xff]
  %v4337 = vld [vmem:[%s4326 + $0x50] sm:$0xff]
  %v4338 = vld [vmem:[%s4326 + $0x58] sm:$0xff]
  %v4339 = vld [vmem:[%s4326 + $0x60] sm:$0xff]
  %v4340 = vld [vmem:[%s4326 + $0x68] sm:$0xff]
  %v4341 = vld [vmem:[%s4326 + $0x70] sm:$0xff]
  %v4342 = vld [vmem:[%s4326 + $0x78] sm:$0xff]
  %4343 = vmatprep.subr.mxu0 0.0
  %4344 = vmatpush1.msra.mxu0 %v3631
  %4345 = vmatprep.subr.mxu0 0.0
  %4346 = vmatpush1.msra.mxu0 %v3625
  %4347 = vmatprep.subr.mxu0 0.0
  %4348 = vmatpush1.msra.mxu0 %v3619
  %4349 = vmatprep.subr.mxu0 0.0
  %4350 = vmatpush1.msra.mxu0 %v3613
  %4351 = vmatprep.subr.mxu0 0.0
  %4352 = vmatpush1.msra.mxu0 %v3607
  %4353 = vmatprep.subr.mxu0 0.0
  %4354 = vmatpush1.msra.mxu0 %v3601
  %4355 = vmatprep.subr.mxu0 0.0
  %4356 = vmatpush1.msra.mxu0 %v3595
  %4357 = vmatprep.subr.mxu0 0.0
  %4358 = vmatpush1.msra.mxu0 %v3589
  %4359 = vmatprep.subr.mxu0 0.0
  %4360 = vmatpush1.msra.mxu0 %v3583
  %4361 = vmatprep.subr.mxu0 0.0
  %4362 = vmatpush1.msra.mxu0 %v3577
  %4363 = vmatprep.subr.mxu0 0.0
  %4364 = vmatpush1.msra.mxu0 %v3571
  %4365 = vmatprep.subr.mxu0 0.0
  %4366 = vmatpush1.msra.mxu0 %v3565
  %4367 = vmatprep.subr.mxu0 0.0
  %4368 = vmatpush1.msra.mxu0 %v3559
  %4369 = vmatprep.subr.mxu0 0.0
  %4370 = vmatpush1.msra.mxu0 %v3553
  %4371 = vmatprep.subr.mxu0 0.0
  %4372 = vmatpush1.msra.mxu0 %v3547
  %4373 = vmatprep.subr.mxu0 0.0
  %4374 = vmatpush1.msra.mxu0 %v3541
  %4375 = vmatprep.subr.mxu0 0.0
  %4376 = vmatpush2.msra.mxu0 0.0
  %4377 = vmatprep.subr.mxu0 0.0
  %4378 = vmatpush2.msra.mxu0 0.0
  %4379 = vmatprep.subr.mxu0 0.0
  %4380 = vmatpush2.msra.mxu0 0.0
  %4381 = vmatprep.subr.mxu0 0.0
  %4382 = vmatpush2.msra.mxu0 0.0
  %4383 = vmatprep.subr.mxu0 0.0
  %4384 = vmatpush2.msra.mxu0 0.0
  %4385 = vmatprep.subr.mxu0 0.0
  %4386 = vmatpush2.msra.mxu0 0.0
  %4387 = vmatprep.subr.mxu0 0.0
  %4388 = vmatpush2.msra.mxu0 0.0
  %4389 = vmatprep.subr.mxu0 0.0
  %4390 = vmatpush2.msra.mxu0 0.0
  %4391 = vmatprep.subr.mxu0 0.0
  %4392 = vmatpush2.msra.mxu0 0.0
  %4393 = vmatprep.subr.mxu0 0.0
  %4394 = vmatpush2.msra.mxu0 0.0
  %4395 = vmatprep.subr.mxu0 0.0
  %4396 = vmatpush2.msra.mxu0 0.0
  %4397 = vmatprep.subr.mxu0 0.0
  %4398 = vmatpush2.msra.mxu0 0.0
  %4399 = vmatprep.subr.mxu0 0.0
  %4400 = vmatpush2.msra.mxu0 0.0
  %4401 = vmatprep.subr.mxu0 0.0
  %4402 = vmatpush2.msra.mxu0 0.0
  %4403 = vmatprep.subr.mxu0 0.0
  %4404 = vmatpush2.msra.mxu0 0.0
  %4405 = vmatprep.subr.mxu0 0.0
  %4406 = vmatpush2.msra.mxu0 0.0
  %4407 = vmatprep.mubr.f32.mxu0 0.0
  %4408 = vmatmul.mubr.f32.gmra.mxu0 %v4327
  %v4409 = vpop.f32.mrf.mxu0
  %v4410 = vadd.f32 0.0, %v4409
  %v4411 = vpop.f32.mrf.mxu0
  %4412 = vmatprep.mubr.f32.mxu0 0.0
  %4413 = vmatmul.mubr.f32.gmra.mxu0 %v4328
  %v4414 = vpop.f32.mrf.mxu0
  %v4415 = vadd.f32 0.0, %v4414
  %v4416 = vpop.f32.mrf.mxu0
  %4417 = vmatprep.mubr.f32.mxu0 0.0
  %4418 = vmatmul.mubr.f32.gmra.mxu0 %v4329
  %v4419 = vpop.f32.mrf.mxu0
  %v4420 = vadd.f32 0.0, %v4419
  %v4421 = vpop.f32.mrf.mxu0
  %4422 = vmatprep.mubr.f32.mxu0 0.0
  %4423 = vmatmul.mubr.f32.gmra.mxu0 %v4330
  %v4424 = vpop.f32.mrf.mxu0
  %v4425 = vadd.f32 0.0, %v4424
  %v4426 = vpop.f32.mrf.mxu0
  %4427 = vmatprep.mubr.f32.mxu0 0.0
  %4428 = vmatmul.mubr.f32.gmra.mxu0 %v4331
  %v4429 = vpop.f32.mrf.mxu0
  %v4430 = vadd.f32 0.0, %v4429
  %v4431 = vpop.f32.mrf.mxu0
  %4432 = vmatprep.mubr.f32.mxu0 0.0
  %4433 = vmatmul.mubr.f32.gmra.mxu0 %v4332
  %v4434 = vpop.f32.mrf.mxu0
  %v4435 = vadd.f32 0.0, %v4434
  %v4436 = vpop.f32.mrf.mxu0
  %4437 = vmatprep.mubr.f32.mxu0 0.0
  %4438 = vmatmul.mubr.f32.gmra.mxu0 %v4333
  %v4439 = vpop.f32.mrf.mxu0
  %v4440 = vadd.f32 0.0, %v4439
  %v4441 = vpop.f32.mrf.mxu0
  %4442 = vmatprep.mubr.f32.mxu0 0.0
  %4443 = vmatmul.mubr.f32.gmra.mxu0 %v4334
  %v4444 = vpop.f32.mrf.mxu0
  %v4445 = vadd.f32 0.0, %v4444
  %v4446 = vpop.f32.mrf.mxu0
  %4447 = vmatprep.mubr.f32.mxu0 0.0
  %4448 = vmatmul.mubr.f32.gmra.mxu0 %v4335
  %v4449 = vpop.f32.mrf.mxu0
  %v4450 = vadd.f32 0.0, %v4449
  %v4451 = vpop.f32.mrf.mxu0
  %4452 = vmatprep.mubr.f32.mxu0 0.0
  %4453 = vmatmul.mubr.f32.gmra.mxu0 %v4336
  %v4454 = vpop.f32.mrf.mxu0
  %v4455 = vadd.f32 0.0, %v4454
  %v4456 = vpop.f32.mrf.mxu0
  %4457 = vmatprep.mubr.f32.mxu0 0.0
  %4458 = vmatmul.mubr.f32.gmra.mxu0 %v4337
  %v4459 = vpop.f32.mrf.mxu0
  %v4460 = vadd.f32 0.0, %v4459
  %v4461 = vpop.f32.mrf.mxu0
  %4462 = vmatprep.mubr.f32.mxu0 0.0
  %4463 = vmatmul.mubr.f32.gmra.mxu0 %v4338
  %v4464 = vpop.f32.mrf.mxu0
  %v4465 = vadd.f32 0.0, %v4464
  %v4466 = vpop.f32.mrf.mxu0
  %4467 = vmatprep.mubr.f32.mxu0 0.0
  %4468 = vmatmul.mubr.f32.gmra.mxu0 %v4339
  %v4469 = vpop.f32.mrf.mxu0
  %v4470 = vadd.f32 0.0, %v4469
  %v4471 = vpop.f32.mrf.mxu0
  %4472 = vmatprep.mubr.f32.mxu0 0.0
  %4473 = vmatmul.mubr.f32.gmra.mxu0 %v4340
  %v4474 = vpop.f32.mrf.mxu0
  %v4475 = vadd.f32 0.0, %v4474
  %v4476 = vpop.f32.mrf.mxu0
  %4477 = vmatprep.mubr.f32.mxu0 0.0
  %4478 = vmatmul.mubr.f32.gmra.mxu0 %v4341
  %v4479 = vpop.f32.mrf.mxu0
  %v4480 = vadd.f32 0.0, %v4479
  %v4481 = vpop.f32.mrf.mxu0
  %4482 = vmatprep.mubr.f32.mxu0 0.0
  %4483 = vmatmul.mubr.f32.gmra.mxu0 %v4342
  %v4484 = vpop.f32.mrf.mxu0
  %v4485 = vadd.f32 0.0, %v4484
  %v4486 = vpop.f32.mrf.mxu0
  %4487 = vdwg.mxu0
  %v4488 = vadd.f32 %v4248, %v4410
  %v4489 = vadd.f32 %v4253, %v4415
  %v4490 = vadd.f32 %v4258, %v4420
  %v4491 = vadd.f32 %v4263, %v4425
  %v4492 = vadd.f32 %v4268, %v4430
  %v4493 = vadd.f32 %v4273, %v4435
  %v4494 = vadd.f32 %v4278, %v4440
  %v4495 = vadd.f32 %v4283, %v4445
  %v4496 = vadd.f32 %v4288, %v4450
  %v4497 = vadd.f32 %v4293, %v4455
  %v4498 = vadd.f32 %v4298, %v4460
  %v4499 = vadd.f32 %v4303, %v4465
  %v4500 = vadd.f32 %v4308, %v4470
  %v4501 = vadd.f32 %v4313, %v4475
  %v4502 = vadd.f32 %v4318, %v4480
  %v4503 = vadd.f32 %v4323, %v4485
  %s4504 = scalar_lea.vmem %s9, 384
  %v4505 = vld [vmem:[%s4504] sm:$0xff]
  %v4506 = vld [vmem:[%s4504 + $0x8] sm:$0xff]
  %v4507 = vld [vmem:[%s4504 + $0x10] sm:$0xff]
  %v4508 = vld [vmem:[%s4504 + $0x18] sm:$0xff]
  %v4509 = vld [vmem:[%s4504 + $0x20] sm:$0xff]
  %v4510 = vld [vmem:[%s4504 + $0x28] sm:$0xff]
  %v4511 = vld [vmem:[%s4504 + $0x30] sm:$0xff]
  %v4512 = vld [vmem:[%s4504 + $0x38] sm:$0xff]
  %v4513 = vld [vmem:[%s4504 + $0x40] sm:$0xff]
  %v4514 = vld [vmem:[%s4504 + $0x48] sm:$0xff]
  %v4515 = vld [vmem:[%s4504 + $0x50] sm:$0xff]
  %v4516 = vld [vmem:[%s4504 + $0x58] sm:$0xff]
  %v4517 = vld [vmem:[%s4504 + $0x60] sm:$0xff]
  %v4518 = vld [vmem:[%s4504 + $0x68] sm:$0xff]
  %v4519 = vld [vmem:[%s4504 + $0x70] sm:$0xff]
  %v4520 = vld [vmem:[%s4504 + $0x78] sm:$0xff]
  %4537 = vrot.lane.b32.xlu0 %v3541, 64
  %v4538 = vpop.permute.xlu0 %4537
  %4539 = vrot.lane.b32.xlu0 %v3547, 64
  %v4540 = vpop.permute.xlu0 %4539
  %4541 = vrot.lane.b32.xlu0 %v3553, 64
  %v4542 = vpop.permute.xlu0 %4541
  %4543 = vrot.lane.b32.xlu0 %v3559, 64
  %v4544 = vpop.permute.xlu0 %4543
  %4545 = vrot.lane.b32.xlu0 %v3565, 64
  %v4546 = vpop.permute.xlu0 %4545
  %4547 = vrot.lane.b32.xlu0 %v3571, 64
  %v4548 = vpop.permute.xlu0 %4547
  %4549 = vrot.lane.b32.xlu0 %v3577, 64
  %v4550 = vpop.permute.xlu0 %4549
  %4551 = vrot.lane.b32.xlu0 %v3583, 64
  %v4552 = vpop.permute.xlu0 %4551
  %4553 = vrot.lane.b32.xlu0 %v3589, 64
  %v4554 = vpop.permute.xlu0 %4553
  %4555 = vrot.lane.b32.xlu0 %v3595, 64
  %v4556 = vpop.permute.xlu0 %4555
  %4557 = vrot.lane.b32.xlu0 %v3601, 64
  %v4558 = vpop.permute.xlu0 %4557
  %4559 = vrot.lane.b32.xlu0 %v3607, 64
  %v4560 = vpop.permute.xlu0 %4559
  %4561 = vrot.lane.b32.xlu0 %v3613, 64
  %v4562 = vpop.permute.xlu0 %4561
  %4563 = vrot.lane.b32.xlu0 %v3619, 64
  %v4564 = vpop.permute.xlu0 %4563
  %4565 = vrot.lane.b32.xlu0 %v3625, 64
  %v4566 = vpop.permute.xlu0 %4565
  %4567 = vrot.lane.b32.xlu0 %v3631, 64
  %v4568 = vpop.permute.xlu0 %4567
  %4585 = vmatprep.subr.mxu0 0.0
  %4586 = vmatpush1.msra.mxu0 %v4568
  %4587 = vmatprep.subr.mxu0 0.0
  %4588 = vmatpush1.msra.mxu0 %v4566
  %4589 = vmatprep.subr.mxu0 0.0
  %4590 = vmatpush1.msra.mxu0 %v4564
  %4591 = vmatprep.subr.mxu0 0.0
  %4592 = vmatpush1.msra.mxu0 %v4562
  %4593 = vmatprep.subr.mxu0 0.0
  %4594 = vmatpush1.msra.mxu0 %v4560
  %4595 = vmatprep.subr.mxu0 0.0
  %4596 = vmatpush1.msra.mxu0 %v4558
  %4597 = vmatprep.subr.mxu0 0.0
  %4598 = vmatpush1.msra.mxu0 %v4556
  %4599 = vmatprep.subr.mxu0 0.0
  %4600 = vmatpush1.msra.mxu0 %v4554
  %4601 = vmatprep.subr.mxu0 0.0
  %4602 = vmatpush1.msra.mxu0 %v4552
  %4603 = vmatprep.subr.mxu0 0.0
  %4604 = vmatpush1.msra.mxu0 %v4550
  %4605 = vmatprep.subr.mxu0 0.0
  %4606 = vmatpush1.msra.mxu0 %v4548
  %4607 = vmatprep.subr.mxu0 0.0
  %4608 = vmatpush1.msra.mxu0 %v4546
  %4609 = vmatprep.subr.mxu0 0.0
  %4610 = vmatpush1.msra.mxu0 %v4544
  %4611 = vmatprep.subr.mxu0 0.0
  %4612 = vmatpush1.msra.mxu0 %v4542
  %4613 = vmatprep.subr.mxu0 0.0
  %4614 = vmatpush1.msra.mxu0 %v4540
  %4615 = vmatprep.subr.mxu0 0.0
  %4616 = vmatpush1.msra.mxu0 %v4538
  %4617 = vmatprep.subr.mxu0 0.0
  %4618 = vmatpush2.msra.mxu0 0.0
  %4619 = vmatprep.subr.mxu0 0.0
  %4620 = vmatpush2.msra.mxu0 0.0
  %4621 = vmatprep.subr.mxu0 0.0
  %4622 = vmatpush2.msra.mxu0 0.0
  %4623 = vmatprep.subr.mxu0 0.0
  %4624 = vmatpush2.msra.mxu0 0.0
  %4625 = vmatprep.subr.mxu0 0.0
  %4626 = vmatpush2.msra.mxu0 0.0
  %4627 = vmatprep.subr.mxu0 0.0
  %4628 = vmatpush2.msra.mxu0 0.0
  %4629 = vmatprep.subr.mxu0 0.0
  %4630 = vmatpush2.msra.mxu0 0.0
  %4631 = vmatprep.subr.mxu0 0.0
  %4632 = vmatpush2.msra.mxu0 0.0
  %4633 = vmatprep.subr.mxu0 0.0
  %4634 = vmatpush2.msra.mxu0 0.0
  %4635 = vmatprep.subr.mxu0 0.0
  %4636 = vmatpush2.msra.mxu0 0.0
  %4637 = vmatprep.subr.mxu0 0.0
  %4638 = vmatpush2.msra.mxu0 0.0
  %4639 = vmatprep.subr.mxu0 0.0
  %4640 = vmatpush2.msra.mxu0 0.0
  %4641 = vmatprep.subr.mxu0 0.0
  %4642 = vmatpush2.msra.mxu0 0.0
  %4643 = vmatprep.subr.mxu0 0.0
  %4644 = vmatpush2.msra.mxu0 0.0
  %4645 = vmatprep.subr.mxu0 0.0
  %4646 = vmatpush2.msra.mxu0 0.0
  %4647 = vmatprep.subr.mxu0 0.0
  %4648 = vmatpush2.msra.mxu0 0.0
  %4649 = vmatprep.mubr.f32.mxu0 0.0
  %4650 = vmatmul.mubr.f32.gmra.mxu0 %v4505
  %v4651 = vpop.f32.mrf.mxu0
  %v4652 = vadd.f32 0.0, %v4651
  %v4653 = vpop.f32.mrf.mxu0
  %4654 = vmatprep.mubr.f32.mxu0 0.0
  %4655 = vmatmul.mubr.f32.gmra.mxu0 %v4506
  %v4656 = vpop.f32.mrf.mxu0
  %v4657 = vadd.f32 0.0, %v4656
  %v4658 = vpop.f32.mrf.mxu0
  %4659 = vmatprep.mubr.f32.mxu0 0.0
  %4660 = vmatmul.mubr.f32.gmra.mxu0 %v4507
  %v4661 = vpop.f32.mrf.mxu0
  %v4662 = vadd.f32 0.0, %v4661
  %v4663 = vpop.f32.mrf.mxu0
  %4664 = vmatprep.mubr.f32.mxu0 0.0
  %4665 = vmatmul.mubr.f32.gmra.mxu0 %v4508
  %v4666 = vpop.f32.mrf.mxu0
  %v4667 = vadd.f32 0.0, %v4666
  %v4668 = vpop.f32.mrf.mxu0
  %4669 = vmatprep.mubr.f32.mxu0 0.0
  %4670 = vmatmul.mubr.f32.gmra.mxu0 %v4509
  %v4671 = vpop.f32.mrf.mxu0
  %v4672 = vadd.f32 0.0, %v4671
  %v4673 = vpop.f32.mrf.mxu0
  %4674 = vmatprep.mubr.f32.mxu0 0.0
  %4675 = vmatmul.mubr.f32.gmra.mxu0 %v4510
  %v4676 = vpop.f32.mrf.mxu0
  %v4677 = vadd.f32 0.0, %v4676
  %v4678 = vpop.f32.mrf.mxu0
  %4679 = vmatprep.mubr.f32.mxu0 0.0
  %4680 = vmatmul.mubr.f32.gmra.mxu0 %v4511
  %v4681 = vpop.f32.mrf.mxu0
  %v4682 = vadd.f32 0.0, %v4681
  %v4683 = vpop.f32.mrf.mxu0
  %4684 = vmatprep.mubr.f32.mxu0 0.0
  %4685 = vmatmul.mubr.f32.gmra.mxu0 %v4512
  %v4686 = vpop.f32.mrf.mxu0
  %v4687 = vadd.f32 0.0, %v4686
  %v4688 = vpop.f32.mrf.mxu0
  %4689 = vmatprep.mubr.f32.mxu0 0.0
  %4690 = vmatmul.mubr.f32.gmra.mxu0 %v4513
  %v4691 = vpop.f32.mrf.mxu0
  %v4692 = vadd.f32 0.0, %v4691
  %v4693 = vpop.f32.mrf.mxu0
  %4694 = vmatprep.mubr.f32.mxu0 0.0
  %4695 = vmatmul.mubr.f32.gmra.mxu0 %v4514
  %v4696 = vpop.f32.mrf.mxu0
  %v4697 = vadd.f32 0.0, %v4696
  %v4698 = vpop.f32.mrf.mxu0
  %4699 = vmatprep.mubr.f32.mxu0 0.0
  %4700 = vmatmul.mubr.f32.gmra.mxu0 %v4515
  %v4701 = vpop.f32.mrf.mxu0
  %v4702 = vadd.f32 0.0, %v4701
  %v4703 = vpop.f32.mrf.mxu0
  %4704 = vmatprep.mubr.f32.mxu0 0.0
  %4705 = vmatmul.mubr.f32.gmra.mxu0 %v4516
  %v4706 = vpop.f32.mrf.mxu0
  %v4707 = vadd.f32 0.0, %v4706
  %v4708 = vpop.f32.mrf.mxu0
  %4709 = vmatprep.mubr.f32.mxu0 0.0
  %4710 = vmatmul.mubr.f32.gmra.mxu0 %v4517
  %v4711 = vpop.f32.mrf.mxu0
  %v4712 = vadd.f32 0.0, %v4711
  %v4713 = vpop.f32.mrf.mxu0
  %4714 = vmatprep.mubr.f32.mxu0 0.0
  %4715 = vmatmul.mubr.f32.gmra.mxu0 %v4518
  %v4716 = vpop.f32.mrf.mxu0
  %v4717 = vadd.f32 0.0, %v4716
  %v4718 = vpop.f32.mrf.mxu0
  %4719 = vmatprep.mubr.f32.mxu0 0.0
  %4720 = vmatmul.mubr.f32.gmra.mxu0 %v4519
  %v4721 = vpop.f32.mrf.mxu0
  %v4722 = vadd.f32 0.0, %v4721
  %v4723 = vpop.f32.mrf.mxu0
  %4724 = vmatprep.mubr.f32.mxu0 0.0
  %4725 = vmatmul.mubr.f32.gmra.mxu0 %v4520
  %v4726 = vpop.f32.mrf.mxu0
  %v4727 = vadd.f32 0.0, %v4726
  %v4728 = vpop.f32.mrf.mxu0
  %4729 = vdwg.mxu0
  %v4730 = vadd.f32 %v4488, %v4652
  %v4731 = vadd.f32 %v4489, %v4657
  %v4732 = vadd.f32 %v4490, %v4662
  %v4733 = vadd.f32 %v4491, %v4667
  %v4734 = vadd.f32 %v4492, %v4672
  %v4735 = vadd.f32 %v4493, %v4677
  %v4736 = vadd.f32 %v4494, %v4682
  %v4737 = vadd.f32 %v4495, %v4687
  %v4738 = vadd.f32 %v4496, %v4692
  %v4739 = vadd.f32 %v4497, %v4697
  %v4740 = vadd.f32 %v4498, %v4702
  %v4741 = vadd.f32 %v4499, %v4707
  %v4742 = vadd.f32 %v4500, %v4712
  %v4743 = vadd.f32 %v4501, %v4717
  %v4744 = vadd.f32 %v4502, %v4722
  %v4745 = vadd.f32 %v4503, %v4727
  %s4746 = scalar_lea.vmem %s9, 512
  %v4747 = vld [vmem:[%s4746] sm:$0xff]
  %v4748 = vld [vmem:[%s4746 + $0x8] sm:$0xff]
  %v4749 = vld [vmem:[%s4746 + $0x10] sm:$0xff]
  %v4750 = vld [vmem:[%s4746 + $0x18] sm:$0xff]
  %v4751 = vld [vmem:[%s4746 + $0x20] sm:$0xff]
  %v4752 = vld [vmem:[%s4746 + $0x28] sm:$0xff]
  %v4753 = vld [vmem:[%s4746 + $0x30] sm:$0xff]
  %v4754 = vld [vmem:[%s4746 + $0x38] sm:$0xff]
  %v4755 = vld [vmem:[%s4746 + $0x40] sm:$0xff]
  %v4756 = vld [vmem:[%s4746 + $0x48] sm:$0xff]
  %v4757 = vld [vmem:[%s4746 + $0x50] sm:$0xff]
  %v4758 = vld [vmem:[%s4746 + $0x58] sm:$0xff]
  %v4759 = vld [vmem:[%s4746 + $0x60] sm:$0xff]
  %v4760 = vld [vmem:[%s4746 + $0x68] sm:$0xff]
  %v4761 = vld [vmem:[%s4746 + $0x70] sm:$0xff]
  %v4762 = vld [vmem:[%s4746 + $0x78] sm:$0xff]
  %4763 = vmatprep.subr.mxu0 0.0
  %4764 = vmatpush1.msra.mxu0 %v3790
  %4765 = vmatprep.subr.mxu0 0.0
  %4766 = vmatpush1.msra.mxu0 %v3784
  %4767 = vmatprep.subr.mxu0 0.0
  %4768 = vmatpush1.msra.mxu0 %v3778
  %4769 = vmatprep.subr.mxu0 0.0
  %4770 = vmatpush1.msra.mxu0 %v3772
  %4771 = vmatprep.subr.mxu0 0.0
  %4772 = vmatpush1.msra.mxu0 %v3766
  %4773 = vmatprep.subr.mxu0 0.0
  %4774 = vmatpush1.msra.mxu0 %v3760
  %4775 = vmatprep.subr.mxu0 0.0
  %4776 = vmatpush1.msra.mxu0 %v3754
  %4777 = vmatprep.subr.mxu0 0.0
  %4778 = vmatpush1.msra.mxu0 %v3748
  %4779 = vmatprep.subr.mxu0 0.0
  %4780 = vmatpush1.msra.mxu0 %v3742
  %4781 = vmatprep.subr.mxu0 0.0
  %4782 = vmatpush1.msra.mxu0 %v3736
  %4783 = vmatprep.subr.mxu0 0.0
  %4784 = vmatpush1.msra.mxu0 %v3730
  %4785 = vmatprep.subr.mxu0 0.0
  %4786 = vmatpush1.msra.mxu0 %v3724
  %4787 = vmatprep.subr.mxu0 0.0
  %4788 = vmatpush1.msra.mxu0 %v3718
  %4789 = vmatprep.subr.mxu0 0.0
  %4790 = vmatpush1.msra.mxu0 %v3712
  %4791 = vmatprep.subr.mxu0 0.0
  %4792 = vmatpush1.msra.mxu0 %v3706
  %4793 = vmatprep.subr.mxu0 0.0
  %4794 = vmatpush1.msra.mxu0 %v3700
  %4795 = vmatprep.subr.mxu0 0.0
  %4796 = vmatpush2.msra.mxu0 0.0
  %4797 = vmatprep.subr.mxu0 0.0
  %4798 = vmatpush2.msra.mxu0 0.0
  %4799 = vmatprep.subr.mxu0 0.0
  %4800 = vmatpush2.msra.mxu0 0.0
  %4801 = vmatprep.subr.mxu0 0.0
  %4802 = vmatpush2.msra.mxu0 0.0
  %4803 = vmatprep.subr.mxu0 0.0
  %4804 = vmatpush2.msra.mxu0 0.0
  %4805 = vmatprep.subr.mxu0 0.0
  %4806 = vmatpush2.msra.mxu0 0.0
  %4807 = vmatprep.subr.mxu0 0.0
  %4808 = vmatpush2.msra.mxu0 0.0
  %4809 = vmatprep.subr.mxu0 0.0
  %4810 = vmatpush2.msra.mxu0 0.0
  %4811 = vmatprep.subr.mxu0 0.0
  %4812 = vmatpush2.msra.mxu0 0.0
  %4813 = vmatprep.subr.mxu0 0.0
  %4814 = vmatpush2.msra.mxu0 0.0
  %4815 = vmatprep.subr.mxu0 0.0
  %4816 = vmatpush2.msra.mxu0 0.0
  %4817 = vmatprep.subr.mxu0 0.0
  %4818 = vmatpush2.msra.mxu0 0.0
  %4819 = vmatprep.subr.mxu0 0.0
  %4820 = vmatpush2.msra.mxu0 0.0
  %4821 = vmatprep.subr.mxu0 0.0
  %4822 = vmatpush2.msra.mxu0 0.0
  %4823 = vmatprep.subr.mxu0 0.0
  %4824 = vmatpush2.msra.mxu0 0.0
  %4825 = vmatprep.subr.mxu0 0.0
  %4826 = vmatpush2.msra.mxu0 0.0
  %4827 = vmatprep.mubr.f32.mxu0 0.0
  %4828 = vmatmul.mubr.f32.gmra.mxu0 %v4747
  %v4829 = vpop.f32.mrf.mxu0
  %v4830 = vadd.f32 0.0, %v4829
  %v4831 = vpop.f32.mrf.mxu0
  %4832 = vmatprep.mubr.f32.mxu0 0.0
  %4833 = vmatmul.mubr.f32.gmra.mxu0 %v4748
  %v4834 = vpop.f32.mrf.mxu0
  %v4835 = vadd.f32 0.0, %v4834
  %v4836 = vpop.f32.mrf.mxu0
  %4837 = vmatprep.mubr.f32.mxu0 0.0
  %4838 = vmatmul.mubr.f32.gmra.mxu0 %v4749
  %v4839 = vpop.f32.mrf.mxu0
  %v4840 = vadd.f32 0.0, %v4839
  %v4841 = vpop.f32.mrf.mxu0
  %4842 = vmatprep.mubr.f32.mxu0 0.0
  %4843 = vmatmul.mubr.f32.gmra.mxu0 %v4750
  %v4844 = vpop.f32.mrf.mxu0
  %v4845 = vadd.f32 0.0, %v4844
  %v4846 = vpop.f32.mrf.mxu0
  %4847 = vmatprep.mubr.f32.mxu0 0.0
  %4848 = vmatmul.mubr.f32.gmra.mxu0 %v4751
  %v4849 = vpop.f32.mrf.mxu0
  %v4850 = vadd.f32 0.0, %v4849
  %v4851 = vpop.f32.mrf.mxu0
  %4852 = vmatprep.mubr.f32.mxu0 0.0
  %4853 = vmatmul.mubr.f32.gmra.mxu0 %v4752
  %v4854 = vpop.f32.mrf.mxu0
  %v4855 = vadd.f32 0.0, %v4854
  %v4856 = vpop.f32.mrf.mxu0
  %4857 = vmatprep.mubr.f32.mxu0 0.0
  %4858 = vmatmul.mubr.f32.gmra.mxu0 %v4753
  %v4859 = vpop.f32.mrf.mxu0
  %v4860 = vadd.f32 0.0, %v4859
  %v4861 = vpop.f32.mrf.mxu0
  %4862 = vmatprep.mubr.f32.mxu0 0.0
  %4863 = vmatmul.mubr.f32.gmra.mxu0 %v4754
  %v4864 = vpop.f32.mrf.mxu0
  %v4865 = vadd.f32 0.0, %v4864
  %v4866 = vpop.f32.mrf.mxu0
  %4867 = vmatprep.mubr.f32.mxu0 0.0
  %4868 = vmatmul.mubr.f32.gmra.mxu0 %v4755
  %v4869 = vpop.f32.mrf.mxu0
  %v4870 = vadd.f32 0.0, %v4869
  %v4871 = vpop.f32.mrf.mxu0
  %4872 = vmatprep.mubr.f32.mxu0 0.0
  %4873 = vmatmul.mubr.f32.gmra.mxu0 %v4756
  %v4874 = vpop.f32.mrf.mxu0
  %v4875 = vadd.f32 0.0, %v4874
  %v4876 = vpop.f32.mrf.mxu0
  %4877 = vmatprep.mubr.f32.mxu0 0.0
  %4878 = vmatmul.mubr.f32.gmra.mxu0 %v4757
  %v4879 = vpop.f32.mrf.mxu0
  %v4880 = vadd.f32 0.0, %v4879
  %v4881 = vpop.f32.mrf.mxu0
  %4882 = vmatprep.mubr.f32.mxu0 0.0
  %4883 = vmatmul.mubr.f32.gmra.mxu0 %v4758
  %v4884 = vpop.f32.mrf.mxu0
  %v4885 = vadd.f32 0.0, %v4884
  %v4886 = vpop.f32.mrf.mxu0
  %4887 = vmatprep.mubr.f32.mxu0 0.0
  %4888 = vmatmul.mubr.f32.gmra.mxu0 %v4759
  %v4889 = vpop.f32.mrf.mxu0
  %v4890 = vadd.f32 0.0, %v4889
  %v4891 = vpop.f32.mrf.mxu0
  %4892 = vmatprep.mubr.f32.mxu0 0.0
  %4893 = vmatmul.mubr.f32.gmra.mxu0 %v4760
  %v4894 = vpop.f32.mrf.mxu0
  %v4895 = vadd.f32 0.0, %v4894
  %v4896 = vpop.f32.mrf.mxu0
  %4897 = vmatprep.mubr.f32.mxu0 0.0
  %4898 = vmatmul.mubr.f32.gmra.mxu0 %v4761
  %v4899 = vpop.f32.mrf.mxu0
  %v4900 = vadd.f32 0.0, %v4899
  %v4901 = vpop.f32.mrf.mxu0
  %4902 = vmatprep.mubr.f32.mxu0 0.0
  %4903 = vmatmul.mubr.f32.gmra.mxu0 %v4762
  %v4904 = vpop.f32.mrf.mxu0
  %v4905 = vadd.f32 0.0, %v4904
  %v4906 = vpop.f32.mrf.mxu0
  %4907 = vdwg.mxu0
  %v4908 = vadd.f32 %v4730, %v4830
  %v4909 = vadd.f32 %v4731, %v4835
  %v4910 = vadd.f32 %v4732, %v4840
  %v4911 = vadd.f32 %v4733, %v4845
  %v4912 = vadd.f32 %v4734, %v4850
  %v4913 = vadd.f32 %v4735, %v4855
  %v4914 = vadd.f32 %v4736, %v4860
  %v4915 = vadd.f32 %v4737, %v4865
  %v4916 = vadd.f32 %v4738, %v4870
  %v4917 = vadd.f32 %v4739, %v4875
  %v4918 = vadd.f32 %v4740, %v4880
  %v4919 = vadd.f32 %v4741, %v4885
  %v4920 = vadd.f32 %v4742, %v4890
  %v4921 = vadd.f32 %v4743, %v4895
  %v4922 = vadd.f32 %v4744, %v4900
  %v4923 = vadd.f32 %v4745, %v4905
  %s4924 = scalar_lea.vmem %s9, 640
  %v4925 = vld [vmem:[%s4924] sm:$0xff]
  %v4926 = vld [vmem:[%s4924 + $0x8] sm:$0xff]
  %v4927 = vld [vmem:[%s4924 + $0x10] sm:$0xff]
  %v4928 = vld [vmem:[%s4924 + $0x18] sm:$0xff]
  %v4929 = vld [vmem:[%s4924 + $0x20] sm:$0xff]
  %v4930 = vld [vmem:[%s4924 + $0x28] sm:$0xff]
  %v4931 = vld [vmem:[%s4924 + $0x30] sm:$0xff]
  %v4932 = vld [vmem:[%s4924 + $0x38] sm:$0xff]
  %v4933 = vld [vmem:[%s4924 + $0x40] sm:$0xff]
  %v4934 = vld [vmem:[%s4924 + $0x48] sm:$0xff]
  %v4935 = vld [vmem:[%s4924 + $0x50] sm:$0xff]
  %v4936 = vld [vmem:[%s4924 + $0x58] sm:$0xff]
  %v4937 = vld [vmem:[%s4924 + $0x60] sm:$0xff]
  %v4938 = vld [vmem:[%s4924 + $0x68] sm:$0xff]
  %v4939 = vld [vmem:[%s4924 + $0x70] sm:$0xff]
  %v4940 = vld [vmem:[%s4924 + $0x78] sm:$0xff]
  %4957 = vrot.lane.b32.xlu0 %v3700, 64
  %v4958 = vpop.permute.xlu0 %4957
  %4959 = vrot.lane.b32.xlu0 %v3706, 64
  %v4960 = vpop.permute.xlu0 %4959
  %4961 = vrot.lane.b32.xlu0 %v3712, 64
  %v4962 = vpop.permute.xlu0 %4961
  %4963 = vrot.lane.b32.xlu0 %v3718, 64
  %v4964 = vpop.permute.xlu0 %4963
  %4965 = vrot.lane.b32.xlu0 %v3724, 64
  %v4966 = vpop.permute.xlu0 %4965
  %4967 = vrot.lane.b32.xlu0 %v3730, 64
  %v4968 = vpop.permute.xlu0 %4967
  %4969 = vrot.lane.b32.xlu0 %v3736, 64
  %v4970 = vpop.permute.xlu0 %4969
  %4971 = vrot.lane.b32.xlu0 %v3742, 64
  %v4972 = vpop.permute.xlu0 %4971
  %4973 = vrot.lane.b32.xlu0 %v3748, 64
  %v4974 = vpop.permute.xlu0 %4973
  %4975 = vrot.lane.b32.xlu0 %v3754, 64
  %v4976 = vpop.permute.xlu0 %4975
  %4977 = vrot.lane.b32.xlu0 %v3760, 64
  %v4978 = vpop.permute.xlu0 %4977
  %4979 = vrot.lane.b32.xlu0 %v3766, 64
  %v4980 = vpop.permute.xlu0 %4979
  %4981 = vrot.lane.b32.xlu0 %v3772, 64
  %v4982 = vpop.permute.xlu0 %4981
  %4983 = vrot.lane.b32.xlu0 %v3778, 64
  %v4984 = vpop.permute.xlu0 %4983
  %4985 = vrot.lane.b32.xlu0 %v3784, 64
  %v4986 = vpop.permute.xlu0 %4985
  %4987 = vrot.lane.b32.xlu0 %v3790, 64
  %v4988 = vpop.permute.xlu0 %4987
  %5005 = vmatprep.subr.mxu0 0.0
  %5006 = vmatpush1.msra.mxu0 %v4988
  %5007 = vmatprep.subr.mxu0 0.0
  %5008 = vmatpush1.msra.mxu0 %v4986
  %5009 = vmatprep.subr.mxu0 0.0
  %5010 = vmatpush1.msra.mxu0 %v4984
  %5011 = vmatprep.subr.mxu0 0.0
  %5012 = vmatpush1.msra.mxu0 %v4982
  %5013 = vmatprep.subr.mxu0 0.0
  %5014 = vmatpush1.msra.mxu0 %v4980
  %5015 = vmatprep.subr.mxu0 0.0
  %5016 = vmatpush1.msra.mxu0 %v4978
  %5017 = vmatprep.subr.mxu0 0.0
  %5018 = vmatpush1.msra.mxu0 %v4976
  %5019 = vmatprep.subr.mxu0 0.0
  %5020 = vmatpush1.msra.mxu0 %v4974
  %5021 = vmatprep.subr.mxu0 0.0
  %5022 = vmatpush1.msra.mxu0 %v4972
  %5023 = vmatprep.subr.mxu0 0.0
  %5024 = vmatpush1.msra.mxu0 %v4970
  %5025 = vmatprep.subr.mxu0 0.0
  %5026 = vmatpush1.msra.mxu0 %v4968
  %5027 = vmatprep.subr.mxu0 0.0
  %5028 = vmatpush1.msra.mxu0 %v4966
  %5029 = vmatprep.subr.mxu0 0.0
  %5030 = vmatpush1.msra.mxu0 %v4964
  %5031 = vmatprep.subr.mxu0 0.0
  %5032 = vmatpush1.msra.mxu0 %v4962
  %5033 = vmatprep.subr.mxu0 0.0
  %5034 = vmatpush1.msra.mxu0 %v4960
  %5035 = vmatprep.subr.mxu0 0.0
  %5036 = vmatpush1.msra.mxu0 %v4958
  %5037 = vmatprep.subr.mxu0 0.0
  %5038 = vmatpush2.msra.mxu0 0.0
  %5039 = vmatprep.subr.mxu0 0.0
  %5040 = vmatpush2.msra.mxu0 0.0
  %5041 = vmatprep.subr.mxu0 0.0
  %5042 = vmatpush2.msra.mxu0 0.0
  %5043 = vmatprep.subr.mxu0 0.0
  %5044 = vmatpush2.msra.mxu0 0.0
  %5045 = vmatprep.subr.mxu0 0.0
  %5046 = vmatpush2.msra.mxu0 0.0
  %5047 = vmatprep.subr.mxu0 0.0
  %5048 = vmatpush2.msra.mxu0 0.0
  %5049 = vmatprep.subr.mxu0 0.0
  %5050 = vmatpush2.msra.mxu0 0.0
  %5051 = vmatprep.subr.mxu0 0.0
  %5052 = vmatpush2.msra.mxu0 0.0
  %5053 = vmatprep.subr.mxu0 0.0
  %5054 = vmatpush2.msra.mxu0 0.0
  %5055 = vmatprep.subr.mxu0 0.0
  %5056 = vmatpush2.msra.mxu0 0.0
  %5057 = vmatprep.subr.mxu0 0.0
  %5058 = vmatpush2.msra.mxu0 0.0
  %5059 = vmatprep.subr.mxu0 0.0
  %5060 = vmatpush2.msra.mxu0 0.0
  %5061 = vmatprep.subr.mxu0 0.0
  %5062 = vmatpush2.msra.mxu0 0.0
  %5063 = vmatprep.subr.mxu0 0.0
  %5064 = vmatpush2.msra.mxu0 0.0
  %5065 = vmatprep.subr.mxu0 0.0
  %5066 = vmatpush2.msra.mxu0 0.0
  %5067 = vmatprep.subr.mxu0 0.0
  %5068 = vmatpush2.msra.mxu0 0.0
  %5069 = vmatprep.mubr.f32.mxu0 0.0
  %5070 = vmatmul.mubr.f32.gmra.mxu0 %v4925
  %v5071 = vpop.f32.mrf.mxu0
  %v5072 = vadd.f32 0.0, %v5071
  %v5073 = vpop.f32.mrf.mxu0
  %5074 = vmatprep.mubr.f32.mxu0 0.0
  %5075 = vmatmul.mubr.f32.gmra.mxu0 %v4926
  %v5076 = vpop.f32.mrf.mxu0
  %v5077 = vadd.f32 0.0, %v5076
  %v5078 = vpop.f32.mrf.mxu0
  %5079 = vmatprep.mubr.f32.mxu0 0.0
  %5080 = vmatmul.mubr.f32.gmra.mxu0 %v4927
  %v5081 = vpop.f32.mrf.mxu0
  %v5082 = vadd.f32 0.0, %v5081
  %v5083 = vpop.f32.mrf.mxu0
  %5084 = vmatprep.mubr.f32.mxu0 0.0
  %5085 = vmatmul.mubr.f32.gmra.mxu0 %v4928
  %v5086 = vpop.f32.mrf.mxu0
  %v5087 = vadd.f32 0.0, %v5086
  %v5088 = vpop.f32.mrf.mxu0
  %5089 = vmatprep.mubr.f32.mxu0 0.0
  %5090 = vmatmul.mubr.f32.gmra.mxu0 %v4929
  %v5091 = vpop.f32.mrf.mxu0
  %v5092 = vadd.f32 0.0, %v5091
  %v5093 = vpop.f32.mrf.mxu0
  %5094 = vmatprep.mubr.f32.mxu0 0.0
  %5095 = vmatmul.mubr.f32.gmra.mxu0 %v4930
  %v5096 = vpop.f32.mrf.mxu0
  %v5097 = vadd.f32 0.0, %v5096
  %v5098 = vpop.f32.mrf.mxu0
  %5099 = vmatprep.mubr.f32.mxu0 0.0
  %5100 = vmatmul.mubr.f32.gmra.mxu0 %v4931
  %v5101 = vpop.f32.mrf.mxu0
  %v5102 = vadd.f32 0.0, %v5101
  %v5103 = vpop.f32.mrf.mxu0
  %5104 = vmatprep.mubr.f32.mxu0 0.0
  %5105 = vmatmul.mubr.f32.gmra.mxu0 %v4932
  %v5106 = vpop.f32.mrf.mxu0
  %v5107 = vadd.f32 0.0, %v5106
  %v5108 = vpop.f32.mrf.mxu0
  %5109 = vmatprep.mubr.f32.mxu0 0.0
  %5110 = vmatmul.mubr.f32.gmra.mxu0 %v4933
  %v5111 = vpop.f32.mrf.mxu0
  %v5112 = vadd.f32 0.0, %v5111
  %v5113 = vpop.f32.mrf.mxu0
  %5114 = vmatprep.mubr.f32.mxu0 0.0
  %5115 = vmatmul.mubr.f32.gmra.mxu0 %v4934
  %v5116 = vpop.f32.mrf.mxu0
  %v5117 = vadd.f32 0.0, %v5116
  %v5118 = vpop.f32.mrf.mxu0
  %5119 = vmatprep.mubr.f32.mxu0 0.0
  %5120 = vmatmul.mubr.f32.gmra.mxu0 %v4935
  %v5121 = vpop.f32.mrf.mxu0
  %v5122 = vadd.f32 0.0, %v5121
  %v5123 = vpop.f32.mrf.mxu0
  %5124 = vmatprep.mubr.f32.mxu0 0.0
  %5125 = vmatmul.mubr.f32.gmra.mxu0 %v4936
  %v5126 = vpop.f32.mrf.mxu0
  %v5127 = vadd.f32 0.0, %v5126
  %v5128 = vpop.f32.mrf.mxu0
  %5129 = vmatprep.mubr.f32.mxu0 0.0
  %5130 = vmatmul.mubr.f32.gmra.mxu0 %v4937
  %v5131 = vpop.f32.mrf.mxu0
  %v5132 = vadd.f32 0.0, %v5131
  %v5133 = vpop.f32.mrf.mxu0
  %5134 = vmatprep.mubr.f32.mxu0 0.0
  %5135 = vmatmul.mubr.f32.gmra.mxu0 %v4938
  %v5136 = vpop.f32.mrf.mxu0
  %v5137 = vadd.f32 0.0, %v5136
  %v5138 = vpop.f32.mrf.mxu0
  %5139 = vmatprep.mubr.f32.mxu0 0.0
  %5140 = vmatmul.mubr.f32.gmra.mxu0 %v4939
  %v5141 = vpop.f32.mrf.mxu0
  %v5142 = vadd.f32 0.0, %v5141
  %v5143 = vpop.f32.mrf.mxu0
  %5144 = vmatprep.mubr.f32.mxu0 0.0
  %5145 = vmatmul.mubr.f32.gmra.mxu0 %v4940
  %v5146 = vpop.f32.mrf.mxu0
  %v5147 = vadd.f32 0.0, %v5146
  %v5148 = vpop.f32.mrf.mxu0
  %5149 = vdwg.mxu0
  %v5150 = vadd.f32 %v4908, %v5072
  %v5151 = vadd.f32 %v4909, %v5077
  %v5152 = vadd.f32 %v4910, %v5082
  %v5153 = vadd.f32 %v4911, %v5087
  %v5154 = vadd.f32 %v4912, %v5092
  %v5155 = vadd.f32 %v4913, %v5097
  %v5156 = vadd.f32 %v4914, %v5102
  %v5157 = vadd.f32 %v4915, %v5107
  %v5158 = vadd.f32 %v4916, %v5112
  %v5159 = vadd.f32 %v4917, %v5117
  %v5160 = vadd.f32 %v4918, %v5122
  %v5161 = vadd.f32 %v4919, %v5127
  %v5162 = vadd.f32 %v4920, %v5132
  %v5163 = vadd.f32 %v4921, %v5137
  %v5164 = vadd.f32 %v4922, %v5142
  %v5165 = vadd.f32 %v4923, %v5147
  %s5166 = scalar_lea.vmem %s9, 768
  %v5167 = vld [vmem:[%s5166] sm:$0xff]
  %v5168 = vld [vmem:[%s5166 + $0x8] sm:$0xff]
  %v5169 = vld [vmem:[%s5166 + $0x10] sm:$0xff]
  %v5170 = vld [vmem:[%s5166 + $0x18] sm:$0xff]
  %v5171 = vld [vmem:[%s5166 + $0x20] sm:$0xff]
  %v5172 = vld [vmem:[%s5166 + $0x28] sm:$0xff]
  %v5173 = vld [vmem:[%s5166 + $0x30] sm:$0xff]
  %v5174 = vld [vmem:[%s5166 + $0x38] sm:$0xff]
  %v5175 = vld [vmem:[%s5166 + $0x40] sm:$0xff]
  %v5176 = vld [vmem:[%s5166 + $0x48] sm:$0xff]
  %v5177 = vld [vmem:[%s5166 + $0x50] sm:$0xff]
  %v5178 = vld [vmem:[%s5166 + $0x58] sm:$0xff]
  %v5179 = vld [vmem:[%s5166 + $0x60] sm:$0xff]
  %v5180 = vld [vmem:[%s5166 + $0x68] sm:$0xff]
  %v5181 = vld [vmem:[%s5166 + $0x70] sm:$0xff]
  %v5182 = vld [vmem:[%s5166 + $0x78] sm:$0xff]
  %5183 = vmatprep.subr.mxu0 0.0
  %5184 = vmatpush1.msra.mxu0 %v3792
  %5185 = vmatprep.subr.mxu0 0.0
  %5186 = vmatpush1.msra.mxu0 %v3786
  %5187 = vmatprep.subr.mxu0 0.0
  %5188 = vmatpush1.msra.mxu0 %v3780
  %5189 = vmatprep.subr.mxu0 0.0
  %5190 = vmatpush1.msra.mxu0 %v3774
  %5191 = vmatprep.subr.mxu0 0.0
  %5192 = vmatpush1.msra.mxu0 %v3768
  %5193 = vmatprep.subr.mxu0 0.0
  %5194 = vmatpush1.msra.mxu0 %v3762
  %5195 = vmatprep.subr.mxu0 0.0
  %5196 = vmatpush1.msra.mxu0 %v3756
  %5197 = vmatprep.subr.mxu0 0.0
  %5198 = vmatpush1.msra.mxu0 %v3750
  %5199 = vmatprep.subr.mxu0 0.0
  %5200 = vmatpush1.msra.mxu0 %v3744
  %5201 = vmatprep.subr.mxu0 0.0
  %5202 = vmatpush1.msra.mxu0 %v3738
  %5203 = vmatprep.subr.mxu0 0.0
  %5204 = vmatpush1.msra.mxu0 %v3732
  %5205 = vmatprep.subr.mxu0 0.0
  %5206 = vmatpush1.msra.mxu0 %v3726
  %5207 = vmatprep.subr.mxu0 0.0
  %5208 = vmatpush1.msra.mxu0 %v3720
  %5209 = vmatprep.subr.mxu0 0.0
  %5210 = vmatpush1.msra.mxu0 %v3714
  %5211 = vmatprep.subr.mxu0 0.0
  %5212 = vmatpush1.msra.mxu0 %v3708
  %5213 = vmatprep.subr.mxu0 0.0
  %5214 = vmatpush1.msra.mxu0 %v3702
  %5215 = vmatprep.subr.mxu0 0.0
  %5216 = vmatpush2.msra.mxu0 0.0
  %5217 = vmatprep.subr.mxu0 0.0
  %5218 = vmatpush2.msra.mxu0 0.0
  %5219 = vmatprep.subr.mxu0 0.0
  %5220 = vmatpush2.msra.mxu0 0.0
  %5221 = vmatprep.subr.mxu0 0.0
  %5222 = vmatpush2.msra.mxu0 0.0
  %5223 = vmatprep.subr.mxu0 0.0
  %5224 = vmatpush2.msra.mxu0 0.0
  %5225 = vmatprep.subr.mxu0 0.0
  %5226 = vmatpush2.msra.mxu0 0.0
  %5227 = vmatprep.subr.mxu0 0.0
  %5228 = vmatpush2.msra.mxu0 0.0
  %5229 = vmatprep.subr.mxu0 0.0
  %5230 = vmatpush2.msra.mxu0 0.0
  %5231 = vmatprep.subr.mxu0 0.0
  %5232 = vmatpush2.msra.mxu0 0.0
  %5233 = vmatprep.subr.mxu0 0.0
  %5234 = vmatpush2.msra.mxu0 0.0
  %5235 = vmatprep.subr.mxu0 0.0
  %5236 = vmatpush2.msra.mxu0 0.0
  %5237 = vmatprep.subr.mxu0 0.0
  %5238 = vmatpush2.msra.mxu0 0.0
  %5239 = vmatprep.subr.mxu0 0.0
  %5240 = vmatpush2.msra.mxu0 0.0
  %5241 = vmatprep.subr.mxu0 0.0
  %5242 = vmatpush2.msra.mxu0 0.0
  %5243 = vmatprep.subr.mxu0 0.0
  %5244 = vmatpush2.msra.mxu0 0.0
  %5245 = vmatprep.subr.mxu0 0.0
  %5246 = vmatpush2.msra.mxu0 0.0
  %5247 = vmatprep.mubr.f32.mxu0 0.0
  %5248 = vmatmul.mubr.f32.gmra.mxu0 %v5167
  %v5249 = vpop.f32.mrf.mxu0
  %v5250 = vadd.f32 0.0, %v5249
  %v5251 = vpop.f32.mrf.mxu0
  %5252 = vmatprep.mubr.f32.mxu0 0.0
  %5253 = vmatmul.mubr.f32.gmra.mxu0 %v5168
  %v5254 = vpop.f32.mrf.mxu0
  %v5255 = vadd.f32 0.0, %v5254
  %v5256 = vpop.f32.mrf.mxu0
  %5257 = vmatprep.mubr.f32.mxu0 0.0
  %5258 = vmatmul.mubr.f32.gmra.mxu0 %v5169
  %v5259 = vpop.f32.mrf.mxu0
  %v5260 = vadd.f32 0.0, %v5259
  %v5261 = vpop.f32.mrf.mxu0
  %5262 = vmatprep.mubr.f32.mxu0 0.0
  %5263 = vmatmul.mubr.f32.gmra.mxu0 %v5170
  %v5264 = vpop.f32.mrf.mxu0
  %v5265 = vadd.f32 0.0, %v5264
  %v5266 = vpop.f32.mrf.mxu0
  %5267 = vmatprep.mubr.f32.mxu0 0.0
  %5268 = vmatmul.mubr.f32.gmra.mxu0 %v5171
  %v5269 = vpop.f32.mrf.mxu0
  %v5270 = vadd.f32 0.0, %v5269
  %v5271 = vpop.f32.mrf.mxu0
  %5272 = vmatprep.mubr.f32.mxu0 0.0
  %5273 = vmatmul.mubr.f32.gmra.mxu0 %v5172
  %v5274 = vpop.f32.mrf.mxu0
  %v5275 = vadd.f32 0.0, %v5274
  %v5276 = vpop.f32.mrf.mxu0
  %5277 = vmatprep.mubr.f32.mxu0 0.0
  %5278 = vmatmul.mubr.f32.gmra.mxu0 %v5173
  %v5279 = vpop.f32.mrf.mxu0
  %v5280 = vadd.f32 0.0, %v5279
  %v5281 = vpop.f32.mrf.mxu0
  %5282 = vmatprep.mubr.f32.mxu0 0.0
  %5283 = vmatmul.mubr.f32.gmra.mxu0 %v5174
  %v5284 = vpop.f32.mrf.mxu0
  %v5285 = vadd.f32 0.0, %v5284
  %v5286 = vpop.f32.mrf.mxu0
  %5287 = vmatprep.mubr.f32.mxu0 0.0
  %5288 = vmatmul.mubr.f32.gmra.mxu0 %v5175
  %v5289 = vpop.f32.mrf.mxu0
  %v5290 = vadd.f32 0.0, %v5289
  %v5291 = vpop.f32.mrf.mxu0
  %5292 = vmatprep.mubr.f32.mxu0 0.0
  %5293 = vmatmul.mubr.f32.gmra.mxu0 %v5176
  %v5294 = vpop.f32.mrf.mxu0
  %v5295 = vadd.f32 0.0, %v5294
  %v5296 = vpop.f32.mrf.mxu0
  %5297 = vmatprep.mubr.f32.mxu0 0.0
  %5298 = vmatmul.mubr.f32.gmra.mxu0 %v5177
  %v5299 = vpop.f32.mrf.mxu0
  %v5300 = vadd.f32 0.0, %v5299
  %v5301 = vpop.f32.mrf.mxu0
  %5302 = vmatprep.mubr.f32.mxu0 0.0
  %5303 = vmatmul.mubr.f32.gmra.mxu0 %v5178
  %v5304 = vpop.f32.mrf.mxu0
  %v5305 = vadd.f32 0.0, %v5304
  %v5306 = vpop.f32.mrf.mxu0
  %5307 = vmatprep.mubr.f32.mxu0 0.0
  %5308 = vmatmul.mubr.f32.gmra.mxu0 %v5179
  %v5309 = vpop.f32.mrf.mxu0
  %v5310 = vadd.f32 0.0, %v5309
  %v5311 = vpop.f32.mrf.mxu0
  %5312 = vmatprep.mubr.f32.mxu0 0.0
  %5313 = vmatmul.mubr.f32.gmra.mxu0 %v5180
  %v5314 = vpop.f32.mrf.mxu0
  %v5315 = vadd.f32 0.0, %v5314
  %v5316 = vpop.f32.mrf.mxu0
  %5317 = vmatprep.mubr.f32.mxu0 0.0
  %5318 = vmatmul.mubr.f32.gmra.mxu0 %v5181
  %v5319 = vpop.f32.mrf.mxu0
  %v5320 = vadd.f32 0.0, %v5319
  %v5321 = vpop.f32.mrf.mxu0
  %5322 = vmatprep.mubr.f32.mxu0 0.0
  %5323 = vmatmul.mubr.f32.gmra.mxu0 %v5182
  %v5324 = vpop.f32.mrf.mxu0
  %v5325 = vadd.f32 0.0, %v5324
  %v5326 = vpop.f32.mrf.mxu0
  %5327 = vdwg.mxu0
  %v5328 = vadd.f32 %v5150, %v5250
  %v5329 = vadd.f32 %v5151, %v5255
  %v5330 = vadd.f32 %v5152, %v5260
  %v5331 = vadd.f32 %v5153, %v5265
  %v5332 = vadd.f32 %v5154, %v5270
  %v5333 = vadd.f32 %v5155, %v5275
  %v5334 = vadd.f32 %v5156, %v5280
  %v5335 = vadd.f32 %v5157, %v5285
  %v5336 = vadd.f32 %v5158, %v5290
  %v5337 = vadd.f32 %v5159, %v5295
  %v5338 = vadd.f32 %v5160, %v5300
  %v5339 = vadd.f32 %v5161, %v5305
  %v5340 = vadd.f32 %v5162, %v5310
  %v5341 = vadd.f32 %v5163, %v5315
  %v5342 = vadd.f32 %v5164, %v5320
  %v5343 = vadd.f32 %v5165, %v5325
  %s5344 = scalar_lea.vmem %s9, 896
  %v5345 = vld [vmem:[%s5344] sm:$0xff]
  %v5346 = vld [vmem:[%s5344 + $0x8] sm:$0xff]
  %v5347 = vld [vmem:[%s5344 + $0x10] sm:$0xff]
  %v5348 = vld [vmem:[%s5344 + $0x18] sm:$0xff]
  %v5349 = vld [vmem:[%s5344 + $0x20] sm:$0xff]
  %v5350 = vld [vmem:[%s5344 + $0x28] sm:$0xff]
  %v5351 = vld [vmem:[%s5344 + $0x30] sm:$0xff]
  %v5352 = vld [vmem:[%s5344 + $0x38] sm:$0xff]
  %v5353 = vld [vmem:[%s5344 + $0x40] sm:$0xff]
  %v5354 = vld [vmem:[%s5344 + $0x48] sm:$0xff]
  %v5355 = vld [vmem:[%s5344 + $0x50] sm:$0xff]
  %v5356 = vld [vmem:[%s5344 + $0x58] sm:$0xff]
  %v5357 = vld [vmem:[%s5344 + $0x60] sm:$0xff]
  %v5358 = vld [vmem:[%s5344 + $0x68] sm:$0xff]
  %v5359 = vld [vmem:[%s5344 + $0x70] sm:$0xff]
  %v5360 = vld [vmem:[%s5344 + $0x78] sm:$0xff]
  %5377 = vrot.lane.b32.xlu0 %v3702, 64
  %v5378 = vpop.permute.xlu0 %5377
  %5379 = vrot.lane.b32.xlu0 %v3708, 64
  %v5380 = vpop.permute.xlu0 %5379
  %5381 = vrot.lane.b32.xlu0 %v3714, 64
  %v5382 = vpop.permute.xlu0 %5381
  %5383 = vrot.lane.b32.xlu0 %v3720, 64
  %v5384 = vpop.permute.xlu0 %5383
  %5385 = vrot.lane.b32.xlu0 %v3726, 64
  %v5386 = vpop.permute.xlu0 %5385
  %5387 = vrot.lane.b32.xlu0 %v3732, 64
  %v5388 = vpop.permute.xlu0 %5387
  %5389 = vrot.lane.b32.xlu0 %v3738, 64
  %v5390 = vpop.permute.xlu0 %5389
  %5391 = vrot.lane.b32.xlu0 %v3744, 64
  %v5392 = vpop.permute.xlu0 %5391
  %5393 = vrot.lane.b32.xlu0 %v3750, 64
  %v5394 = vpop.permute.xlu0 %5393
  %5395 = vrot.lane.b32.xlu0 %v3756, 64
  %v5396 = vpop.permute.xlu0 %5395
  %5397 = vrot.lane.b32.xlu0 %v3762, 64
  %v5398 = vpop.permute.xlu0 %5397
  %5399 = vrot.lane.b32.xlu0 %v3768, 64
  %v5400 = vpop.permute.xlu0 %5399
  %5401 = vrot.lane.b32.xlu0 %v3774, 64
  %v5402 = vpop.permute.xlu0 %5401
  %5403 = vrot.lane.b32.xlu0 %v3780, 64
  %v5404 = vpop.permute.xlu0 %5403
  %5405 = vrot.lane.b32.xlu0 %v3786, 64
  %v5406 = vpop.permute.xlu0 %5405
  %5407 = vrot.lane.b32.xlu0 %v3792, 64
  %v5408 = vpop.permute.xlu0 %5407
  %5425 = vmatprep.subr.mxu0 0.0
  %5426 = vmatpush1.msra.mxu0 %v5408
  %5427 = vmatprep.subr.mxu0 0.0
  %5428 = vmatpush1.msra.mxu0 %v5406
  %5429 = vmatprep.subr.mxu0 0.0
  %5430 = vmatpush1.msra.mxu0 %v5404
  %5431 = vmatprep.subr.mxu0 0.0
  %5432 = vmatpush1.msra.mxu0 %v5402
  %5433 = vmatprep.subr.mxu0 0.0
  %5434 = vmatpush1.msra.mxu0 %v5400
  %5435 = vmatprep.subr.mxu0 0.0
  %5436 = vmatpush1.msra.mxu0 %v5398
  %5437 = vmatprep.subr.mxu0 0.0
  %5438 = vmatpush1.msra.mxu0 %v5396
  %5439 = vmatprep.subr.mxu0 0.0
  %5440 = vmatpush1.msra.mxu0 %v5394
  %5441 = vmatprep.subr.mxu0 0.0
  %5442 = vmatpush1.msra.mxu0 %v5392
  %5443 = vmatprep.subr.mxu0 0.0
  %5444 = vmatpush1.msra.mxu0 %v5390
  %5445 = vmatprep.subr.mxu0 0.0
  %5446 = vmatpush1.msra.mxu0 %v5388
  %5447 = vmatprep.subr.mxu0 0.0
  %5448 = vmatpush1.msra.mxu0 %v5386
  %5449 = vmatprep.subr.mxu0 0.0
  %5450 = vmatpush1.msra.mxu0 %v5384
  %5451 = vmatprep.subr.mxu0 0.0
  %5452 = vmatpush1.msra.mxu0 %v5382
  %5453 = vmatprep.subr.mxu0 0.0
  %5454 = vmatpush1.msra.mxu0 %v5380
  %5455 = vmatprep.subr.mxu0 0.0
  %5456 = vmatpush1.msra.mxu0 %v5378
  %5457 = vmatprep.subr.mxu0 0.0
  %5458 = vmatpush2.msra.mxu0 0.0
  %5459 = vmatprep.subr.mxu0 0.0
  %5460 = vmatpush2.msra.mxu0 0.0
  %5461 = vmatprep.subr.mxu0 0.0
  %5462 = vmatpush2.msra.mxu0 0.0
  %5463 = vmatprep.subr.mxu0 0.0
  %5464 = vmatpush2.msra.mxu0 0.0
  %5465 = vmatprep.subr.mxu0 0.0
  %5466 = vmatpush2.msra.mxu0 0.0
  %5467 = vmatprep.subr.mxu0 0.0
  %5468 = vmatpush2.msra.mxu0 0.0
  %5469 = vmatprep.subr.mxu0 0.0
  %5470 = vmatpush2.msra.mxu0 0.0
  %5471 = vmatprep.subr.mxu0 0.0
  %5472 = vmatpush2.msra.mxu0 0.0
  %5473 = vmatprep.subr.mxu0 0.0
  %5474 = vmatpush2.msra.mxu0 0.0
  %5475 = vmatprep.subr.mxu0 0.0
  %5476 = vmatpush2.msra.mxu0 0.0
  %5477 = vmatprep.subr.mxu0 0.0
  %5478 = vmatpush2.msra.mxu0 0.0
  %5479 = vmatprep.subr.mxu0 0.0
  %5480 = vmatpush2.msra.mxu0 0.0
  %5481 = vmatprep.subr.mxu0 0.0
  %5482 = vmatpush2.msra.mxu0 0.0
  %5483 = vmatprep.subr.mxu0 0.0
  %5484 = vmatpush2.msra.mxu0 0.0
  %5485 = vmatprep.subr.mxu0 0.0
  %5486 = vmatpush2.msra.mxu0 0.0
  %5487 = vmatprep.subr.mxu0 0.0
  %5488 = vmatpush2.msra.mxu0 0.0
  %5489 = vmatprep.mubr.f32.mxu0 0.0
  %5490 = vmatmul.mubr.f32.gmra.mxu0 %v5345
  %v5491 = vpop.f32.mrf.mxu0
  %v5492 = vadd.f32 0.0, %v5491
  %v5493 = vpop.f32.mrf.mxu0
  %5494 = vmatprep.mubr.f32.mxu0 0.0
  %5495 = vmatmul.mubr.f32.gmra.mxu0 %v5346
  %v5496 = vpop.f32.mrf.mxu0
  %v5497 = vadd.f32 0.0, %v5496
  %v5498 = vpop.f32.mrf.mxu0
  %5499 = vmatprep.mubr.f32.mxu0 0.0
  %5500 = vmatmul.mubr.f32.gmra.mxu0 %v5347
  %v5501 = vpop.f32.mrf.mxu0
  %v5502 = vadd.f32 0.0, %v5501
  %v5503 = vpop.f32.mrf.mxu0
  %5504 = vmatprep.mubr.f32.mxu0 0.0
  %5505 = vmatmul.mubr.f32.gmra.mxu0 %v5348
  %v5506 = vpop.f32.mrf.mxu0
  %v5507 = vadd.f32 0.0, %v5506
  %v5508 = vpop.f32.mrf.mxu0
  %5509 = vmatprep.mubr.f32.mxu0 0.0
  %5510 = vmatmul.mubr.f32.gmra.mxu0 %v5349
  %v5511 = vpop.f32.mrf.mxu0
  %v5512 = vadd.f32 0.0, %v5511
  %v5513 = vpop.f32.mrf.mxu0
  %5514 = vmatprep.mubr.f32.mxu0 0.0
  %5515 = vmatmul.mubr.f32.gmra.mxu0 %v5350
  %v5516 = vpop.f32.mrf.mxu0
  %v5517 = vadd.f32 0.0, %v5516
  %v5518 = vpop.f32.mrf.mxu0
  %5519 = vmatprep.mubr.f32.mxu0 0.0
  %5520 = vmatmul.mubr.f32.gmra.mxu0 %v5351
  %v5521 = vpop.f32.mrf.mxu0
  %v5522 = vadd.f32 0.0, %v5521
  %v5523 = vpop.f32.mrf.mxu0
  %5524 = vmatprep.mubr.f32.mxu0 0.0
  %5525 = vmatmul.mubr.f32.gmra.mxu0 %v5352
  %v5526 = vpop.f32.mrf.mxu0
  %v5527 = vadd.f32 0.0, %v5526
  %v5528 = vpop.f32.mrf.mxu0
  %5529 = vmatprep.mubr.f32.mxu0 0.0
  %5530 = vmatmul.mubr.f32.gmra.mxu0 %v5353
  %v5531 = vpop.f32.mrf.mxu0
  %v5532 = vadd.f32 0.0, %v5531
  %v5533 = vpop.f32.mrf.mxu0
  %5534 = vmatprep.mubr.f32.mxu0 0.0
  %5535 = vmatmul.mubr.f32.gmra.mxu0 %v5354
  %v5536 = vpop.f32.mrf.mxu0
  %v5537 = vadd.f32 0.0, %v5536
  %v5538 = vpop.f32.mrf.mxu0
  %5539 = vmatprep.mubr.f32.mxu0 0.0
  %5540 = vmatmul.mubr.f32.gmra.mxu0 %v5355
  %v5541 = vpop.f32.mrf.mxu0
  %v5542 = vadd.f32 0.0, %v5541
  %v5543 = vpop.f32.mrf.mxu0
  %5544 = vmatprep.mubr.f32.mxu0 0.0
  %5545 = vmatmul.mubr.f32.gmra.mxu0 %v5356
  %v5546 = vpop.f32.mrf.mxu0
  %v5547 = vadd.f32 0.0, %v5546
  %v5548 = vpop.f32.mrf.mxu0
  %5549 = vmatprep.mubr.f32.mxu0 0.0
  %5550 = vmatmul.mubr.f32.gmra.mxu0 %v5357
  %v5551 = vpop.f32.mrf.mxu0
  %v5552 = vadd.f32 0.0, %v5551
  %v5553 = vpop.f32.mrf.mxu0
  %5554 = vmatprep.mubr.f32.mxu0 0.0
  %5555 = vmatmul.mubr.f32.gmra.mxu0 %v5358
  %v5556 = vpop.f32.mrf.mxu0
  %v5557 = vadd.f32 0.0, %v5556
  %v5558 = vpop.f32.mrf.mxu0
  %5559 = vmatprep.mubr.f32.mxu0 0.0
  %5560 = vmatmul.mubr.f32.gmra.mxu0 %v5359
  %v5561 = vpop.f32.mrf.mxu0
  %v5562 = vadd.f32 0.0, %v5561
  %v5563 = vpop.f32.mrf.mxu0
  %5564 = vmatprep.mubr.f32.mxu0 0.0
  %5565 = vmatmul.mubr.f32.gmra.mxu0 %v5360
  %v5566 = vpop.f32.mrf.mxu0
  %v5567 = vadd.f32 0.0, %v5566
  %v5568 = vpop.f32.mrf.mxu0
  %5569 = vdwg.mxu0
  %v5570 = vadd.f32 %v5328, %v5492
  %v5571 = vadd.f32 %v5329, %v5497
  %v5572 = vadd.f32 %v5330, %v5502
  %v5573 = vadd.f32 %v5331, %v5507
  %v5574 = vadd.f32 %v5332, %v5512
  %v5575 = vadd.f32 %v5333, %v5517
  %v5576 = vadd.f32 %v5334, %v5522
  %v5577 = vadd.f32 %v5335, %v5527
  %v5578 = vadd.f32 %v5336, %v5532
  %v5579 = vadd.f32 %v5337, %v5537
  %v5580 = vadd.f32 %v5338, %v5542
  %v5581 = vadd.f32 %v5339, %v5547
  %v5582 = vadd.f32 %v5340, %v5552
  %v5583 = vadd.f32 %v5341, %v5557
  %v5584 = vadd.f32 %v5342, %v5562
  %v5585 = vadd.f32 %v5343, %v5567
  %s5586 = scalar_lea.vmem %s9, 1024
  %v5587 = vld [vmem:[%s5586] sm:$0xff]
  %v5588 = vld [vmem:[%s5586 + $0x8] sm:$0xff]
  %v5589 = vld [vmem:[%s5586 + $0x10] sm:$0xff]
  %v5590 = vld [vmem:[%s5586 + $0x18] sm:$0xff]
  %v5591 = vld [vmem:[%s5586 + $0x20] sm:$0xff]
  %v5592 = vld [vmem:[%s5586 + $0x28] sm:$0xff]
  %v5593 = vld [vmem:[%s5586 + $0x30] sm:$0xff]
  %v5594 = vld [vmem:[%s5586 + $0x38] sm:$0xff]
  %v5595 = vld [vmem:[%s5586 + $0x40] sm:$0xff]
  %v5596 = vld [vmem:[%s5586 + $0x48] sm:$0xff]
  %v5597 = vld [vmem:[%s5586 + $0x50] sm:$0xff]
  %v5598 = vld [vmem:[%s5586 + $0x58] sm:$0xff]
  %v5599 = vld [vmem:[%s5586 + $0x60] sm:$0xff]
  %v5600 = vld [vmem:[%s5586 + $0x68] sm:$0xff]
  %v5601 = vld [vmem:[%s5586 + $0x70] sm:$0xff]
  %v5602 = vld [vmem:[%s5586 + $0x78] sm:$0xff]
  %5603 = vmatprep.subr.mxu0 0.0
  %5604 = vmatpush1.msra.mxu0 %v3936
  %5605 = vmatprep.subr.mxu0 0.0
  %5606 = vmatpush1.msra.mxu0 %v3931
  %5607 = vmatprep.subr.mxu0 0.0
  %5608 = vmatpush1.msra.mxu0 %v3926
  %5609 = vmatprep.subr.mxu0 0.0
  %5610 = vmatpush1.msra.mxu0 %v3921
  %5611 = vmatprep.subr.mxu0 0.0
  %5612 = vmatpush1.msra.mxu0 %v3916
  %5613 = vmatprep.subr.mxu0 0.0
  %5614 = vmatpush1.msra.mxu0 %v3911
  %5615 = vmatprep.subr.mxu0 0.0
  %5616 = vmatpush1.msra.mxu0 %v3906
  %5617 = vmatprep.subr.mxu0 0.0
  %5618 = vmatpush1.msra.mxu0 %v3901
  %5619 = vmatprep.subr.mxu0 0.0
  %5620 = vmatpush1.msra.mxu0 %v3896
  %5621 = vmatprep.subr.mxu0 0.0
  %5622 = vmatpush1.msra.mxu0 %v3891
  %5623 = vmatprep.subr.mxu0 0.0
  %5624 = vmatpush1.msra.mxu0 %v3886
  %5625 = vmatprep.subr.mxu0 0.0
  %5626 = vmatpush1.msra.mxu0 %v3881
  %5627 = vmatprep.subr.mxu0 0.0
  %5628 = vmatpush1.msra.mxu0 %v3876
  %5629 = vmatprep.subr.mxu0 0.0
  %5630 = vmatpush1.msra.mxu0 %v3871
  %5631 = vmatprep.subr.mxu0 0.0
  %5632 = vmatpush1.msra.mxu0 %v3866
  %5633 = vmatprep.subr.mxu0 0.0
  %5634 = vmatpush1.msra.mxu0 %v3861
  %5635 = vmatprep.subr.mxu0 0.0
  %5636 = vmatpush2.msra.mxu0 0.0
  %5637 = vmatprep.subr.mxu0 0.0
  %5638 = vmatpush2.msra.mxu0 0.0
  %5639 = vmatprep.subr.mxu0 0.0
  %5640 = vmatpush2.msra.mxu0 0.0
  %5641 = vmatprep.subr.mxu0 0.0
  %5642 = vmatpush2.msra.mxu0 0.0
  %5643 = vmatprep.subr.mxu0 0.0
  %5644 = vmatpush2.msra.mxu0 0.0
  %5645 = vmatprep.subr.mxu0 0.0
  %5646 = vmatpush2.msra.mxu0 0.0
  %5647 = vmatprep.subr.mxu0 0.0
  %5648 = vmatpush2.msra.mxu0 0.0
  %5649 = vmatprep.subr.mxu0 0.0
  %5650 = vmatpush2.msra.mxu0 0.0
  %5651 = vmatprep.subr.mxu0 0.0
  %5652 = vmatpush2.msra.mxu0 0.0
  %5653 = vmatprep.subr.mxu0 0.0
  %5654 = vmatpush2.msra.mxu0 0.0
  %5655 = vmatprep.subr.mxu0 0.0
  %5656 = vmatpush2.msra.mxu0 0.0
  %5657 = vmatprep.subr.mxu0 0.0
  %5658 = vmatpush2.msra.mxu0 0.0
  %5659 = vmatprep.subr.mxu0 0.0
  %5660 = vmatpush2.msra.mxu0 0.0
  %5661 = vmatprep.subr.mxu0 0.0
  %5662 = vmatpush2.msra.mxu0 0.0
  %5663 = vmatprep.subr.mxu0 0.0
  %5664 = vmatpush2.msra.mxu0 0.0
  %5665 = vmatprep.subr.mxu0 0.0
  %5666 = vmatpush2.msra.mxu0 0.0
  %5667 = vmatprep.mubr.f32.mxu0 0.0
  %5668 = vmatmul.mubr.f32.gmra.mxu0 %v5587
  %v5669 = vpop.f32.mrf.mxu0
  %v5670 = vadd.f32 0.0, %v5669
  %v5671 = vpop.f32.mrf.mxu0
  %5672 = vmatprep.mubr.f32.mxu0 0.0
  %5673 = vmatmul.mubr.f32.gmra.mxu0 %v5588
  %v5674 = vpop.f32.mrf.mxu0
  %v5675 = vadd.f32 0.0, %v5674
  %v5676 = vpop.f32.mrf.mxu0
  %5677 = vmatprep.mubr.f32.mxu0 0.0
  %5678 = vmatmul.mubr.f32.gmra.mxu0 %v5589
  %v5679 = vpop.f32.mrf.mxu0
  %v5680 = vadd.f32 0.0, %v5679
  %v5681 = vpop.f32.mrf.mxu0
  %5682 = vmatprep.mubr.f32.mxu0 0.0
  %5683 = vmatmul.mubr.f32.gmra.mxu0 %v5590
  %v5684 = vpop.f32.mrf.mxu0
  %v5685 = vadd.f32 0.0, %v5684
  %v5686 = vpop.f32.mrf.mxu0
  %5687 = vmatprep.mubr.f32.mxu0 0.0
  %5688 = vmatmul.mubr.f32.gmra.mxu0 %v5591
  %v5689 = vpop.f32.mrf.mxu0
  %v5690 = vadd.f32 0.0, %v5689
  %v5691 = vpop.f32.mrf.mxu0
  %5692 = vmatprep.mubr.f32.mxu0 0.0
  %5693 = vmatmul.mubr.f32.gmra.mxu0 %v5592
  %v5694 = vpop.f32.mrf.mxu0
  %v5695 = vadd.f32 0.0, %v5694
  %v5696 = vpop.f32.mrf.mxu0
  %5697 = vmatprep.mubr.f32.mxu0 0.0
  %5698 = vmatmul.mubr.f32.gmra.mxu0 %v5593
  %v5699 = vpop.f32.mrf.mxu0
  %v5700 = vadd.f32 0.0, %v5699
  %v5701 = vpop.f32.mrf.mxu0
  %5702 = vmatprep.mubr.f32.mxu0 0.0
  %5703 = vmatmul.mubr.f32.gmra.mxu0 %v5594
  %v5704 = vpop.f32.mrf.mxu0
  %v5705 = vadd.f32 0.0, %v5704
  %v5706 = vpop.f32.mrf.mxu0
  %5707 = vmatprep.mubr.f32.mxu0 0.0
  %5708 = vmatmul.mubr.f32.gmra.mxu0 %v5595
  %v5709 = vpop.f32.mrf.mxu0
  %v5710 = vadd.f32 0.0, %v5709
  %v5711 = vpop.f32.mrf.mxu0
  %5712 = vmatprep.mubr.f32.mxu0 0.0
  %5713 = vmatmul.mubr.f32.gmra.mxu0 %v5596
  %v5714 = vpop.f32.mrf.mxu0
  %v5715 = vadd.f32 0.0, %v5714
  %v5716 = vpop.f32.mrf.mxu0
  %5717 = vmatprep.mubr.f32.mxu0 0.0
  %5718 = vmatmul.mubr.f32.gmra.mxu0 %v5597
  %v5719 = vpop.f32.mrf.mxu0
  %v5720 = vadd.f32 0.0, %v5719
  %v5721 = vpop.f32.mrf.mxu0
  %5722 = vmatprep.mubr.f32.mxu0 0.0
  %5723 = vmatmul.mubr.f32.gmra.mxu0 %v5598
  %v5724 = vpop.f32.mrf.mxu0
  %v5725 = vadd.f32 0.0, %v5724
  %v5726 = vpop.f32.mrf.mxu0
  %5727 = vmatprep.mubr.f32.mxu0 0.0
  %5728 = vmatmul.mubr.f32.gmra.mxu0 %v5599
  %v5729 = vpop.f32.mrf.mxu0
  %v5730 = vadd.f32 0.0, %v5729
  %v5731 = vpop.f32.mrf.mxu0
  %5732 = vmatprep.mubr.f32.mxu0 0.0
  %5733 = vmatmul.mubr.f32.gmra.mxu0 %v5600
  %v5734 = vpop.f32.mrf.mxu0
  %v5735 = vadd.f32 0.0, %v5734
  %v5736 = vpop.f32.mrf.mxu0
  %5737 = vmatprep.mubr.f32.mxu0 0.0
  %5738 = vmatmul.mubr.f32.gmra.mxu0 %v5601
  %v5739 = vpop.f32.mrf.mxu0
  %v5740 = vadd.f32 0.0, %v5739
  %v5741 = vpop.f32.mrf.mxu0
  %5742 = vmatprep.mubr.f32.mxu0 0.0
  %5743 = vmatmul.mubr.f32.gmra.mxu0 %v5602
  %v5744 = vpop.f32.mrf.mxu0
  %v5745 = vadd.f32 0.0, %v5744
  %v5746 = vpop.f32.mrf.mxu0
  %5747 = vdwg.mxu0
  %v5748 = vadd.f32 %v5570, %v5670
  %v5749 = vadd.f32 %v5571, %v5675
  %v5750 = vadd.f32 %v5572, %v5680
  %v5751 = vadd.f32 %v5573, %v5685
  %v5752 = vadd.f32 %v5574, %v5690
  %v5753 = vadd.f32 %v5575, %v5695
  %v5754 = vadd.f32 %v5576, %v5700
  %v5755 = vadd.f32 %v5577, %v5705
  %v5756 = vadd.f32 %v5578, %v5710
  %v5757 = vadd.f32 %v5579, %v5715
  %v5758 = vadd.f32 %v5580, %v5720
  %v5759 = vadd.f32 %v5581, %v5725
  %v5760 = vadd.f32 %v5582, %v5730
  %v5761 = vadd.f32 %v5583, %v5735
  %v5762 = vadd.f32 %v5584, %v5740
  %v5763 = vadd.f32 %v5585, %v5745
  %v5764 = vsel %vm3423, %v5748, 0.0
  %v5765 = vsel %vm3423, %v5749, 0.0
  %v5766 = vadd.f32 %v5764, %v5765
  %v5767 = vsel %vm3423, %v5750, 0.0
  %v5768 = vadd.f32 %v5766, %v5767
  %v5769 = vsel %vm3423, %v5751, 0.0
  %v5770 = vadd.f32 %v5768, %v5769
  %v5771 = vsel %vm3423, %v5752, 0.0
  %v5772 = vadd.f32 %v5770, %v5771
  %v5773 = vsel %vm3423, %v5753, 0.0
  %v5774 = vadd.f32 %v5772, %v5773
  %v5775 = vsel %vm3423, %v5754, 0.0
  %v5776 = vadd.f32 %v5774, %v5775
  %v5777 = vsel %vm3423, %v5755, 0.0
  %v5778 = vadd.f32 %v5776, %v5777
  %v5779 = vsel %vm3423, %v5756, 0.0
  %v5780 = vadd.f32 %v5778, %v5779
  %v5781 = vsel %vm3423, %v5757, 0.0
  %v5782 = vadd.f32 %v5780, %v5781
  %v5783 = vsel %vm3423, %v5758, 0.0
  %v5784 = vadd.f32 %v5782, %v5783
  %v5785 = vsel %vm3423, %v5759, 0.0
  %v5786 = vadd.f32 %v5784, %v5785
  %v5787 = vsel %vm3423, %v5760, 0.0
  %v5788 = vadd.f32 %v5786, %v5787
  %v5789 = vsel %vm3423, %v5761, 0.0
  %v5790 = vadd.f32 %v5788, %v5789
  %v5791 = vsel %vm3423, %v5762, 0.0
  %v5792 = vadd.f32 %v5790, %v5791
  %v5793 = vsel %vm3423, %v5763, 0.0
  %v5794 = vadd.f32 %v5792, %v5793
  %v5795 = vrot.slane %v5794, 4
  %v5796 = vadd.f32 %v5794, %v5795
  %v5797 = vrot.slane %v5796, 2
  %v5798 = vadd.f32 %v5796, %v5797
  %v5799 = vrot.slane %v5798, 1
  %v5800 = vadd.f32 %v5798, %v5799
  %v5801 = vmul.f32 %v5748, %v5748
  %v5802 = vmul.f32 %v5749, %v5749
  %v5803 = vmul.f32 %v5750, %v5750
  %v5804 = vmul.f32 %v5751, %v5751
  %v5805 = vmul.f32 %v5752, %v5752
  %v5806 = vmul.f32 %v5753, %v5753
  %v5807 = vmul.f32 %v5754, %v5754
  %v5808 = vmul.f32 %v5755, %v5755
  %v5809 = vmul.f32 %v5756, %v5756
  %v5810 = vmul.f32 %v5757, %v5757
  %v5811 = vmul.f32 %v5758, %v5758
  %v5812 = vmul.f32 %v5759, %v5759
  %v5813 = vmul.f32 %v5760, %v5760
  %v5814 = vmul.f32 %v5761, %v5761
  %v5815 = vmul.f32 %v5762, %v5762
  %v5816 = vmul.f32 %v5763, %v5763
  %v5817 = vsel %vm3423, %v5801, 0.0
  %v5818 = vsel %vm3423, %v5802, 0.0
  %v5819 = vadd.f32 %v5817, %v5818
  %v5820 = vsel %vm3423, %v5803, 0.0
  %v5821 = vadd.f32 %v5819, %v5820
  %v5822 = vsel %vm3423, %v5804, 0.0
  %v5823 = vadd.f32 %v5821, %v5822
  %v5824 = vsel %vm3423, %v5805, 0.0
  %v5825 = vadd.f32 %v5823, %v5824
  %v5826 = vsel %vm3423, %v5806, 0.0
  %v5827 = vadd.f32 %v5825, %v5826
  %v5828 = vsel %vm3423, %v5807, 0.0
  %v5829 = vadd.f32 %v5827, %v5828
  %v5830 = vsel %vm3423, %v5808, 0.0
  %v5831 = vadd.f32 %v5829, %v5830
  %v5832 = vsel %vm3423, %v5809, 0.0
  %v5833 = vadd.f32 %v5831, %v5832
  %v5834 = vsel %vm3423, %v5810, 0.0
  %v5835 = vadd.f32 %v5833, %v5834
  %v5836 = vsel %vm3423, %v5811, 0.0
  %v5837 = vadd.f32 %v5835, %v5836
  %v5838 = vsel %vm3423, %v5812, 0.0
  %v5839 = vadd.f32 %v5837, %v5838
  %v5840 = vsel %vm3423, %v5813, 0.0
  %v5841 = vadd.f32 %v5839, %v5840
  %v5842 = vsel %vm3423, %v5814, 0.0
  %v5843 = vadd.f32 %v5841, %v5842
  %v5844 = vsel %vm3423, %v5815, 0.0
  %v5845 = vadd.f32 %v5843, %v5844
  %v5846 = vsel %vm3423, %v5816, 0.0
  %v5847 = vadd.f32 %v5845, %v5846
  %v5848 = vrot.slane %v5847, 4
  %v5849 = vadd.f32 %v5847, %v5848
  %v5850 = vrot.slane %v5849, 2
  %v5851 = vadd.f32 %v5849, %v5850
  %v5852 = vrot.slane %v5851, 1
  %v5853 = vadd.f32 %v5851, %v5852
  %v5854 = vld [vmem:[%s11] sm:$0x1]
  %v5855 = vld [vmem:[%s12] sm:$0x1]
  %v5856 = vmul.f32 %v5800, 0.0078125
  %v5857 = vmul.f32 %v5853, 0.0078125
  %v5858 = vmul.f32 %v5856, %v5856
  %v5859 = vsub.f32 %v5857, %v5858
  %v5860 = vmax.f32 %v5859, 0.0
  %v5861 = vadd.f32 %v5860, 1e-05
  %v5862 = vrsqrt.pop %v5861
  %v5863 = vmul.f32 %v5854, %v5862
  %v5864 = vmul.f32 %v5856, %v5863
  %v5865 = vsub.f32 %v5855, %v5864
  %v5867 = vlaneseq
  %v5868 = vshrl.u32 %v5867, 7
  %v5869 = vsub.s32 0, %v5868
  %v5870 = vrot.slane %v5863, %v5869
  %v5872 = vmul.f32 %v5748, %v5870
  %v5873 = vmul.f32 %v5749, %v5870
  %v5874 = vmul.f32 %v5750, %v5870
  %v5875 = vmul.f32 %v5751, %v5870
  %v5876 = vmul.f32 %v5752, %v5870
  %v5877 = vmul.f32 %v5753, %v5870
  %v5878 = vmul.f32 %v5754, %v5870
  %v5879 = vmul.f32 %v5755, %v5870
  %v5880 = vmul.f32 %v5756, %v5870
  %v5881 = vmul.f32 %v5757, %v5870
  %v5882 = vmul.f32 %v5758, %v5870
  %v5883 = vmul.f32 %v5759, %v5870
  %v5884 = vmul.f32 %v5760, %v5870
  %v5885 = vmul.f32 %v5761, %v5870
  %v5886 = vmul.f32 %v5762, %v5870
  %v5887 = vmul.f32 %v5763, %v5870
  %v5889 = vlaneseq
  %v5890 = vshrl.u32 %v5889, 7
  %v5891 = vsub.s32 0, %v5890
  %v5892 = vrot.slane %v5865, %v5891
  %v5894 = vadd.f32 %v5872, %v5892
  %v5895 = vadd.f32 %v5873, %v5892
  %v5896 = vadd.f32 %v5874, %v5892
  %v5897 = vadd.f32 %v5875, %v5892
  %v5898 = vadd.f32 %v5876, %v5892
  %v5899 = vadd.f32 %v5877, %v5892
  %v5900 = vadd.f32 %v5878, %v5892
  %v5901 = vadd.f32 %v5879, %v5892
  %v5902 = vadd.f32 %v5880, %v5892
  %v5903 = vadd.f32 %v5881, %v5892
  %v5904 = vadd.f32 %v5882, %v5892
  %v5905 = vadd.f32 %v5883, %v5892
  %v5906 = vadd.f32 %v5884, %v5892
  %v5907 = vadd.f32 %v5885, %v5892
  %v5908 = vadd.f32 %v5886, %v5892
  %v5909 = vadd.f32 %v5887, %v5892
  %v5910 = vsub.f32 0.0, %v5894
  %v5911 = vsub.f32 0.0, %v5895
  %v5912 = vsub.f32 0.0, %v5896
  %v5913 = vsub.f32 0.0, %v5897
  %v5914 = vsub.f32 0.0, %v5898
  %v5915 = vsub.f32 0.0, %v5899
  %v5916 = vsub.f32 0.0, %v5900
  %v5917 = vsub.f32 0.0, %v5901
  %v5918 = vsub.f32 0.0, %v5902
  %v5919 = vsub.f32 0.0, %v5903
  %v5920 = vsub.f32 0.0, %v5904
  %v5921 = vsub.f32 0.0, %v5905
  %v5922 = vsub.f32 0.0, %v5906
  %v5923 = vsub.f32 0.0, %v5907
  %v5924 = vsub.f32 0.0, %v5908
  %v5925 = vsub.f32 0.0, %v5909
  %v5926 = vmul.f32 %v5910, 1.442695
  %v5927 = vpow.pop %v5926
  %v5928 = vmul.f32 %v5911, 1.442695
  %v5929 = vpow.pop %v5928
  %v5930 = vmul.f32 %v5912, 1.442695
  %v5931 = vpow.pop %v5930
  %v5932 = vmul.f32 %v5913, 1.442695
  %v5933 = vpow.pop %v5932
  %v5934 = vmul.f32 %v5914, 1.442695
  %v5935 = vpow.pop %v5934
  %v5936 = vmul.f32 %v5915, 1.442695
  %v5937 = vpow.pop %v5936
  %v5938 = vmul.f32 %v5916, 1.442695
  %v5939 = vpow.pop %v5938
  %v5940 = vmul.f32 %v5917, 1.442695
  %v5941 = vpow.pop %v5940
  %v5942 = vmul.f32 %v5918, 1.442695
  %v5943 = vpow.pop %v5942
  %v5944 = vmul.f32 %v5919, 1.442695
  %v5945 = vpow.pop %v5944
  %v5946 = vmul.f32 %v5920, 1.442695
  %v5947 = vpow.pop %v5946
  %v5948 = vmul.f32 %v5921, 1.442695
  %v5949 = vpow.pop %v5948
  %v5950 = vmul.f32 %v5922, 1.442695
  %v5951 = vpow.pop %v5950
  %v5952 = vmul.f32 %v5923, 1.442695
  %v5953 = vpow.pop %v5952
  %v5954 = vmul.f32 %v5924, 1.442695
  %v5955 = vpow.pop %v5954
  %v5956 = vmul.f32 %v5925, 1.442695
  %v5957 = vpow.pop %v5956
  %v5958 = vadd.f32 %v5927, 1.0
  %v5959 = vadd.f32 %v5929, 1.0
  %v5960 = vadd.f32 %v5931, 1.0
  %v5961 = vadd.f32 %v5933, 1.0
  %v5962 = vadd.f32 %v5935, 1.0
  %v5963 = vadd.f32 %v5937, 1.0
  %v5964 = vadd.f32 %v5939, 1.0
  %v5965 = vadd.f32 %v5941, 1.0
  %v5966 = vadd.f32 %v5943, 1.0
  %v5967 = vadd.f32 %v5945, 1.0
  %v5968 = vadd.f32 %v5947, 1.0
  %v5969 = vadd.f32 %v5949, 1.0
  %v5970 = vadd.f32 %v5951, 1.0
  %v5971 = vadd.f32 %v5953, 1.0
  %v5972 = vadd.f32 %v5955, 1.0
  %v5973 = vadd.f32 %v5957, 1.0
  %v5974 = vrcp.pop %v5958
  %v5975 = vrcp.pop %v5959
  %v5976 = vrcp.pop %v5960
  %v5977 = vrcp.pop %v5961
  %v5978 = vrcp.pop %v5962
  %v5979 = vrcp.pop %v5963
  %v5980 = vrcp.pop %v5964
  %v5981 = vrcp.pop %v5965
  %v5982 = vrcp.pop %v5966
  %v5983 = vrcp.pop %v5967
  %v5984 = vrcp.pop %v5968
  %v5985 = vrcp.pop %v5969
  %v5986 = vrcp.pop %v5970
  %v5987 = vrcp.pop %v5971
  %v5988 = vrcp.pop %v5972
  %v5989 = vrcp.pop %v5973
  %v5990 = vld [vmem:[%s13] sm:$0xff]
  %v5991 = vld [vmem:[%s13 + $0x8] sm:$0xff]
  %v5992 = vld [vmem:[%s13 + $0x10] sm:$0xff]
  %v5993 = vld [vmem:[%s13 + $0x18] sm:$0xff]
  %v5994 = vld [vmem:[%s13 + $0x20] sm:$0xff]
  %v5995 = vld [vmem:[%s13 + $0x28] sm:$0xff]
  %v5996 = vld [vmem:[%s13 + $0x30] sm:$0xff]
  %v5997 = vld [vmem:[%s13 + $0x38] sm:$0xff]
  %v5999 = vsel %vm3423, %v5974, 0
  %v6002 = vsel %vm3423, %v5975, 0
  %v6005 = vsel %vm3423, %v5976, 0
  %v6008 = vsel %vm3423, %v5977, 0
  %v6011 = vsel %vm3423, %v5978, 0
  %v6014 = vsel %vm3423, %v5979, 0
  %v6017 = vsel %vm3423, %v5980, 0
  %v6020 = vsel %vm3423, %v5981, 0
  %v6023 = vsel %vm3423, %v5982, 0
  %v6026 = vsel %vm3423, %v5983, 0
  %v6029 = vsel %vm3423, %v5984, 0
  %v6032 = vsel %vm3423, %v5985, 0
  %v6035 = vsel %vm3423, %v5986, 0
  %v6038 = vsel %vm3423, %v5987, 0
  %v6041 = vsel %vm3423, %v5988, 0
  %v6044 = vsel %vm3423, %v5989, 0
  %6046 = vmatprep.subr.mxu0 0.0
  %6047 = vmatpush1.msra.mxu0 0.0
  %6048 = vmatprep.subr.mxu0 0.0
  %6049 = vmatpush1.msra.mxu0 0.0
  %6050 = vmatprep.subr.mxu0 0.0
  %6051 = vmatpush1.msra.mxu0 0.0
  %6052 = vmatprep.subr.mxu0 0.0
  %6053 = vmatpush1.msra.mxu0 0.0
  %6054 = vmatprep.subr.mxu0 0.0
  %6055 = vmatpush1.msra.mxu0 0.0
  %6056 = vmatprep.subr.mxu0 0.0
  %6057 = vmatpush1.msra.mxu0 0.0
  %6058 = vmatprep.subr.mxu0 0.0
  %6059 = vmatpush1.msra.mxu0 0.0
  %6060 = vmatprep.subr.mxu0 0.0
  %6061 = vmatpush1.msra.mxu0 0.0
  %6062 = vmatprep.subr.mxu0 0.0
  %6063 = vmatpush1.msra.mxu0 %v5997
  %6064 = vmatprep.subr.mxu0 0.0
  %6065 = vmatpush1.msra.mxu0 %v5996
  %6066 = vmatprep.subr.mxu0 0.0
  %6067 = vmatpush1.msra.mxu0 %v5995
  %6068 = vmatprep.subr.mxu0 0.0
  %6069 = vmatpush1.msra.mxu0 %v5994
  %6070 = vmatprep.subr.mxu0 0.0
  %6071 = vmatpush1.msra.mxu0 %v5993
  %6072 = vmatprep.subr.mxu0 0.0
  %6073 = vmatpush1.msra.mxu0 %v5992
  %6074 = vmatprep.subr.mxu0 0.0
  %6075 = vmatpush1.msra.mxu0 %v5991
  %6076 = vmatprep.subr.mxu0 0.0
  %6077 = vmatpush1.msra.mxu0 %v5990
  %6078 = vmatprep.subr.mxu0 0.0
  %6079 = vmatpush2.msra.mxu0 0.0
  %6080 = vmatprep.subr.mxu0 0.0
  %6081 = vmatpush2.msra.mxu0 0.0
  %6082 = vmatprep.subr.mxu0 0.0
  %6083 = vmatpush2.msra.mxu0 0.0
  %6084 = vmatprep.subr.mxu0 0.0
  %6085 = vmatpush2.msra.mxu0 0.0
  %6086 = vmatprep.subr.mxu0 0.0
  %6087 = vmatpush2.msra.mxu0 0.0
  %6088 = vmatprep.subr.mxu0 0.0
  %6089 = vmatpush2.msra.mxu0 0.0
  %6090 = vmatprep.subr.mxu0 0.0
  %6091 = vmatpush2.msra.mxu0 0.0
  %6092 = vmatprep.subr.mxu0 0.0
  %6093 = vmatpush2.msra.mxu0 0.0
  %6094 = vmatprep.subr.mxu0 0.0
  %6095 = vmatpush2.msra.mxu0 0.0
  %6096 = vmatprep.subr.mxu0 0.0
  %6097 = vmatpush2.msra.mxu0 0.0
  %6098 = vmatprep.subr.mxu0 0.0
  %6099 = vmatpush2.msra.mxu0 0.0
  %6100 = vmatprep.subr.mxu0 0.0
  %6101 = vmatpush2.msra.mxu0 0.0
  %6102 = vmatprep.subr.mxu0 0.0
  %6103 = vmatpush2.msra.mxu0 0.0
  %6104 = vmatprep.subr.mxu0 0.0
  %6105 = vmatpush2.msra.mxu0 0.0
  %6106 = vmatprep.subr.mxu0 0.0
  %6107 = vmatpush2.msra.mxu0 0.0
  %6108 = vmatprep.subr.mxu0 0.0
  %6109 = vmatpush2.msra.mxu0 0.0
  %6110 = vmatprep.mubr.f32.mxu0 0.0
  %6111 = vmatmul.mubr.f32.gmra.mxu0 %v5999
  %v6112 = vpop.f32.mrf.mxu0
  %v6113 = vadd.f32 0.0, %v6112
  %v6114 = vpop.f32.mrf.mxu0
  %6115 = vmatprep.mubr.f32.mxu0 0.0
  %6116 = vmatmul.mubr.f32.gmra.mxu0 %v6002
  %v6117 = vpop.f32.mrf.mxu0
  %v6118 = vadd.f32 0.0, %v6117
  %v6119 = vpop.f32.mrf.mxu0
  %6120 = vmatprep.mubr.f32.mxu0 0.0
  %6121 = vmatmul.mubr.f32.gmra.mxu0 %v6005
  %v6122 = vpop.f32.mrf.mxu0
  %v6123 = vadd.f32 0.0, %v6122
  %v6124 = vpop.f32.mrf.mxu0
  %6125 = vmatprep.mubr.f32.mxu0 0.0
  %6126 = vmatmul.mubr.f32.gmra.mxu0 %v6008
  %v6127 = vpop.f32.mrf.mxu0
  %v6128 = vadd.f32 0.0, %v6127
  %v6129 = vpop.f32.mrf.mxu0
  %6130 = vmatprep.mubr.f32.mxu0 0.0
  %6131 = vmatmul.mubr.f32.gmra.mxu0 %v6011
  %v6132 = vpop.f32.mrf.mxu0
  %v6133 = vadd.f32 0.0, %v6132
  %v6134 = vpop.f32.mrf.mxu0
  %6135 = vmatprep.mubr.f32.mxu0 0.0
  %6136 = vmatmul.mubr.f32.gmra.mxu0 %v6014
  %v6137 = vpop.f32.mrf.mxu0
  %v6138 = vadd.f32 0.0, %v6137
  %v6139 = vpop.f32.mrf.mxu0
  %6140 = vmatprep.mubr.f32.mxu0 0.0
  %6141 = vmatmul.mubr.f32.gmra.mxu0 %v6017
  %v6142 = vpop.f32.mrf.mxu0
  %v6143 = vadd.f32 0.0, %v6142
  %v6144 = vpop.f32.mrf.mxu0
  %6145 = vmatprep.mubr.f32.mxu0 0.0
  %6146 = vmatmul.mubr.f32.gmra.mxu0 %v6020
  %v6147 = vpop.f32.mrf.mxu0
  %v6148 = vadd.f32 0.0, %v6147
  %v6149 = vpop.f32.mrf.mxu0
  %6150 = vmatprep.mubr.f32.mxu0 0.0
  %6151 = vmatmul.mubr.f32.gmra.mxu0 %v6023
  %v6152 = vpop.f32.mrf.mxu0
  %v6153 = vadd.f32 0.0, %v6152
  %v6154 = vpop.f32.mrf.mxu0
  %6155 = vmatprep.mubr.f32.mxu0 0.0
  %6156 = vmatmul.mubr.f32.gmra.mxu0 %v6026
  %v6157 = vpop.f32.mrf.mxu0
  %v6158 = vadd.f32 0.0, %v6157
  %v6159 = vpop.f32.mrf.mxu0
  %6160 = vmatprep.mubr.f32.mxu0 0.0
  %6161 = vmatmul.mubr.f32.gmra.mxu0 %v6029
  %v6162 = vpop.f32.mrf.mxu0
  %v6163 = vadd.f32 0.0, %v6162
  %v6164 = vpop.f32.mrf.mxu0
  %6165 = vmatprep.mubr.f32.mxu0 0.0
  %6166 = vmatmul.mubr.f32.gmra.mxu0 %v6032
  %v6167 = vpop.f32.mrf.mxu0
  %v6168 = vadd.f32 0.0, %v6167
  %v6169 = vpop.f32.mrf.mxu0
  %6170 = vmatprep.mubr.f32.mxu0 0.0
  %6171 = vmatmul.mubr.f32.gmra.mxu0 %v6035
  %v6172 = vpop.f32.mrf.mxu0
  %v6173 = vadd.f32 0.0, %v6172
  %v6174 = vpop.f32.mrf.mxu0
  %6175 = vmatprep.mubr.f32.mxu0 0.0
  %6176 = vmatmul.mubr.f32.gmra.mxu0 %v6038
  %v6177 = vpop.f32.mrf.mxu0
  %v6178 = vadd.f32 0.0, %v6177
  %v6179 = vpop.f32.mrf.mxu0
  %6180 = vmatprep.mubr.f32.mxu0 0.0
  %6181 = vmatmul.mubr.f32.gmra.mxu0 %v6041
  %v6182 = vpop.f32.mrf.mxu0
  %v6183 = vadd.f32 0.0, %v6182
  %v6184 = vpop.f32.mrf.mxu0
  %6185 = vmatprep.mubr.f32.mxu0 0.0
  %6186 = vmatmul.mubr.f32.gmra.mxu0 %v6044
  %v6187 = vpop.f32.mrf.mxu0
  %v6188 = vadd.f32 0.0, %v6187
  %v6189 = vpop.f32.mrf.mxu0
  %6190 = vdwg.mxu0
  %6191 = vxpose.xlu0.b32.start [1/16] %v6113, 128
  %6192 = vxpose.xlu0.b32.cont [2/16] %v6118, 128
  %6193 = vxpose.xlu0.b32.cont [3/16] %v6123, 128
  %6194 = vxpose.xlu0.b32.cont [4/16] %v6128, 128
  %6195 = vxpose.xlu0.b32.cont [5/16] %v6133, 128
  %6196 = vxpose.xlu0.b32.cont [6/16] %v6138, 128
  %6197 = vxpose.xlu0.b32.cont [7/16] %v6143, 128
  %6198 = vxpose.xlu0.b32.cont [8/16] %v6148, 128
  %6199 = vxpose.xlu0.b32.cont [9/16] %v6153, 128
  %6200 = vxpose.xlu0.b32.cont [10/16] %v6158, 128
  %6201 = vxpose.xlu0.b32.cont [11/16] %v6163, 128
  %6202 = vxpose.xlu0.b32.cont [12/16] %v6168, 128
  %6203 = vxpose.xlu0.b32.cont [13/16] %v6173, 128
  %6204 = vxpose.xlu0.b32.cont [14/16] %v6178, 128
  %6205 = vxpose.xlu0.b32.cont [15/16] %v6183, 128
  %6206 = vxpose.xlu0.b32.end [16/16] %v6188, 128
  %v6207 = vpop.trf.xlu0
  %v6208 = vpop.trf.xlu0
  %v6209 = vpop.trf.xlu0
  %v6210 = vpop.trf.xlu0
  %v6211 = vpop.trf.xlu0
  %v6212 = vpop.trf.xlu0
  %v6213 = vpop.trf.xlu0
  %v6214 = vpop.trf.xlu0
  %v6215 = vpop.trf.xlu0
  %v6216 = vpop.trf.xlu0
  %v6217 = vpop.trf.xlu0
  %v6218 = vpop.trf.xlu0
  %v6219 = vpop.trf.xlu0
  %v6220 = vpop.trf.xlu0
  %v6221 = vpop.trf.xlu0
  %v6222 = vpop.trf.xlu0
  %6223 = vadd.xlane.f32.xlu0 %v6207
  %v6224 = vpop.xlane.xlu0 %6223
  %6225 = vadd.xlane.f32.xlu0 %v6208
  %v6226 = vpop.xlane.xlu0 %6225
  %6227 = vadd.xlane.f32.xlu0 %v6209
  %v6228 = vpop.xlane.xlu0 %6227
  %6229 = vadd.xlane.f32.xlu0 %v6210
  %v6230 = vpop.xlane.xlu0 %6229
  %6231 = vadd.xlane.f32.xlu0 %v6211
  %v6232 = vpop.xlane.xlu0 %6231
  %6233 = vadd.xlane.f32.xlu0 %v6212
  %v6234 = vpop.xlane.xlu0 %6233
  %6235 = vadd.xlane.f32.xlu0 %v6213
  %v6236 = vpop.xlane.xlu0 %6235
  %6237 = vadd.xlane.f32.xlu0 %v6214
  %v6238 = vpop.xlane.xlu0 %6237
  %6239 = vadd.xlane.f32.xlu0 %v6215
  %v6240 = vpop.xlane.xlu0 %6239
  %6241 = vadd.xlane.f32.xlu0 %v6216
  %v6242 = vpop.xlane.xlu0 %6241
  %6243 = vadd.xlane.f32.xlu0 %v6217
  %v6244 = vpop.xlane.xlu0 %6243
  %6245 = vadd.xlane.f32.xlu0 %v6218
  %v6246 = vpop.xlane.xlu0 %6245
  %6247 = vadd.xlane.f32.xlu0 %v6219
  %v6248 = vpop.xlane.xlu0 %6247
  %6249 = vadd.xlane.f32.xlu0 %v6220
  %v6250 = vpop.xlane.xlu0 %6249
  %6251 = vadd.xlane.f32.xlu0 %v6221
  %v6252 = vpop.xlane.xlu0 %6251
  %6253 = vadd.xlane.f32.xlu0 %v6222
  %v6254 = vpop.xlane.xlu0 %6253
  %v6255 = vmul.f32 %v6207, %v6207
  %v6256 = vmul.f32 %v6208, %v6208
  %v6257 = vmul.f32 %v6209, %v6209
  %v6258 = vmul.f32 %v6210, %v6210
  %v6259 = vmul.f32 %v6211, %v6211
  %v6260 = vmul.f32 %v6212, %v6212
  %v6261 = vmul.f32 %v6213, %v6213
  %v6262 = vmul.f32 %v6214, %v6214
  %v6263 = vmul.f32 %v6215, %v6215
  %v6264 = vmul.f32 %v6216, %v6216
  %v6265 = vmul.f32 %v6217, %v6217
  %v6266 = vmul.f32 %v6218, %v6218
  %v6267 = vmul.f32 %v6219, %v6219
  %v6268 = vmul.f32 %v6220, %v6220
  %v6269 = vmul.f32 %v6221, %v6221
  %v6270 = vmul.f32 %v6222, %v6222
  %6271 = vadd.xlane.f32.xlu0 %v6255
  %v6272 = vpop.xlane.xlu0 %6271
  %6273 = vadd.xlane.f32.xlu0 %v6256
  %v6274 = vpop.xlane.xlu0 %6273
  %6275 = vadd.xlane.f32.xlu0 %v6257
  %v6276 = vpop.xlane.xlu0 %6275
  %6277 = vadd.xlane.f32.xlu0 %v6258
  %v6278 = vpop.xlane.xlu0 %6277
  %6279 = vadd.xlane.f32.xlu0 %v6259
  %v6280 = vpop.xlane.xlu0 %6279
  %6281 = vadd.xlane.f32.xlu0 %v6260
  %v6282 = vpop.xlane.xlu0 %6281
  %6283 = vadd.xlane.f32.xlu0 %v6261
  %v6284 = vpop.xlane.xlu0 %6283
  %6285 = vadd.xlane.f32.xlu0 %v6262
  %v6286 = vpop.xlane.xlu0 %6285
  %6287 = vadd.xlane.f32.xlu0 %v6263
  %v6288 = vpop.xlane.xlu0 %6287
  %6289 = vadd.xlane.f32.xlu0 %v6264
  %v6290 = vpop.xlane.xlu0 %6289
  %6291 = vadd.xlane.f32.xlu0 %v6265
  %v6292 = vpop.xlane.xlu0 %6291
  %6293 = vadd.xlane.f32.xlu0 %v6266
  %v6294 = vpop.xlane.xlu0 %6293
  %6295 = vadd.xlane.f32.xlu0 %v6267
  %v6296 = vpop.xlane.xlu0 %6295
  %6297 = vadd.xlane.f32.xlu0 %v6268
  %v6298 = vpop.xlane.xlu0 %6297
  %6299 = vadd.xlane.f32.xlu0 %v6269
  %v6300 = vpop.xlane.xlu0 %6299
  %6301 = vadd.xlane.f32.xlu0 %v6270
  %v6302 = vpop.xlane.xlu0 %6301
  %v6303 = vadd.f32 %v6224, %v6232
  %v6304 = vadd.f32 %v6226, %v6234
  %v6305 = vadd.f32 %v6228, %v6236
  %v6306 = vadd.f32 %v6230, %v6238
  %v6307 = vadd.f32 %v6303, %v6240
  %v6308 = vadd.f32 %v6304, %v6242
  %v6309 = vadd.f32 %v6305, %v6244
  %v6310 = vadd.f32 %v6306, %v6246
  %v6311 = vadd.f32 %v6307, %v6248
  %v6312 = vadd.f32 %v6308, %v6250
  %v6313 = vadd.f32 %v6309, %v6252
  %v6314 = vadd.f32 %v6310, %v6254
  %v6315 = vadd.f32 %v6272, %v6280
  %v6316 = vadd.f32 %v6274, %v6282
  %v6317 = vadd.f32 %v6276, %v6284
  %v6318 = vadd.f32 %v6278, %v6286
  %v6319 = vadd.f32 %v6315, %v6288
  %v6320 = vadd.f32 %v6316, %v6290
  %v6321 = vadd.f32 %v6317, %v6292
  %v6322 = vadd.f32 %v6318, %v6294
  %v6323 = vadd.f32 %v6319, %v6296
  %v6324 = vadd.f32 %v6320, %v6298
  %v6325 = vadd.f32 %v6321, %v6300
  %v6326 = vadd.f32 %v6322, %v6302
  %v6327 = vld [vmem:[%s14] sm:$0xff]
  %v6328 = vld [vmem:[%s14 + $0x8] sm:$0xff]
  %v6329 = vld [vmem:[%s14 + $0x10] sm:$0xff]
  %v6330 = vld [vmem:[%s14 + $0x18] sm:$0xff]
  %v6331 = vld [vmem:[%s15] sm:$0xff]
  %v6332 = vld [vmem:[%s15 + $0x8] sm:$0xff]
  %v6333 = vld [vmem:[%s15 + $0x10] sm:$0xff]
  %v6334 = vld [vmem:[%s15 + $0x18] sm:$0xff]
  %v6335 = vmul.f32 %v6311, 0.001953125
  %v6336 = vmul.f32 %v6312, 0.001953125
  %v6337 = vmul.f32 %v6313, 0.001953125
  %v6338 = vmul.f32 %v6314, 0.001953125
  %v6339 = vmul.f32 %v6323, 0.001953125
  %v6340 = vmul.f32 %v6324, 0.001953125
  %v6341 = vmul.f32 %v6325, 0.001953125
  %v6342 = vmul.f32 %v6326, 0.001953125
  %v6343 = vmul.f32 %v6335, %v6335
  %v6344 = vmul.f32 %v6336, %v6336
  %v6345 = vmul.f32 %v6337, %v6337
  %v6346 = vmul.f32 %v6338, %v6338
  %v6347 = vsub.f32 %v6339, %v6343
  %v6348 = vsub.f32 %v6340, %v6344
  %v6349 = vsub.f32 %v6341, %v6345
  %v6350 = vsub.f32 %v6342, %v6346
  %v6351 = vmax.f32 %v6347, 0.0
  %v6352 = vmax.f32 %v6348, 0.0
  %v6353 = vmax.f32 %v6349, 0.0
  %v6354 = vmax.f32 %v6350, 0.0
  %v6355 = vadd.f32 %v6351, 1e-05
  %v6356 = vadd.f32 %v6352, 1e-05
  %v6357 = vadd.f32 %v6353, 1e-05
  %v6358 = vadd.f32 %v6354, 1e-05
  %v6359 = vrsqrt.pop %v6355
  %v6360 = vrsqrt.pop %v6356
  %v6361 = vrsqrt.pop %v6357
  %v6362 = vrsqrt.pop %v6358
  %v6363 = vmul.f32 %v6327, %v6359
  %v6364 = vmul.f32 %v6328, %v6360
  %v6365 = vmul.f32 %v6329, %v6361
  %v6366 = vmul.f32 %v6330, %v6362
  %v6367 = vmul.f32 %v6335, %v6363
  %v6368 = vmul.f32 %v6336, %v6364
  %v6369 = vmul.f32 %v6337, %v6365
  %v6370 = vmul.f32 %v6338, %v6366
  %v6371 = vsub.f32 %v6331, %v6367
  %v6372 = vsub.f32 %v6332, %v6368
  %v6373 = vsub.f32 %v6333, %v6369
  %v6374 = vsub.f32 %v6334, %v6370
  %6376 = vset.pattern.permute.xlu0 0
  %6377 = vperm.xlu0 %6376, %v6363
  %v6378 = vpop.permute.xlu0 %6377
  %6381 = vset.pattern.permute.xlu0 0
  %6382 = vperm.xlu0 %6381, %v6364
  %v6383 = vpop.permute.xlu0 %6382
  %6386 = vset.pattern.permute.xlu0 0
  %6387 = vperm.xlu0 %6386, %v6365
  %v6388 = vpop.permute.xlu0 %6387
  %6391 = vset.pattern.permute.xlu0 0
  %6392 = vperm.xlu0 %6391, %v6366
  %v6393 = vpop.permute.xlu0 %6392
  %v6395 = vmul.f32 %v6207, %v6378
  %v6396 = vmul.f32 %v6208, %v6383
  %v6397 = vmul.f32 %v6209, %v6388
  %v6398 = vmul.f32 %v6210, %v6393
  %6400 = vset.pattern.permute.xlu0 0
  %6401 = vperm.xlu0 %6400, %v6371
  %v6402 = vpop.permute.xlu0 %6401
  %6405 = vset.pattern.permute.xlu0 0
  %6406 = vperm.xlu0 %6405, %v6372
  %v6407 = vpop.permute.xlu0 %6406
  %6410 = vset.pattern.permute.xlu0 0
  %6411 = vperm.xlu0 %6410, %v6373
  %v6412 = vpop.permute.xlu0 %6411
  %6415 = vset.pattern.permute.xlu0 0
  %6416 = vperm.xlu0 %6415, %v6374
  %v6417 = vpop.permute.xlu0 %6416
  %v6419 = vadd.f32 %v6395, %v6402
  %v6420 = vadd.f32 %v6396, %v6407
  %v6421 = vadd.f32 %v6397, %v6412
  %v6422 = vadd.f32 %v6398, %v6417
  %v6423 = vsub.f32 0.0, %v6419
  %v6424 = vsub.f32 0.0, %v6420
  %v6425 = vsub.f32 0.0, %v6421
  %v6426 = vsub.f32 0.0, %v6422
  %v6427 = vmul.f32 %v6423, 1.442695
  %v6428 = vpow.pop %v6427
  %v6429 = vmul.f32 %v6424, 1.442695
  %v6430 = vpow.pop %v6429
  %v6431 = vmul.f32 %v6425, 1.442695
  %v6432 = vpow.pop %v6431
  %v6433 = vmul.f32 %v6426, 1.442695
  %v6434 = vpow.pop %v6433
  %v6435 = vadd.f32 %v6428, 1.0
  %v6436 = vadd.f32 %v6430, 1.0
  %v6437 = vadd.f32 %v6432, 1.0
  %v6438 = vadd.f32 %v6434, 1.0
  %v6439 = vrcp.pop %v6435
  %v6440 = vrcp.pop %v6436
  %v6441 = vrcp.pop %v6437
  %v6442 = vrcp.pop %v6438
  %v6443 = vld [vmem:[%s16] sm:$0xff]
  %v6444 = vld [vmem:[%s16 + $0x8] sm:$0xff]
  %v6445 = vld [vmem:[%s16 + $0x10] sm:$0xff]
  %v6446 = vld [vmem:[%s16 + $0x18] sm:$0xff]
  %v6447 = vld [vmem:[%s16 + $0x20] sm:$0xff]
  %v6448 = vld [vmem:[%s16 + $0x28] sm:$0xff]
  %v6449 = vld [vmem:[%s16 + $0x30] sm:$0xff]
  %v6450 = vld [vmem:[%s16 + $0x38] sm:$0xff]
  %v6451 = vld [vmem:[%s16 + $0x40] sm:$0xff]
  %v6452 = vld [vmem:[%s16 + $0x48] sm:$0xff]
  %v6453 = vld [vmem:[%s16 + $0x50] sm:$0xff]
  %v6454 = vld [vmem:[%s16 + $0x58] sm:$0xff]
  %v6455 = vld [vmem:[%s16 + $0x60] sm:$0xff]
  %v6456 = vld [vmem:[%s16 + $0x68] sm:$0xff]
  %v6457 = vld [vmem:[%s16 + $0x70] sm:$0xff]
  %v6458 = vld [vmem:[%s16 + $0x78] sm:$0xff]
  %v6459 = vld [vmem:[%s16 + $0x80] sm:$0xff]
  %v6460 = vld [vmem:[%s16 + $0x88] sm:$0xff]
  %v6461 = vld [vmem:[%s16 + $0x90] sm:$0xff]
  %v6462 = vld [vmem:[%s16 + $0x98] sm:$0xff]
  %v6463 = vld [vmem:[%s16 + $0xa0] sm:$0xff]
  %v6464 = vld [vmem:[%s16 + $0xa8] sm:$0xff]
  %v6465 = vld [vmem:[%s16 + $0xb0] sm:$0xff]
  %v6466 = vld [vmem:[%s16 + $0xb8] sm:$0xff]
  %v6467 = vld [vmem:[%s16 + $0xc0] sm:$0xff]
  %v6468 = vld [vmem:[%s16 + $0xc8] sm:$0xff]
  %v6469 = vld [vmem:[%s16 + $0xd0] sm:$0xff]
  %v6470 = vld [vmem:[%s16 + $0xd8] sm:$0xff]
  %v6471 = vld [vmem:[%s16 + $0xe0] sm:$0xff]
  %v6472 = vld [vmem:[%s16 + $0xe8] sm:$0xff]
  %v6473 = vld [vmem:[%s16 + $0xf0] sm:$0xff]
  %v6474 = vld [vmem:[%s16 + $0xf8] sm:$0xff]
  %v6475 = vld [vmem:[%s16 + $0x100] sm:$0xff]
  %v6476 = vld [vmem:[%s16 + $0x108] sm:$0xff]
  %v6477 = vld [vmem:[%s16 + $0x110] sm:$0xff]
  %v6478 = vld [vmem:[%s16 + $0x118] sm:$0xff]
  %v6479 = vld [vmem:[%s16 + $0x120] sm:$0xff]
  %v6480 = vld [vmem:[%s16 + $0x128] sm:$0xff]
  %v6481 = vld [vmem:[%s16 + $0x130] sm:$0xff]
  %v6482 = vld [vmem:[%s16 + $0x138] sm:$0xff]
  %v6483 = vld [vmem:[%s16 + $0x140] sm:$0xff]
  %v6484 = vld [vmem:[%s16 + $0x148] sm:$0xff]
  %v6485 = vld [vmem:[%s16 + $0x150] sm:$0xff]
  %v6486 = vld [vmem:[%s16 + $0x158] sm:$0xff]
  %v6487 = vld [vmem:[%s16 + $0x160] sm:$0xff]
  %v6488 = vld [vmem:[%s16 + $0x168] sm:$0xff]
  %v6489 = vld [vmem:[%s16 + $0x170] sm:$0xff]
  %v6490 = vld [vmem:[%s16 + $0x178] sm:$0xff]
  %v6491 = vld [vmem:[%s16 + $0x180] sm:$0xff]
  %v6492 = vld [vmem:[%s16 + $0x188] sm:$0xff]
  %v6493 = vld [vmem:[%s16 + $0x190] sm:$0xff]
  %v6494 = vld [vmem:[%s16 + $0x198] sm:$0xff]
  %v6495 = vld [vmem:[%s16 + $0x1a0] sm:$0xff]
  %v6496 = vld [vmem:[%s16 + $0x1a8] sm:$0xff]
  %v6497 = vld [vmem:[%s16 + $0x1b0] sm:$0xff]
  %v6498 = vld [vmem:[%s16 + $0x1b8] sm:$0xff]
  %v6499 = vld [vmem:[%s16 + $0x1c0] sm:$0xff]
  %v6500 = vld [vmem:[%s16 + $0x1c8] sm:$0xff]
  %v6501 = vld [vmem:[%s16 + $0x1d0] sm:$0xff]
  %v6502 = vld [vmem:[%s16 + $0x1d8] sm:$0xff]
  %v6503 = vld [vmem:[%s16 + $0x1e0] sm:$0xff]
  %v6504 = vld [vmem:[%s16 + $0x1e8] sm:$0xff]
  %v6505 = vld [vmem:[%s16 + $0x1f0] sm:$0xff]
  %v6506 = vld [vmem:[%s16 + $0x1f8] sm:$0xff]
  %v6507 = vmul.f32 %v6211, %v6378
  %v6508 = vmul.f32 %v6212, %v6383
  %v6509 = vmul.f32 %v6213, %v6388
  %v6510 = vmul.f32 %v6214, %v6393
  %v6511 = vadd.f32 %v6507, %v6402
  %v6512 = vadd.f32 %v6508, %v6407
  %v6513 = vadd.f32 %v6509, %v6412
  %v6514 = vadd.f32 %v6510, %v6417
  %v6515 = vsub.f32 0.0, %v6511
  %v6516 = vsub.f32 0.0, %v6512
  %v6517 = vsub.f32 0.0, %v6513
  %v6518 = vsub.f32 0.0, %v6514
  %v6519 = vmul.f32 %v6515, 1.442695
  %v6520 = vpow.pop %v6519
  %v6521 = vmul.f32 %v6516, 1.442695
  %v6522 = vpow.pop %v6521
  %v6523 = vmul.f32 %v6517, 1.442695
  %v6524 = vpow.pop %v6523
  %v6525 = vmul.f32 %v6518, 1.442695
  %v6526 = vpow.pop %v6525
  %v6527 = vadd.f32 %v6520, 1.0
  %v6528 = vadd.f32 %v6522, 1.0
  %v6529 = vadd.f32 %v6524, 1.0
  %v6530 = vadd.f32 %v6526, 1.0
  %v6531 = vrcp.pop %v6527
  %v6532 = vrcp.pop %v6528
  %v6533 = vrcp.pop %v6529
  %v6534 = vrcp.pop %v6530
  %s6535 = scalar_lea.vmem %s16, 512
  %v6536 = vld [vmem:[%s6535] sm:$0xff]
  %v6537 = vld [vmem:[%s6535 + $0x8] sm:$0xff]
  %v6538 = vld [vmem:[%s6535 + $0x10] sm:$0xff]
  %v6539 = vld [vmem:[%s6535 + $0x18] sm:$0xff]
  %v6540 = vld [vmem:[%s6535 + $0x20] sm:$0xff]
  %v6541 = vld [vmem:[%s6535 + $0x28] sm:$0xff]
  %v6542 = vld [vmem:[%s6535 + $0x30] sm:$0xff]
  %v6543 = vld [vmem:[%s6535 + $0x38] sm:$0xff]
  %v6544 = vld [vmem:[%s6535 + $0x40] sm:$0xff]
  %v6545 = vld [vmem:[%s6535 + $0x48] sm:$0xff]
  %v6546 = vld [vmem:[%s6535 + $0x50] sm:$0xff]
  %v6547 = vld [vmem:[%s6535 + $0x58] sm:$0xff]
  %v6548 = vld [vmem:[%s6535 + $0x60] sm:$0xff]
  %v6549 = vld [vmem:[%s6535 + $0x68] sm:$0xff]
  %v6550 = vld [vmem:[%s6535 + $0x70] sm:$0xff]
  %v6551 = vld [vmem:[%s6535 + $0x78] sm:$0xff]
  %v6552 = vld [vmem:[%s6535 + $0x80] sm:$0xff]
  %v6553 = vld [vmem:[%s6535 + $0x88] sm:$0xff]
  %v6554 = vld [vmem:[%s6535 + $0x90] sm:$0xff]
  %v6555 = vld [vmem:[%s6535 + $0x98] sm:$0xff]
  %v6556 = vld [vmem:[%s6535 + $0xa0] sm:$0xff]
  %v6557 = vld [vmem:[%s6535 + $0xa8] sm:$0xff]
  %v6558 = vld [vmem:[%s6535 + $0xb0] sm:$0xff]
  %v6559 = vld [vmem:[%s6535 + $0xb8] sm:$0xff]
  %v6560 = vld [vmem:[%s6535 + $0xc0] sm:$0xff]
  %v6561 = vld [vmem:[%s6535 + $0xc8] sm:$0xff]
  %v6562 = vld [vmem:[%s6535 + $0xd0] sm:$0xff]
  %v6563 = vld [vmem:[%s6535 + $0xd8] sm:$0xff]
  %v6564 = vld [vmem:[%s6535 + $0xe0] sm:$0xff]
  %v6565 = vld [vmem:[%s6535 + $0xe8] sm:$0xff]
  %v6566 = vld [vmem:[%s6535 + $0xf0] sm:$0xff]
  %v6567 = vld [vmem:[%s6535 + $0xf8] sm:$0xff]
  %v6568 = vld [vmem:[%s6535 + $0x100] sm:$0xff]
  %v6569 = vld [vmem:[%s6535 + $0x108] sm:$0xff]
  %v6570 = vld [vmem:[%s6535 + $0x110] sm:$0xff]
  %v6571 = vld [vmem:[%s6535 + $0x118] sm:$0xff]
  %v6572 = vld [vmem:[%s6535 + $0x120] sm:$0xff]
  %v6573 = vld [vmem:[%s6535 + $0x128] sm:$0xff]
  %v6574 = vld [vmem:[%s6535 + $0x130] sm:$0xff]
  %v6575 = vld [vmem:[%s6535 + $0x138] sm:$0xff]
  %v6576 = vld [vmem:[%s6535 + $0x140] sm:$0xff]
  %v6577 = vld [vmem:[%s6535 + $0x148] sm:$0xff]
  %v6578 = vld [vmem:[%s6535 + $0x150] sm:$0xff]
  %v6579 = vld [vmem:[%s6535 + $0x158] sm:$0xff]
  %v6580 = vld [vmem:[%s6535 + $0x160] sm:$0xff]
  %v6581 = vld [vmem:[%s6535 + $0x168] sm:$0xff]
  %v6582 = vld [vmem:[%s6535 + $0x170] sm:$0xff]
  %v6583 = vld [vmem:[%s6535 + $0x178] sm:$0xff]
  %v6584 = vld [vmem:[%s6535 + $0x180] sm:$0xff]
  %v6585 = vld [vmem:[%s6535 + $0x188] sm:$0xff]
  %v6586 = vld [vmem:[%s6535 + $0x190] sm:$0xff]
  %v6587 = vld [vmem:[%s6535 + $0x198] sm:$0xff]
  %v6588 = vld [vmem:[%s6535 + $0x1a0] sm:$0xff]
  %v6589 = vld [vmem:[%s6535 + $0x1a8] sm:$0xff]
  %v6590 = vld [vmem:[%s6535 + $0x1b0] sm:$0xff]
  %v6591 = vld [vmem:[%s6535 + $0x1b8] sm:$0xff]
  %v6592 = vld [vmem:[%s6535 + $0x1c0] sm:$0xff]
  %v6593 = vld [vmem:[%s6535 + $0x1c8] sm:$0xff]
  %v6594 = vld [vmem:[%s6535 + $0x1d0] sm:$0xff]
  %v6595 = vld [vmem:[%s6535 + $0x1d8] sm:$0xff]
  %v6596 = vld [vmem:[%s6535 + $0x1e0] sm:$0xff]
  %v6597 = vld [vmem:[%s6535 + $0x1e8] sm:$0xff]
  %v6598 = vld [vmem:[%s6535 + $0x1f0] sm:$0xff]
  %v6599 = vld [vmem:[%s6535 + $0x1f8] sm:$0xff]
  %6600 = vmatprep.subr.mxu0 %v6597
  %6601 = vmatpush1.msra.mxu0 %v6596
  %6602 = vmatprep.subr.mxu0 %v6593
  %6603 = vmatpush1.msra.mxu0 %v6592
  %6604 = vmatprep.subr.mxu0 %v6589
  %6605 = vmatpush1.msra.mxu0 %v6588
  %6606 = vmatprep.subr.mxu0 %v6585
  %6607 = vmatpush1.msra.mxu0 %v6584
  %6608 = vmatprep.subr.mxu0 %v6581
  %6609 = vmatpush1.msra.mxu0 %v6580
  %6610 = vmatprep.subr.mxu0 %v6577
  %6611 = vmatpush1.msra.mxu0 %v6576
  %6612 = vmatprep.subr.mxu0 %v6573
  %6613 = vmatpush1.msra.mxu0 %v6572
  %6614 = vmatprep.subr.mxu0 %v6569
  %6615 = vmatpush1.msra.mxu0 %v6568
  %6616 = vmatprep.subr.mxu0 %v6565
  %6617 = vmatpush1.msra.mxu0 %v6564
  %6618 = vmatprep.subr.mxu0 %v6561
  %6619 = vmatpush1.msra.mxu0 %v6560
  %6620 = vmatprep.subr.mxu0 %v6557
  %6621 = vmatpush1.msra.mxu0 %v6556
  %6622 = vmatprep.subr.mxu0 %v6553
  %6623 = vmatpush1.msra.mxu0 %v6552
  %6624 = vmatprep.subr.mxu0 %v6549
  %6625 = vmatpush1.msra.mxu0 %v6548
  %6626 = vmatprep.subr.mxu0 %v6545
  %6627 = vmatpush1.msra.mxu0 %v6544
  %6628 = vmatprep.subr.mxu0 %v6541
  %6629 = vmatpush1.msra.mxu0 %v6540
  %6630 = vmatprep.subr.mxu0 %v6537
  %6631 = vmatpush1.msra.mxu0 %v6536
  %6632 = vmatprep.subr.mxu0 0.0
  %6633 = vmatpush2.msra.mxu0 0.0
  %6634 = vmatprep.subr.mxu0 0.0
  %6635 = vmatpush2.msra.mxu0 0.0
  %6636 = vmatprep.subr.mxu0 0.0
  %6637 = vmatpush2.msra.mxu0 0.0
  %6638 = vmatprep.subr.mxu0 0.0
  %6639 = vmatpush2.msra.mxu0 0.0
  %6640 = vmatprep.subr.mxu0 0.0
  %6641 = vmatpush2.msra.mxu0 0.0
  %6642 = vmatprep.subr.mxu0 0.0
  %6643 = vmatpush2.msra.mxu0 0.0
  %6644 = vmatprep.subr.mxu0 0.0
  %6645 = vmatpush2.msra.mxu0 0.0
  %6646 = vmatprep.subr.mxu0 0.0
  %6647 = vmatpush2.msra.mxu0 0.0
  %6648 = vmatprep.subr.mxu0 0.0
  %6649 = vmatpush2.msra.mxu0 0.0
  %6650 = vmatprep.subr.mxu0 0.0
  %6651 = vmatpush2.msra.mxu0 0.0
  %6652 = vmatprep.subr.mxu0 0.0
  %6653 = vmatpush2.msra.mxu0 0.0
  %6654 = vmatprep.subr.mxu0 0.0
  %6655 = vmatpush2.msra.mxu0 0.0
  %6656 = vmatprep.subr.mxu0 0.0
  %6657 = vmatpush2.msra.mxu0 0.0
  %6658 = vmatprep.subr.mxu0 0.0
  %6659 = vmatpush2.msra.mxu0 0.0
  %6660 = vmatprep.subr.mxu0 0.0
  %6661 = vmatpush2.msra.mxu0 0.0
  %6662 = vmatprep.subr.mxu0 0.0
  %6663 = vmatpush2.msra.mxu0 0.0
  %6664 = vmatprep.mubr.f32.mxu0 0.0
  %6665 = vmatmul.mubr.f32.gmra.mxu0 %v6531
  %v6666 = vpop.f32.mrf.mxu0
  %v6667 = vadd.f32 0.0, %v6666
  %v6668 = vpop.f32.mrf.mxu0
  %v6669 = vadd.f32 0.0, %v6668
  %6670 = vmatprep.mubr.f32.mxu0 0.0
  %6671 = vmatmul.mubr.f32.gmra.mxu0 %v6532
  %v6672 = vpop.f32.mrf.mxu0
  %v6673 = vadd.f32 0.0, %v6672
  %v6674 = vpop.f32.mrf.mxu0
  %v6675 = vadd.f32 0.0, %v6674
  %6676 = vmatprep.mubr.f32.mxu0 0.0
  %6677 = vmatmul.mubr.f32.gmra.mxu0 %v6533
  %v6678 = vpop.f32.mrf.mxu0
  %v6679 = vadd.f32 0.0, %v6678
  %v6680 = vpop.f32.mrf.mxu0
  %v6681 = vadd.f32 0.0, %v6680
  %6682 = vmatprep.mubr.f32.mxu0 0.0
  %6683 = vmatmul.mubr.f32.gmra.mxu0 %v6534
  %v6684 = vpop.f32.mrf.mxu0
  %v6685 = vadd.f32 0.0, %v6684
  %v6686 = vpop.f32.mrf.mxu0
  %v6687 = vadd.f32 0.0, %v6686
  %6688 = vdwg.mxu0
  %6689 = vmatprep.subr.mxu0 %v6599
  %6690 = vmatpush1.msra.mxu0 %v6598
  %6691 = vmatprep.subr.mxu0 %v6595
  %6692 = vmatpush1.msra.mxu0 %v6594
  %6693 = vmatprep.subr.mxu0 %v6591
  %6694 = vmatpush1.msra.mxu0 %v6590
  %6695 = vmatprep.subr.mxu0 %v6587
  %6696 = vmatpush1.msra.mxu0 %v6586
  %6697 = vmatprep.subr.mxu0 %v6583
  %6698 = vmatpush1.msra.mxu0 %v6582
  %6699 = vmatprep.subr.mxu0 %v6579
  %6700 = vmatpush1.msra.mxu0 %v6578
  %6701 = vmatprep.subr.mxu0 %v6575
  %6702 = vmatpush1.msra.mxu0 %v6574
  %6703 = vmatprep.subr.mxu0 %v6571
  %6704 = vmatpush1.msra.mxu0 %v6570
  %6705 = vmatprep.subr.mxu0 %v6567
  %6706 = vmatpush1.msra.mxu0 %v6566
  %6707 = vmatprep.subr.mxu0 %v6563
  %6708 = vmatpush1.msra.mxu0 %v6562
  %6709 = vmatprep.subr.mxu0 %v6559
  %6710 = vmatpush1.msra.mxu0 %v6558
  %6711 = vmatprep.subr.mxu0 %v6555
  %6712 = vmatpush1.msra.mxu0 %v6554
  %6713 = vmatprep.subr.mxu0 %v6551
  %6714 = vmatpush1.msra.mxu0 %v6550
  %6715 = vmatprep.subr.mxu0 %v6547
  %6716 = vmatpush1.msra.mxu0 %v6546
  %6717 = vmatprep.subr.mxu0 %v6543
  %6718 = vmatpush1.msra.mxu0 %v6542
  %6719 = vmatprep.subr.mxu0 %v6539
  %6720 = vmatpush1.msra.mxu0 %v6538
  %6721 = vmatprep.subr.mxu0 0.0
  %6722 = vmatpush2.msra.mxu0 0.0
  %6723 = vmatprep.subr.mxu0 0.0
  %6724 = vmatpush2.msra.mxu0 0.0
  %6725 = vmatprep.subr.mxu0 0.0
  %6726 = vmatpush2.msra.mxu0 0.0
  %6727 = vmatprep.subr.mxu0 0.0
  %6728 = vmatpush2.msra.mxu0 0.0
  %6729 = vmatprep.subr.mxu0 0.0
  %6730 = vmatpush2.msra.mxu0 0.0
  %6731 = vmatprep.subr.mxu0 0.0
  %6732 = vmatpush2.msra.mxu0 0.0
  %6733 = vmatprep.subr.mxu0 0.0
  %6734 = vmatpush2.msra.mxu0 0.0
  %6735 = vmatprep.subr.mxu0 0.0
  %6736 = vmatpush2.msra.mxu0 0.0
  %6737 = vmatprep.subr.mxu0 0.0
  %6738 = vmatpush2.msra.mxu0 0.0
  %6739 = vmatprep.subr.mxu0 0.0
  %6740 = vmatpush2.msra.mxu0 0.0
  %6741 = vmatprep.subr.mxu0 0.0
  %6742 = vmatpush2.msra.mxu0 0.0
  %6743 = vmatprep.subr.mxu0 0.0
  %6744 = vmatpush2.msra.mxu0 0.0
  %6745 = vmatprep.subr.mxu0 0.0
  %6746 = vmatpush2.msra.mxu0 0.0
  %6747 = vmatprep.subr.mxu0 0.0
  %6748 = vmatpush2.msra.mxu0 0.0
  %6749 = vmatprep.subr.mxu0 0.0
  %6750 = vmatpush2.msra.mxu0 0.0
  %6751 = vmatprep.subr.mxu0 0.0
  %6752 = vmatpush2.msra.mxu0 0.0
  %6753 = vmatprep.mubr.f32.mxu0 0.0
  %6754 = vmatmul.mubr.f32.gmra.mxu0 %v6531
  %v6755 = vpop.f32.mrf.mxu0
  %v6756 = vadd.f32 0.0, %v6755
  %v6757 = vpop.f32.mrf.mxu0
  %v6758 = vadd.f32 0.0, %v6757
  %6759 = vmatprep.mubr.f32.mxu0 0.0
  %6760 = vmatmul.mubr.f32.gmra.mxu0 %v6532
  %v6761 = vpop.f32.mrf.mxu0
  %v6762 = vadd.f32 0.0, %v6761
  %v6763 = vpop.f32.mrf.mxu0
  %v6764 = vadd.f32 0.0, %v6763
  %6765 = vmatprep.mubr.f32.mxu0 0.0
  %6766 = vmatmul.mubr.f32.gmra.mxu0 %v6533
  %v6767 = vpop.f32.mrf.mxu0
  %v6768 = vadd.f32 0.0, %v6767
  %v6769 = vpop.f32.mrf.mxu0
  %v6770 = vadd.f32 0.0, %v6769
  %6771 = vmatprep.mubr.f32.mxu0 0.0
  %6772 = vmatmul.mubr.f32.gmra.mxu0 %v6534
  %v6773 = vpop.f32.mrf.mxu0
  %v6774 = vadd.f32 0.0, %v6773
  %v6775 = vpop.f32.mrf.mxu0
  %v6776 = vadd.f32 0.0, %v6775
  %6777 = vdwg.mxu0
  %6778 = vmatprep.subr.mxu0 %v6504
  %6779 = vmatpush1.msra.mxu0 %v6503
  %6780 = vmatprep.subr.mxu0 %v6500
  %6781 = vmatpush1.msra.mxu0 %v6499
  %6782 = vmatprep.subr.mxu0 %v6496
  %6783 = vmatpush1.msra.mxu0 %v6495
  %6784 = vmatprep.subr.mxu0 %v6492
  %6785 = vmatpush1.msra.mxu0 %v6491
  %6786 = vmatprep.subr.mxu0 %v6488
  %6787 = vmatpush1.msra.mxu0 %v6487
  %6788 = vmatprep.subr.mxu0 %v6484
  %6789 = vmatpush1.msra.mxu0 %v6483
  %6790 = vmatprep.subr.mxu0 %v6480
  %6791 = vmatpush1.msra.mxu0 %v6479
  %6792 = vmatprep.subr.mxu0 %v6476
  %6793 = vmatpush1.msra.mxu0 %v6475
  %6794 = vmatprep.subr.mxu0 %v6472
  %6795 = vmatpush1.msra.mxu0 %v6471
  %6796 = vmatprep.subr.mxu0 %v6468
  %6797 = vmatpush1.msra.mxu0 %v6467
  %6798 = vmatprep.subr.mxu0 %v6464
  %6799 = vmatpush1.msra.mxu0 %v6463
  %6800 = vmatprep.subr.mxu0 %v6460
  %6801 = vmatpush1.msra.mxu0 %v6459
  %6802 = vmatprep.subr.mxu0 %v6456
  %6803 = vmatpush1.msra.mxu0 %v6455
  %6804 = vmatprep.subr.mxu0 %v6452
  %6805 = vmatpush1.msra.mxu0 %v6451
  %6806 = vmatprep.subr.mxu0 %v6448
  %6807 = vmatpush1.msra.mxu0 %v6447
  %6808 = vmatprep.subr.mxu0 %v6444
  %6809 = vmatpush1.msra.mxu0 %v6443
  %6810 = vmatprep.subr.mxu0 0.0
  %6811 = vmatpush2.msra.mxu0 0.0
  %6812 = vmatprep.subr.mxu0 0.0
  %6813 = vmatpush2.msra.mxu0 0.0
  %6814 = vmatprep.subr.mxu0 0.0
  %6815 = vmatpush2.msra.mxu0 0.0
  %6816 = vmatprep.subr.mxu0 0.0
  %6817 = vmatpush2.msra.mxu0 0.0
  %6818 = vmatprep.subr.mxu0 0.0
  %6819 = vmatpush2.msra.mxu0 0.0
  %6820 = vmatprep.subr.mxu0 0.0
  %6821 = vmatpush2.msra.mxu0 0.0
  %6822 = vmatprep.subr.mxu0 0.0
  %6823 = vmatpush2.msra.mxu0 0.0
  %6824 = vmatprep.subr.mxu0 0.0
  %6825 = vmatpush2.msra.mxu0 0.0
  %6826 = vmatprep.subr.mxu0 0.0
  %6827 = vmatpush2.msra.mxu0 0.0
  %6828 = vmatprep.subr.mxu0 0.0
  %6829 = vmatpush2.msra.mxu0 0.0
  %6830 = vmatprep.subr.mxu0 0.0
  %6831 = vmatpush2.msra.mxu0 0.0
  %6832 = vmatprep.subr.mxu0 0.0
  %6833 = vmatpush2.msra.mxu0 0.0
  %6834 = vmatprep.subr.mxu0 0.0
  %6835 = vmatpush2.msra.mxu0 0.0
  %6836 = vmatprep.subr.mxu0 0.0
  %6837 = vmatpush2.msra.mxu0 0.0
  %6838 = vmatprep.subr.mxu0 0.0
  %6839 = vmatpush2.msra.mxu0 0.0
  %6840 = vmatprep.subr.mxu0 0.0
  %6841 = vmatpush2.msra.mxu0 0.0
  %6842 = vmatprep.mubr.f32.mxu0 0.0
  %6843 = vmatmul.mubr.f32.gmra.mxu0 %v6439
  %v6844 = vpop.f32.mrf.mxu0
  %v6845 = vadd.f32 %v6667, %v6844
  %v6846 = vpop.f32.mrf.mxu0
  %v6847 = vadd.f32 %v6669, %v6846
  %6848 = vmatprep.mubr.f32.mxu0 0.0
  %6849 = vmatmul.mubr.f32.gmra.mxu0 %v6440
  %v6850 = vpop.f32.mrf.mxu0
  %v6851 = vadd.f32 %v6673, %v6850
  %v6852 = vpop.f32.mrf.mxu0
  %v6853 = vadd.f32 %v6675, %v6852
  %6854 = vmatprep.mubr.f32.mxu0 0.0
  %6855 = vmatmul.mubr.f32.gmra.mxu0 %v6441
  %v6856 = vpop.f32.mrf.mxu0
  %v6857 = vadd.f32 %v6679, %v6856
  %v6858 = vpop.f32.mrf.mxu0
  %v6859 = vadd.f32 %v6681, %v6858
  %6860 = vmatprep.mubr.f32.mxu0 0.0
  %6861 = vmatmul.mubr.f32.gmra.mxu0 %v6442
  %v6862 = vpop.f32.mrf.mxu0
  %v6863 = vadd.f32 %v6685, %v6862
  %v6864 = vpop.f32.mrf.mxu0
  %v6865 = vadd.f32 %v6687, %v6864
  %6866 = vdwg.mxu0
  %6867 = vmatprep.subr.mxu0 %v6506
  %6868 = vmatpush1.msra.mxu0 %v6505
  %6869 = vmatprep.subr.mxu0 %v6502
  %6870 = vmatpush1.msra.mxu0 %v6501
  %6871 = vmatprep.subr.mxu0 %v6498
  %6872 = vmatpush1.msra.mxu0 %v6497
  %6873 = vmatprep.subr.mxu0 %v6494
  %6874 = vmatpush1.msra.mxu0 %v6493
  %6875 = vmatprep.subr.mxu0 %v6490
  %6876 = vmatpush1.msra.mxu0 %v6489
  %6877 = vmatprep.subr.mxu0 %v6486
  %6878 = vmatpush1.msra.mxu0 %v6485
  %6879 = vmatprep.subr.mxu0 %v6482
  %6880 = vmatpush1.msra.mxu0 %v6481
  %6881 = vmatprep.subr.mxu0 %v6478
  %6882 = vmatpush1.msra.mxu0 %v6477
  %6883 = vmatprep.subr.mxu0 %v6474
  %6884 = vmatpush1.msra.mxu0 %v6473
  %6885 = vmatprep.subr.mxu0 %v6470
  %6886 = vmatpush1.msra.mxu0 %v6469
  %6887 = vmatprep.subr.mxu0 %v6466
  %6888 = vmatpush1.msra.mxu0 %v6465
  %6889 = vmatprep.subr.mxu0 %v6462
  %6890 = vmatpush1.msra.mxu0 %v6461
  %6891 = vmatprep.subr.mxu0 %v6458
  %6892 = vmatpush1.msra.mxu0 %v6457
  %6893 = vmatprep.subr.mxu0 %v6454
  %6894 = vmatpush1.msra.mxu0 %v6453
  %6895 = vmatprep.subr.mxu0 %v6450
  %6896 = vmatpush1.msra.mxu0 %v6449
  %6897 = vmatprep.subr.mxu0 %v6446
  %6898 = vmatpush1.msra.mxu0 %v6445
  %6899 = vmatprep.subr.mxu0 0.0
  %6900 = vmatpush2.msra.mxu0 0.0
  %6901 = vmatprep.subr.mxu0 0.0
  %6902 = vmatpush2.msra.mxu0 0.0
  %6903 = vmatprep.subr.mxu0 0.0
  %6904 = vmatpush2.msra.mxu0 0.0
  %6905 = vmatprep.subr.mxu0 0.0
  %6906 = vmatpush2.msra.mxu0 0.0
  %6907 = vmatprep.subr.mxu0 0.0
  %6908 = vmatpush2.msra.mxu0 0.0
  %6909 = vmatprep.subr.mxu0 0.0
  %6910 = vmatpush2.msra.mxu0 0.0
  %6911 = vmatprep.subr.mxu0 0.0
  %6912 = vmatpush2.msra.mxu0 0.0
  %6913 = vmatprep.subr.mxu0 0.0
  %6914 = vmatpush2.msra.mxu0 0.0
  %6915 = vmatprep.subr.mxu0 0.0
  %6916 = vmatpush2.msra.mxu0 0.0
  %6917 = vmatprep.subr.mxu0 0.0
  %6918 = vmatpush2.msra.mxu0 0.0
  %6919 = vmatprep.subr.mxu0 0.0
  %6920 = vmatpush2.msra.mxu0 0.0
  %6921 = vmatprep.subr.mxu0 0.0
  %6922 = vmatpush2.msra.mxu0 0.0
  %6923 = vmatprep.subr.mxu0 0.0
  %6924 = vmatpush2.msra.mxu0 0.0
  %6925 = vmatprep.subr.mxu0 0.0
  %6926 = vmatpush2.msra.mxu0 0.0
  %6927 = vmatprep.subr.mxu0 0.0
  %6928 = vmatpush2.msra.mxu0 0.0
  %6929 = vmatprep.subr.mxu0 0.0
  %6930 = vmatpush2.msra.mxu0 0.0
  %6931 = vmatprep.mubr.f32.mxu0 0.0
  %6932 = vmatmul.mubr.f32.gmra.mxu0 %v6439
  %v6933 = vpop.f32.mrf.mxu0
  %v6934 = vadd.f32 %v6756, %v6933
  %v6935 = vpop.f32.mrf.mxu0
  %v6936 = vadd.f32 %v6758, %v6935
  %6937 = vmatprep.mubr.f32.mxu0 0.0
  %6938 = vmatmul.mubr.f32.gmra.mxu0 %v6440
  %v6939 = vpop.f32.mrf.mxu0
  %v6940 = vadd.f32 %v6762, %v6939
  %v6941 = vpop.f32.mrf.mxu0
  %v6942 = vadd.f32 %v6764, %v6941
  %6943 = vmatprep.mubr.f32.mxu0 0.0
  %6944 = vmatmul.mubr.f32.gmra.mxu0 %v6441
  %v6945 = vpop.f32.mrf.mxu0
  %v6946 = vadd.f32 %v6768, %v6945
  %v6947 = vpop.f32.mrf.mxu0
  %v6948 = vadd.f32 %v6770, %v6947
  %6949 = vmatprep.mubr.f32.mxu0 0.0
  %6950 = vmatmul.mubr.f32.gmra.mxu0 %v6442
  %v6951 = vpop.f32.mrf.mxu0
  %v6952 = vadd.f32 %v6774, %v6951
  %v6953 = vpop.f32.mrf.mxu0
  %v6954 = vadd.f32 %v6776, %v6953
  %6955 = vdwg.mxu0
  %v6956 = vmul.f32 %v6215, %v6378
  %v6957 = vmul.f32 %v6216, %v6383
  %v6958 = vmul.f32 %v6217, %v6388
  %v6959 = vmul.f32 %v6218, %v6393
  %v6960 = vadd.f32 %v6956, %v6402
  %v6961 = vadd.f32 %v6957, %v6407
  %v6962 = vadd.f32 %v6958, %v6412
  %v6963 = vadd.f32 %v6959, %v6417
  %v6964 = vsub.f32 0.0, %v6960
  %v6965 = vsub.f32 0.0, %v6961
  %v6966 = vsub.f32 0.0, %v6962
  %v6967 = vsub.f32 0.0, %v6963
  %v6968 = vmul.f32 %v6964, 1.442695
  %v6969 = vpow.pop %v6968
  %v6970 = vmul.f32 %v6965, 1.442695
  %v6971 = vpow.pop %v6970
  %v6972 = vmul.f32 %v6966, 1.442695
  %v6973 = vpow.pop %v6972
  %v6974 = vmul.f32 %v6967, 1.442695
  %v6975 = vpow.pop %v6974
  %v6976 = vadd.f32 %v6969, 1.0
  %v6977 = vadd.f32 %v6971, 1.0
  %v6978 = vadd.f32 %v6973, 1.0
  %v6979 = vadd.f32 %v6975, 1.0
  %v6980 = vrcp.pop %v6976
  %v6981 = vrcp.pop %v6977
  %v6982 = vrcp.pop %v6978
  %v6983 = vrcp.pop %v6979
  %s6984 = scalar_lea.vmem %s16, 1024
  %v6985 = vld [vmem:[%s6984] sm:$0xff]
  %v6986 = vld [vmem:[%s6984 + $0x8] sm:$0xff]
  %v6987 = vld [vmem:[%s6984 + $0x10] sm:$0xff]
  %v6988 = vld [vmem:[%s6984 + $0x18] sm:$0xff]
  %v6989 = vld [vmem:[%s6984 + $0x20] sm:$0xff]
  %v6990 = vld [vmem:[%s6984 + $0x28] sm:$0xff]
  %v6991 = vld [vmem:[%s6984 + $0x30] sm:$0xff]
  %v6992 = vld [vmem:[%s6984 + $0x38] sm:$0xff]
  %v6993 = vld [vmem:[%s6984 + $0x40] sm:$0xff]
  %v6994 = vld [vmem:[%s6984 + $0x48] sm:$0xff]
  %v6995 = vld [vmem:[%s6984 + $0x50] sm:$0xff]
  %v6996 = vld [vmem:[%s6984 + $0x58] sm:$0xff]
  %v6997 = vld [vmem:[%s6984 + $0x60] sm:$0xff]
  %v6998 = vld [vmem:[%s6984 + $0x68] sm:$0xff]
  %v6999 = vld [vmem:[%s6984 + $0x70] sm:$0xff]
  %v7000 = vld [vmem:[%s6984 + $0x78] sm:$0xff]
  %v7001 = vld [vmem:[%s6984 + $0x80] sm:$0xff]
  %v7002 = vld [vmem:[%s6984 + $0x88] sm:$0xff]
  %v7003 = vld [vmem:[%s6984 + $0x90] sm:$0xff]
  %v7004 = vld [vmem:[%s6984 + $0x98] sm:$0xff]
  %v7005 = vld [vmem:[%s6984 + $0xa0] sm:$0xff]
  %v7006 = vld [vmem:[%s6984 + $0xa8] sm:$0xff]
  %v7007 = vld [vmem:[%s6984 + $0xb0] sm:$0xff]
  %v7008 = vld [vmem:[%s6984 + $0xb8] sm:$0xff]
  %v7009 = vld [vmem:[%s6984 + $0xc0] sm:$0xff]
  %v7010 = vld [vmem:[%s6984 + $0xc8] sm:$0xff]
  %v7011 = vld [vmem:[%s6984 + $0xd0] sm:$0xff]
  %v7012 = vld [vmem:[%s6984 + $0xd8] sm:$0xff]
  %v7013 = vld [vmem:[%s6984 + $0xe0] sm:$0xff]
  %v7014 = vld [vmem:[%s6984 + $0xe8] sm:$0xff]
  %v7015 = vld [vmem:[%s6984 + $0xf0] sm:$0xff]
  %v7016 = vld [vmem:[%s6984 + $0xf8] sm:$0xff]
  %v7017 = vld [vmem:[%s6984 + $0x100] sm:$0xff]
  %v7018 = vld [vmem:[%s6984 + $0x108] sm:$0xff]
  %v7019 = vld [vmem:[%s6984 + $0x110] sm:$0xff]
  %v7020 = vld [vmem:[%s6984 + $0x118] sm:$0xff]
  %v7021 = vld [vmem:[%s6984 + $0x120] sm:$0xff]
  %v7022 = vld [vmem:[%s6984 + $0x128] sm:$0xff]
  %v7023 = vld [vmem:[%s6984 + $0x130] sm:$0xff]
  %v7024 = vld [vmem:[%s6984 + $0x138] sm:$0xff]
  %v7025 = vld [vmem:[%s6984 + $0x140] sm:$0xff]
  %v7026 = vld [vmem:[%s6984 + $0x148] sm:$0xff]
  %v7027 = vld [vmem:[%s6984 + $0x150] sm:$0xff]
  %v7028 = vld [vmem:[%s6984 + $0x158] sm:$0xff]
  %v7029 = vld [vmem:[%s6984 + $0x160] sm:$0xff]
  %v7030 = vld [vmem:[%s6984 + $0x168] sm:$0xff]
  %v7031 = vld [vmem:[%s6984 + $0x170] sm:$0xff]
  %v7032 = vld [vmem:[%s6984 + $0x178] sm:$0xff]
  %v7033 = vld [vmem:[%s6984 + $0x180] sm:$0xff]
  %v7034 = vld [vmem:[%s6984 + $0x188] sm:$0xff]
  %v7035 = vld [vmem:[%s6984 + $0x190] sm:$0xff]
  %v7036 = vld [vmem:[%s6984 + $0x198] sm:$0xff]
  %v7037 = vld [vmem:[%s6984 + $0x1a0] sm:$0xff]
  %v7038 = vld [vmem:[%s6984 + $0x1a8] sm:$0xff]
  %v7039 = vld [vmem:[%s6984 + $0x1b0] sm:$0xff]
  %v7040 = vld [vmem:[%s6984 + $0x1b8] sm:$0xff]
  %v7041 = vld [vmem:[%s6984 + $0x1c0] sm:$0xff]
  %v7042 = vld [vmem:[%s6984 + $0x1c8] sm:$0xff]
  %v7043 = vld [vmem:[%s6984 + $0x1d0] sm:$0xff]
  %v7044 = vld [vmem:[%s6984 + $0x1d8] sm:$0xff]
  %v7045 = vld [vmem:[%s6984 + $0x1e0] sm:$0xff]
  %v7046 = vld [vmem:[%s6984 + $0x1e8] sm:$0xff]
  %v7047 = vld [vmem:[%s6984 + $0x1f0] sm:$0xff]
  %v7048 = vld [vmem:[%s6984 + $0x1f8] sm:$0xff]
  %7049 = vmatprep.subr.mxu0 %v7046
  %7050 = vmatpush1.msra.mxu0 %v7045
  %7051 = vmatprep.subr.mxu0 %v7042
  %7052 = vmatpush1.msra.mxu0 %v7041
  %7053 = vmatprep.subr.mxu0 %v7038
  %7054 = vmatpush1.msra.mxu0 %v7037
  %7055 = vmatprep.subr.mxu0 %v7034
  %7056 = vmatpush1.msra.mxu0 %v7033
  %7057 = vmatprep.subr.mxu0 %v7030
  %7058 = vmatpush1.msra.mxu0 %v7029
  %7059 = vmatprep.subr.mxu0 %v7026
  %7060 = vmatpush1.msra.mxu0 %v7025
  %7061 = vmatprep.subr.mxu0 %v7022
  %7062 = vmatpush1.msra.mxu0 %v7021
  %7063 = vmatprep.subr.mxu0 %v7018
  %7064 = vmatpush1.msra.mxu0 %v7017
  %7065 = vmatprep.subr.mxu0 %v7014
  %7066 = vmatpush1.msra.mxu0 %v7013
  %7067 = vmatprep.subr.mxu0 %v7010
  %7068 = vmatpush1.msra.mxu0 %v7009
  %7069 = vmatprep.subr.mxu0 %v7006
  %7070 = vmatpush1.msra.mxu0 %v7005
  %7071 = vmatprep.subr.mxu0 %v7002
  %7072 = vmatpush1.msra.mxu0 %v7001
  %7073 = vmatprep.subr.mxu0 %v6998
  %7074 = vmatpush1.msra.mxu0 %v6997
  %7075 = vmatprep.subr.mxu0 %v6994
  %7076 = vmatpush1.msra.mxu0 %v6993
  %7077 = vmatprep.subr.mxu0 %v6990
  %7078 = vmatpush1.msra.mxu0 %v6989
  %7079 = vmatprep.subr.mxu0 %v6986
  %7080 = vmatpush1.msra.mxu0 %v6985
  %7081 = vmatprep.subr.mxu0 0.0
  %7082 = vmatpush2.msra.mxu0 0.0
  %7083 = vmatprep.subr.mxu0 0.0
  %7084 = vmatpush2.msra.mxu0 0.0
  %7085 = vmatprep.subr.mxu0 0.0
  %7086 = vmatpush2.msra.mxu0 0.0
  %7087 = vmatprep.subr.mxu0 0.0
  %7088 = vmatpush2.msra.mxu0 0.0
  %7089 = vmatprep.subr.mxu0 0.0
  %7090 = vmatpush2.msra.mxu0 0.0
  %7091 = vmatprep.subr.mxu0 0.0
  %7092 = vmatpush2.msra.mxu0 0.0
  %7093 = vmatprep.subr.mxu0 0.0
  %7094 = vmatpush2.msra.mxu0 0.0
  %7095 = vmatprep.subr.mxu0 0.0
  %7096 = vmatpush2.msra.mxu0 0.0
  %7097 = vmatprep.subr.mxu0 0.0
  %7098 = vmatpush2.msra.mxu0 0.0
  %7099 = vmatprep.subr.mxu0 0.0
  %7100 = vmatpush2.msra.mxu0 0.0
  %7101 = vmatprep.subr.mxu0 0.0
  %7102 = vmatpush2.msra.mxu0 0.0
  %7103 = vmatprep.subr.mxu0 0.0
  %7104 = vmatpush2.msra.mxu0 0.0
  %7105 = vmatprep.subr.mxu0 0.0
  %7106 = vmatpush2.msra.mxu0 0.0
  %7107 = vmatprep.subr.mxu0 0.0
  %7108 = vmatpush2.msra.mxu0 0.0
  %7109 = vmatprep.subr.mxu0 0.0
  %7110 = vmatpush2.msra.mxu0 0.0
  %7111 = vmatprep.subr.mxu0 0.0
  %7112 = vmatpush2.msra.mxu0 0.0
  %7113 = vmatprep.mubr.f32.mxu0 0.0
  %7114 = vmatmul.mubr.f32.gmra.mxu0 %v6980
  %v7115 = vpop.f32.mrf.mxu0
  %v7116 = vadd.f32 0.0, %v7115
  %v7117 = vpop.f32.mrf.mxu0
  %v7118 = vadd.f32 0.0, %v7117
  %7119 = vmatprep.mubr.f32.mxu0 0.0
  %7120 = vmatmul.mubr.f32.gmra.mxu0 %v6981
  %v7121 = vpop.f32.mrf.mxu0
  %v7122 = vadd.f32 0.0, %v7121
  %v7123 = vpop.f32.mrf.mxu0
  %v7124 = vadd.f32 0.0, %v7123
  %7125 = vmatprep.mubr.f32.mxu0 0.0
  %7126 = vmatmul.mubr.f32.gmra.mxu0 %v6982
  %v7127 = vpop.f32.mrf.mxu0
  %v7128 = vadd.f32 0.0, %v7127
  %v7129 = vpop.f32.mrf.mxu0
  %v7130 = vadd.f32 0.0, %v7129
  %7131 = vmatprep.mubr.f32.mxu0 0.0
  %7132 = vmatmul.mubr.f32.gmra.mxu0 %v6983
  %v7133 = vpop.f32.mrf.mxu0
  %v7134 = vadd.f32 0.0, %v7133
  %v7135 = vpop.f32.mrf.mxu0
  %v7136 = vadd.f32 0.0, %v7135
  %7137 = vdwg.mxu0
  %7138 = vmatprep.subr.mxu0 %v7048
  %7139 = vmatpush1.msra.mxu0 %v7047
  %7140 = vmatprep.subr.mxu0 %v7044
  %7141 = vmatpush1.msra.mxu0 %v7043
  %7142 = vmatprep.subr.mxu0 %v7040
  %7143 = vmatpush1.msra.mxu0 %v7039
  %7144 = vmatprep.subr.mxu0 %v7036
  %7145 = vmatpush1.msra.mxu0 %v7035
  %7146 = vmatprep.subr.mxu0 %v7032
  %7147 = vmatpush1.msra.mxu0 %v7031
  %7148 = vmatprep.subr.mxu0 %v7028
  %7149 = vmatpush1.msra.mxu0 %v7027
  %7150 = vmatprep.subr.mxu0 %v7024
  %7151 = vmatpush1.msra.mxu0 %v7023
  %7152 = vmatprep.subr.mxu0 %v7020
  %7153 = vmatpush1.msra.mxu0 %v7019
  %7154 = vmatprep.subr.mxu0 %v7016
  %7155 = vmatpush1.msra.mxu0 %v7015
  %7156 = vmatprep.subr.mxu0 %v7012
  %7157 = vmatpush1.msra.mxu0 %v7011
  %7158 = vmatprep.subr.mxu0 %v7008
  %7159 = vmatpush1.msra.mxu0 %v7007
  %7160 = vmatprep.subr.mxu0 %v7004
  %7161 = vmatpush1.msra.mxu0 %v7003
  %7162 = vmatprep.subr.mxu0 %v7000
  %7163 = vmatpush1.msra.mxu0 %v6999
  %7164 = vmatprep.subr.mxu0 %v6996
  %7165 = vmatpush1.msra.mxu0 %v6995
  %7166 = vmatprep.subr.mxu0 %v6992
  %7167 = vmatpush1.msra.mxu0 %v6991
  %7168 = vmatprep.subr.mxu0 %v6988
  %7169 = vmatpush1.msra.mxu0 %v6987
  %7170 = vmatprep.subr.mxu0 0.0
  %7171 = vmatpush2.msra.mxu0 0.0
  %7172 = vmatprep.subr.mxu0 0.0
  %7173 = vmatpush2.msra.mxu0 0.0
  %7174 = vmatprep.subr.mxu0 0.0
  %7175 = vmatpush2.msra.mxu0 0.0
  %7176 = vmatprep.subr.mxu0 0.0
  %7177 = vmatpush2.msra.mxu0 0.0
  %7178 = vmatprep.subr.mxu0 0.0
  %7179 = vmatpush2.msra.mxu0 0.0
  %7180 = vmatprep.subr.mxu0 0.0
  %7181 = vmatpush2.msra.mxu0 0.0
  %7182 = vmatprep.subr.mxu0 0.0
  %7183 = vmatpush2.msra.mxu0 0.0
  %7184 = vmatprep.subr.mxu0 0.0
  %7185 = vmatpush2.msra.mxu0 0.0
  %7186 = vmatprep.subr.mxu0 0.0
  %7187 = vmatpush2.msra.mxu0 0.0
  %7188 = vmatprep.subr.mxu0 0.0
  %7189 = vmatpush2.msra.mxu0 0.0
  %7190 = vmatprep.subr.mxu0 0.0
  %7191 = vmatpush2.msra.mxu0 0.0
  %7192 = vmatprep.subr.mxu0 0.0
  %7193 = vmatpush2.msra.mxu0 0.0
  %7194 = vmatprep.subr.mxu0 0.0
  %7195 = vmatpush2.msra.mxu0 0.0
  %7196 = vmatprep.subr.mxu0 0.0
  %7197 = vmatpush2.msra.mxu0 0.0
  %7198 = vmatprep.subr.mxu0 0.0
  %7199 = vmatpush2.msra.mxu0 0.0
  %7200 = vmatprep.subr.mxu0 0.0
  %7201 = vmatpush2.msra.mxu0 0.0
  %7202 = vmatprep.mubr.f32.mxu0 0.0
  %7203 = vmatmul.mubr.f32.gmra.mxu0 %v6980
  %v7204 = vpop.f32.mrf.mxu0
  %v7205 = vadd.f32 0.0, %v7204
  %v7206 = vpop.f32.mrf.mxu0
  %v7207 = vadd.f32 0.0, %v7206
  %7208 = vmatprep.mubr.f32.mxu0 0.0
  %7209 = vmatmul.mubr.f32.gmra.mxu0 %v6981
  %v7210 = vpop.f32.mrf.mxu0
  %v7211 = vadd.f32 0.0, %v7210
  %v7212 = vpop.f32.mrf.mxu0
  %v7213 = vadd.f32 0.0, %v7212
  %7214 = vmatprep.mubr.f32.mxu0 0.0
  %7215 = vmatmul.mubr.f32.gmra.mxu0 %v6982
  %v7216 = vpop.f32.mrf.mxu0
  %v7217 = vadd.f32 0.0, %v7216
  %v7218 = vpop.f32.mrf.mxu0
  %v7219 = vadd.f32 0.0, %v7218
  %7220 = vmatprep.mubr.f32.mxu0 0.0
  %7221 = vmatmul.mubr.f32.gmra.mxu0 %v6983
  %v7222 = vpop.f32.mrf.mxu0
  %v7223 = vadd.f32 0.0, %v7222
  %v7224 = vpop.f32.mrf.mxu0
  %v7225 = vadd.f32 0.0, %v7224
  %7226 = vdwg.mxu0
  %v7227 = vadd.f32 %v6845, %v7116
  %v7228 = vadd.f32 %v6847, %v7118
  %v7229 = vadd.f32 %v6934, %v7205
  %v7230 = vadd.f32 %v6936, %v7207
  %v7231 = vadd.f32 %v6851, %v7122
  %v7232 = vadd.f32 %v6853, %v7124
  %v7233 = vadd.f32 %v6940, %v7211
  %v7234 = vadd.f32 %v6942, %v7213
  %v7235 = vadd.f32 %v6857, %v7128
  %v7236 = vadd.f32 %v6859, %v7130
  %v7237 = vadd.f32 %v6946, %v7217
  %v7238 = vadd.f32 %v6948, %v7219
  %v7239 = vadd.f32 %v6863, %v7134
  %v7240 = vadd.f32 %v6865, %v7136
  %v7241 = vadd.f32 %v6952, %v7223
  %v7242 = vadd.f32 %v6954, %v7225
  %v7243 = vmul.f32 %v6219, %v6378
  %v7244 = vmul.f32 %v6220, %v6383
  %v7245 = vmul.f32 %v6221, %v6388
  %v7246 = vmul.f32 %v6222, %v6393
  %v7247 = vadd.f32 %v7243, %v6402
  %v7248 = vadd.f32 %v7244, %v6407
  %v7249 = vadd.f32 %v7245, %v6412
  %v7250 = vadd.f32 %v7246, %v6417
  %v7251 = vsub.f32 0.0, %v7247
  %v7252 = vsub.f32 0.0, %v7248
  %v7253 = vsub.f32 0.0, %v7249
  %v7254 = vsub.f32 0.0, %v7250
  %v7255 = vmul.f32 %v7251, 1.442695
  %v7256 = vpow.pop %v7255
  %v7257 = vmul.f32 %v7252, 1.442695
  %v7258 = vpow.pop %v7257
  %v7259 = vmul.f32 %v7253, 1.442695
  %v7260 = vpow.pop %v7259
  %v7261 = vmul.f32 %v7254, 1.442695
  %v7262 = vpow.pop %v7261
  %v7263 = vadd.f32 %v7256, 1.0
  %v7264 = vadd.f32 %v7258, 1.0
  %v7265 = vadd.f32 %v7260, 1.0
  %v7266 = vadd.f32 %v7262, 1.0
  %v7267 = vrcp.pop %v7263
  %v7268 = vrcp.pop %v7264
  %v7269 = vrcp.pop %v7265
  %v7270 = vrcp.pop %v7266
  %s7271 = scalar_lea.vmem %s16, 1536
  %v7272 = vld [vmem:[%s7271] sm:$0xff]
  %v7273 = vld [vmem:[%s7271 + $0x8] sm:$0xff]
  %v7274 = vld [vmem:[%s7271 + $0x10] sm:$0xff]
  %v7275 = vld [vmem:[%s7271 + $0x18] sm:$0xff]
  %v7276 = vld [vmem:[%s7271 + $0x20] sm:$0xff]
  %v7277 = vld [vmem:[%s7271 + $0x28] sm:$0xff]
  %v7278 = vld [vmem:[%s7271 + $0x30] sm:$0xff]
  %v7279 = vld [vmem:[%s7271 + $0x38] sm:$0xff]
  %v7280 = vld [vmem:[%s7271 + $0x40] sm:$0xff]
  %v7281 = vld [vmem:[%s7271 + $0x48] sm:$0xff]
  %v7282 = vld [vmem:[%s7271 + $0x50] sm:$0xff]
  %v7283 = vld [vmem:[%s7271 + $0x58] sm:$0xff]
  %v7284 = vld [vmem:[%s7271 + $0x60] sm:$0xff]
  %v7285 = vld [vmem:[%s7271 + $0x68] sm:$0xff]
  %v7286 = vld [vmem:[%s7271 + $0x70] sm:$0xff]
  %v7287 = vld [vmem:[%s7271 + $0x78] sm:$0xff]
  %v7288 = vld [vmem:[%s7271 + $0x80] sm:$0xff]
  %v7289 = vld [vmem:[%s7271 + $0x88] sm:$0xff]
  %v7290 = vld [vmem:[%s7271 + $0x90] sm:$0xff]
  %v7291 = vld [vmem:[%s7271 + $0x98] sm:$0xff]
  %v7292 = vld [vmem:[%s7271 + $0xa0] sm:$0xff]
  %v7293 = vld [vmem:[%s7271 + $0xa8] sm:$0xff]
  %v7294 = vld [vmem:[%s7271 + $0xb0] sm:$0xff]
  %v7295 = vld [vmem:[%s7271 + $0xb8] sm:$0xff]
  %v7296 = vld [vmem:[%s7271 + $0xc0] sm:$0xff]
  %v7297 = vld [vmem:[%s7271 + $0xc8] sm:$0xff]
  %v7298 = vld [vmem:[%s7271 + $0xd0] sm:$0xff]
  %v7299 = vld [vmem:[%s7271 + $0xd8] sm:$0xff]
  %v7300 = vld [vmem:[%s7271 + $0xe0] sm:$0xff]
  %v7301 = vld [vmem:[%s7271 + $0xe8] sm:$0xff]
  %v7302 = vld [vmem:[%s7271 + $0xf0] sm:$0xff]
  %v7303 = vld [vmem:[%s7271 + $0xf8] sm:$0xff]
  %v7304 = vld [vmem:[%s7271 + $0x100] sm:$0xff]
  %v7305 = vld [vmem:[%s7271 + $0x108] sm:$0xff]
  %v7306 = vld [vmem:[%s7271 + $0x110] sm:$0xff]
  %v7307 = vld [vmem:[%s7271 + $0x118] sm:$0xff]
  %v7308 = vld [vmem:[%s7271 + $0x120] sm:$0xff]
  %v7309 = vld [vmem:[%s7271 + $0x128] sm:$0xff]
  %v7310 = vld [vmem:[%s7271 + $0x130] sm:$0xff]
  %v7311 = vld [vmem:[%s7271 + $0x138] sm:$0xff]
  %v7312 = vld [vmem:[%s7271 + $0x140] sm:$0xff]
  %v7313 = vld [vmem:[%s7271 + $0x148] sm:$0xff]
  %v7314 = vld [vmem:[%s7271 + $0x150] sm:$0xff]
  %v7315 = vld [vmem:[%s7271 + $0x158] sm:$0xff]
  %v7316 = vld [vmem:[%s7271 + $0x160] sm:$0xff]
  %v7317 = vld [vmem:[%s7271 + $0x168] sm:$0xff]
  %v7318 = vld [vmem:[%s7271 + $0x170] sm:$0xff]
  %v7319 = vld [vmem:[%s7271 + $0x178] sm:$0xff]
  %v7320 = vld [vmem:[%s7271 + $0x180] sm:$0xff]
  %v7321 = vld [vmem:[%s7271 + $0x188] sm:$0xff]
  %v7322 = vld [vmem:[%s7271 + $0x190] sm:$0xff]
  %v7323 = vld [vmem:[%s7271 + $0x198] sm:$0xff]
  %v7324 = vld [vmem:[%s7271 + $0x1a0] sm:$0xff]
  %v7325 = vld [vmem:[%s7271 + $0x1a8] sm:$0xff]
  %v7326 = vld [vmem:[%s7271 + $0x1b0] sm:$0xff]
  %v7327 = vld [vmem:[%s7271 + $0x1b8] sm:$0xff]
  %v7328 = vld [vmem:[%s7271 + $0x1c0] sm:$0xff]
  %v7329 = vld [vmem:[%s7271 + $0x1c8] sm:$0xff]
  %v7330 = vld [vmem:[%s7271 + $0x1d0] sm:$0xff]
  %v7331 = vld [vmem:[%s7271 + $0x1d8] sm:$0xff]
  %v7332 = vld [vmem:[%s7271 + $0x1e0] sm:$0xff]
  %v7333 = vld [vmem:[%s7271 + $0x1e8] sm:$0xff]
  %v7334 = vld [vmem:[%s7271 + $0x1f0] sm:$0xff]
  %v7335 = vld [vmem:[%s7271 + $0x1f8] sm:$0xff]
  %7336 = vmatprep.subr.mxu0 %v7333
  %7337 = vmatpush1.msra.mxu0 %v7332
  %7338 = vmatprep.subr.mxu0 %v7329
  %7339 = vmatpush1.msra.mxu0 %v7328
  %7340 = vmatprep.subr.mxu0 %v7325
  %7341 = vmatpush1.msra.mxu0 %v7324
  %7342 = vmatprep.subr.mxu0 %v7321
  %7343 = vmatpush1.msra.mxu0 %v7320
  %7344 = vmatprep.subr.mxu0 %v7317
  %7345 = vmatpush1.msra.mxu0 %v7316
  %7346 = vmatprep.subr.mxu0 %v7313
  %7347 = vmatpush1.msra.mxu0 %v7312
  %7348 = vmatprep.subr.mxu0 %v7309
  %7349 = vmatpush1.msra.mxu0 %v7308
  %7350 = vmatprep.subr.mxu0 %v7305
  %7351 = vmatpush1.msra.mxu0 %v7304
  %7352 = vmatprep.subr.mxu0 %v7301
  %7353 = vmatpush1.msra.mxu0 %v7300
  %7354 = vmatprep.subr.mxu0 %v7297
  %7355 = vmatpush1.msra.mxu0 %v7296
  %7356 = vmatprep.subr.mxu0 %v7293
  %7357 = vmatpush1.msra.mxu0 %v7292
  %7358 = vmatprep.subr.mxu0 %v7289
  %7359 = vmatpush1.msra.mxu0 %v7288
  %7360 = vmatprep.subr.mxu0 %v7285
  %7361 = vmatpush1.msra.mxu0 %v7284
  %7362 = vmatprep.subr.mxu0 %v7281
  %7363 = vmatpush1.msra.mxu0 %v7280
  %7364 = vmatprep.subr.mxu0 %v7277
  %7365 = vmatpush1.msra.mxu0 %v7276
  %7366 = vmatprep.subr.mxu0 %v7273
  %7367 = vmatpush1.msra.mxu0 %v7272
  %7368 = vmatprep.subr.mxu0 0.0
  %7369 = vmatpush2.msra.mxu0 0.0
  %7370 = vmatprep.subr.mxu0 0.0
  %7371 = vmatpush2.msra.mxu0 0.0
  %7372 = vmatprep.subr.mxu0 0.0
  %7373 = vmatpush2.msra.mxu0 0.0
  %7374 = vmatprep.subr.mxu0 0.0
  %7375 = vmatpush2.msra.mxu0 0.0
  %7376 = vmatprep.subr.mxu0 0.0
  %7377 = vmatpush2.msra.mxu0 0.0
  %7378 = vmatprep.subr.mxu0 0.0
  %7379 = vmatpush2.msra.mxu0 0.0
  %7380 = vmatprep.subr.mxu0 0.0
  %7381 = vmatpush2.msra.mxu0 0.0
  %7382 = vmatprep.subr.mxu0 0.0
  %7383 = vmatpush2.msra.mxu0 0.0
  %7384 = vmatprep.subr.mxu0 0.0
  %7385 = vmatpush2.msra.mxu0 0.0
  %7386 = vmatprep.subr.mxu0 0.0
  %7387 = vmatpush2.msra.mxu0 0.0
  %7388 = vmatprep.subr.mxu0 0.0
  %7389 = vmatpush2.msra.mxu0 0.0
  %7390 = vmatprep.subr.mxu0 0.0
  %7391 = vmatpush2.msra.mxu0 0.0
  %7392 = vmatprep.subr.mxu0 0.0
  %7393 = vmatpush2.msra.mxu0 0.0
  %7394 = vmatprep.subr.mxu0 0.0
  %7395 = vmatpush2.msra.mxu0 0.0
  %7396 = vmatprep.subr.mxu0 0.0
  %7397 = vmatpush2.msra.mxu0 0.0
  %7398 = vmatprep.subr.mxu0 0.0
  %7399 = vmatpush2.msra.mxu0 0.0
  %7400 = vmatprep.mubr.f32.mxu0 0.0
  %7401 = vmatmul.mubr.f32.gmra.mxu0 %v7267
  %v7402 = vpop.f32.mrf.mxu0
  %v7403 = vadd.f32 0.0, %v7402
  %v7404 = vpop.f32.mrf.mxu0
  %v7405 = vadd.f32 0.0, %v7404
  %7406 = vmatprep.mubr.f32.mxu0 0.0
  %7407 = vmatmul.mubr.f32.gmra.mxu0 %v7268
  %v7408 = vpop.f32.mrf.mxu0
  %v7409 = vadd.f32 0.0, %v7408
  %v7410 = vpop.f32.mrf.mxu0
  %v7411 = vadd.f32 0.0, %v7410
  %7412 = vmatprep.mubr.f32.mxu0 0.0
  %7413 = vmatmul.mubr.f32.gmra.mxu0 %v7269
  %v7414 = vpop.f32.mrf.mxu0
  %v7415 = vadd.f32 0.0, %v7414
  %v7416 = vpop.f32.mrf.mxu0
  %v7417 = vadd.f32 0.0, %v7416
  %7418 = vmatprep.mubr.f32.mxu0 0.0
  %7419 = vmatmul.mubr.f32.gmra.mxu0 %v7270
  %v7420 = vpop.f32.mrf.mxu0
  %v7421 = vadd.f32 0.0, %v7420
  %v7422 = vpop.f32.mrf.mxu0
  %v7423 = vadd.f32 0.0, %v7422
  %7424 = vdwg.mxu0
  %7425 = vmatprep.subr.mxu0 %v7335
  %7426 = vmatpush1.msra.mxu0 %v7334
  %7427 = vmatprep.subr.mxu0 %v7331
  %7428 = vmatpush1.msra.mxu0 %v7330
  %7429 = vmatprep.subr.mxu0 %v7327
  %7430 = vmatpush1.msra.mxu0 %v7326
  %7431 = vmatprep.subr.mxu0 %v7323
  %7432 = vmatpush1.msra.mxu0 %v7322
  %7433 = vmatprep.subr.mxu0 %v7319
  %7434 = vmatpush1.msra.mxu0 %v7318
  %7435 = vmatprep.subr.mxu0 %v7315
  %7436 = vmatpush1.msra.mxu0 %v7314
  %7437 = vmatprep.subr.mxu0 %v7311
  %7438 = vmatpush1.msra.mxu0 %v7310
  %7439 = vmatprep.subr.mxu0 %v7307
  %7440 = vmatpush1.msra.mxu0 %v7306
  %7441 = vmatprep.subr.mxu0 %v7303
  %7442 = vmatpush1.msra.mxu0 %v7302
  %7443 = vmatprep.subr.mxu0 %v7299
  %7444 = vmatpush1.msra.mxu0 %v7298
  %7445 = vmatprep.subr.mxu0 %v7295
  %7446 = vmatpush1.msra.mxu0 %v7294
  %7447 = vmatprep.subr.mxu0 %v7291
  %7448 = vmatpush1.msra.mxu0 %v7290
  %7449 = vmatprep.subr.mxu0 %v7287
  %7450 = vmatpush1.msra.mxu0 %v7286
  %7451 = vmatprep.subr.mxu0 %v7283
  %7452 = vmatpush1.msra.mxu0 %v7282
  %7453 = vmatprep.subr.mxu0 %v7279
  %7454 = vmatpush1.msra.mxu0 %v7278
  %7455 = vmatprep.subr.mxu0 %v7275
  %7456 = vmatpush1.msra.mxu0 %v7274
  %7457 = vmatprep.subr.mxu0 0.0
  %7458 = vmatpush2.msra.mxu0 0.0
  %7459 = vmatprep.subr.mxu0 0.0
  %7460 = vmatpush2.msra.mxu0 0.0
  %7461 = vmatprep.subr.mxu0 0.0
  %7462 = vmatpush2.msra.mxu0 0.0
  %7463 = vmatprep.subr.mxu0 0.0
  %7464 = vmatpush2.msra.mxu0 0.0
  %7465 = vmatprep.subr.mxu0 0.0
  %7466 = vmatpush2.msra.mxu0 0.0
  %7467 = vmatprep.subr.mxu0 0.0
  %7468 = vmatpush2.msra.mxu0 0.0
  %7469 = vmatprep.subr.mxu0 0.0
  %7470 = vmatpush2.msra.mxu0 0.0
  %7471 = vmatprep.subr.mxu0 0.0
  %7472 = vmatpush2.msra.mxu0 0.0
  %7473 = vmatprep.subr.mxu0 0.0
  %7474 = vmatpush2.msra.mxu0 0.0
  %7475 = vmatprep.subr.mxu0 0.0
  %7476 = vmatpush2.msra.mxu0 0.0
  %7477 = vmatprep.subr.mxu0 0.0
  %7478 = vmatpush2.msra.mxu0 0.0
  %7479 = vmatprep.subr.mxu0 0.0
  %7480 = vmatpush2.msra.mxu0 0.0
  %7481 = vmatprep.subr.mxu0 0.0
  %7482 = vmatpush2.msra.mxu0 0.0
  %7483 = vmatprep.subr.mxu0 0.0
  %7484 = vmatpush2.msra.mxu0 0.0
  %7485 = vmatprep.subr.mxu0 0.0
  %7486 = vmatpush2.msra.mxu0 0.0
  %7487 = vmatprep.subr.mxu0 0.0
  %7488 = vmatpush2.msra.mxu0 0.0
  %7489 = vmatprep.mubr.f32.mxu0 0.0
  %7490 = vmatmul.mubr.f32.gmra.mxu0 %v7267
  %v7491 = vpop.f32.mrf.mxu0
  %v7492 = vadd.f32 0.0, %v7491
  %v7493 = vpop.f32.mrf.mxu0
  %v7494 = vadd.f32 0.0, %v7493
  %7495 = vmatprep.mubr.f32.mxu0 0.0
  %7496 = vmatmul.mubr.f32.gmra.mxu0 %v7268
  %v7497 = vpop.f32.mrf.mxu0
  %v7498 = vadd.f32 0.0, %v7497
  %v7499 = vpop.f32.mrf.mxu0
  %v7500 = vadd.f32 0.0, %v7499
  %7501 = vmatprep.mubr.f32.mxu0 0.0
  %7502 = vmatmul.mubr.f32.gmra.mxu0 %v7269
  %v7503 = vpop.f32.mrf.mxu0
  %v7504 = vadd.f32 0.0, %v7503
  %v7505 = vpop.f32.mrf.mxu0
  %v7506 = vadd.f32 0.0, %v7505
  %7507 = vmatprep.mubr.f32.mxu0 0.0
  %7508 = vmatmul.mubr.f32.gmra.mxu0 %v7270
  %v7509 = vpop.f32.mrf.mxu0
  %v7510 = vadd.f32 0.0, %v7509
  %v7511 = vpop.f32.mrf.mxu0
  %v7512 = vadd.f32 0.0, %v7511
  %7513 = vdwg.mxu0
  %v7514 = vadd.f32 %v7227, %v7403
  %v7515 = vadd.f32 %v7228, %v7405
  %v7516 = vadd.f32 %v7229, %v7492
  %v7517 = vadd.f32 %v7230, %v7494
  %v7518 = vadd.f32 %v7231, %v7409
  %v7519 = vadd.f32 %v7232, %v7411
  %v7520 = vadd.f32 %v7233, %v7498
  %v7521 = vadd.f32 %v7234, %v7500
  %v7522 = vadd.f32 %v7235, %v7415
  %v7523 = vadd.f32 %v7236, %v7417
  %v7524 = vadd.f32 %v7237, %v7504
  %v7525 = vadd.f32 %v7238, %v7506
  %v7526 = vadd.f32 %v7239, %v7421
  %v7527 = vadd.f32 %v7240, %v7423
  %v7528 = vadd.f32 %v7241, %v7510
  %v7529 = vadd.f32 %v7242, %v7512
  %v7530 = vld [vmem:[%s17] sm:$0xff]
  %v7531 = vld [vmem:[%s18] sm:$0xff]
  %7533 = vset.pattern.permute.xlu0 0
  %7534 = vperm.xlu0 %7533, %v7531
  %v7535 = vpop.permute.xlu0 %7534
  %v7538 = vsel %vm74, %v7530, 0
  %7540 = vmatprep.subr.mxu0 0.0
  %7541 = vmatpush1.msra.mxu0 0.0
  %7542 = vmatprep.subr.mxu0 0.0
  %7543 = vmatpush1.msra.mxu0 0.0
  %7544 = vmatprep.subr.mxu0 0.0
  %7545 = vmatpush1.msra.mxu0 0.0
  %7546 = vmatprep.subr.mxu0 0.0
  %7547 = vmatpush1.msra.mxu0 0.0
  %7548 = vmatprep.subr.mxu0 0.0
  %7549 = vmatpush1.msra.mxu0 0.0
  %7550 = vmatprep.subr.mxu0 0.0
  %7551 = vmatpush1.msra.mxu0 0.0
  %7552 = vmatprep.subr.mxu0 0.0
  %7553 = vmatpush1.msra.mxu0 0.0
  %7554 = vmatprep.subr.mxu0 0.0
  %7555 = vmatpush1.msra.mxu0 0.0
  %7556 = vmatprep.subr.mxu0 0.0
  %7557 = vmatpush1.msra.mxu0 0.0
  %7558 = vmatprep.subr.mxu0 0.0
  %7559 = vmatpush1.msra.mxu0 0.0
  %7560 = vmatprep.subr.mxu0 0.0
  %7561 = vmatpush1.msra.mxu0 0.0
  %7562 = vmatprep.subr.mxu0 0.0
  %7563 = vmatpush1.msra.mxu0 0.0
  %7564 = vmatprep.subr.mxu0 %v7527
  %7565 = vmatpush1.msra.mxu0 %v7526
  %7566 = vmatprep.subr.mxu0 %v7523
  %7567 = vmatpush1.msra.mxu0 %v7522
  %7568 = vmatprep.subr.mxu0 %v7519
  %7569 = vmatpush1.msra.mxu0 %v7518
  %7570 = vmatprep.subr.mxu0 %v7515
  %7571 = vmatpush1.msra.mxu0 %v7514
  %7572 = vmatprep.subr.mxu0 0.0
  %7573 = vmatpush2.msra.mxu0 0.0
  %7574 = vmatprep.subr.mxu0 0.0
  %7575 = vmatpush2.msra.mxu0 0.0
  %7576 = vmatprep.subr.mxu0 0.0
  %7577 = vmatpush2.msra.mxu0 0.0
  %7578 = vmatprep.subr.mxu0 0.0
  %7579 = vmatpush2.msra.mxu0 0.0
  %7580 = vmatprep.subr.mxu0 0.0
  %7581 = vmatpush2.msra.mxu0 0.0
  %7582 = vmatprep.subr.mxu0 0.0
  %7583 = vmatpush2.msra.mxu0 0.0
  %7584 = vmatprep.subr.mxu0 0.0
  %7585 = vmatpush2.msra.mxu0 0.0
  %7586 = vmatprep.subr.mxu0 0.0
  %7587 = vmatpush2.msra.mxu0 0.0
  %7588 = vmatprep.subr.mxu0 0.0
  %7589 = vmatpush2.msra.mxu0 0.0
  %7590 = vmatprep.subr.mxu0 0.0
  %7591 = vmatpush2.msra.mxu0 0.0
  %7592 = vmatprep.subr.mxu0 0.0
  %7593 = vmatpush2.msra.mxu0 0.0
  %7594 = vmatprep.subr.mxu0 0.0
  %7595 = vmatpush2.msra.mxu0 0.0
  %7596 = vmatprep.subr.mxu0 0.0
  %7597 = vmatpush2.msra.mxu0 0.0
  %7598 = vmatprep.subr.mxu0 0.0
  %7599 = vmatpush2.msra.mxu0 0.0
  %7600 = vmatprep.subr.mxu0 0.0
  %7601 = vmatpush2.msra.mxu0 0.0
  %7602 = vmatprep.subr.mxu0 0.0
  %7603 = vmatpush2.msra.mxu0 0.0
  %7604 = vmatprep.mubr.f32.mxu0 0.0
  %7605 = vmatmul.mubr.f32.gmra.mxu0 %v7538
  %v7606 = vpop.f32.mrf.mxu0
  %v7607 = vadd.f32 %v7535, %v7606
  %v7608 = vpop.f32.mrf.mxu0
  %v7609 = vadd.f32 %v7535, %v7608
  %7610 = vdwg.mxu0
  %7611 = vmatprep.subr.mxu0 0.0
  %7612 = vmatpush1.msra.mxu0 0.0
  %7613 = vmatprep.subr.mxu0 0.0
  %7614 = vmatpush1.msra.mxu0 0.0
  %7615 = vmatprep.subr.mxu0 0.0
  %7616 = vmatpush1.msra.mxu0 0.0
  %7617 = vmatprep.subr.mxu0 0.0
  %7618 = vmatpush1.msra.mxu0 0.0
  %7619 = vmatprep.subr.mxu0 0.0
  %7620 = vmatpush1.msra.mxu0 0.0
  %7621 = vmatprep.subr.mxu0 0.0
  %7622 = vmatpush1.msra.mxu0 0.0
  %7623 = vmatprep.subr.mxu0 0.0
  %7624 = vmatpush1.msra.mxu0 0.0
  %7625 = vmatprep.subr.mxu0 0.0
  %7626 = vmatpush1.msra.mxu0 0.0
  %7627 = vmatprep.subr.mxu0 0.0
  %7628 = vmatpush1.msra.mxu0 0.0
  %7629 = vmatprep.subr.mxu0 0.0
  %7630 = vmatpush1.msra.mxu0 0.0
  %7631 = vmatprep.subr.mxu0 0.0
  %7632 = vmatpush1.msra.mxu0 0.0
  %7633 = vmatprep.subr.mxu0 0.0
  %7634 = vmatpush1.msra.mxu0 0.0
  %7635 = vmatprep.subr.mxu0 %v7529
  %7636 = vmatpush1.msra.mxu0 %v7528
  %7637 = vmatprep.subr.mxu0 %v7525
  %7638 = vmatpush1.msra.mxu0 %v7524
  %7639 = vmatprep.subr.mxu0 %v7521
  %7640 = vmatpush1.msra.mxu0 %v7520
  %7641 = vmatprep.subr.mxu0 %v7517
  %7642 = vmatpush1.msra.mxu0 %v7516
  %7643 = vmatprep.subr.mxu0 0.0
  %7644 = vmatpush2.msra.mxu0 0.0
  %7645 = vmatprep.subr.mxu0 0.0
  %7646 = vmatpush2.msra.mxu0 0.0
  %7647 = vmatprep.subr.mxu0 0.0
  %7648 = vmatpush2.msra.mxu0 0.0
  %7649 = vmatprep.subr.mxu0 0.0
  %7650 = vmatpush2.msra.mxu0 0.0
  %7651 = vmatprep.subr.mxu0 0.0
  %7652 = vmatpush2.msra.mxu0 0.0
  %7653 = vmatprep.subr.mxu0 0.0
  %7654 = vmatpush2.msra.mxu0 0.0
  %7655 = vmatprep.subr.mxu0 0.0
  %7656 = vmatpush2.msra.mxu0 0.0
  %7657 = vmatprep.subr.mxu0 0.0
  %7658 = vmatpush2.msra.mxu0 0.0
  %7659 = vmatprep.subr.mxu0 0.0
  %7660 = vmatpush2.msra.mxu0 0.0
  %7661 = vmatprep.subr.mxu0 0.0
  %7662 = vmatpush2.msra.mxu0 0.0
  %7663 = vmatprep.subr.mxu0 0.0
  %7664 = vmatpush2.msra.mxu0 0.0
  %7665 = vmatprep.subr.mxu0 0.0
  %7666 = vmatpush2.msra.mxu0 0.0
  %7667 = vmatprep.subr.mxu0 0.0
  %7668 = vmatpush2.msra.mxu0 0.0
  %7669 = vmatprep.subr.mxu0 0.0
  %7670 = vmatpush2.msra.mxu0 0.0
  %7671 = vmatprep.subr.mxu0 0.0
  %7672 = vmatpush2.msra.mxu0 0.0
  %7673 = vmatprep.subr.mxu0 0.0
  %7674 = vmatpush2.msra.mxu0 0.0
  %7675 = vmatprep.mubr.f32.mxu0 0.0
  %7676 = vmatmul.mubr.f32.gmra.mxu0 %v7538
  %v7677 = vpop.f32.mrf.mxu0
  %v7678 = vadd.f32 %v7535, %v7677
  %v7679 = vpop.f32.mrf.mxu0
  %v7680 = vadd.f32 %v7535, %v7679
  %7681 = vdwg.mxu0
  %7682 = vst [vmem:[%s19] sm:$0xff] %v7607
  %7683 = vst [vmem:[%s19 + $0x8] sm:$0xff] %v7609
  %7684 = vst [vmem:[%s19 + $0x10] sm:$0xff] %v7678
  %7685 = vst [vmem:[%s19 + $0x18] sm:$0xff] %v7680
  // Predicated region
  $region78: #{colorization_forward.1} parent=0 // pred_check
    _
  $region79: #{colorization_forward.1} parent=0 // pred_check_branch
    %7687 = sbr.rel (0) target = $region81
  $region80: #{colorization_forward.1} parent=0 // pred_region
    _
  $region81: #{colorization_forward.1} parent=0 // pred_fallthru
    _
  // Predicated region
  $region82: #{colorization_forward.1} parent=0 // pred_check
    _
  $region83: #{colorization_forward.1} parent=0 // pred_check_branch
    %7689 = sbr.rel (0) target = $region85
  $region84: #{colorization_forward.1} parent=0 // pred_region
    _
  $region85: #{colorization_forward.1} parent=0 // pred_fallthru
    _

</llo_original>
